<compile_context>
chip_gen: v7x
topology: tpu7x:2x2x1
jax: 0.10.0
libtpu: 0.0.40
codegen_flags: <defaults>
</compile_context>

<pallas_src>
import math

import jax
import jax.numpy as jnp
from jax.experimental import pallas as pl
from jax.experimental.pallas import tpu as pltpu


# LSTM matmul input dtype (accumulation is always f32 via preferred_element_type).
MATMUL_DTYPE = jnp.bfloat16


def _round_up(x, m):
    return ((x + m - 1) // m) * m


# -----------------------------------------------------------------------------
# Fused kernel: embedding-seq (T,B,E) -> L stacked LSTM layers -> FC logits.
# PyTorch gate order: i, f, g, o ;  gates = x_t @ W_ih^T + b_ih + h @ W_hh^T + b_hh
# -----------------------------------------------------------------------------
def make_fused_rnn_kernel(num_layers, seq_len):
    def kernel(*refs):
        x_ref = refs[0]                                   # (T, B, E)  MATMUL_DTYPE
        pos = 1
        layer_refs = []
        for _ in range(num_layers):
            layer_refs.append((refs[pos], refs[pos + 1], refs[pos + 2]))
            pos += 3
        h0_ref, c0_ref = refs[pos], refs[pos + 1]          # (L, B, H)  f32
        fcw_ref, fcb_ref = refs[pos + 2], refs[pos + 3]    # (H, Cp), (1, Cp)  f32
        out_ref = refs[pos + 4]                            # (B, Cp)    f32

        B, H = h0_ref.shape[1], h0_ref.shape[2]

        # Hoist all weight / bias loads (and the bias broadcast) out of the time loop.
        layer_gates = []
        for (wih_ref, whh_ref, b_ref) in layer_refs:
            gates = []
            for g in range(4):                             # per-gate blocks: no lane slicing
                gates.append((wih_ref[g], whh_ref[g],
                              jnp.broadcast_to(b_ref[g], (B, H))))
            layer_gates.append(gates)

        h = [h0_ref[l] for l in range(num_layers)]         # f32 carried state
        c = [c0_ref[l] for l in range(num_layers)]

        def lstm_cell(x_in, h_prev, c_prev, gates):
            h_mm = h_prev.astype(x_in.dtype)               # bf16 for MXU, f32 accumulate
            pre = [jnp.dot(x_in, wih, preferred_element_type=jnp.float32)
                   + jnp.dot(h_mm, whh, preferred_element_type=jnp.float32)
                   + b
                   for (wih, whh, b) in gates]             # order: i, f, g, o
            i_g = jax.nn.sigmoid(pre[0])
            f_g = jax.nn.sigmoid(pre[1])
            g_g = jnp.tanh(pre[2])
            o_g = jax.nn.sigmoid(pre[3])
            c_new = f_g * c_prev + i_g * g_g
            h_new = o_g * jnp.tanh(c_new)
            return h_new, c_new

        # Fully unrolled (static, small T) time loop; all intermediates stay in vregs/VMEM.
        for t in range(seq_len):
            layer_in = x_ref[t]                            # (B, E)
            for l in range(num_layers):
                h[l], c[l] = lstm_cell(layer_in, h[l], c[l], layer_gates[l])
                layer_in = h[l].astype(x_ref.dtype)

        # TODO(synk): nn.Dropout(0.5) is stochastic in train mode; eval-mode identity here.
        # FC epilogue fused into the same kernel; output is lane-padded -> unmasked store.
        out_ref[...] = (jnp.dot(h[num_layers - 1], fcw_ref[...],
                                preferred_element_type=jnp.float32)
                        + fcb_ref[...])

    return kernel


# -----------------------------------------------------------------------------
# Full RNNClassifier forward
# -----------------------------------------------------------------------------
def rnn_classifier_forward(token_ids, params, num_layers, hidden_size, hc_key):
    """token_ids: (B, T) int32 -> logits (B, num_classes)."""
    B, T = token_ids.shape
    H = hidden_size
    E = params["embed_weight"].shape[1]
    C = params["fc_weight"].shape[0]

    B_pad = _round_up(max(B, 8), 8)          # sublane alignment
    C_pad = _round_up(max(C, 128), 128)      # lane-dense output store

    # Embedding lookup, directly time-major (folds the transpose into the gather).
    x = params["embed_weight"][token_ids.T]                       # (T, B, E) f32
    x = jnp.pad(x, ((0, 0), (0, B_pad - B), (0, 0))).astype(MATMUL_DTYPE)

    # h0/c0 = xavier_normal_ on shape (L, B, H): fan_in = B*H, fan_out = L*H (PyTorch
    # semantics), resampled from hc_key each forward like the reference module.
    fan_in, fan_out = B * H, num_layers * H
    std = math.sqrt(2.0 / (fan_in + fan_out))
    kh, kc = jax.random.split(hc_key)
    h0 = std * jax.random.normal(kh, (num_layers, B, H), jnp.float32)
    c0 = std * jax.random.normal(kc, (num_layers, B, H), jnp.float32)
    h0 = jnp.pad(h0, ((0, 0), (0, B_pad - B), (0, 0)))
    c0 = jnp.pad(c0, ((0, 0), (0, B_pad - B), (0, 0)))

    # Restructure LSTM weights per gate: (4H, in) -> (4, in, H); bias = b_ih + b_hh -> (4,1,H).
    layer_inputs = []
    for l in range(num_layers):
        in_sz = E if l == 0 else H
        w_ih = params[f"w_ih_l{l}"].reshape(4, H, in_sz).transpose(0, 2, 1)
        w_hh = params[f"w_hh_l{l}"].reshape(4, H, H).transpose(0, 2, 1)
        b = (params[f"b_ih_l{l}"] + params[f"b_hh_l{l}"]).reshape(4, 1, H)
        layer_inputs += [w_ih.astype(MATMUL_DTYPE),
                         w_hh.astype(MATMUL_DTYPE),
                         b.astype(jnp.float32)]

    # FC weights, transposed and lane-padded to 128.
    fc_w = jnp.zeros((H, C_pad), jnp.float32).at[:, :C].set(params["fc_weight"].T)
    fc_b = jnp.zeros((1, C_pad), jnp.float32).at[:, :C].set(params["fc_bias"])

    operands = [x] + layer_inputs + [h0, c0, fc_w, fc_b]
    vmem_spec = pl.BlockSpec(memory_space=pltpu.MemorySpace.VMEM)

    logits_pad = pl.pallas_call(
        make_fused_rnn_kernel(num_layers, T),
        out_shape=jax.ShapeDtypeStruct((B_pad, C_pad), jnp.float32),
        in_specs=[vmem_spec] * len(operands),
        out_specs=vmem_spec,
        # No grid: single invocation; everything is resident in VMEM (a few KiB here).
        # TODO(synk): when scaling B/H, add a leading "parallel" batch grid axis (v7x has
        # 2 TensorCores) and budget weight VMEM (bf16 + vmem_limit_bytes) under v7x's 64 MiB.
    )(*operands)

    return logits_pad[:B, :C]


# -----------------------------------------------------------------------------
# Deterministic parameter construction (matches nn.Module shapes / init style)
# -----------------------------------------------------------------------------
def make_params(key, voca_size, embed_size, hidden_size, num_layers, num_classes):
    keys = jax.random.split(key, 4 + 4 * num_layers)
    params = {}
    # Embedding weight is supplied externally in the module; synthesize one.
    params["embed_weight"] = jax.random.normal(keys[0], (voca_size, embed_size),
                                               jnp.float32)
    # fc: normal(0, 0.01) as in init_weights()
    params["fc_weight"] = 0.01 * jax.random.normal(keys[1], (num_classes, hidden_size),
                                                   jnp.float32)
    params["fc_bias"] = 0.01 * jax.random.normal(keys[2], (num_classes,), jnp.float32)
    # LSTM: PyTorch default uniform(-1/sqrt(H), 1/sqrt(H))
    bound = 1.0 / math.sqrt(hidden_size)
    for layer in range(num_layers):
        in_sz = embed_size if layer == 0 else hidden_size
        k = jax.random.split(keys[4 + layer], 4)
        params[f"w_ih_l{layer}"] = jax.random.uniform(
            k[0], (4 * hidden_size, in_sz), jnp.float32, -bound, bound)
        params[f"w_hh_l{layer}"] = jax.random.uniform(
            k[1], (4 * hidden_size, hidden_size), jnp.float32, -bound, bound)
        params[f"b_ih_l{layer}"] = jax.random.uniform(
            k[2], (4 * hidden_size,), jnp.float32, -bound, bound)
        params[f"b_hh_l{layer}"] = jax.random.uniform(
            k[3], (4 * hidden_size,), jnp.float32, -bound, bound)
    return params


if __name__ == "__main__":
    VOCA, EMBED, HIDDEN, LAYERS, CLASSES = 50, 16, 32, 2, 5
    B, T = 2, 8

    key = jax.random.PRNGKey(0)
    k_params, k_ids, k_hc = jax.random.split(key, 3)

    params = make_params(k_params, VOCA, EMBED, HIDDEN, LAYERS, CLASSES)
    token_ids = jax.random.randint(k_ids, (B, T), 0, VOCA, dtype=jnp.int32)

    logits = rnn_classifier_forward(token_ids, params, LAYERS, HIDDEN, k_hc)
    logits = jax.block_until_ready(logits)
    assert logits.shape == (B, CLASSES)
    assert bool(jnp.all(jnp.isfinite(logits)))
    print("KERNEL_OK")
</pallas_src>

<mosaic_0001>
module attributes {stable_mosaic.version = 11 : i64} {
  func.func @kernel(%arg0: memref<8x8x16xbf16, #tpu.memory_space<vmem>>, %arg1: memref<4x16x32xbf16, #tpu.memory_space<vmem>>, %arg2: memref<4x32x32xbf16, #tpu.memory_space<vmem>>, %arg3: memref<4x1x32xf32, #tpu.memory_space<vmem>>, %arg4: memref<4x32x32xbf16, #tpu.memory_space<vmem>>, %arg5: memref<4x32x32xbf16, #tpu.memory_space<vmem>>, %arg6: memref<4x1x32xf32, #tpu.memory_space<vmem>>, %arg7: memref<2x8x32xf32, #tpu.memory_space<vmem>>, %arg8: memref<2x8x32xf32, #tpu.memory_space<vmem>>, %arg9: memref<32x128xf32, #tpu.memory_space<vmem>>, %arg10: memref<1x128xf32, #tpu.memory_space<vmem>>, %arg11: memref<8x128xf32, #tpu.memory_space<vmem>>) attributes {dimension_semantics = [], scalar_prefetch = 0 : i64, scratch_operands = 0 : i64, tpu.core_type = #tpu.core_type<tc>} {
    %c0 = arith.constant 0 : index
    %c0_0 = arith.constant 0 : index
    %c0_1 = arith.constant 0 : index
    %0 = vector.load %arg1[%c0, %c0_0, %c0_1] : memref<4x16x32xbf16, #tpu.memory_space<vmem>>, vector<1x16x32xbf16>
    %1 = vector.shape_cast %0 : vector<1x16x32xbf16> to vector<16x32xbf16>
    %c0_2 = arith.constant 0 : index
    %c0_3 = arith.constant 0 : index
    %c0_4 = arith.constant 0 : index
    %2 = vector.load %arg2[%c0_2, %c0_3, %c0_4] : memref<4x32x32xbf16, #tpu.memory_space<vmem>>, vector<1x32x32xbf16>
    %3 = vector.shape_cast %2 : vector<1x32x32xbf16> to vector<32x32xbf16>
    %c0_5 = arith.constant 0 : index
    %c0_6 = arith.constant 0 : index
    %c0_7 = arith.constant 0 : index
    %4 = vector.load %arg3[%c0_5, %c0_6, %c0_7] : memref<4x1x32xf32, #tpu.memory_space<vmem>>, vector<1x1x32xf32>
    %5 = vector.shape_cast %4 : vector<1x1x32xf32> to vector<1x32xf32>
    %6 = vector.shape_cast %5 : vector<1x32xf32> to vector<1x32xf32>
    %7 = vector.broadcast %6 : vector<1x32xf32> to vector<8x32xf32>
    %c1 = arith.constant 1 : index
    %c0_8 = arith.constant 0 : index
    %c0_9 = arith.constant 0 : index
    %8 = vector.load %arg1[%c1, %c0_8, %c0_9] : memref<4x16x32xbf16, #tpu.memory_space<vmem>>, vector<1x16x32xbf16>
    %9 = vector.shape_cast %8 : vector<1x16x32xbf16> to vector<16x32xbf16>
    %c1_10 = arith.constant 1 : index
    %c0_11 = arith.constant 0 : index
    %c0_12 = arith.constant 0 : index
    %10 = vector.load %arg2[%c1_10, %c0_11, %c0_12] : memref<4x32x32xbf16, #tpu.memory_space<vmem>>, vector<1x32x32xbf16>
    %11 = vector.shape_cast %10 : vector<1x32x32xbf16> to vector<32x32xbf16>
    %c1_13 = arith.constant 1 : index
    %c0_14 = arith.constant 0 : index
    %c0_15 = arith.constant 0 : index
    %12 = vector.load %arg3[%c1_13, %c0_14, %c0_15] : memref<4x1x32xf32, #tpu.memory_space<vmem>>, vector<1x1x32xf32>
    %13 = vector.shape_cast %12 : vector<1x1x32xf32> to vector<1x32xf32>
    %14 = vector.shape_cast %13 : vector<1x32xf32> to vector<1x32xf32>
    %15 = vector.broadcast %14 : vector<1x32xf32> to vector<8x32xf32>
    %c2 = arith.constant 2 : index
    %c0_16 = arith.constant 0 : index
    %c0_17 = arith.constant 0 : index
    %16 = vector.load %arg1[%c2, %c0_16, %c0_17] : memref<4x16x32xbf16, #tpu.memory_space<vmem>>, vector<1x16x32xbf16>
    %17 = vector.shape_cast %16 : vector<1x16x32xbf16> to vector<16x32xbf16>
    %c2_18 = arith.constant 2 : index
    %c0_19 = arith.constant 0 : index
    %c0_20 = arith.constant 0 : index
    %18 = vector.load %arg2[%c2_18, %c0_19, %c0_20] : memref<4x32x32xbf16, #tpu.memory_space<vmem>>, vector<1x32x32xbf16>
    %19 = vector.shape_cast %18 : vector<1x32x32xbf16> to vector<32x32xbf16>
    %c2_21 = arith.constant 2 : index
    %c0_22 = arith.constant 0 : index
    %c0_23 = arith.constant 0 : index
    %20 = vector.load %arg3[%c2_21, %c0_22, %c0_23] : memref<4x1x32xf32, #tpu.memory_space<vmem>>, vector<1x1x32xf32>
    %21 = vector.shape_cast %20 : vector<1x1x32xf32> to vector<1x32xf32>
    %22 = vector.shape_cast %21 : vector<1x32xf32> to vector<1x32xf32>
    %23 = vector.broadcast %22 : vector<1x32xf32> to vector<8x32xf32>
    %c3 = arith.constant 3 : index
    %c0_24 = arith.constant 0 : index
    %c0_25 = arith.constant 0 : index
    %24 = vector.load %arg1[%c3, %c0_24, %c0_25] : memref<4x16x32xbf16, #tpu.memory_space<vmem>>, vector<1x16x32xbf16>
    %25 = vector.shape_cast %24 : vector<1x16x32xbf16> to vector<16x32xbf16>
    %c3_26 = arith.constant 3 : index
    %c0_27 = arith.constant 0 : index
    %c0_28 = arith.constant 0 : index
    %26 = vector.load %arg2[%c3_26, %c0_27, %c0_28] : memref<4x32x32xbf16, #tpu.memory_space<vmem>>, vector<1x32x32xbf16>
    %27 = vector.shape_cast %26 : vector<1x32x32xbf16> to vector<32x32xbf16>
    %c3_29 = arith.constant 3 : index
    %c0_30 = arith.constant 0 : index
    %c0_31 = arith.constant 0 : index
    %28 = vector.load %arg3[%c3_29, %c0_30, %c0_31] : memref<4x1x32xf32, #tpu.memory_space<vmem>>, vector<1x1x32xf32>
    %29 = vector.shape_cast %28 : vector<1x1x32xf32> to vector<1x32xf32>
    %30 = vector.shape_cast %29 : vector<1x32xf32> to vector<1x32xf32>
    %31 = vector.broadcast %30 : vector<1x32xf32> to vector<8x32xf32>
    %c0_32 = arith.constant 0 : index
    %c0_33 = arith.constant 0 : index
    %c0_34 = arith.constant 0 : index
    %32 = vector.load %arg4[%c0_32, %c0_33, %c0_34] : memref<4x32x32xbf16, #tpu.memory_space<vmem>>, vector<1x32x32xbf16>
    %33 = vector.shape_cast %32 : vector<1x32x32xbf16> to vector<32x32xbf16>
    %c0_35 = arith.constant 0 : index
    %c0_36 = arith.constant 0 : index
    %c0_37 = arith.constant 0 : index
    %34 = vector.load %arg5[%c0_35, %c0_36, %c0_37] : memref<4x32x32xbf16, #tpu.memory_space<vmem>>, vector<1x32x32xbf16>
    %35 = vector.shape_cast %34 : vector<1x32x32xbf16> to vector<32x32xbf16>
    %c0_38 = arith.constant 0 : index
    %c0_39 = arith.constant 0 : index
    %c0_40 = arith.constant 0 : index
    %36 = vector.load %arg6[%c0_38, %c0_39, %c0_40] : memref<4x1x32xf32, #tpu.memory_space<vmem>>, vector<1x1x32xf32>
    %37 = vector.shape_cast %36 : vector<1x1x32xf32> to vector<1x32xf32>
    %38 = vector.shape_cast %37 : vector<1x32xf32> to vector<1x32xf32>
    %39 = vector.broadcast %38 : vector<1x32xf32> to vector<8x32xf32>
    %c1_41 = arith.constant 1 : index
    %c0_42 = arith.constant 0 : index
    %c0_43 = arith.constant 0 : index
    %40 = vector.load %arg4[%c1_41, %c0_42, %c0_43] : memref<4x32x32xbf16, #tpu.memory_space<vmem>>, vector<1x32x32xbf16>
    %41 = vector.shape_cast %40 : vector<1x32x32xbf16> to vector<32x32xbf16>
    %c1_44 = arith.constant 1 : index
    %c0_45 = arith.constant 0 : index
    %c0_46 = arith.constant 0 : index
    %42 = vector.load %arg5[%c1_44, %c0_45, %c0_46] : memref<4x32x32xbf16, #tpu.memory_space<vmem>>, vector<1x32x32xbf16>
    %43 = vector.shape_cast %42 : vector<1x32x32xbf16> to vector<32x32xbf16>
    %c1_47 = arith.constant 1 : index
    %c0_48 = arith.constant 0 : index
    %c0_49 = arith.constant 0 : index
    %44 = vector.load %arg6[%c1_47, %c0_48, %c0_49] : memref<4x1x32xf32, #tpu.memory_space<vmem>>, vector<1x1x32xf32>
    %45 = vector.shape_cast %44 : vector<1x1x32xf32> to vector<1x32xf32>
    %46 = vector.shape_cast %45 : vector<1x32xf32> to vector<1x32xf32>
    %47 = vector.broadcast %46 : vector<1x32xf32> to vector<8x32xf32>
    %c2_50 = arith.constant 2 : index
    %c0_51 = arith.constant 0 : index
    %c0_52 = arith.constant 0 : index
    %48 = vector.load %arg4[%c2_50, %c0_51, %c0_52] : memref<4x32x32xbf16, #tpu.memory_space<vmem>>, vector<1x32x32xbf16>
    %49 = vector.shape_cast %48 : vector<1x32x32xbf16> to vector<32x32xbf16>
    %c2_53 = arith.constant 2 : index
    %c0_54 = arith.constant 0 : index
    %c0_55 = arith.constant 0 : index
    %50 = vector.load %arg5[%c2_53, %c0_54, %c0_55] : memref<4x32x32xbf16, #tpu.memory_space<vmem>>, vector<1x32x32xbf16>
    %51 = vector.shape_cast %50 : vector<1x32x32xbf16> to vector<32x32xbf16>
    %c2_56 = arith.constant 2 : index
    %c0_57 = arith.constant 0 : index
    %c0_58 = arith.constant 0 : index
    %52 = vector.load %arg6[%c2_56, %c0_57, %c0_58] : memref<4x1x32xf32, #tpu.memory_space<vmem>>, vector<1x1x32xf32>
    %53 = vector.shape_cast %52 : vector<1x1x32xf32> to vector<1x32xf32>
    %54 = vector.shape_cast %53 : vector<1x32xf32> to vector<1x32xf32>
    %55 = vector.broadcast %54 : vector<1x32xf32> to vector<8x32xf32>
    %c3_59 = arith.constant 3 : index
    %c0_60 = arith.constant 0 : index
    %c0_61 = arith.constant 0 : index
    %56 = vector.load %arg4[%c3_59, %c0_60, %c0_61] : memref<4x32x32xbf16, #tpu.memory_space<vmem>>, vector<1x32x32xbf16>
    %57 = vector.shape_cast %56 : vector<1x32x32xbf16> to vector<32x32xbf16>
    %c3_62 = arith.constant 3 : index
    %c0_63 = arith.constant 0 : index
    %c0_64 = arith.constant 0 : index
    %58 = vector.load %arg5[%c3_62, %c0_63, %c0_64] : memref<4x32x32xbf16, #tpu.memory_space<vmem>>, vector<1x32x32xbf16>
    %59 = vector.shape_cast %58 : vector<1x32x32xbf16> to vector<32x32xbf16>
    %c3_65 = arith.constant 3 : index
    %c0_66 = arith.constant 0 : index
    %c0_67 = arith.constant 0 : index
    %60 = vector.load %arg6[%c3_65, %c0_66, %c0_67] : memref<4x1x32xf32, #tpu.memory_space<vmem>>, vector<1x1x32xf32>
    %61 = vector.shape_cast %60 : vector<1x1x32xf32> to vector<1x32xf32>
    %62 = vector.shape_cast %61 : vector<1x32xf32> to vector<1x32xf32>
    %63 = vector.broadcast %62 : vector<1x32xf32> to vector<8x32xf32>
    %c0_68 = arith.constant 0 : index
    %c0_69 = arith.constant 0 : index
    %c0_70 = arith.constant 0 : index
    %64 = vector.load %arg7[%c0_68, %c0_69, %c0_70] : memref<2x8x32xf32, #tpu.memory_space<vmem>>, vector<1x8x32xf32>
    %65 = vector.shape_cast %64 : vector<1x8x32xf32> to vector<8x32xf32>
    %c1_71 = arith.constant 1 : index
    %c0_72 = arith.constant 0 : index
    %c0_73 = arith.constant 0 : index
    %66 = vector.load %arg7[%c1_71, %c0_72, %c0_73] : memref<2x8x32xf32, #tpu.memory_space<vmem>>, vector<1x8x32xf32>
    %67 = vector.shape_cast %66 : vector<1x8x32xf32> to vector<8x32xf32>
    %c0_74 = arith.constant 0 : index
    %c0_75 = arith.constant 0 : index
    %c0_76 = arith.constant 0 : index
    %68 = vector.load %arg8[%c0_74, %c0_75, %c0_76] : memref<2x8x32xf32, #tpu.memory_space<vmem>>, vector<1x8x32xf32>
    %69 = vector.shape_cast %68 : vector<1x8x32xf32> to vector<8x32xf32>
    %c1_77 = arith.constant 1 : index
    %c0_78 = arith.constant 0 : index
    %c0_79 = arith.constant 0 : index
    %70 = vector.load %arg8[%c1_77, %c0_78, %c0_79] : memref<2x8x32xf32, #tpu.memory_space<vmem>>, vector<1x8x32xf32>
    %71 = vector.shape_cast %70 : vector<1x8x32xf32> to vector<8x32xf32>
    %c0_80 = arith.constant 0 : index
    %c0_81 = arith.constant 0 : index
    %c0_82 = arith.constant 0 : index
    %72 = vector.load %arg0[%c0_80, %c0_81, %c0_82] : memref<8x8x16xbf16, #tpu.memory_space<vmem>>, vector<1x8x16xbf16>
    %73 = vector.shape_cast %72 : vector<1x8x16xbf16> to vector<8x16xbf16>
    %74 = arith.truncf %65 : vector<8x32xf32> to vector<8x32xbf16>
    %cst = arith.constant dense<0.000000e+00> : vector<8x32xf32>
    %75 = tpu.matmul %73, %1, %cst {dimension_numbers = #tpu.dot_dimension_numbers<[1], [0], [0], [1], [0, 0, 1, 1], [], []>} : vector<8x16xbf16>, vector<16x32xbf16>, vector<8x32xf32> -> vector<8x32xf32>
    %cst_83 = arith.constant dense<0.000000e+00> : vector<8x32xf32>
    %76 = tpu.matmul %74, %3, %cst_83 {dimension_numbers = #tpu.dot_dimension_numbers<[1], [0], [0], [1], [0, 0, 1, 1], [], []>} : vector<8x32xbf16>, vector<32x32xbf16>, vector<8x32xf32> -> vector<8x32xf32>
    %77 = arith.addf %75, %76 : vector<8x32xf32>
    %78 = arith.addf %77, %7 : vector<8x32xf32>
    %cst_84 = arith.constant dense<0.000000e+00> : vector<8x32xf32>
    %79 = tpu.matmul %73, %9, %cst_84 {dimension_numbers = #tpu.dot_dimension_numbers<[1], [0], [0], [1], [0, 0, 1, 1], [], []>} : vector<8x16xbf16>, vector<16x32xbf16>, vector<8x32xf32> -> vector<8x32xf32>
    %cst_85 = arith.constant dense<0.000000e+00> : vector<8x32xf32>
    %80 = tpu.matmul %74, %11, %cst_85 {dimension_numbers = #tpu.dot_dimension_numbers<[1], [0], [0], [1], [0, 0, 1, 1], [], []>} : vector<8x32xbf16>, vector<32x32xbf16>, vector<8x32xf32> -> vector<8x32xf32>
    %81 = arith.addf %79, %80 : vector<8x32xf32>
    %82 = arith.addf %81, %15 : vector<8x32xf32>
    %cst_86 = arith.constant dense<0.000000e+00> : vector<8x32xf32>
    %83 = tpu.matmul %73, %17, %cst_86 {dimension_numbers = #tpu.dot_dimension_numbers<[1], [0], [0], [1], [0, 0, 1, 1], [], []>} : vector<8x16xbf16>, vector<16x32xbf16>, vector<8x32xf32> -> vector<8x32xf32>
    %cst_87 = arith.constant dense<0.000000e+00> : vector<8x32xf32>
    %84 = tpu.matmul %74, %19, %cst_87 {dimension_numbers = #tpu.dot_dimension_numbers<[1], [0], [0], [1], [0, 0, 1, 1], [], []>} : vector<8x32xbf16>, vector<32x32xbf16>, vector<8x32xf32> -> vector<8x32xf32>
    %85 = arith.addf %83, %84 : vector<8x32xf32>
    %86 = arith.addf %85, %23 : vector<8x32xf32>
    %cst_88 = arith.constant dense<0.000000e+00> : vector<8x32xf32>
    %87 = tpu.matmul %73, %25, %cst_88 {dimension_numbers = #tpu.dot_dimension_numbers<[1], [0], [0], [1], [0, 0, 1, 1], [], []>} : vector<8x16xbf16>, vector<16x32xbf16>, vector<8x32xf32> -> vector<8x32xf32>
    %cst_89 = arith.constant dense<0.000000e+00> : vector<8x32xf32>
    %88 = tpu.matmul %74, %27, %cst_89 {dimension_numbers = #tpu.dot_dimension_numbers<[1], [0], [0], [1], [0, 0, 1, 1], [], []>} : vector<8x32xbf16>, vector<32x32xbf16>, vector<8x32xf32> -> vector<8x32xf32>
    %89 = arith.addf %87, %88 : vector<8x32xf32>
    %90 = arith.addf %89, %31 : vector<8x32xf32>
    %91 = arith.negf %78 : vector<8x32xf32>
    %92 = math.exp %91 : vector<8x32xf32>
    %cst_90 = arith.constant 1.000000e+00 : f32
    %93 = vector.broadcast %cst_90 : f32 to vector<8x32xf32>
    %94 = arith.addf %93, %92 : vector<8x32xf32>
    %95 = arith.divf %93, %94 : vector<8x32xf32>
    %96 = arith.negf %82 : vector<8x32xf32>
    %97 = math.exp %96 : vector<8x32xf32>
    %cst_91 = arith.constant 1.000000e+00 : f32
    %98 = vector.broadcast %cst_91 : f32 to vector<8x32xf32>
    %99 = arith.addf %98, %97 : vector<8x32xf32>
    %100 = arith.divf %98, %99 : vector<8x32xf32>
    %101 = math.tanh %86 : vector<8x32xf32>
    %102 = arith.negf %90 : vector<8x32xf32>
    %103 = math.exp %102 : vector<8x32xf32>
    %cst_92 = arith.constant 1.000000e+00 : f32
    %104 = vector.broadcast %cst_92 : f32 to vector<8x32xf32>
    %105 = arith.addf %104, %103 : vector<8x32xf32>
    %106 = arith.divf %104, %105 : vector<8x32xf32>
    %107 = arith.mulf %100, %69 : vector<8x32xf32>
    %108 = arith.mulf %95, %101 : vector<8x32xf32>
    %109 = arith.addf %107, %108 : vector<8x32xf32>
    %110 = math.tanh %109 : vector<8x32xf32>
    %111 = arith.mulf %106, %110 : vector<8x32xf32>
    %112 = arith.truncf %111 : vector<8x32xf32> to vector<8x32xbf16>
    %113 = arith.truncf %67 : vector<8x32xf32> to vector<8x32xbf16>
    %cst_93 = arith.constant dense<0.000000e+00> : vector<8x32xf32>
    %114 = tpu.matmul %112, %33, %cst_93 {dimension_numbers = #tpu.dot_dimension_numbers<[1], [0], [0], [1], [0, 0, 1, 1], [], []>} : vector<8x32xbf16>, vector<32x32xbf16>, vector<8x32xf32> -> vector<8x32xf32>
    %cst_94 = arith.constant dense<0.000000e+00> : vector<8x32xf32>
    %115 = tpu.matmul %113, %35, %cst_94 {dimension_numbers = #tpu.dot_dimension_numbers<[1], [0], [0], [1], [0, 0, 1, 1], [], []>} : vector<8x32xbf16>, vector<32x32xbf16>, vector<8x32xf32> -> vector<8x32xf32>
    %116 = arith.addf %114, %115 : vector<8x32xf32>
    %117 = arith.addf %116, %39 : vector<8x32xf32>
    %cst_95 = arith.constant dense<0.000000e+00> : vector<8x32xf32>
    %118 = tpu.matmul %112, %41, %cst_95 {dimension_numbers = #tpu.dot_dimension_numbers<[1], [0], [0], [1], [0, 0, 1, 1], [], []>} : vector<8x32xbf16>, vector<32x32xbf16>, vector<8x32xf32> -> vector<8x32xf32>
    %cst_96 = arith.constant dense<0.000000e+00> : vector<8x32xf32>
    %119 = tpu.matmul %113, %43, %cst_96 {dimension_numbers = #tpu.dot_dimension_numbers<[1], [0], [0], [1], [0, 0, 1, 1], [], []>} : vector<8x32xbf16>, vector<32x32xbf16>, vector<8x32xf32> -> vector<8x32xf32>
    %120 = arith.addf %118, %119 : vector<8x32xf32>
    %121 = arith.addf %120, %47 : vector<8x32xf32>
    %cst_97 = arith.constant dense<0.000000e+00> : vector<8x32xf32>
    %122 = tpu.matmul %112, %49, %cst_97 {dimension_numbers = #tpu.dot_dimension_numbers<[1], [0], [0], [1], [0, 0, 1, 1], [], []>} : vector<8x32xbf16>, vector<32x32xbf16>, vector<8x32xf32> -> vector<8x32xf32>
    %cst_98 = arith.constant dense<0.000000e+00> : vector<8x32xf32>
    %123 = tpu.matmul %113, %51, %cst_98 {dimension_numbers = #tpu.dot_dimension_numbers<[1], [0], [0], [1], [0, 0, 1, 1], [], []>} : vector<8x32xbf16>, vector<32x32xbf16>, vector<8x32xf32> -> vector<8x32xf32>
    %124 = arith.addf %122, %123 : vector<8x32xf32>
    %125 = arith.addf %124, %55 : vector<8x32xf32>
    %cst_99 = arith.constant dense<0.000000e+00> : vector<8x32xf32>
    %126 = tpu.matmul %112, %57, %cst_99 {dimension_numbers = #tpu.dot_dimension_numbers<[1], [0], [0], [1], [0, 0, 1, 1], [], []>} : vector<8x32xbf16>, vector<32x32xbf16>, vector<8x32xf32> -> vector<8x32xf32>
    %cst_100 = arith.constant dense<0.000000e+00> : vector<8x32xf32>
    %127 = tpu.matmul %113, %59, %cst_100 {dimension_numbers = #tpu.dot_dimension_numbers<[1], [0], [0], [1], [0, 0, 1, 1], [], []>} : vector<8x32xbf16>, vector<32x32xbf16>, vector<8x32xf32> -> vector<8x32xf32>
    %128 = arith.addf %126, %127 : vector<8x32xf32>
    %129 = arith.addf %128, %63 : vector<8x32xf32>
    %130 = arith.negf %117 : vector<8x32xf32>
    %131 = math.exp %130 : vector<8x32xf32>
    %cst_101 = arith.constant 1.000000e+00 : f32
    %132 = vector.broadcast %cst_101 : f32 to vector<8x32xf32>
    %133 = arith.addf %132, %131 : vector<8x32xf32>
    %134 = arith.divf %132, %133 : vector<8x32xf32>
    %135 = arith.negf %121 : vector<8x32xf32>
    %136 = math.exp %135 : vector<8x32xf32>
    %cst_102 = arith.constant 1.000000e+00 : f32
    %137 = vector.broadcast %cst_102 : f32 to vector<8x32xf32>
    %138 = arith.addf %137, %136 : vector<8x32xf32>
    %139 = arith.divf %137, %138 : vector<8x32xf32>
    %140 = math.tanh %125 : vector<8x32xf32>
    %141 = arith.negf %129 : vector<8x32xf32>
    %142 = math.exp %141 : vector<8x32xf32>
    %cst_103 = arith.constant 1.000000e+00 : f32
    %143 = vector.broadcast %cst_103 : f32 to vector<8x32xf32>
    %144 = arith.addf %143, %142 : vector<8x32xf32>
    %145 = arith.divf %143, %144 : vector<8x32xf32>
    %146 = arith.mulf %139, %71 : vector<8x32xf32>
    %147 = arith.mulf %134, %140 : vector<8x32xf32>
    %148 = arith.addf %146, %147 : vector<8x32xf32>
    %149 = math.tanh %148 : vector<8x32xf32>
    %150 = arith.mulf %145, %149 : vector<8x32xf32>
    %c1_104 = arith.constant 1 : index
    %c0_105 = arith.constant 0 : index
    %c0_106 = arith.constant 0 : index
    %151 = vector.load %arg0[%c1_104, %c0_105, %c0_106] : memref<8x8x16xbf16, #tpu.memory_space<vmem>>, vector<1x8x16xbf16>
    %152 = vector.shape_cast %151 : vector<1x8x16xbf16> to vector<8x16xbf16>
    %153 = arith.truncf %111 : vector<8x32xf32> to vector<8x32xbf16>
    %cst_107 = arith.constant dense<0.000000e+00> : vector<8x32xf32>
    %154 = tpu.matmul %152, %1, %cst_107 {dimension_numbers = #tpu.dot_dimension_numbers<[1], [0], [0], [1], [0, 0, 1, 1], [], []>} : vector<8x16xbf16>, vector<16x32xbf16>, vector<8x32xf32> -> vector<8x32xf32>
    %cst_108 = arith.constant dense<0.000000e+00> : vector<8x32xf32>
    %155 = tpu.matmul %153, %3, %cst_108 {dimension_numbers = #tpu.dot_dimension_numbers<[1], [0], [0], [1], [0, 0, 1, 1], [], []>} : vector<8x32xbf16>, vector<32x32xbf16>, vector<8x32xf32> -> vector<8x32xf32>
    %156 = arith.addf %154, %155 : vector<8x32xf32>
    %157 = arith.addf %156, %7 : vector<8x32xf32>
    %cst_109 = arith.constant dense<0.000000e+00> : vector<8x32xf32>
    %158 = tpu.matmul %152, %9, %cst_109 {dimension_numbers = #tpu.dot_dimension_numbers<[1], [0], [0], [1], [0, 0, 1, 1], [], []>} : vector<8x16xbf16>, vector<16x32xbf16>, vector<8x32xf32> -> vector<8x32xf32>
    %cst_110 = arith.constant dense<0.000000e+00> : vector<8x32xf32>
    %159 = tpu.matmul %153, %11, %cst_110 {dimension_numbers = #tpu.dot_dimension_numbers<[1], [0], [0], [1], [0, 0, 1, 1], [], []>} : vector<8x32xbf16>, vector<32x32xbf16>, vector<8x32xf32> -> vector<8x32xf32>
    %160 = arith.addf %158, %159 : vector<8x32xf32>
    %161 = arith.addf %160, %15 : vector<8x32xf32>
    %cst_111 = arith.constant dense<0.000000e+00> : vector<8x32xf32>
    %162 = tpu.matmul %152, %17, %cst_111 {dimension_numbers = #tpu.dot_dimension_numbers<[1], [0], [0], [1], [0, 0, 1, 1], [], []>} : vector<8x16xbf16>, vector<16x32xbf16>, vector<8x32xf32> -> vector<8x32xf32>
    %cst_112 = arith.constant dense<0.000000e+00> : vector<8x32xf32>
    %163 = tpu.matmul %153, %19, %cst_112 {dimension_numbers = #tpu.dot_dimension_numbers<[1], [0], [0], [1], [0, 0, 1, 1], [], []>} : vector<8x32xbf16>, vector<32x32xbf16>, vector<8x32xf32> -> vector<8x32xf32>
    %164 = arith.addf %162, %163 : vector<8x32xf32>
    %165 = arith.addf %164, %23 : vector<8x32xf32>
    %cst_113 = arith.constant dense<0.000000e+00> : vector<8x32xf32>
    %166 = tpu.matmul %152, %25, %cst_113 {dimension_numbers = #tpu.dot_dimension_numbers<[1], [0], [0], [1], [0, 0, 1, 1], [], []>} : vector<8x16xbf16>, vector<16x32xbf16>, vector<8x32xf32> -> vector<8x32xf32>
    %cst_114 = arith.constant dense<0.000000e+00> : vector<8x32xf32>
    %167 = tpu.matmul %153, %27, %cst_114 {dimension_numbers = #tpu.dot_dimension_numbers<[1], [0], [0], [1], [0, 0, 1, 1], [], []>} : vector<8x32xbf16>, vector<32x32xbf16>, vector<8x32xf32> -> vector<8x32xf32>
    %168 = arith.addf %166, %167 : vector<8x32xf32>
    %169 = arith.addf %168, %31 : vector<8x32xf32>
    %170 = arith.negf %157 : vector<8x32xf32>
    %171 = math.exp %170 : vector<8x32xf32>
    %cst_115 = arith.constant 1.000000e+00 : f32
    %172 = vector.broadcast %cst_115 : f32 to vector<8x32xf32>
    %173 = arith.addf %172, %171 : vector<8x32xf32>
    %174 = arith.divf %172, %173 : vector<8x32xf32>
    %175 = arith.negf %161 : vector<8x32xf32>
    %176 = math.exp %175 : vector<8x32xf32>
    %cst_116 = arith.constant 1.000000e+00 : f32
    %177 = vector.broadcast %cst_116 : f32 to vector<8x32xf32>
    %178 = arith.addf %177, %176 : vector<8x32xf32>
    %179 = arith.divf %177, %178 : vector<8x32xf32>
    %180 = math.tanh %165 : vector<8x32xf32>
    %181 = arith.negf %169 : vector<8x32xf32>
    %182 = math.exp %181 : vector<8x32xf32>
    %cst_117 = arith.constant 1.000000e+00 : f32
    %183 = vector.broadcast %cst_117 : f32 to vector<8x32xf32>
    %184 = arith.addf %183, %182 : vector<8x32xf32>
    %185 = arith.divf %183, %184 : vector<8x32xf32>
    %186 = arith.mulf %179, %109 : vector<8x32xf32>
    %187 = arith.mulf %174, %180 : vector<8x32xf32>
    %188 = arith.addf %186, %187 : vector<8x32xf32>
    %189 = math.tanh %188 : vector<8x32xf32>
    %190 = arith.mulf %185, %189 : vector<8x32xf32>
    %191 = arith.truncf %190 : vector<8x32xf32> to vector<8x32xbf16>
    %192 = arith.truncf %150 : vector<8x32xf32> to vector<8x32xbf16>
    %cst_118 = arith.constant dense<0.000000e+00> : vector<8x32xf32>
    %193 = tpu.matmul %191, %33, %cst_118 {dimension_numbers = #tpu.dot_dimension_numbers<[1], [0], [0], [1], [0, 0, 1, 1], [], []>} : vector<8x32xbf16>, vector<32x32xbf16>, vector<8x32xf32> -> vector<8x32xf32>
    %cst_119 = arith.constant dense<0.000000e+00> : vector<8x32xf32>
    %194 = tpu.matmul %192, %35, %cst_119 {dimension_numbers = #tpu.dot_dimension_numbers<[1], [0], [0], [1], [0, 0, 1, 1], [], []>} : vector<8x32xbf16>, vector<32x32xbf16>, vector<8x32xf32> -> vector<8x32xf32>
    %195 = arith.addf %193, %194 : vector<8x32xf32>
    %196 = arith.addf %195, %39 : vector<8x32xf32>
    %cst_120 = arith.constant dense<0.000000e+00> : vector<8x32xf32>
    %197 = tpu.matmul %191, %41, %cst_120 {dimension_numbers = #tpu.dot_dimension_numbers<[1], [0], [0], [1], [0, 0, 1, 1], [], []>} : vector<8x32xbf16>, vector<32x32xbf16>, vector<8x32xf32> -> vector<8x32xf32>
    %cst_121 = arith.constant dense<0.000000e+00> : vector<8x32xf32>
    %198 = tpu.matmul %192, %43, %cst_121 {dimension_numbers = #tpu.dot_dimension_numbers<[1], [0], [0], [1], [0, 0, 1, 1], [], []>} : vector<8x32xbf16>, vector<32x32xbf16>, vector<8x32xf32> -> vector<8x32xf32>
    %199 = arith.addf %197, %198 : vector<8x32xf32>
    %200 = arith.addf %199, %47 : vector<8x32xf32>
    %cst_122 = arith.constant dense<0.000000e+00> : vector<8x32xf32>
    %201 = tpu.matmul %191, %49, %cst_122 {dimension_numbers = #tpu.dot_dimension_numbers<[1], [0], [0], [1], [0, 0, 1, 1], [], []>} : vector<8x32xbf16>, vector<32x32xbf16>, vector<8x32xf32> -> vector<8x32xf32>
    %cst_123 = arith.constant dense<0.000000e+00> : vector<8x32xf32>
    %202 = tpu.matmul %192, %51, %cst_123 {dimension_numbers = #tpu.dot_dimension_numbers<[1], [0], [0], [1], [0, 0, 1, 1], [], []>} : vector<8x32xbf16>, vector<32x32xbf16>, vector<8x32xf32> -> vector<8x32xf32>
    %203 = arith.addf %201, %202 : vector<8x32xf32>
    %204 = arith.addf %203, %55 : vector<8x32xf32>
    %cst_124 = arith.constant dense<0.000000e+00> : vector<8x32xf32>
    %205 = tpu.matmul %191, %57, %cst_124 {dimension_numbers = #tpu.dot_dimension_numbers<[1], [0], [0], [1], [0, 0, 1, 1], [], []>} : vector<8x32xbf16>, vector<32x32xbf16>, vector<8x32xf32> -> vector<8x32xf32>
    %cst_125 = arith.constant dense<0.000000e+00> : vector<8x32xf32>
    %206 = tpu.matmul %192, %59, %cst_125 {dimension_numbers = #tpu.dot_dimension_numbers<[1], [0], [0], [1], [0, 0, 1, 1], [], []>} : vector<8x32xbf16>, vector<32x32xbf16>, vector<8x32xf32> -> vector<8x32xf32>
    %207 = arith.addf %205, %206 : vector<8x32xf32>
    %208 = arith.addf %207, %63 : vector<8x32xf32>
    %209 = arith.negf %196 : vector<8x32xf32>
    %210 = math.exp %209 : vector<8x32xf32>
    %cst_126 = arith.constant 1.000000e+00 : f32
    %211 = vector.broadcast %cst_126 : f32 to vector<8x32xf32>
    %212 = arith.addf %211, %210 : vector<8x32xf32>
    %213 = arith.divf %211, %212 : vector<8x32xf32>
    %214 = arith.negf %200 : vector<8x32xf32>
    %215 = math.exp %214 : vector<8x32xf32>
    %cst_127 = arith.constant 1.000000e+00 : f32
    %216 = vector.broadcast %cst_127 : f32 to vector<8x32xf32>
    %217 = arith.addf %216, %215 : vector<8x32xf32>
    %218 = arith.divf %216, %217 : vector<8x32xf32>
    %219 = math.tanh %204 : vector<8x32xf32>
    %220 = arith.negf %208 : vector<8x32xf32>
    %221 = math.exp %220 : vector<8x32xf32>
    %cst_128 = arith.constant 1.000000e+00 : f32
    %222 = vector.broadcast %cst_128 : f32 to vector<8x32xf32>
    %223 = arith.addf %222, %221 : vector<8x32xf32>
    %224 = arith.divf %222, %223 : vector<8x32xf32>
    %225 = arith.mulf %218, %148 : vector<8x32xf32>
    %226 = arith.mulf %213, %219 : vector<8x32xf32>
    %227 = arith.addf %225, %226 : vector<8x32xf32>
    %228 = math.tanh %227 : vector<8x32xf32>
    %229 = arith.mulf %224, %228 : vector<8x32xf32>
    %c2_129 = arith.constant 2 : index
    %c0_130 = arith.constant 0 : index
    %c0_131 = arith.constant 0 : index
    %230 = vector.load %arg0[%c2_129, %c0_130, %c0_131] : memref<8x8x16xbf16, #tpu.memory_space<vmem>>, vector<1x8x16xbf16>
    %231 = vector.shape_cast %230 : vector<1x8x16xbf16> to vector<8x16xbf16>
    %232 = arith.truncf %190 : vector<8x32xf32> to vector<8x32xbf16>
    %cst_132 = arith.constant dense<0.000000e+00> : vector<8x32xf32>
    %233 = tpu.matmul %231, %1, %cst_132 {dimension_numbers = #tpu.dot_dimension_numbers<[1], [0], [0], [1], [0, 0, 1, 1], [], []>} : vector<8x16xbf16>, vector<16x32xbf16>, vector<8x32xf32> -> vector<8x32xf32>
    %cst_133 = arith.constant dense<0.000000e+00> : vector<8x32xf32>
    %234 = tpu.matmul %232, %3, %cst_133 {dimension_numbers = #tpu.dot_dimension_numbers<[1], [0], [0], [1], [0, 0, 1, 1], [], []>} : vector<8x32xbf16>, vector<32x32xbf16>, vector<8x32xf32> -> vector<8x32xf32>
    %235 = arith.addf %233, %234 : vector<8x32xf32>
    %236 = arith.addf %235, %7 : vector<8x32xf32>
    %cst_134 = arith.constant dense<0.000000e+00> : vector<8x32xf32>
    %237 = tpu.matmul %231, %9, %cst_134 {dimension_numbers = #tpu.dot_dimension_numbers<[1], [0], [0], [1], [0, 0, 1, 1], [], []>} : vector<8x16xbf16>, vector<16x32xbf16>, vector<8x32xf32> -> vector<8x32xf32>
    %cst_135 = arith.constant dense<0.000000e+00> : vector<8x32xf32>
    %238 = tpu.matmul %232, %11, %cst_135 {dimension_numbers = #tpu.dot_dimension_numbers<[1], [0], [0], [1], [0, 0, 1, 1], [], []>} : vector<8x32xbf16>, vector<32x32xbf16>, vector<8x32xf32> -> vector<8x32xf32>
    %239 = arith.addf %237, %238 : vector<8x32xf32>
    %240 = arith.addf %239, %15 : vector<8x32xf32>
    %cst_136 = arith.constant dense<0.000000e+00> : vector<8x32xf32>
    %241 = tpu.matmul %231, %17, %cst_136 {dimension_numbers = #tpu.dot_dimension_numbers<[1], [0], [0], [1], [0, 0, 1, 1], [], []>} : vector<8x16xbf16>, vector<16x32xbf16>, vector<8x32xf32> -> vector<8x32xf32>
    %cst_137 = arith.constant dense<0.000000e+00> : vector<8x32xf32>
    %242 = tpu.matmul %232, %19, %cst_137 {dimension_numbers = #tpu.dot_dimension_numbers<[1], [0], [0], [1], [0, 0, 1, 1], [], []>} : vector<8x32xbf16>, vector<32x32xbf16>, vector<8x32xf32> -> vector<8x32xf32>
    %243 = arith.addf %241, %242 : vector<8x32xf32>
    %244 = arith.addf %243, %23 : vector<8x32xf32>
    %cst_138 = arith.constant dense<0.000000e+00> : vector<8x32xf32>
    %245 = tpu.matmul %231, %25, %cst_138 {dimension_numbers = #tpu.dot_dimension_numbers<[1], [0], [0], [1], [0, 0, 1, 1], [], []>} : vector<8x16xbf16>, vector<16x32xbf16>, vector<8x32xf32> -> vector<8x32xf32>
    %cst_139 = arith.constant dense<0.000000e+00> : vector<8x32xf32>
    %246 = tpu.matmul %232, %27, %cst_139 {dimension_numbers = #tpu.dot_dimension_numbers<[1], [0], [0], [1], [0, 0, 1, 1], [], []>} : vector<8x32xbf16>, vector<32x32xbf16>, vector<8x32xf32> -> vector<8x32xf32>
    %247 = arith.addf %245, %246 : vector<8x32xf32>
    %248 = arith.addf %247, %31 : vector<8x32xf32>
    %249 = arith.negf %236 : vector<8x32xf32>
    %250 = math.exp %249 : vector<8x32xf32>
    %cst_140 = arith.constant 1.000000e+00 : f32
    %251 = vector.broadcast %cst_140 : f32 to vector<8x32xf32>
    %252 = arith.addf %251, %250 : vector<8x32xf32>
    %253 = arith.divf %251, %252 : vector<8x32xf32>
    %254 = arith.negf %240 : vector<8x32xf32>
    %255 = math.exp %254 : vector<8x32xf32>
    %cst_141 = arith.constant 1.000000e+00 : f32
    %256 = vector.broadcast %cst_141 : f32 to vector<8x32xf32>
    %257 = arith.addf %256, %255 : vector<8x32xf32>
    %258 = arith.divf %256, %257 : vector<8x32xf32>
    %259 = math.tanh %244 : vector<8x32xf32>
    %260 = arith.negf %248 : vector<8x32xf32>
    %261 = math.exp %260 : vector<8x32xf32>
    %cst_142 = arith.constant 1.000000e+00 : f32
    %262 = vector.broadcast %cst_142 : f32 to vector<8x32xf32>
    %263 = arith.addf %262, %261 : vector<8x32xf32>
    %264 = arith.divf %262, %263 : vector<8x32xf32>
    %265 = arith.mulf %258, %188 : vector<8x32xf32>
    %266 = arith.mulf %253, %259 : vector<8x32xf32>
    %267 = arith.addf %265, %266 : vector<8x32xf32>
    %268 = math.tanh %267 : vector<8x32xf32>
    %269 = arith.mulf %264, %268 : vector<8x32xf32>
    %270 = arith.truncf %269 : vector<8x32xf32> to vector<8x32xbf16>
    %271 = arith.truncf %229 : vector<8x32xf32> to vector<8x32xbf16>
    %cst_143 = arith.constant dense<0.000000e+00> : vector<8x32xf32>
    %272 = tpu.matmul %270, %33, %cst_143 {dimension_numbers = #tpu.dot_dimension_numbers<[1], [0], [0], [1], [0, 0, 1, 1], [], []>} : vector<8x32xbf16>, vector<32x32xbf16>, vector<8x32xf32> -> vector<8x32xf32>
    %cst_144 = arith.constant dense<0.000000e+00> : vector<8x32xf32>
    %273 = tpu.matmul %271, %35, %cst_144 {dimension_numbers = #tpu.dot_dimension_numbers<[1], [0], [0], [1], [0, 0, 1, 1], [], []>} : vector<8x32xbf16>, vector<32x32xbf16>, vector<8x32xf32> -> vector<8x32xf32>
    %274 = arith.addf %272, %273 : vector<8x32xf32>
    %275 = arith.addf %274, %39 : vector<8x32xf32>
    %cst_145 = arith.constant dense<0.000000e+00> : vector<8x32xf32>
    %276 = tpu.matmul %270, %41, %cst_145 {dimension_numbers = #tpu.dot_dimension_numbers<[1], [0], [0], [1], [0, 0, 1, 1], [], []>} : vector<8x32xbf16>, vector<32x32xbf16>, vector<8x32xf32> -> vector<8x32xf32>
    %cst_146 = arith.constant dense<0.000000e+00> : vector<8x32xf32>
    %277 = tpu.matmul %271, %43, %cst_146 {dimension_numbers = #tpu.dot_dimension_numbers<[1], [0], [0], [1], [0, 0, 1, 1], [], []>} : vector<8x32xbf16>, vector<32x32xbf16>, vector<8x32xf32> -> vector<8x32xf32>
    %278 = arith.addf %276, %277 : vector<8x32xf32>
    %279 = arith.addf %278, %47 : vector<8x32xf32>
    %cst_147 = arith.constant dense<0.000000e+00> : vector<8x32xf32>
    %280 = tpu.matmul %270, %49, %cst_147 {dimension_numbers = #tpu.dot_dimension_numbers<[1], [0], [0], [1], [0, 0, 1, 1], [], []>} : vector<8x32xbf16>, vector<32x32xbf16>, vector<8x32xf32> -> vector<8x32xf32>
    %cst_148 = arith.constant dense<0.000000e+00> : vector<8x32xf32>
    %281 = tpu.matmul %271, %51, %cst_148 {dimension_numbers = #tpu.dot_dimension_numbers<[1], [0], [0], [1], [0, 0, 1, 1], [], []>} : vector<8x32xbf16>, vector<32x32xbf16>, vector<8x32xf32> -> vector<8x32xf32>
    %282 = arith.addf %280, %281 : vector<8x32xf32>
    %283 = arith.addf %282, %55 : vector<8x32xf32>
    %cst_149 = arith.constant dense<0.000000e+00> : vector<8x32xf32>
    %284 = tpu.matmul %270, %57, %cst_149 {dimension_numbers = #tpu.dot_dimension_numbers<[1], [0], [0], [1], [0, 0, 1, 1], [], []>} : vector<8x32xbf16>, vector<32x32xbf16>, vector<8x32xf32> -> vector<8x32xf32>
    %cst_150 = arith.constant dense<0.000000e+00> : vector<8x32xf32>
    %285 = tpu.matmul %271, %59, %cst_150 {dimension_numbers = #tpu.dot_dimension_numbers<[1], [0], [0], [1], [0, 0, 1, 1], [], []>} : vector<8x32xbf16>, vector<32x32xbf16>, vector<8x32xf32> -> vector<8x32xf32>
    %286 = arith.addf %284, %285 : vector<8x32xf32>
    %287 = arith.addf %286, %63 : vector<8x32xf32>
    %288 = arith.negf %275 : vector<8x32xf32>
    %289 = math.exp %288 : vector<8x32xf32>
    %cst_151 = arith.constant 1.000000e+00 : f32
    %290 = vector.broadcast %cst_151 : f32 to vector<8x32xf32>
    %291 = arith.addf %290, %289 : vector<8x32xf32>
    %292 = arith.divf %290, %291 : vector<8x32xf32>
    %293 = arith.negf %279 : vector<8x32xf32>
    %294 = math.exp %293 : vector<8x32xf32>
    %cst_152 = arith.constant 1.000000e+00 : f32
    %295 = vector.broadcast %cst_152 : f32 to vector<8x32xf32>
    %296 = arith.addf %295, %294 : vector<8x32xf32>
    %297 = arith.divf %295, %296 : vector<8x32xf32>
    %298 = math.tanh %283 : vector<8x32xf32>
    %299 = arith.negf %287 : vector<8x32xf32>
    %300 = math.exp %299 : vector<8x32xf32>
    %cst_153 = arith.constant 1.000000e+00 : f32
    %301 = vector.broadcast %cst_153 : f32 to vector<8x32xf32>
    %302 = arith.addf %301, %300 : vector<8x32xf32>
    %303 = arith.divf %301, %302 : vector<8x32xf32>
    %304 = arith.mulf %297, %227 : vector<8x32xf32>
    %305 = arith.mulf %292, %298 : vector<8x32xf32>
    %306 = arith.addf %304, %305 : vector<8x32xf32>
    %307 = math.tanh %306 : vector<8x32xf32>
    %308 = arith.mulf %303, %307 : vector<8x32xf32>
    %c3_154 = arith.constant 3 : index
    %c0_155 = arith.constant 0 : index
    %c0_156 = arith.constant 0 : index
    %309 = vector.load %arg0[%c3_154, %c0_155, %c0_156] : memref<8x8x16xbf16, #tpu.memory_space<vmem>>, vector<1x8x16xbf16>
    %310 = vector.shape_cast %309 : vector<1x8x16xbf16> to vector<8x16xbf16>
    %311 = arith.truncf %269 : vector<8x32xf32> to vector<8x32xbf16>
    %cst_157 = arith.constant dense<0.000000e+00> : vector<8x32xf32>
    %312 = tpu.matmul %310, %1, %cst_157 {dimension_numbers = #tpu.dot_dimension_numbers<[1], [0], [0], [1], [0, 0, 1, 1], [], []>} : vector<8x16xbf16>, vector<16x32xbf16>, vector<8x32xf32> -> vector<8x32xf32>
    %cst_158 = arith.constant dense<0.000000e+00> : vector<8x32xf32>
    %313 = tpu.matmul %311, %3, %cst_158 {dimension_numbers = #tpu.dot_dimension_numbers<[1], [0], [0], [1], [0, 0, 1, 1], [], []>} : vector<8x32xbf16>, vector<32x32xbf16>, vector<8x32xf32> -> vector<8x32xf32>
    %314 = arith.addf %312, %313 : vector<8x32xf32>
    %315 = arith.addf %314, %7 : vector<8x32xf32>
    %cst_159 = arith.constant dense<0.000000e+00> : vector<8x32xf32>
    %316 = tpu.matmul %310, %9, %cst_159 {dimension_numbers = #tpu.dot_dimension_numbers<[1], [0], [0], [1], [0, 0, 1, 1], [], []>} : vector<8x16xbf16>, vector<16x32xbf16>, vector<8x32xf32> -> vector<8x32xf32>
    %cst_160 = arith.constant dense<0.000000e+00> : vector<8x32xf32>
    %317 = tpu.matmul %311, %11, %cst_160 {dimension_numbers = #tpu.dot_dimension_numbers<[1], [0], [0], [1], [0, 0, 1, 1], [], []>} : vector<8x32xbf16>, vector<32x32xbf16>, vector<8x32xf32> -> vector<8x32xf32>
    %318 = arith.addf %316, %317 : vector<8x32xf32>
    %319 = arith.addf %318, %15 : vector<8x32xf32>
    %cst_161 = arith.constant dense<0.000000e+00> : vector<8x32xf32>
    %320 = tpu.matmul %310, %17, %cst_161 {dimension_numbers = #tpu.dot_dimension_numbers<[1], [0], [0], [1], [0, 0, 1, 1], [], []>} : vector<8x16xbf16>, vector<16x32xbf16>, vector<8x32xf32> -> vector<8x32xf32>
    %cst_162 = arith.constant dense<0.000000e+00> : vector<8x32xf32>
    %321 = tpu.matmul %311, %19, %cst_162 {dimension_numbers = #tpu.dot_dimension_numbers<[1], [0], [0], [1], [0, 0, 1, 1], [], []>} : vector<8x32xbf16>, vector<32x32xbf16>, vector<8x32xf32> -> vector<8x32xf32>
    %322 = arith.addf %320, %321 : vector<8x32xf32>
    %323 = arith.addf %322, %23 : vector<8x32xf32>
    %cst_163 = arith.constant dense<0.000000e+00> : vector<8x32xf32>
    %324 = tpu.matmul %310, %25, %cst_163 {dimension_numbers = #tpu.dot_dimension_numbers<[1], [0], [0], [1], [0, 0, 1, 1], [], []>} : vector<8x16xbf16>, vector<16x32xbf16>, vector<8x32xf32> -> vector<8x32xf32>
    %cst_164 = arith.constant dense<0.000000e+00> : vector<8x32xf32>
    %325 = tpu.matmul %311, %27, %cst_164 {dimension_numbers = #tpu.dot_dimension_numbers<[1], [0], [0], [1], [0, 0, 1, 1], [], []>} : vector<8x32xbf16>, vector<32x32xbf16>, vector<8x32xf32> -> vector<8x32xf32>
    %326 = arith.addf %324, %325 : vector<8x32xf32>
    %327 = arith.addf %326, %31 : vector<8x32xf32>
    %328 = arith.negf %315 : vector<8x32xf32>
    %329 = math.exp %328 : vector<8x32xf32>
    %cst_165 = arith.constant 1.000000e+00 : f32
    %330 = vector.broadcast %cst_165 : f32 to vector<8x32xf32>
    %331 = arith.addf %330, %329 : vector<8x32xf32>
    %332 = arith.divf %330, %331 : vector<8x32xf32>
    %333 = arith.negf %319 : vector<8x32xf32>
    %334 = math.exp %333 : vector<8x32xf32>
    %cst_166 = arith.constant 1.000000e+00 : f32
    %335 = vector.broadcast %cst_166 : f32 to vector<8x32xf32>
    %336 = arith.addf %335, %334 : vector<8x32xf32>
    %337 = arith.divf %335, %336 : vector<8x32xf32>
    %338 = math.tanh %323 : vector<8x32xf32>
    %339 = arith.negf %327 : vector<8x32xf32>
    %340 = math.exp %339 : vector<8x32xf32>
    %cst_167 = arith.constant 1.000000e+00 : f32
    %341 = vector.broadcast %cst_167 : f32 to vector<8x32xf32>
    %342 = arith.addf %341, %340 : vector<8x32xf32>
    %343 = arith.divf %341, %342 : vector<8x32xf32>
    %344 = arith.mulf %337, %267 : vector<8x32xf32>
    %345 = arith.mulf %332, %338 : vector<8x32xf32>
    %346 = arith.addf %344, %345 : vector<8x32xf32>
    %347 = math.tanh %346 : vector<8x32xf32>
    %348 = arith.mulf %343, %347 : vector<8x32xf32>
    %349 = arith.truncf %348 : vector<8x32xf32> to vector<8x32xbf16>
    %350 = arith.truncf %308 : vector<8x32xf32> to vector<8x32xbf16>
    %cst_168 = arith.constant dense<0.000000e+00> : vector<8x32xf32>
    %351 = tpu.matmul %349, %33, %cst_168 {dimension_numbers = #tpu.dot_dimension_numbers<[1], [0], [0], [1], [0, 0, 1, 1], [], []>} : vector<8x32xbf16>, vector<32x32xbf16>, vector<8x32xf32> -> vector<8x32xf32>
    %cst_169 = arith.constant dense<0.000000e+00> : vector<8x32xf32>
    %352 = tpu.matmul %350, %35, %cst_169 {dimension_numbers = #tpu.dot_dimension_numbers<[1], [0], [0], [1], [0, 0, 1, 1], [], []>} : vector<8x32xbf16>, vector<32x32xbf16>, vector<8x32xf32> -> vector<8x32xf32>
    %353 = arith.addf %351, %352 : vector<8x32xf32>
    %354 = arith.addf %353, %39 : vector<8x32xf32>
    %cst_170 = arith.constant dense<0.000000e+00> : vector<8x32xf32>
    %355 = tpu.matmul %349, %41, %cst_170 {dimension_numbers = #tpu.dot_dimension_numbers<[1], [0], [0], [1], [0, 0, 1, 1], [], []>} : vector<8x32xbf16>, vector<32x32xbf16>, vector<8x32xf32> -> vector<8x32xf32>
    %cst_171 = arith.constant dense<0.000000e+00> : vector<8x32xf32>
    %356 = tpu.matmul %350, %43, %cst_171 {dimension_numbers = #tpu.dot_dimension_numbers<[1], [0], [0], [1], [0, 0, 1, 1], [], []>} : vector<8x32xbf16>, vector<32x32xbf16>, vector<8x32xf32> -> vector<8x32xf32>
    %357 = arith.addf %355, %356 : vector<8x32xf32>
    %358 = arith.addf %357, %47 : vector<8x32xf32>
    %cst_172 = arith.constant dense<0.000000e+00> : vector<8x32xf32>
    %359 = tpu.matmul %349, %49, %cst_172 {dimension_numbers = #tpu.dot_dimension_numbers<[1], [0], [0], [1], [0, 0, 1, 1], [], []>} : vector<8x32xbf16>, vector<32x32xbf16>, vector<8x32xf32> -> vector<8x32xf32>
    %cst_173 = arith.constant dense<0.000000e+00> : vector<8x32xf32>
    %360 = tpu.matmul %350, %51, %cst_173 {dimension_numbers = #tpu.dot_dimension_numbers<[1], [0], [0], [1], [0, 0, 1, 1], [], []>} : vector<8x32xbf16>, vector<32x32xbf16>, vector<8x32xf32> -> vector<8x32xf32>
    %361 = arith.addf %359, %360 : vector<8x32xf32>
    %362 = arith.addf %361, %55 : vector<8x32xf32>
    %cst_174 = arith.constant dense<0.000000e+00> : vector<8x32xf32>
    %363 = tpu.matmul %349, %57, %cst_174 {dimension_numbers = #tpu.dot_dimension_numbers<[1], [0], [0], [1], [0, 0, 1, 1], [], []>} : vector<8x32xbf16>, vector<32x32xbf16>, vector<8x32xf32> -> vector<8x32xf32>
    %cst_175 = arith.constant dense<0.000000e+00> : vector<8x32xf32>
    %364 = tpu.matmul %350, %59, %cst_175 {dimension_numbers = #tpu.dot_dimension_numbers<[1], [0], [0], [1], [0, 0, 1, 1], [], []>} : vector<8x32xbf16>, vector<32x32xbf16>, vector<8x32xf32> -> vector<8x32xf32>
    %365 = arith.addf %363, %364 : vector<8x32xf32>
    %366 = arith.addf %365, %63 : vector<8x32xf32>
    %367 = arith.negf %354 : vector<8x32xf32>
    %368 = math.exp %367 : vector<8x32xf32>
    %cst_176 = arith.constant 1.000000e+00 : f32
    %369 = vector.broadcast %cst_176 : f32 to vector<8x32xf32>
    %370 = arith.addf %369, %368 : vector<8x32xf32>
    %371 = arith.divf %369, %370 : vector<8x32xf32>
    %372 = arith.negf %358 : vector<8x32xf32>
    %373 = math.exp %372 : vector<8x32xf32>
    %cst_177 = arith.constant 1.000000e+00 : f32
    %374 = vector.broadcast %cst_177 : f32 to vector<8x32xf32>
    %375 = arith.addf %374, %373 : vector<8x32xf32>
    %376 = arith.divf %374, %375 : vector<8x32xf32>
    %377 = math.tanh %362 : vector<8x32xf32>
    %378 = arith.negf %366 : vector<8x32xf32>
    %379 = math.exp %378 : vector<8x32xf32>
    %cst_178 = arith.constant 1.000000e+00 : f32
    %380 = vector.broadcast %cst_178 : f32 to vector<8x32xf32>
    %381 = arith.addf %380, %379 : vector<8x32xf32>
    %382 = arith.divf %380, %381 : vector<8x32xf32>
    %383 = arith.mulf %376, %306 : vector<8x32xf32>
    %384 = arith.mulf %371, %377 : vector<8x32xf32>
    %385 = arith.addf %383, %384 : vector<8x32xf32>
    %386 = math.tanh %385 : vector<8x32xf32>
    %387 = arith.mulf %382, %386 : vector<8x32xf32>
    %c4 = arith.constant 4 : index
    %c0_179 = arith.constant 0 : index
    %c0_180 = arith.constant 0 : index
    %388 = vector.load %arg0[%c4, %c0_179, %c0_180] : memref<8x8x16xbf16, #tpu.memory_space<vmem>>, vector<1x8x16xbf16>
    %389 = vector.shape_cast %388 : vector<1x8x16xbf16> to vector<8x16xbf16>
    %390 = arith.truncf %348 : vector<8x32xf32> to vector<8x32xbf16>
    %cst_181 = arith.constant dense<0.000000e+00> : vector<8x32xf32>
    %391 = tpu.matmul %389, %1, %cst_181 {dimension_numbers = #tpu.dot_dimension_numbers<[1], [0], [0], [1], [0, 0, 1, 1], [], []>} : vector<8x16xbf16>, vector<16x32xbf16>, vector<8x32xf32> -> vector<8x32xf32>
    %cst_182 = arith.constant dense<0.000000e+00> : vector<8x32xf32>
    %392 = tpu.matmul %390, %3, %cst_182 {dimension_numbers = #tpu.dot_dimension_numbers<[1], [0], [0], [1], [0, 0, 1, 1], [], []>} : vector<8x32xbf16>, vector<32x32xbf16>, vector<8x32xf32> -> vector<8x32xf32>
    %393 = arith.addf %391, %392 : vector<8x32xf32>
    %394 = arith.addf %393, %7 : vector<8x32xf32>
    %cst_183 = arith.constant dense<0.000000e+00> : vector<8x32xf32>
    %395 = tpu.matmul %389, %9, %cst_183 {dimension_numbers = #tpu.dot_dimension_numbers<[1], [0], [0], [1], [0, 0, 1, 1], [], []>} : vector<8x16xbf16>, vector<16x32xbf16>, vector<8x32xf32> -> vector<8x32xf32>
    %cst_184 = arith.constant dense<0.000000e+00> : vector<8x32xf32>
    %396 = tpu.matmul %390, %11, %cst_184 {dimension_numbers = #tpu.dot_dimension_numbers<[1], [0], [0], [1], [0, 0, 1, 1], [], []>} : vector<8x32xbf16>, vector<32x32xbf16>, vector<8x32xf32> -> vector<8x32xf32>
    %397 = arith.addf %395, %396 : vector<8x32xf32>
    %398 = arith.addf %397, %15 : vector<8x32xf32>
    %cst_185 = arith.constant dense<0.000000e+00> : vector<8x32xf32>
    %399 = tpu.matmul %389, %17, %cst_185 {dimension_numbers = #tpu.dot_dimension_numbers<[1], [0], [0], [1], [0, 0, 1, 1], [], []>} : vector<8x16xbf16>, vector<16x32xbf16>, vector<8x32xf32> -> vector<8x32xf32>
    %cst_186 = arith.constant dense<0.000000e+00> : vector<8x32xf32>
    %400 = tpu.matmul %390, %19, %cst_186 {dimension_numbers = #tpu.dot_dimension_numbers<[1], [0], [0], [1], [0, 0, 1, 1], [], []>} : vector<8x32xbf16>, vector<32x32xbf16>, vector<8x32xf32> -> vector<8x32xf32>
    %401 = arith.addf %399, %400 : vector<8x32xf32>
    %402 = arith.addf %401, %23 : vector<8x32xf32>
    %cst_187 = arith.constant dense<0.000000e+00> : vector<8x32xf32>
    %403 = tpu.matmul %389, %25, %cst_187 {dimension_numbers = #tpu.dot_dimension_numbers<[1], [0], [0], [1], [0, 0, 1, 1], [], []>} : vector<8x16xbf16>, vector<16x32xbf16>, vector<8x32xf32> -> vector<8x32xf32>
    %cst_188 = arith.constant dense<0.000000e+00> : vector<8x32xf32>
    %404 = tpu.matmul %390, %27, %cst_188 {dimension_numbers = #tpu.dot_dimension_numbers<[1], [0], [0], [1], [0, 0, 1, 1], [], []>} : vector<8x32xbf16>, vector<32x32xbf16>, vector<8x32xf32> -> vector<8x32xf32>
    %405 = arith.addf %403, %404 : vector<8x32xf32>
    %406 = arith.addf %405, %31 : vector<8x32xf32>
    %407 = arith.negf %394 : vector<8x32xf32>
    %408 = math.exp %407 : vector<8x32xf32>
    %cst_189 = arith.constant 1.000000e+00 : f32
    %409 = vector.broadcast %cst_189 : f32 to vector<8x32xf32>
    %410 = arith.addf %409, %408 : vector<8x32xf32>
    %411 = arith.divf %409, %410 : vector<8x32xf32>
    %412 = arith.negf %398 : vector<8x32xf32>
    %413 = math.exp %412 : vector<8x32xf32>
    %cst_190 = arith.constant 1.000000e+00 : f32
    %414 = vector.broadcast %cst_190 : f32 to vector<8x32xf32>
    %415 = arith.addf %414, %413 : vector<8x32xf32>
    %416 = arith.divf %414, %415 : vector<8x32xf32>
    %417 = math.tanh %402 : vector<8x32xf32>
    %418 = arith.negf %406 : vector<8x32xf32>
    %419 = math.exp %418 : vector<8x32xf32>
    %cst_191 = arith.constant 1.000000e+00 : f32
    %420 = vector.broadcast %cst_191 : f32 to vector<8x32xf32>
    %421 = arith.addf %420, %419 : vector<8x32xf32>
    %422 = arith.divf %420, %421 : vector<8x32xf32>
    %423 = arith.mulf %416, %346 : vector<8x32xf32>
    %424 = arith.mulf %411, %417 : vector<8x32xf32>
    %425 = arith.addf %423, %424 : vector<8x32xf32>
    %426 = math.tanh %425 : vector<8x32xf32>
    %427 = arith.mulf %422, %426 : vector<8x32xf32>
    %428 = arith.truncf %427 : vector<8x32xf32> to vector<8x32xbf16>
    %429 = arith.truncf %387 : vector<8x32xf32> to vector<8x32xbf16>
    %cst_192 = arith.constant dense<0.000000e+00> : vector<8x32xf32>
    %430 = tpu.matmul %428, %33, %cst_192 {dimension_numbers = #tpu.dot_dimension_numbers<[1], [0], [0], [1], [0, 0, 1, 1], [], []>} : vector<8x32xbf16>, vector<32x32xbf16>, vector<8x32xf32> -> vector<8x32xf32>
    %cst_193 = arith.constant dense<0.000000e+00> : vector<8x32xf32>
    %431 = tpu.matmul %429, %35, %cst_193 {dimension_numbers = #tpu.dot_dimension_numbers<[1], [0], [0], [1], [0, 0, 1, 1], [], []>} : vector<8x32xbf16>, vector<32x32xbf16>, vector<8x32xf32> -> vector<8x32xf32>
    %432 = arith.addf %430, %431 : vector<8x32xf32>
    %433 = arith.addf %432, %39 : vector<8x32xf32>
    %cst_194 = arith.constant dense<0.000000e+00> : vector<8x32xf32>
    %434 = tpu.matmul %428, %41, %cst_194 {dimension_numbers = #tpu.dot_dimension_numbers<[1], [0], [0], [1], [0, 0, 1, 1], [], []>} : vector<8x32xbf16>, vector<32x32xbf16>, vector<8x32xf32> -> vector<8x32xf32>
    %cst_195 = arith.constant dense<0.000000e+00> : vector<8x32xf32>
    %435 = tpu.matmul %429, %43, %cst_195 {dimension_numbers = #tpu.dot_dimension_numbers<[1], [0], [0], [1], [0, 0, 1, 1], [], []>} : vector<8x32xbf16>, vector<32x32xbf16>, vector<8x32xf32> -> vector<8x32xf32>
    %436 = arith.addf %434, %435 : vector<8x32xf32>
    %437 = arith.addf %436, %47 : vector<8x32xf32>
    %cst_196 = arith.constant dense<0.000000e+00> : vector<8x32xf32>
    %438 = tpu.matmul %428, %49, %cst_196 {dimension_numbers = #tpu.dot_dimension_numbers<[1], [0], [0], [1], [0, 0, 1, 1], [], []>} : vector<8x32xbf16>, vector<32x32xbf16>, vector<8x32xf32> -> vector<8x32xf32>
    %cst_197 = arith.constant dense<0.000000e+00> : vector<8x32xf32>
    %439 = tpu.matmul %429, %51, %cst_197 {dimension_numbers = #tpu.dot_dimension_numbers<[1], [0], [0], [1], [0, 0, 1, 1], [], []>} : vector<8x32xbf16>, vector<32x32xbf16>, vector<8x32xf32> -> vector<8x32xf32>
    %440 = arith.addf %438, %439 : vector<8x32xf32>
    %441 = arith.addf %440, %55 : vector<8x32xf32>
    %cst_198 = arith.constant dense<0.000000e+00> : vector<8x32xf32>
    %442 = tpu.matmul %428, %57, %cst_198 {dimension_numbers = #tpu.dot_dimension_numbers<[1], [0], [0], [1], [0, 0, 1, 1], [], []>} : vector<8x32xbf16>, vector<32x32xbf16>, vector<8x32xf32> -> vector<8x32xf32>
    %cst_199 = arith.constant dense<0.000000e+00> : vector<8x32xf32>
    %443 = tpu.matmul %429, %59, %cst_199 {dimension_numbers = #tpu.dot_dimension_numbers<[1], [0], [0], [1], [0, 0, 1, 1], [], []>} : vector<8x32xbf16>, vector<32x32xbf16>, vector<8x32xf32> -> vector<8x32xf32>
    %444 = arith.addf %442, %443 : vector<8x32xf32>
    %445 = arith.addf %444, %63 : vector<8x32xf32>
    %446 = arith.negf %433 : vector<8x32xf32>
    %447 = math.exp %446 : vector<8x32xf32>
    %cst_200 = arith.constant 1.000000e+00 : f32
    %448 = vector.broadcast %cst_200 : f32 to vector<8x32xf32>
    %449 = arith.addf %448, %447 : vector<8x32xf32>
    %450 = arith.divf %448, %449 : vector<8x32xf32>
    %451 = arith.negf %437 : vector<8x32xf32>
    %452 = math.exp %451 : vector<8x32xf32>
    %cst_201 = arith.constant 1.000000e+00 : f32
    %453 = vector.broadcast %cst_201 : f32 to vector<8x32xf32>
    %454 = arith.addf %453, %452 : vector<8x32xf32>
    %455 = arith.divf %453, %454 : vector<8x32xf32>
    %456 = math.tanh %441 : vector<8x32xf32>
    %457 = arith.negf %445 : vector<8x32xf32>
    %458 = math.exp %457 : vector<8x32xf32>
    %cst_202 = arith.constant 1.000000e+00 : f32
    %459 = vector.broadcast %cst_202 : f32 to vector<8x32xf32>
    %460 = arith.addf %459, %458 : vector<8x32xf32>
    %461 = arith.divf %459, %460 : vector<8x32xf32>
    %462 = arith.mulf %455, %385 : vector<8x32xf32>
    %463 = arith.mulf %450, %456 : vector<8x32xf32>
    %464 = arith.addf %462, %463 : vector<8x32xf32>
    %465 = math.tanh %464 : vector<8x32xf32>
    %466 = arith.mulf %461, %465 : vector<8x32xf32>
    %c5 = arith.constant 5 : index
    %c0_203 = arith.constant 0 : index
    %c0_204 = arith.constant 0 : index
    %467 = vector.load %arg0[%c5, %c0_203, %c0_204] : memref<8x8x16xbf16, #tpu.memory_space<vmem>>, vector<1x8x16xbf16>
    %468 = vector.shape_cast %467 : vector<1x8x16xbf16> to vector<8x16xbf16>
    %469 = arith.truncf %427 : vector<8x32xf32> to vector<8x32xbf16>
    %cst_205 = arith.constant dense<0.000000e+00> : vector<8x32xf32>
    %470 = tpu.matmul %468, %1, %cst_205 {dimension_numbers = #tpu.dot_dimension_numbers<[1], [0], [0], [1], [0, 0, 1, 1], [], []>} : vector<8x16xbf16>, vector<16x32xbf16>, vector<8x32xf32> -> vector<8x32xf32>
    %cst_206 = arith.constant dense<0.000000e+00> : vector<8x32xf32>
    %471 = tpu.matmul %469, %3, %cst_206 {dimension_numbers = #tpu.dot_dimension_numbers<[1], [0], [0], [1], [0, 0, 1, 1], [], []>} : vector<8x32xbf16>, vector<32x32xbf16>, vector<8x32xf32> -> vector<8x32xf32>
    %472 = arith.addf %470, %471 : vector<8x32xf32>
    %473 = arith.addf %472, %7 : vector<8x32xf32>
    %cst_207 = arith.constant dense<0.000000e+00> : vector<8x32xf32>
    %474 = tpu.matmul %468, %9, %cst_207 {dimension_numbers = #tpu.dot_dimension_numbers<[1], [0], [0], [1], [0, 0, 1, 1], [], []>} : vector<8x16xbf16>, vector<16x32xbf16>, vector<8x32xf32> -> vector<8x32xf32>
    %cst_208 = arith.constant dense<0.000000e+00> : vector<8x32xf32>
    %475 = tpu.matmul %469, %11, %cst_208 {dimension_numbers = #tpu.dot_dimension_numbers<[1], [0], [0], [1], [0, 0, 1, 1], [], []>} : vector<8x32xbf16>, vector<32x32xbf16>, vector<8x32xf32> -> vector<8x32xf32>
    %476 = arith.addf %474, %475 : vector<8x32xf32>
    %477 = arith.addf %476, %15 : vector<8x32xf32>
    %cst_209 = arith.constant dense<0.000000e+00> : vector<8x32xf32>
    %478 = tpu.matmul %468, %17, %cst_209 {dimension_numbers = #tpu.dot_dimension_numbers<[1], [0], [0], [1], [0, 0, 1, 1], [], []>} : vector<8x16xbf16>, vector<16x32xbf16>, vector<8x32xf32> -> vector<8x32xf32>
    %cst_210 = arith.constant dense<0.000000e+00> : vector<8x32xf32>
    %479 = tpu.matmul %469, %19, %cst_210 {dimension_numbers = #tpu.dot_dimension_numbers<[1], [0], [0], [1], [0, 0, 1, 1], [], []>} : vector<8x32xbf16>, vector<32x32xbf16>, vector<8x32xf32> -> vector<8x32xf32>
    %480 = arith.addf %478, %479 : vector<8x32xf32>
    %481 = arith.addf %480, %23 : vector<8x32xf32>
    %cst_211 = arith.constant dense<0.000000e+00> : vector<8x32xf32>
    %482 = tpu.matmul %468, %25, %cst_211 {dimension_numbers = #tpu.dot_dimension_numbers<[1], [0], [0], [1], [0, 0, 1, 1], [], []>} : vector<8x16xbf16>, vector<16x32xbf16>, vector<8x32xf32> -> vector<8x32xf32>
    %cst_212 = arith.constant dense<0.000000e+00> : vector<8x32xf32>
    %483 = tpu.matmul %469, %27, %cst_212 {dimension_numbers = #tpu.dot_dimension_numbers<[1], [0], [0], [1], [0, 0, 1, 1], [], []>} : vector<8x32xbf16>, vector<32x32xbf16>, vector<8x32xf32> -> vector<8x32xf32>
    %484 = arith.addf %482, %483 : vector<8x32xf32>
    %485 = arith.addf %484, %31 : vector<8x32xf32>
    %486 = arith.negf %473 : vector<8x32xf32>
    %487 = math.exp %486 : vector<8x32xf32>
    %cst_213 = arith.constant 1.000000e+00 : f32
    %488 = vector.broadcast %cst_213 : f32 to vector<8x32xf32>
    %489 = arith.addf %488, %487 : vector<8x32xf32>
    %490 = arith.divf %488, %489 : vector<8x32xf32>
    %491 = arith.negf %477 : vector<8x32xf32>
    %492 = math.exp %491 : vector<8x32xf32>
    %cst_214 = arith.constant 1.000000e+00 : f32
    %493 = vector.broadcast %cst_214 : f32 to vector<8x32xf32>
    %494 = arith.addf %493, %492 : vector<8x32xf32>
    %495 = arith.divf %493, %494 : vector<8x32xf32>
    %496 = math.tanh %481 : vector<8x32xf32>
    %497 = arith.negf %485 : vector<8x32xf32>
    %498 = math.exp %497 : vector<8x32xf32>
    %cst_215 = arith.constant 1.000000e+00 : f32
    %499 = vector.broadcast %cst_215 : f32 to vector<8x32xf32>
    %500 = arith.addf %499, %498 : vector<8x32xf32>
    %501 = arith.divf %499, %500 : vector<8x32xf32>
    %502 = arith.mulf %495, %425 : vector<8x32xf32>
    %503 = arith.mulf %490, %496 : vector<8x32xf32>
    %504 = arith.addf %502, %503 : vector<8x32xf32>
    %505 = math.tanh %504 : vector<8x32xf32>
    %506 = arith.mulf %501, %505 : vector<8x32xf32>
    %507 = arith.truncf %506 : vector<8x32xf32> to vector<8x32xbf16>
    %508 = arith.truncf %466 : vector<8x32xf32> to vector<8x32xbf16>
    %cst_216 = arith.constant dense<0.000000e+00> : vector<8x32xf32>
    %509 = tpu.matmul %507, %33, %cst_216 {dimension_numbers = #tpu.dot_dimension_numbers<[1], [0], [0], [1], [0, 0, 1, 1], [], []>} : vector<8x32xbf16>, vector<32x32xbf16>, vector<8x32xf32> -> vector<8x32xf32>
    %cst_217 = arith.constant dense<0.000000e+00> : vector<8x32xf32>
    %510 = tpu.matmul %508, %35, %cst_217 {dimension_numbers = #tpu.dot_dimension_numbers<[1], [0], [0], [1], [0, 0, 1, 1], [], []>} : vector<8x32xbf16>, vector<32x32xbf16>, vector<8x32xf32> -> vector<8x32xf32>
    %511 = arith.addf %509, %510 : vector<8x32xf32>
    %512 = arith.addf %511, %39 : vector<8x32xf32>
    %cst_218 = arith.constant dense<0.000000e+00> : vector<8x32xf32>
    %513 = tpu.matmul %507, %41, %cst_218 {dimension_numbers = #tpu.dot_dimension_numbers<[1], [0], [0], [1], [0, 0, 1, 1], [], []>} : vector<8x32xbf16>, vector<32x32xbf16>, vector<8x32xf32> -> vector<8x32xf32>
    %cst_219 = arith.constant dense<0.000000e+00> : vector<8x32xf32>
    %514 = tpu.matmul %508, %43, %cst_219 {dimension_numbers = #tpu.dot_dimension_numbers<[1], [0], [0], [1], [0, 0, 1, 1], [], []>} : vector<8x32xbf16>, vector<32x32xbf16>, vector<8x32xf32> -> vector<8x32xf32>
    %515 = arith.addf %513, %514 : vector<8x32xf32>
    %516 = arith.addf %515, %47 : vector<8x32xf32>
    %cst_220 = arith.constant dense<0.000000e+00> : vector<8x32xf32>
    %517 = tpu.matmul %507, %49, %cst_220 {dimension_numbers = #tpu.dot_dimension_numbers<[1], [0], [0], [1], [0, 0, 1, 1], [], []>} : vector<8x32xbf16>, vector<32x32xbf16>, vector<8x32xf32> -> vector<8x32xf32>
    %cst_221 = arith.constant dense<0.000000e+00> : vector<8x32xf32>
    %518 = tpu.matmul %508, %51, %cst_221 {dimension_numbers = #tpu.dot_dimension_numbers<[1], [0], [0], [1], [0, 0, 1, 1], [], []>} : vector<8x32xbf16>, vector<32x32xbf16>, vector<8x32xf32> -> vector<8x32xf32>
    %519 = arith.addf %517, %518 : vector<8x32xf32>
    %520 = arith.addf %519, %55 : vector<8x32xf32>
    %cst_222 = arith.constant dense<0.000000e+00> : vector<8x32xf32>
    %521 = tpu.matmul %507, %57, %cst_222 {dimension_numbers = #tpu.dot_dimension_numbers<[1], [0], [0], [1], [0, 0, 1, 1], [], []>} : vector<8x32xbf16>, vector<32x32xbf16>, vector<8x32xf32> -> vector<8x32xf32>
    %cst_223 = arith.constant dense<0.000000e+00> : vector<8x32xf32>
    %522 = tpu.matmul %508, %59, %cst_223 {dimension_numbers = #tpu.dot_dimension_numbers<[1], [0], [0], [1], [0, 0, 1, 1], [], []>} : vector<8x32xbf16>, vector<32x32xbf16>, vector<8x32xf32> -> vector<8x32xf32>
    %523 = arith.addf %521, %522 : vector<8x32xf32>
    %524 = arith.addf %523, %63 : vector<8x32xf32>
    %525 = arith.negf %512 : vector<8x32xf32>
    %526 = math.exp %525 : vector<8x32xf32>
    %cst_224 = arith.constant 1.000000e+00 : f32
    %527 = vector.broadcast %cst_224 : f32 to vector<8x32xf32>
    %528 = arith.addf %527, %526 : vector<8x32xf32>
    %529 = arith.divf %527, %528 : vector<8x32xf32>
    %530 = arith.negf %516 : vector<8x32xf32>
    %531 = math.exp %530 : vector<8x32xf32>
    %cst_225 = arith.constant 1.000000e+00 : f32
    %532 = vector.broadcast %cst_225 : f32 to vector<8x32xf32>
    %533 = arith.addf %532, %531 : vector<8x32xf32>
    %534 = arith.divf %532, %533 : vector<8x32xf32>
    %535 = math.tanh %520 : vector<8x32xf32>
    %536 = arith.negf %524 : vector<8x32xf32>
    %537 = math.exp %536 : vector<8x32xf32>
    %cst_226 = arith.constant 1.000000e+00 : f32
    %538 = vector.broadcast %cst_226 : f32 to vector<8x32xf32>
    %539 = arith.addf %538, %537 : vector<8x32xf32>
    %540 = arith.divf %538, %539 : vector<8x32xf32>
    %541 = arith.mulf %534, %464 : vector<8x32xf32>
    %542 = arith.mulf %529, %535 : vector<8x32xf32>
    %543 = arith.addf %541, %542 : vector<8x32xf32>
    %544 = math.tanh %543 : vector<8x32xf32>
    %545 = arith.mulf %540, %544 : vector<8x32xf32>
    %c6 = arith.constant 6 : index
    %c0_227 = arith.constant 0 : index
    %c0_228 = arith.constant 0 : index
    %546 = vector.load %arg0[%c6, %c0_227, %c0_228] : memref<8x8x16xbf16, #tpu.memory_space<vmem>>, vector<1x8x16xbf16>
    %547 = vector.shape_cast %546 : vector<1x8x16xbf16> to vector<8x16xbf16>
    %548 = arith.truncf %506 : vector<8x32xf32> to vector<8x32xbf16>
    %cst_229 = arith.constant dense<0.000000e+00> : vector<8x32xf32>
    %549 = tpu.matmul %547, %1, %cst_229 {dimension_numbers = #tpu.dot_dimension_numbers<[1], [0], [0], [1], [0, 0, 1, 1], [], []>} : vector<8x16xbf16>, vector<16x32xbf16>, vector<8x32xf32> -> vector<8x32xf32>
    %cst_230 = arith.constant dense<0.000000e+00> : vector<8x32xf32>
    %550 = tpu.matmul %548, %3, %cst_230 {dimension_numbers = #tpu.dot_dimension_numbers<[1], [0], [0], [1], [0, 0, 1, 1], [], []>} : vector<8x32xbf16>, vector<32x32xbf16>, vector<8x32xf32> -> vector<8x32xf32>
    %551 = arith.addf %549, %550 : vector<8x32xf32>
    %552 = arith.addf %551, %7 : vector<8x32xf32>
    %cst_231 = arith.constant dense<0.000000e+00> : vector<8x32xf32>
    %553 = tpu.matmul %547, %9, %cst_231 {dimension_numbers = #tpu.dot_dimension_numbers<[1], [0], [0], [1], [0, 0, 1, 1], [], []>} : vector<8x16xbf16>, vector<16x32xbf16>, vector<8x32xf32> -> vector<8x32xf32>
    %cst_232 = arith.constant dense<0.000000e+00> : vector<8x32xf32>
    %554 = tpu.matmul %548, %11, %cst_232 {dimension_numbers = #tpu.dot_dimension_numbers<[1], [0], [0], [1], [0, 0, 1, 1], [], []>} : vector<8x32xbf16>, vector<32x32xbf16>, vector<8x32xf32> -> vector<8x32xf32>
    %555 = arith.addf %553, %554 : vector<8x32xf32>
    %556 = arith.addf %555, %15 : vector<8x32xf32>
    %cst_233 = arith.constant dense<0.000000e+00> : vector<8x32xf32>
    %557 = tpu.matmul %547, %17, %cst_233 {dimension_numbers = #tpu.dot_dimension_numbers<[1], [0], [0], [1], [0, 0, 1, 1], [], []>} : vector<8x16xbf16>, vector<16x32xbf16>, vector<8x32xf32> -> vector<8x32xf32>
    %cst_234 = arith.constant dense<0.000000e+00> : vector<8x32xf32>
    %558 = tpu.matmul %548, %19, %cst_234 {dimension_numbers = #tpu.dot_dimension_numbers<[1], [0], [0], [1], [0, 0, 1, 1], [], []>} : vector<8x32xbf16>, vector<32x32xbf16>, vector<8x32xf32> -> vector<8x32xf32>
    %559 = arith.addf %557, %558 : vector<8x32xf32>
    %560 = arith.addf %559, %23 : vector<8x32xf32>
    %cst_235 = arith.constant dense<0.000000e+00> : vector<8x32xf32>
    %561 = tpu.matmul %547, %25, %cst_235 {dimension_numbers = #tpu.dot_dimension_numbers<[1], [0], [0], [1], [0, 0, 1, 1], [], []>} : vector<8x16xbf16>, vector<16x32xbf16>, vector<8x32xf32> -> vector<8x32xf32>
    %cst_236 = arith.constant dense<0.000000e+00> : vector<8x32xf32>
    %562 = tpu.matmul %548, %27, %cst_236 {dimension_numbers = #tpu.dot_dimension_numbers<[1], [0], [0], [1], [0, 0, 1, 1], [], []>} : vector<8x32xbf16>, vector<32x32xbf16>, vector<8x32xf32> -> vector<8x32xf32>
    %563 = arith.addf %561, %562 : vector<8x32xf32>
    %564 = arith.addf %563, %31 : vector<8x32xf32>
    %565 = arith.negf %552 : vector<8x32xf32>
    %566 = math.exp %565 : vector<8x32xf32>
    %cst_237 = arith.constant 1.000000e+00 : f32
    %567 = vector.broadcast %cst_237 : f32 to vector<8x32xf32>
    %568 = arith.addf %567, %566 : vector<8x32xf32>
    %569 = arith.divf %567, %568 : vector<8x32xf32>
    %570 = arith.negf %556 : vector<8x32xf32>
    %571 = math.exp %570 : vector<8x32xf32>
    %cst_238 = arith.constant 1.000000e+00 : f32
    %572 = vector.broadcast %cst_238 : f32 to vector<8x32xf32>
    %573 = arith.addf %572, %571 : vector<8x32xf32>
    %574 = arith.divf %572, %573 : vector<8x32xf32>
    %575 = math.tanh %560 : vector<8x32xf32>
    %576 = arith.negf %564 : vector<8x32xf32>
    %577 = math.exp %576 : vector<8x32xf32>
    %cst_239 = arith.constant 1.000000e+00 : f32
    %578 = vector.broadcast %cst_239 : f32 to vector<8x32xf32>
    %579 = arith.addf %578, %577 : vector<8x32xf32>
    %580 = arith.divf %578, %579 : vector<8x32xf32>
    %581 = arith.mulf %574, %504 : vector<8x32xf32>
    %582 = arith.mulf %569, %575 : vector<8x32xf32>
    %583 = arith.addf %581, %582 : vector<8x32xf32>
    %584 = math.tanh %583 : vector<8x32xf32>
    %585 = arith.mulf %580, %584 : vector<8x32xf32>
    %586 = arith.truncf %585 : vector<8x32xf32> to vector<8x32xbf16>
    %587 = arith.truncf %545 : vector<8x32xf32> to vector<8x32xbf16>
    %cst_240 = arith.constant dense<0.000000e+00> : vector<8x32xf32>
    %588 = tpu.matmul %586, %33, %cst_240 {dimension_numbers = #tpu.dot_dimension_numbers<[1], [0], [0], [1], [0, 0, 1, 1], [], []>} : vector<8x32xbf16>, vector<32x32xbf16>, vector<8x32xf32> -> vector<8x32xf32>
    %cst_241 = arith.constant dense<0.000000e+00> : vector<8x32xf32>
    %589 = tpu.matmul %587, %35, %cst_241 {dimension_numbers = #tpu.dot_dimension_numbers<[1], [0], [0], [1], [0, 0, 1, 1], [], []>} : vector<8x32xbf16>, vector<32x32xbf16>, vector<8x32xf32> -> vector<8x32xf32>
    %590 = arith.addf %588, %589 : vector<8x32xf32>
    %591 = arith.addf %590, %39 : vector<8x32xf32>
    %cst_242 = arith.constant dense<0.000000e+00> : vector<8x32xf32>
    %592 = tpu.matmul %586, %41, %cst_242 {dimension_numbers = #tpu.dot_dimension_numbers<[1], [0], [0], [1], [0, 0, 1, 1], [], []>} : vector<8x32xbf16>, vector<32x32xbf16>, vector<8x32xf32> -> vector<8x32xf32>
    %cst_243 = arith.constant dense<0.000000e+00> : vector<8x32xf32>
    %593 = tpu.matmul %587, %43, %cst_243 {dimension_numbers = #tpu.dot_dimension_numbers<[1], [0], [0], [1], [0, 0, 1, 1], [], []>} : vector<8x32xbf16>, vector<32x32xbf16>, vector<8x32xf32> -> vector<8x32xf32>
    %594 = arith.addf %592, %593 : vector<8x32xf32>
    %595 = arith.addf %594, %47 : vector<8x32xf32>
    %cst_244 = arith.constant dense<0.000000e+00> : vector<8x32xf32>
    %596 = tpu.matmul %586, %49, %cst_244 {dimension_numbers = #tpu.dot_dimension_numbers<[1], [0], [0], [1], [0, 0, 1, 1], [], []>} : vector<8x32xbf16>, vector<32x32xbf16>, vector<8x32xf32> -> vector<8x32xf32>
    %cst_245 = arith.constant dense<0.000000e+00> : vector<8x32xf32>
    %597 = tpu.matmul %587, %51, %cst_245 {dimension_numbers = #tpu.dot_dimension_numbers<[1], [0], [0], [1], [0, 0, 1, 1], [], []>} : vector<8x32xbf16>, vector<32x32xbf16>, vector<8x32xf32> -> vector<8x32xf32>
    %598 = arith.addf %596, %597 : vector<8x32xf32>
    %599 = arith.addf %598, %55 : vector<8x32xf32>
    %cst_246 = arith.constant dense<0.000000e+00> : vector<8x32xf32>
    %600 = tpu.matmul %586, %57, %cst_246 {dimension_numbers = #tpu.dot_dimension_numbers<[1], [0], [0], [1], [0, 0, 1, 1], [], []>} : vector<8x32xbf16>, vector<32x32xbf16>, vector<8x32xf32> -> vector<8x32xf32>
    %cst_247 = arith.constant dense<0.000000e+00> : vector<8x32xf32>
    %601 = tpu.matmul %587, %59, %cst_247 {dimension_numbers = #tpu.dot_dimension_numbers<[1], [0], [0], [1], [0, 0, 1, 1], [], []>} : vector<8x32xbf16>, vector<32x32xbf16>, vector<8x32xf32> -> vector<8x32xf32>
    %602 = arith.addf %600, %601 : vector<8x32xf32>
    %603 = arith.addf %602, %63 : vector<8x32xf32>
    %604 = arith.negf %591 : vector<8x32xf32>
    %605 = math.exp %604 : vector<8x32xf32>
    %cst_248 = arith.constant 1.000000e+00 : f32
    %606 = vector.broadcast %cst_248 : f32 to vector<8x32xf32>
    %607 = arith.addf %606, %605 : vector<8x32xf32>
    %608 = arith.divf %606, %607 : vector<8x32xf32>
    %609 = arith.negf %595 : vector<8x32xf32>
    %610 = math.exp %609 : vector<8x32xf32>
    %cst_249 = arith.constant 1.000000e+00 : f32
    %611 = vector.broadcast %cst_249 : f32 to vector<8x32xf32>
    %612 = arith.addf %611, %610 : vector<8x32xf32>
    %613 = arith.divf %611, %612 : vector<8x32xf32>
    %614 = math.tanh %599 : vector<8x32xf32>
    %615 = arith.negf %603 : vector<8x32xf32>
    %616 = math.exp %615 : vector<8x32xf32>
    %cst_250 = arith.constant 1.000000e+00 : f32
    %617 = vector.broadcast %cst_250 : f32 to vector<8x32xf32>
    %618 = arith.addf %617, %616 : vector<8x32xf32>
    %619 = arith.divf %617, %618 : vector<8x32xf32>
    %620 = arith.mulf %613, %543 : vector<8x32xf32>
    %621 = arith.mulf %608, %614 : vector<8x32xf32>
    %622 = arith.addf %620, %621 : vector<8x32xf32>
    %623 = math.tanh %622 : vector<8x32xf32>
    %624 = arith.mulf %619, %623 : vector<8x32xf32>
    %c7 = arith.constant 7 : index
    %c0_251 = arith.constant 0 : index
    %c0_252 = arith.constant 0 : index
    %625 = vector.load %arg0[%c7, %c0_251, %c0_252] : memref<8x8x16xbf16, #tpu.memory_space<vmem>>, vector<1x8x16xbf16>
    %626 = vector.shape_cast %625 : vector<1x8x16xbf16> to vector<8x16xbf16>
    %627 = arith.truncf %585 : vector<8x32xf32> to vector<8x32xbf16>
    %cst_253 = arith.constant dense<0.000000e+00> : vector<8x32xf32>
    %628 = tpu.matmul %626, %1, %cst_253 {dimension_numbers = #tpu.dot_dimension_numbers<[1], [0], [0], [1], [0, 0, 1, 1], [], []>} : vector<8x16xbf16>, vector<16x32xbf16>, vector<8x32xf32> -> vector<8x32xf32>
    %cst_254 = arith.constant dense<0.000000e+00> : vector<8x32xf32>
    %629 = tpu.matmul %627, %3, %cst_254 {dimension_numbers = #tpu.dot_dimension_numbers<[1], [0], [0], [1], [0, 0, 1, 1], [], []>} : vector<8x32xbf16>, vector<32x32xbf16>, vector<8x32xf32> -> vector<8x32xf32>
    %630 = arith.addf %628, %629 : vector<8x32xf32>
    %631 = arith.addf %630, %7 : vector<8x32xf32>
    %cst_255 = arith.constant dense<0.000000e+00> : vector<8x32xf32>
    %632 = tpu.matmul %626, %9, %cst_255 {dimension_numbers = #tpu.dot_dimension_numbers<[1], [0], [0], [1], [0, 0, 1, 1], [], []>} : vector<8x16xbf16>, vector<16x32xbf16>, vector<8x32xf32> -> vector<8x32xf32>
    %cst_256 = arith.constant dense<0.000000e+00> : vector<8x32xf32>
    %633 = tpu.matmul %627, %11, %cst_256 {dimension_numbers = #tpu.dot_dimension_numbers<[1], [0], [0], [1], [0, 0, 1, 1], [], []>} : vector<8x32xbf16>, vector<32x32xbf16>, vector<8x32xf32> -> vector<8x32xf32>
    %634 = arith.addf %632, %633 : vector<8x32xf32>
    %635 = arith.addf %634, %15 : vector<8x32xf32>
    %cst_257 = arith.constant dense<0.000000e+00> : vector<8x32xf32>
    %636 = tpu.matmul %626, %17, %cst_257 {dimension_numbers = #tpu.dot_dimension_numbers<[1], [0], [0], [1], [0, 0, 1, 1], [], []>} : vector<8x16xbf16>, vector<16x32xbf16>, vector<8x32xf32> -> vector<8x32xf32>
    %cst_258 = arith.constant dense<0.000000e+00> : vector<8x32xf32>
    %637 = tpu.matmul %627, %19, %cst_258 {dimension_numbers = #tpu.dot_dimension_numbers<[1], [0], [0], [1], [0, 0, 1, 1], [], []>} : vector<8x32xbf16>, vector<32x32xbf16>, vector<8x32xf32> -> vector<8x32xf32>
    %638 = arith.addf %636, %637 : vector<8x32xf32>
    %639 = arith.addf %638, %23 : vector<8x32xf32>
    %cst_259 = arith.constant dense<0.000000e+00> : vector<8x32xf32>
    %640 = tpu.matmul %626, %25, %cst_259 {dimension_numbers = #tpu.dot_dimension_numbers<[1], [0], [0], [1], [0, 0, 1, 1], [], []>} : vector<8x16xbf16>, vector<16x32xbf16>, vector<8x32xf32> -> vector<8x32xf32>
    %cst_260 = arith.constant dense<0.000000e+00> : vector<8x32xf32>
    %641 = tpu.matmul %627, %27, %cst_260 {dimension_numbers = #tpu.dot_dimension_numbers<[1], [0], [0], [1], [0, 0, 1, 1], [], []>} : vector<8x32xbf16>, vector<32x32xbf16>, vector<8x32xf32> -> vector<8x32xf32>
    %642 = arith.addf %640, %641 : vector<8x32xf32>
    %643 = arith.addf %642, %31 : vector<8x32xf32>
    %644 = arith.negf %631 : vector<8x32xf32>
    %645 = math.exp %644 : vector<8x32xf32>
    %cst_261 = arith.constant 1.000000e+00 : f32
    %646 = vector.broadcast %cst_261 : f32 to vector<8x32xf32>
    %647 = arith.addf %646, %645 : vector<8x32xf32>
    %648 = arith.divf %646, %647 : vector<8x32xf32>
    %649 = arith.negf %635 : vector<8x32xf32>
    %650 = math.exp %649 : vector<8x32xf32>
    %cst_262 = arith.constant 1.000000e+00 : f32
    %651 = vector.broadcast %cst_262 : f32 to vector<8x32xf32>
    %652 = arith.addf %651, %650 : vector<8x32xf32>
    %653 = arith.divf %651, %652 : vector<8x32xf32>
    %654 = math.tanh %639 : vector<8x32xf32>
    %655 = arith.negf %643 : vector<8x32xf32>
    %656 = math.exp %655 : vector<8x32xf32>
    %cst_263 = arith.constant 1.000000e+00 : f32
    %657 = vector.broadcast %cst_263 : f32 to vector<8x32xf32>
    %658 = arith.addf %657, %656 : vector<8x32xf32>
    %659 = arith.divf %657, %658 : vector<8x32xf32>
    %660 = arith.mulf %653, %583 : vector<8x32xf32>
    %661 = arith.mulf %648, %654 : vector<8x32xf32>
    %662 = arith.addf %660, %661 : vector<8x32xf32>
    %663 = math.tanh %662 : vector<8x32xf32>
    %664 = arith.mulf %659, %663 : vector<8x32xf32>
    %665 = arith.truncf %664 : vector<8x32xf32> to vector<8x32xbf16>
    %666 = arith.truncf %624 : vector<8x32xf32> to vector<8x32xbf16>
    %cst_264 = arith.constant dense<0.000000e+00> : vector<8x32xf32>
    %667 = tpu.matmul %665, %33, %cst_264 {dimension_numbers = #tpu.dot_dimension_numbers<[1], [0], [0], [1], [0, 0, 1, 1], [], []>} : vector<8x32xbf16>, vector<32x32xbf16>, vector<8x32xf32> -> vector<8x32xf32>
    %cst_265 = arith.constant dense<0.000000e+00> : vector<8x32xf32>
    %668 = tpu.matmul %666, %35, %cst_265 {dimension_numbers = #tpu.dot_dimension_numbers<[1], [0], [0], [1], [0, 0, 1, 1], [], []>} : vector<8x32xbf16>, vector<32x32xbf16>, vector<8x32xf32> -> vector<8x32xf32>
    %669 = arith.addf %667, %668 : vector<8x32xf32>
    %670 = arith.addf %669, %39 : vector<8x32xf32>
    %cst_266 = arith.constant dense<0.000000e+00> : vector<8x32xf32>
    %671 = tpu.matmul %665, %41, %cst_266 {dimension_numbers = #tpu.dot_dimension_numbers<[1], [0], [0], [1], [0, 0, 1, 1], [], []>} : vector<8x32xbf16>, vector<32x32xbf16>, vector<8x32xf32> -> vector<8x32xf32>
    %cst_267 = arith.constant dense<0.000000e+00> : vector<8x32xf32>
    %672 = tpu.matmul %666, %43, %cst_267 {dimension_numbers = #tpu.dot_dimension_numbers<[1], [0], [0], [1], [0, 0, 1, 1], [], []>} : vector<8x32xbf16>, vector<32x32xbf16>, vector<8x32xf32> -> vector<8x32xf32>
    %673 = arith.addf %671, %672 : vector<8x32xf32>
    %674 = arith.addf %673, %47 : vector<8x32xf32>
    %cst_268 = arith.constant dense<0.000000e+00> : vector<8x32xf32>
    %675 = tpu.matmul %665, %49, %cst_268 {dimension_numbers = #tpu.dot_dimension_numbers<[1], [0], [0], [1], [0, 0, 1, 1], [], []>} : vector<8x32xbf16>, vector<32x32xbf16>, vector<8x32xf32> -> vector<8x32xf32>
    %cst_269 = arith.constant dense<0.000000e+00> : vector<8x32xf32>
    %676 = tpu.matmul %666, %51, %cst_269 {dimension_numbers = #tpu.dot_dimension_numbers<[1], [0], [0], [1], [0, 0, 1, 1], [], []>} : vector<8x32xbf16>, vector<32x32xbf16>, vector<8x32xf32> -> vector<8x32xf32>
    %677 = arith.addf %675, %676 : vector<8x32xf32>
    %678 = arith.addf %677, %55 : vector<8x32xf32>
    %cst_270 = arith.constant dense<0.000000e+00> : vector<8x32xf32>
    %679 = tpu.matmul %665, %57, %cst_270 {dimension_numbers = #tpu.dot_dimension_numbers<[1], [0], [0], [1], [0, 0, 1, 1], [], []>} : vector<8x32xbf16>, vector<32x32xbf16>, vector<8x32xf32> -> vector<8x32xf32>
    %cst_271 = arith.constant dense<0.000000e+00> : vector<8x32xf32>
    %680 = tpu.matmul %666, %59, %cst_271 {dimension_numbers = #tpu.dot_dimension_numbers<[1], [0], [0], [1], [0, 0, 1, 1], [], []>} : vector<8x32xbf16>, vector<32x32xbf16>, vector<8x32xf32> -> vector<8x32xf32>
    %681 = arith.addf %679, %680 : vector<8x32xf32>
    %682 = arith.addf %681, %63 : vector<8x32xf32>
    %683 = arith.negf %670 : vector<8x32xf32>
    %684 = math.exp %683 : vector<8x32xf32>
    %cst_272 = arith.constant 1.000000e+00 : f32
    %685 = vector.broadcast %cst_272 : f32 to vector<8x32xf32>
    %686 = arith.addf %685, %684 : vector<8x32xf32>
    %687 = arith.divf %685, %686 : vector<8x32xf32>
    %688 = arith.negf %674 : vector<8x32xf32>
    %689 = math.exp %688 : vector<8x32xf32>
    %cst_273 = arith.constant 1.000000e+00 : f32
    %690 = vector.broadcast %cst_273 : f32 to vector<8x32xf32>
    %691 = arith.addf %690, %689 : vector<8x32xf32>
    %692 = arith.divf %690, %691 : vector<8x32xf32>
    %693 = math.tanh %678 : vector<8x32xf32>
    %694 = arith.negf %682 : vector<8x32xf32>
    %695 = math.exp %694 : vector<8x32xf32>
    %cst_274 = arith.constant 1.000000e+00 : f32
    %696 = vector.broadcast %cst_274 : f32 to vector<8x32xf32>
    %697 = arith.addf %696, %695 : vector<8x32xf32>
    %698 = arith.divf %696, %697 : vector<8x32xf32>
    %699 = arith.mulf %692, %622 : vector<8x32xf32>
    %700 = arith.mulf %687, %693 : vector<8x32xf32>
    %701 = arith.addf %699, %700 : vector<8x32xf32>
    %702 = math.tanh %701 : vector<8x32xf32>
    %703 = arith.mulf %698, %702 : vector<8x32xf32>
    %c0_275 = arith.constant 0 : index
    %c0_276 = arith.constant 0 : index
    %704 = vector.load %arg9[%c0_275, %c0_276] : memref<32x128xf32, #tpu.memory_space<vmem>>, vector<32x128xf32>
    %cst_277 = arith.constant dense<0.000000e+00> : vector<8x128xf32>
    %705 = tpu.matmul %703, %704, %cst_277 {dimension_numbers = #tpu.dot_dimension_numbers<[1], [0], [0], [1], [0, 0, 1, 1], [], []>} : vector<8x32xf32>, vector<32x128xf32>, vector<8x128xf32> -> vector<8x128xf32>
    %c0_278 = arith.constant 0 : index
    %c0_279 = arith.constant 0 : index
    %706 = vector.load %arg10[%c0_278, %c0_279] : memref<1x128xf32, #tpu.memory_space<vmem>>, vector<1x128xf32>
    %707 = vector.broadcast %706 : vector<1x128xf32> to vector<8x128xf32>
    %708 = arith.addf %705, %707 : vector<8x128xf32>
    %c0_280 = arith.constant 0 : index
    %c0_281 = arith.constant 0 : index
    %709 = vector.load %arg11[%c0_280, %c0_281] : memref<8x128xf32, #tpu.memory_space<vmem>>, vector<8x128xf32>
    tpu.vector_store %arg11[%c0_280, %c0_281], %708 {strides = array<i32>} : memref<8x128xf32, #tpu.memory_space<vmem>>, vector<8x128xf32>,
    return
  }
}

</mosaic_0001>

<llo_original>
// kernel: tpu_custom_call.1
$region0: #{tpu_custom_call.1}
  #allocation0 [shape = 'u32[]', space=smem, size = 0x4, offset = 0x4, fixed_abs, tag = 'smem constant byte address 0x4 - core index']
  #allocation1 [shape = 'u32[144,128]{1,0:T(1,128)}', space=vmem, size = 0x12000, scoped, tag = 'internal scratch']
  %s0 = inlined_call_operand.hbm [shape: bf16[8,8,16], index: 0, kind: input, shape index: {}]
  %s1 = inlined_call_operand.hbm [shape: bf16[4,16,32], index: 1, kind: input, shape index: {}]
  %s2 = inlined_call_operand.hbm [shape: bf16[4,32,32], index: 2, kind: input, shape index: {}]
  %s3 = inlined_call_operand.hbm [shape: f32[4,1,32], index: 3, kind: input, shape index: {}]
  %s4 = inlined_call_operand.hbm [shape: bf16[4,32,32], index: 4, kind: input, shape index: {}]
  %s5 = inlined_call_operand.hbm [shape: bf16[4,32,32], index: 5, kind: input, shape index: {}]
  %s6 = inlined_call_operand.hbm [shape: f32[4,1,32], index: 6, kind: input, shape index: {}]
  %s7 = inlined_call_operand.hbm [shape: f32[2,8,32], index: 7, kind: input, shape index: {}]
  %s8 = inlined_call_operand.hbm [shape: f32[2,8,32], index: 8, kind: input, shape index: {}]
  %s9 = inlined_call_operand.vmem [shape: f32[32,128], index: 9, kind: input, shape index: {}]
  %s10 = inlined_call_operand.vmem [shape: f32[1,128], index: 10, kind: input, shape index: {}]
  %s11 = inlined_call_operand.hbm [shape: f32[8,128], index: 11, kind: output, shape index: {}]
  %s12 = sld [smem:[#allocation0]]
  $region90: #{tpu_custom_call.1} parent=0
    _
  %s14 = ssub.s32 1, %s12
  %s15 = scalar_select 0, %s14, %s12
  $region1: #{tpu_custom_call.1} parent=0
    #allocation2 [shape = 'u8[16384]{0}', space=vmem, size = 0x4000, scoped, tag = 'input window, operand 0, single buffered']
    #allocation3 [shape = 's32[1]{0}', space=sflag, size = 0x4, scoped, tag = 'scoped memory for tpu_custom_call.1']
    #allocation4 [shape = 's32[1]{0}', space=sflag, size = 0x4, scoped, tag = 'scoped memory for tpu_custom_call.1']
    #allocation5 [shape = 'u8[16384]{0}', space=vmem, size = 0x4000, scoped, tag = 'input window, operand 1, single buffered']
    #allocation6 [shape = 's32[1]{0}', space=sflag, size = 0x4, scoped, tag = 'scoped memory for tpu_custom_call.1']
    #allocation7 [shape = 'u8[32768]{0}', space=vmem, size = 0x8000, scoped, tag = 'input window, operand 2, single buffered']
    #allocation8 [shape = 'u8[2048]{0}', space=vmem, size = 0x800, scoped, tag = 'input window, operand 3, single buffered']
    #allocation9 [shape = 's32[1]{0}', space=sflag, size = 0x4, scoped, tag = 'scoped memory for tpu_custom_call.1']
    #allocation10 [shape = 'u8[32768]{0}', space=vmem, size = 0x8000, scoped, tag = 'input window, operand 4, single buffered']
    #allocation11 [shape = 'u8[32768]{0}', space=vmem, size = 0x8000, scoped, tag = 'input window, operand 5, single buffered']
    #allocation12 [shape = 's32[1]{0}', space=sflag, size = 0x4, scoped, tag = 'scoped memory for tpu_custom_call.1']
    #allocation13 [shape = 'u8[2048]{0}', space=vmem, size = 0x800, scoped, tag = 'input window, operand 6, single buffered']
    #allocation14 [shape = 'u8[8192]{0}', space=vmem, size = 0x2000, scoped, tag = 'input window, operand 7, single buffered']
    #allocation15 [shape = 's32[1]{0}', space=sflag, size = 0x4, scoped, tag = 'scoped memory for tpu_custom_call.1']
    #allocation16 [shape = 'u8[8192]{0}', space=vmem, size = 0x2000, scoped, tag = 'input window, operand 8, single buffered']
    #allocation17 [shape = 'u8[4096]{0}', space=vmem, size = 0x1000, scoped, tag = 'output window, operand 0, single buffered']
    %16 = vsyncpa [#allocation3], 0
    %17 = vsyncpa [#allocation6], 0
    %18 = vsyncpa [#allocation9], 0
    %19 = vsyncpa [#allocation12], 0
    %20 = vsyncpa [#allocation15], 0
    %21 = vsyncpa [#allocation4], 0
    // Predicated region
    $region2: #{tpu_custom_call.1} parent=1 // pred_check
      _
    $region3: #{tpu_custom_call.1} parent=1 // pred_check_branch
      %23 = sbr.rel (0) target = $region5
    $region4: #{tpu_custom_call.1} parent=1 // pred_region
      %s25 = ssub.s32 512, 512
      %26 = vsyncadd [#allocation3], %s25
      %s27 = sshll.u32 [#allocation2], 4
      %s28 = int_to_ptr.vmem [resolvable:$true] %s27
      %33 = dma.hbm_to_vmem [thread:$0]  %s0, 512, %s28, [#allocation3], 64, 64, 4
    $region5: #{tpu_custom_call.1} parent=1 // pred_fallthru
      _
    // Predicated region
    $region6: #{tpu_custom_call.1} parent=1 // pred_check
      _
    $region7: #{tpu_custom_call.1} parent=1 // pred_check_branch
      %35 = sbr.rel (0) target = $region9
    $region8: #{tpu_custom_call.1} parent=1 // pred_region
      %s37 = ssub.s32 512, 512
      %38 = vsyncadd [#allocation6], %s37
      %s39 = sshll.u32 [#allocation5], 4
      %s40 = int_to_ptr.vmem [resolvable:$true] %s39
      %45 = dma.hbm_to_vmem [thread:$0]  %s1, 512, %s40, [#allocation6], 64, 64, 4
    $region9: #{tpu_custom_call.1} parent=1 // pred_fallthru
      _
    // Predicated region
    $region10: #{tpu_custom_call.1} parent=1 // pred_check
      _
    $region11: #{tpu_custom_call.1} parent=1 // pred_check_branch
      %47 = sbr.rel (0) target = $region13
    $region12: #{tpu_custom_call.1} parent=1 // pred_region
      %s49 = ssub.s32 1024, 1024
      %50 = vsyncadd [#allocation6], %s49
      %s51 = sshll.u32 [#allocation7], 4
      %s52 = int_to_ptr.vmem [resolvable:$true] %s51
      %57 = dma.hbm_to_vmem [thread:$0]  %s2, 1024, %s52, [#allocation6], 64, 64, 4
    $region13: #{tpu_custom_call.1} parent=1 // pred_fallthru
      _
    // Predicated region
    $region14: #{tpu_custom_call.1} parent=1 // pred_check
      _
    $region15: #{tpu_custom_call.1} parent=1 // pred_check_branch
      %59 = sbr.rel (0) target = $region17
    $region16: #{tpu_custom_call.1} parent=1 // pred_region
      %s61 = ssub.s32 64, 64
      %62 = vsyncadd [#allocation9], %s61
      %s63 = sshll.u32 [#allocation8], 4
      %s64 = int_to_ptr.vmem [resolvable:$true] %s63
      %69 = dma.hbm_to_vmem [thread:$0]  %s3, 64, %s64, [#allocation9], 16, 16, 1
    $region17: #{tpu_custom_call.1} parent=1 // pred_fallthru
      _
    // Predicated region
    $region18: #{tpu_custom_call.1} parent=1 // pred_check
      _
    $region19: #{tpu_custom_call.1} parent=1 // pred_check_branch
      %71 = sbr.rel (0) target = $region21
    $region20: #{tpu_custom_call.1} parent=1 // pred_region
      %s73 = ssub.s32 1024, 1024
      %74 = vsyncadd [#allocation9], %s73
      %s75 = sshll.u32 [#allocation10], 4
      %s76 = int_to_ptr.vmem [resolvable:$true] %s75
      %81 = dma.hbm_to_vmem [thread:$0]  %s4, 1024, %s76, [#allocation9], 64, 64, 4
    $region21: #{tpu_custom_call.1} parent=1 // pred_fallthru
      _
    // Predicated region
    $region22: #{tpu_custom_call.1} parent=1 // pred_check
      _
    $region23: #{tpu_custom_call.1} parent=1 // pred_check_branch
      %83 = sbr.rel (0) target = $region25
    $region24: #{tpu_custom_call.1} parent=1 // pred_region
      %s85 = ssub.s32 1024, 1024
      %86 = vsyncadd [#allocation12], %s85
      %s87 = sshll.u32 [#allocation11], 4
      %s88 = int_to_ptr.vmem [resolvable:$true] %s87
      %93 = dma.hbm_to_vmem [thread:$0]  %s5, 1024, %s88, [#allocation12], 64, 64, 4
    $region25: #{tpu_custom_call.1} parent=1 // pred_fallthru
      _
    // Predicated region
    $region26: #{tpu_custom_call.1} parent=1 // pred_check
      _
    $region27: #{tpu_custom_call.1} parent=1 // pred_check_branch
      %95 = sbr.rel (0) target = $region29
    $region28: #{tpu_custom_call.1} parent=1 // pred_region
      %s97 = ssub.s32 64, 64
      %98 = vsyncadd [#allocation12], %s97
      %s99 = sshll.u32 [#allocation13], 4
      %s100 = int_to_ptr.vmem [resolvable:$true] %s99
      %105 = dma.hbm_to_vmem [thread:$0]  %s6, 64, %s100, [#allocation12], 16, 16, 1
    $region29: #{tpu_custom_call.1} parent=1 // pred_fallthru
      _
    // Predicated region
    $region30: #{tpu_custom_call.1} parent=1 // pred_check
      _
    $region31: #{tpu_custom_call.1} parent=1 // pred_check_branch
      %107 = sbr.rel (0) target = $region33
    $region32: #{tpu_custom_call.1} parent=1 // pred_region
      %s109 = ssub.s32 256, 256
      %110 = vsyncadd [#allocation15], %s109
      %s111 = sshll.u32 [#allocation14], 4
      %s112 = int_to_ptr.vmem [resolvable:$true] %s111
      %117 = dma.hbm_to_vmem [thread:$0]  %s7, 256, %s112, [#allocation15], 128, 128, 8
    $region33: #{tpu_custom_call.1} parent=1 // pred_fallthru
      _
    // Predicated region
    $region34: #{tpu_custom_call.1} parent=1 // pred_check
      _
    $region35: #{tpu_custom_call.1} parent=1 // pred_check_branch
      %119 = sbr.rel (0) target = $region37
    $region36: #{tpu_custom_call.1} parent=1 // pred_region
      %s121 = ssub.s32 256, 256
      %122 = vsyncadd [#allocation15], %s121
      %s123 = sshll.u32 [#allocation16], 4
      %s124 = int_to_ptr.vmem [resolvable:$true] %s123
      %129 = dma.hbm_to_vmem [thread:$0]  %s8, 256, %s124, [#allocation15], 128, 128, 8
    $region37: #{tpu_custom_call.1} parent=1 // pred_fallthru
      _
    // Predicated region
    $region38: #{tpu_custom_call.1} parent=1 // pred_check
      _
    $region39: #{tpu_custom_call.1} parent=1 // pred_check_branch
      %131 = sbr.rel (0) target = $region41
    $region40: #{tpu_custom_call.1} parent=1 // pred_region
      _
    $region41: #{tpu_custom_call.1} parent=1 // pred_fallthru
      _
    // Predicated region
    $region42: #{tpu_custom_call.1} parent=1 // pred_check
      _
    $region43: #{tpu_custom_call.1} parent=1 // pred_check_branch
      %133 = sbr.rel (0) target = $region45
    $region44: #{tpu_custom_call.1} parent=1 // pred_region
      _
    $region45: #{tpu_custom_call.1} parent=1 // pred_fallthru
      _
    // Predicated region
    $region46: #{tpu_custom_call.1} parent=1 // pred_check
      _
    $region47: #{tpu_custom_call.1} parent=1 // pred_check_branch
      %135 = sbr.rel (0) target = $region49
    $region48: #{tpu_custom_call.1} parent=1 // pred_region
      %136 = dma.done [#allocation3], 512
    $region49: #{tpu_custom_call.1} parent=1 // pred_fallthru
      _
    // Predicated region
    $region50: #{tpu_custom_call.1} parent=1 // pred_check
      _
    $region51: #{tpu_custom_call.1} parent=1 // pred_check_branch
      %138 = sbr.rel (0) target = $region53
    $region52: #{tpu_custom_call.1} parent=1 // pred_region
      %139 = dma.done [#allocation6], 512
    $region53: #{tpu_custom_call.1} parent=1 // pred_fallthru
      _
    // Predicated region
    $region54: #{tpu_custom_call.1} parent=1 // pred_check
      _
    $region55: #{tpu_custom_call.1} parent=1 // pred_check_branch
      %141 = sbr.rel (0) target = $region57
    $region56: #{tpu_custom_call.1} parent=1 // pred_region
      %142 = dma.done [#allocation6], 1024
    $region57: #{tpu_custom_call.1} parent=1 // pred_fallthru
      _
    // Predicated region
    $region58: #{tpu_custom_call.1} parent=1 // pred_check
      _
    $region59: #{tpu_custom_call.1} parent=1 // pred_check_branch
      %144 = sbr.rel (0) target = $region61
    $region60: #{tpu_custom_call.1} parent=1 // pred_region
      %145 = dma.done [#allocation9], 64
    $region61: #{tpu_custom_call.1} parent=1 // pred_fallthru
      _
    // Predicated region
    $region62: #{tpu_custom_call.1} parent=1 // pred_check
      _
    $region63: #{tpu_custom_call.1} parent=1 // pred_check_branch
      %147 = sbr.rel (0) target = $region65
    $region64: #{tpu_custom_call.1} parent=1 // pred_region
      %148 = dma.done [#allocation9], 1024
    $region65: #{tpu_custom_call.1} parent=1 // pred_fallthru
      _
    // Predicated region
    $region66: #{tpu_custom_call.1} parent=1 // pred_check
      _
    $region67: #{tpu_custom_call.1} parent=1 // pred_check_branch
      %150 = sbr.rel (0) target = $region69
    $region68: #{tpu_custom_call.1} parent=1 // pred_region
      %151 = dma.done [#allocation12], 1024
    $region69: #{tpu_custom_call.1} parent=1 // pred_fallthru
      _
    // Predicated region
    $region70: #{tpu_custom_call.1} parent=1 // pred_check
      _
    $region71: #{tpu_custom_call.1} parent=1 // pred_check_branch
      %153 = sbr.rel (0) target = $region73
    $region72: #{tpu_custom_call.1} parent=1 // pred_region
      %154 = dma.done [#allocation12], 64
    $region73: #{tpu_custom_call.1} parent=1 // pred_fallthru
      _
    // Predicated region
    $region74: #{tpu_custom_call.1} parent=1 // pred_check
      _
    $region75: #{tpu_custom_call.1} parent=1 // pred_check_branch
      %156 = sbr.rel (0) target = $region77
    $region76: #{tpu_custom_call.1} parent=1 // pred_region
      %157 = dma.done [#allocation15], 256
    $region77: #{tpu_custom_call.1} parent=1 // pred_fallthru
      _
    // Predicated region
    $region78: #{tpu_custom_call.1} parent=1 // pred_check
      _
    $region79: #{tpu_custom_call.1} parent=1 // pred_check_branch
      %159 = sbr.rel (0) target = $region81
    $region80: #{tpu_custom_call.1} parent=1 // pred_region
      %160 = dma.done [#allocation15], 256
    $region81: #{tpu_custom_call.1} parent=1 // pred_fallthru
      _
    %v162 = vld [vmem:[#allocation5] sm:$0xf]
    %v163 = vld [vmem:[#allocation5 + $0x4] sm:$0xf]
    %v164 = vld [vmem:[#allocation7] sm:$0xf]
    %v165 = vld [vmem:[#allocation7 + $0x4] sm:$0xf]
    %v166 = vld [vmem:[#allocation7 + $0x8] sm:$0xf]
    %v167 = vld [vmem:[#allocation7 + $0xc] sm:$0xf]
    %v168 = vld [vmem:[#allocation8] sm:$0x1]
    %v170 = vlaneseq
    %v171 = vshrl.u32 %v170, 7
    %v172 = vsub.s32 0, %v171
    %v173 = vrot.slane %v168, %v172
    %s175 = scalar_lea.vmem [#allocation5], 8
    %v176 = vld [vmem:[%s175] sm:$0xf]
    %v177 = vld [vmem:[%s175 + $0x4] sm:$0xf]
    %s178 = scalar_lea.vmem [#allocation7], 16
    %v179 = vld [vmem:[%s178] sm:$0xf]
    %v180 = vld [vmem:[%s178 + $0x4] sm:$0xf]
    %v181 = vld [vmem:[%s178 + $0x8] sm:$0xf]
    %v182 = vld [vmem:[%s178 + $0xc] sm:$0xf]
    %s183 = scalar_lea.vmem [#allocation8], 1
    %v184 = vld [vmem:[%s183] sm:$0x1]
    %v186 = vlaneseq
    %v187 = vshrl.u32 %v186, 7
    %v188 = vsub.s32 0, %v187
    %v189 = vrot.slane %v184, %v188
    %s191 = scalar_lea.vmem [#allocation5], 16
    %v192 = vld [vmem:[%s191] sm:$0xf]
    %v193 = vld [vmem:[%s191 + $0x4] sm:$0xf]
    %s194 = scalar_lea.vmem [#allocation7], 32
    %v195 = vld [vmem:[%s194] sm:$0xf]
    %v196 = vld [vmem:[%s194 + $0x4] sm:$0xf]
    %v197 = vld [vmem:[%s194 + $0x8] sm:$0xf]
    %v198 = vld [vmem:[%s194 + $0xc] sm:$0xf]
    %s199 = scalar_lea.vmem [#allocation8], 2
    %v200 = vld [vmem:[%s199] sm:$0x1]
    %v202 = vlaneseq
    %v203 = vshrl.u32 %v202, 7
    %v204 = vsub.s32 0, %v203
    %v205 = vrot.slane %v200, %v204
    %s207 = scalar_lea.vmem [#allocation5], 24
    %v208 = vld [vmem:[%s207] sm:$0xf]
    %v209 = vld [vmem:[%s207 + $0x4] sm:$0xf]
    %s210 = scalar_lea.vmem [#allocation7], 48
    %v211 = vld [vmem:[%s210] sm:$0xf]
    %v212 = vld [vmem:[%s210 + $0x4] sm:$0xf]
    %v213 = vld [vmem:[%s210 + $0x8] sm:$0xf]
    %v214 = vld [vmem:[%s210 + $0xc] sm:$0xf]
    %s215 = scalar_lea.vmem [#allocation8], 3
    %v216 = vld [vmem:[%s215] sm:$0x1]
    %v218 = vlaneseq
    %v219 = vshrl.u32 %v218, 7
    %v220 = vsub.s32 0, %v219
    %v221 = vrot.slane %v216, %v220
    %v223 = vld [vmem:[#allocation10] sm:$0xf]
    %v224 = vld [vmem:[#allocation10 + $0x4] sm:$0xf]
    %v225 = vld [vmem:[#allocation10 + $0x8] sm:$0xf]
    %v226 = vld [vmem:[#allocation10 + $0xc] sm:$0xf]
    %v227 = vld [vmem:[#allocation11] sm:$0xf]
    %v228 = vld [vmem:[#allocation11 + $0x4] sm:$0xf]
    %v229 = vld [vmem:[#allocation11 + $0x8] sm:$0xf]
    %v230 = vld [vmem:[#allocation11 + $0xc] sm:$0xf]
    %v231 = vld [vmem:[#allocation13] sm:$0x1]
    %v233 = vlaneseq
    %v234 = vshrl.u32 %v233, 7
    %v235 = vsub.s32 0, %v234
    %v236 = vrot.slane %v231, %v235
    %s238 = scalar_lea.vmem [#allocation10], 16
    %v239 = vld [vmem:[%s238] sm:$0xf]
    %v240 = vld [vmem:[%s238 + $0x4] sm:$0xf]
    %v241 = vld [vmem:[%s238 + $0x8] sm:$0xf]
    %v242 = vld [vmem:[%s238 + $0xc] sm:$0xf]
    %s243 = scalar_lea.vmem [#allocation11], 16
    %v244 = vld [vmem:[%s243] sm:$0xf]
    %v245 = vld [vmem:[%s243 + $0x4] sm:$0xf]
    %v246 = vld [vmem:[%s243 + $0x8] sm:$0xf]
    %v247 = vld [vmem:[%s243 + $0xc] sm:$0xf]
    %s248 = scalar_lea.vmem [#allocation13], 1
    %v249 = vld [vmem:[%s248] sm:$0x1]
    %v251 = vlaneseq
    %v252 = vshrl.u32 %v251, 7
    %v253 = vsub.s32 0, %v252
    %v254 = vrot.slane %v249, %v253
    %s256 = scalar_lea.vmem [#allocation10], 32
    %v257 = vld [vmem:[%s256] sm:$0xf]
    %v258 = vld [vmem:[%s256 + $0x4] sm:$0xf]
    %v259 = vld [vmem:[%s256 + $0x8] sm:$0xf]
    %v260 = vld [vmem:[%s256 + $0xc] sm:$0xf]
    %s261 = scalar_lea.vmem [#allocation11], 32
    %v262 = vld [vmem:[%s261] sm:$0xf]
    %v263 = vld [vmem:[%s261 + $0x4] sm:$0xf]
    %v264 = vld [vmem:[%s261 + $0x8] sm:$0xf]
    %v265 = vld [vmem:[%s261 + $0xc] sm:$0xf]
    %s266 = scalar_lea.vmem [#allocation13], 2
    %v267 = vld [vmem:[%s266] sm:$0x1]
    %v269 = vlaneseq
    %v270 = vshrl.u32 %v269, 7
    %v271 = vsub.s32 0, %v270
    %v272 = vrot.slane %v267, %v271
    %s274 = scalar_lea.vmem [#allocation10], 48
    %v275 = vld [vmem:[%s274] sm:$0xf]
    %v276 = vld [vmem:[%s274 + $0x4] sm:$0xf]
    %v277 = vld [vmem:[%s274 + $0x8] sm:$0xf]
    %v278 = vld [vmem:[%s274 + $0xc] sm:$0xf]
    %s279 = scalar_lea.vmem [#allocation11], 48
    %v280 = vld [vmem:[%s279] sm:$0xf]
    %v281 = vld [vmem:[%s279 + $0x4] sm:$0xf]
    %v282 = vld [vmem:[%s279 + $0x8] sm:$0xf]
    %v283 = vld [vmem:[%s279 + $0xc] sm:$0xf]
    %s284 = scalar_lea.vmem [#allocation13], 3
    %v285 = vld [vmem:[%s284] sm:$0x1]
    %v287 = vlaneseq
    %v288 = vshrl.u32 %v287, 7
    %v289 = vsub.s32 0, %v288
    %v290 = vrot.slane %v285, %v289
    %v292 = vld [vmem:[#allocation14] sm:$0xff]
    %s293 = scalar_lea.vmem [#allocation14], 8
    %v294 = vld [vmem:[%s293] sm:$0xff]
    %v295 = vld [vmem:[#allocation16] sm:$0xff]
    %s296 = scalar_lea.vmem [#allocation16], 8
    %v297 = vld [vmem:[%s296] sm:$0xff]
    %v298 = vld [vmem:[#allocation2] sm:$0xf]
    %v299 = vpack.c.bf16 %v292, %v292
    %v304 = vunpack.c.l.b16 %v164
    %v305 = vunpack.c.l.b16 %v165
    %v306 = vunpack.c.l.b16 %v166
    %v307 = vunpack.c.l.b16 %v167
    %v308 = vpack.c.b16 %v305, %v304
    %v309 = vpack.c.b16 %v307, %v306
    %vm312 = vcmask 261120
    %v314 = vsel %vm312, %v299, 0
    %316 = vmatprep.subr.bf16.mxu0 0
    %317 = vmatpush1.bf16.msra.mxu0 %v308
    %318 = vmatprep.subr.bf16.mxu0 0
    %319 = vmatpush1.bf16.msra.mxu0 %v309
    %320 = vmatprep.subr.bf16.mxu0 0
    %321 = vmatpush1.bf16.msra.mxu0 0
    %322 = vmatprep.subr.bf16.mxu0 0
    %323 = vmatpush1.bf16.msra.mxu0 0
    %324 = vmatprep.subr.bf16.mxu0 0
    %325 = vmatpush1.bf16.msra.mxu0 0
    %326 = vmatprep.subr.bf16.mxu0 0
    %327 = vmatpush1.bf16.msra.mxu0 0
    %328 = vmatprep.subr.bf16.mxu0 0
    %329 = vmatpush1.bf16.msra.mxu0 0
    %330 = vmatprep.subr.bf16.mxu0 0
    %331 = vmatpush1.bf16.msra.mxu0 0
    %332 = vmatprep.subr.bf16.mxu0 0
    %333 = vmatpush1.bf16.msra.mxu0 0
    %334 = vmatprep.subr.bf16.mxu0 0
    %335 = vmatpush1.bf16.msra.mxu0 0
    %336 = vmatprep.subr.bf16.mxu0 0
    %337 = vmatpush1.bf16.msra.mxu0 0
    %338 = vmatprep.subr.bf16.mxu0 0
    %339 = vmatpush1.bf16.msra.mxu0 0
    %340 = vmatprep.subr.bf16.mxu0 0
    %341 = vmatpush1.bf16.msra.mxu0 0
    %342 = vmatprep.subr.bf16.mxu0 0
    %343 = vmatpush1.bf16.msra.mxu0 0
    %344 = vmatprep.subr.bf16.mxu0 0
    %345 = vmatpush1.bf16.msra.mxu0 0
    %346 = vmatprep.subr.bf16.mxu0 0
    %347 = vmatpush1.bf16.msra.mxu0 0
    %348 = vmatprep.mubr.bf16.mxu0 0
    %349 = vmatmul.mubr.bf16.gmra.mrb[0].mxu0 %v314
    %v350 = vpop.f32.mrb[0].mxu0
    %v351 = vadd.f32 0.0, %v350
    %v352 = vpop.f32.mrb[0].mxu0
    %v353 = vpop.f32.mrb[0].mxu0
    %v354 = vpop.f32.mrb[0].mxu0
    %355 = vdwg.mxu0
    %v358 = vunpack.c.l.b16 %v162
    %v359 = vunpack.c.l.b16 %v163
    %v360 = vpack.c.b16 %v359, %v358
    %vm362 = vcmask 130048
    %v364 = vsel %vm362, %v298, 0
    %366 = vmatprep.subr.bf16.mxu0 0
    %367 = vmatpush1.bf16.msra.mxu0 %v360
    %368 = vmatprep.subr.bf16.mxu0 0
    %369 = vmatpush1.bf16.msra.mxu0 0
    %370 = vmatprep.subr.bf16.mxu0 0
    %371 = vmatpush1.bf16.msra.mxu0 0
    %372 = vmatprep.subr.bf16.mxu0 0
    %373 = vmatpush1.bf16.msra.mxu0 0
    %374 = vmatprep.subr.bf16.mxu0 0
    %375 = vmatpush1.bf16.msra.mxu0 0
    %376 = vmatprep.subr.bf16.mxu0 0
    %377 = vmatpush1.bf16.msra.mxu0 0
    %378 = vmatprep.subr.bf16.mxu0 0
    %379 = vmatpush1.bf16.msra.mxu0 0
    %380 = vmatprep.subr.bf16.mxu0 0
    %381 = vmatpush1.bf16.msra.mxu0 0
    %382 = vmatprep.subr.bf16.mxu0 0
    %383 = vmatpush1.bf16.msra.mxu0 0
    %384 = vmatprep.subr.bf16.mxu0 0
    %385 = vmatpush1.bf16.msra.mxu0 0
    %386 = vmatprep.subr.bf16.mxu0 0
    %387 = vmatpush1.bf16.msra.mxu0 0
    %388 = vmatprep.subr.bf16.mxu0 0
    %389 = vmatpush1.bf16.msra.mxu0 0
    %390 = vmatprep.subr.bf16.mxu0 0
    %391 = vmatpush1.bf16.msra.mxu0 0
    %392 = vmatprep.subr.bf16.mxu0 0
    %393 = vmatpush1.bf16.msra.mxu0 0
    %394 = vmatprep.subr.bf16.mxu0 0
    %395 = vmatpush1.bf16.msra.mxu0 0
    %396 = vmatprep.subr.bf16.mxu0 0
    %397 = vmatpush1.bf16.msra.mxu0 0
    %398 = vmatprep.mubr.bf16.mxu0 0
    %399 = vmatmul.mubr.bf16.gmra.mrb[0].mxu0 %v364
    %v400 = vpop.f32.mrb[0].mxu0
    %v401 = vadd.f32 %v351, %v400
    %v402 = vpop.f32.mrb[0].mxu0
    %v403 = vpop.f32.mrb[0].mxu0
    %v404 = vpop.f32.mrb[0].mxu0
    %405 = vdwg.mxu0
    %v406 = vadd.f32 %v401, %v173
    %v411 = vunpack.c.l.b16 %v179
    %v412 = vunpack.c.l.b16 %v180
    %v413 = vunpack.c.l.b16 %v181
    %v414 = vunpack.c.l.b16 %v182
    %v415 = vpack.c.b16 %v412, %v411
    %v416 = vpack.c.b16 %v414, %v413
    %419 = vmatprep.subr.bf16.mxu0 0
    %420 = vmatpush1.bf16.msra.mxu0 %v415
    %421 = vmatprep.subr.bf16.mxu0 0
    %422 = vmatpush1.bf16.msra.mxu0 %v416
    %423 = vmatprep.subr.bf16.mxu0 0
    %424 = vmatpush1.bf16.msra.mxu0 0
    %425 = vmatprep.subr.bf16.mxu0 0
    %426 = vmatpush1.bf16.msra.mxu0 0
    %427 = vmatprep.subr.bf16.mxu0 0
    %428 = vmatpush1.bf16.msra.mxu0 0
    %429 = vmatprep.subr.bf16.mxu0 0
    %430 = vmatpush1.bf16.msra.mxu0 0
    %431 = vmatprep.subr.bf16.mxu0 0
    %432 = vmatpush1.bf16.msra.mxu0 0
    %433 = vmatprep.subr.bf16.mxu0 0
    %434 = vmatpush1.bf16.msra.mxu0 0
    %435 = vmatprep.subr.bf16.mxu0 0
    %436 = vmatpush1.bf16.msra.mxu0 0
    %437 = vmatprep.subr.bf16.mxu0 0
    %438 = vmatpush1.bf16.msra.mxu0 0
    %439 = vmatprep.subr.bf16.mxu0 0
    %440 = vmatpush1.bf16.msra.mxu0 0
    %441 = vmatprep.subr.bf16.mxu0 0
    %442 = vmatpush1.bf16.msra.mxu0 0
    %443 = vmatprep.subr.bf16.mxu0 0
    %444 = vmatpush1.bf16.msra.mxu0 0
    %445 = vmatprep.subr.bf16.mxu0 0
    %446 = vmatpush1.bf16.msra.mxu0 0
    %447 = vmatprep.subr.bf16.mxu0 0
    %448 = vmatpush1.bf16.msra.mxu0 0
    %449 = vmatprep.subr.bf16.mxu0 0
    %450 = vmatpush1.bf16.msra.mxu0 0
    %451 = vmatprep.mubr.bf16.mxu0 0
    %452 = vmatmul.mubr.bf16.gmra.mrb[0].mxu0 %v314
    %v453 = vpop.f32.mrb[0].mxu0
    %v454 = vadd.f32 0.0, %v453
    %v455 = vpop.f32.mrb[0].mxu0
    %v456 = vpop.f32.mrb[0].mxu0
    %v457 = vpop.f32.mrb[0].mxu0
    %458 = vdwg.mxu0
    %v461 = vunpack.c.l.b16 %v176
    %v462 = vunpack.c.l.b16 %v177
    %v463 = vpack.c.b16 %v462, %v461
    %465 = vmatprep.subr.bf16.mxu0 0
    %466 = vmatpush1.bf16.msra.mxu0 %v463
    %467 = vmatprep.subr.bf16.mxu0 0
    %468 = vmatpush1.bf16.msra.mxu0 0
    %469 = vmatprep.subr.bf16.mxu0 0
    %470 = vmatpush1.bf16.msra.mxu0 0
    %471 = vmatprep.subr.bf16.mxu0 0
    %472 = vmatpush1.bf16.msra.mxu0 0
    %473 = vmatprep.subr.bf16.mxu0 0
    %474 = vmatpush1.bf16.msra.mxu0 0
    %475 = vmatprep.subr.bf16.mxu0 0
    %476 = vmatpush1.bf16.msra.mxu0 0
    %477 = vmatprep.subr.bf16.mxu0 0
    %478 = vmatpush1.bf16.msra.mxu0 0
    %479 = vmatprep.subr.bf16.mxu0 0
    %480 = vmatpush1.bf16.msra.mxu0 0
    %481 = vmatprep.subr.bf16.mxu0 0
    %482 = vmatpush1.bf16.msra.mxu0 0
    %483 = vmatprep.subr.bf16.mxu0 0
    %484 = vmatpush1.bf16.msra.mxu0 0
    %485 = vmatprep.subr.bf16.mxu0 0
    %486 = vmatpush1.bf16.msra.mxu0 0
    %487 = vmatprep.subr.bf16.mxu0 0
    %488 = vmatpush1.bf16.msra.mxu0 0
    %489 = vmatprep.subr.bf16.mxu0 0
    %490 = vmatpush1.bf16.msra.mxu0 0
    %491 = vmatprep.subr.bf16.mxu0 0
    %492 = vmatpush1.bf16.msra.mxu0 0
    %493 = vmatprep.subr.bf16.mxu0 0
    %494 = vmatpush1.bf16.msra.mxu0 0
    %495 = vmatprep.subr.bf16.mxu0 0
    %496 = vmatpush1.bf16.msra.mxu0 0
    %497 = vmatprep.mubr.bf16.mxu0 0
    %498 = vmatmul.mubr.bf16.gmra.mrb[0].mxu0 %v364
    %v499 = vpop.f32.mrb[0].mxu0
    %v500 = vadd.f32 %v454, %v499
    %v501 = vpop.f32.mrb[0].mxu0
    %v502 = vpop.f32.mrb[0].mxu0
    %v503 = vpop.f32.mrb[0].mxu0
    %504 = vdwg.mxu0
    %v505 = vadd.f32 %v500, %v189
    %v510 = vunpack.c.l.b16 %v195
    %v511 = vunpack.c.l.b16 %v196
    %v512 = vunpack.c.l.b16 %v197
    %v513 = vunpack.c.l.b16 %v198
    %v514 = vpack.c.b16 %v511, %v510
    %v515 = vpack.c.b16 %v513, %v512
    %518 = vmatprep.subr.bf16.mxu0 0
    %519 = vmatpush1.bf16.msra.mxu0 %v514
    %520 = vmatprep.subr.bf16.mxu0 0
    %521 = vmatpush1.bf16.msra.mxu0 %v515
    %522 = vmatprep.subr.bf16.mxu0 0
    %523 = vmatpush1.bf16.msra.mxu0 0
    %524 = vmatprep.subr.bf16.mxu0 0
    %525 = vmatpush1.bf16.msra.mxu0 0
    %526 = vmatprep.subr.bf16.mxu0 0
    %527 = vmatpush1.bf16.msra.mxu0 0
    %528 = vmatprep.subr.bf16.mxu0 0
    %529 = vmatpush1.bf16.msra.mxu0 0
    %530 = vmatprep.subr.bf16.mxu0 0
    %531 = vmatpush1.bf16.msra.mxu0 0
    %532 = vmatprep.subr.bf16.mxu0 0
    %533 = vmatpush1.bf16.msra.mxu0 0
    %534 = vmatprep.subr.bf16.mxu0 0
    %535 = vmatpush1.bf16.msra.mxu0 0
    %536 = vmatprep.subr.bf16.mxu0 0
    %537 = vmatpush1.bf16.msra.mxu0 0
    %538 = vmatprep.subr.bf16.mxu0 0
    %539 = vmatpush1.bf16.msra.mxu0 0
    %540 = vmatprep.subr.bf16.mxu0 0
    %541 = vmatpush1.bf16.msra.mxu0 0
    %542 = vmatprep.subr.bf16.mxu0 0
    %543 = vmatpush1.bf16.msra.mxu0 0
    %544 = vmatprep.subr.bf16.mxu0 0
    %545 = vmatpush1.bf16.msra.mxu0 0
    %546 = vmatprep.subr.bf16.mxu0 0
    %547 = vmatpush1.bf16.msra.mxu0 0
    %548 = vmatprep.subr.bf16.mxu0 0
    %549 = vmatpush1.bf16.msra.mxu0 0
    %550 = vmatprep.mubr.bf16.mxu0 0
    %551 = vmatmul.mubr.bf16.gmra.mrb[0].mxu0 %v314
    %v552 = vpop.f32.mrb[0].mxu0
    %v553 = vadd.f32 0.0, %v552
    %v554 = vpop.f32.mrb[0].mxu0
    %v555 = vpop.f32.mrb[0].mxu0
    %v556 = vpop.f32.mrb[0].mxu0
    %557 = vdwg.mxu0
    %v560 = vunpack.c.l.b16 %v192
    %v561 = vunpack.c.l.b16 %v193
    %v562 = vpack.c.b16 %v561, %v560
    %564 = vmatprep.subr.bf16.mxu0 0
    %565 = vmatpush1.bf16.msra.mxu0 %v562
    %566 = vmatprep.subr.bf16.mxu0 0
    %567 = vmatpush1.bf16.msra.mxu0 0
    %568 = vmatprep.subr.bf16.mxu0 0
    %569 = vmatpush1.bf16.msra.mxu0 0
    %570 = vmatprep.subr.bf16.mxu0 0
    %571 = vmatpush1.bf16.msra.mxu0 0
    %572 = vmatprep.subr.bf16.mxu0 0
    %573 = vmatpush1.bf16.msra.mxu0 0
    %574 = vmatprep.subr.bf16.mxu0 0
    %575 = vmatpush1.bf16.msra.mxu0 0
    %576 = vmatprep.subr.bf16.mxu0 0
    %577 = vmatpush1.bf16.msra.mxu0 0
    %578 = vmatprep.subr.bf16.mxu0 0
    %579 = vmatpush1.bf16.msra.mxu0 0
    %580 = vmatprep.subr.bf16.mxu0 0
    %581 = vmatpush1.bf16.msra.mxu0 0
    %582 = vmatprep.subr.bf16.mxu0 0
    %583 = vmatpush1.bf16.msra.mxu0 0
    %584 = vmatprep.subr.bf16.mxu0 0
    %585 = vmatpush1.bf16.msra.mxu0 0
    %586 = vmatprep.subr.bf16.mxu0 0
    %587 = vmatpush1.bf16.msra.mxu0 0
    %588 = vmatprep.subr.bf16.mxu0 0
    %589 = vmatpush1.bf16.msra.mxu0 0
    %590 = vmatprep.subr.bf16.mxu0 0
    %591 = vmatpush1.bf16.msra.mxu0 0
    %592 = vmatprep.subr.bf16.mxu0 0
    %593 = vmatpush1.bf16.msra.mxu0 0
    %594 = vmatprep.subr.bf16.mxu0 0
    %595 = vmatpush1.bf16.msra.mxu0 0
    %596 = vmatprep.mubr.bf16.mxu0 0
    %597 = vmatmul.mubr.bf16.gmra.mrb[0].mxu0 %v364
    %v598 = vpop.f32.mrb[0].mxu0
    %v599 = vadd.f32 %v553, %v598
    %v600 = vpop.f32.mrb[0].mxu0
    %v601 = vpop.f32.mrb[0].mxu0
    %v602 = vpop.f32.mrb[0].mxu0
    %603 = vdwg.mxu0
    %v604 = vadd.f32 %v599, %v205
    %v609 = vunpack.c.l.b16 %v211
    %v610 = vunpack.c.l.b16 %v212
    %v611 = vunpack.c.l.b16 %v213
    %v612 = vunpack.c.l.b16 %v214
    %v613 = vpack.c.b16 %v610, %v609
    %v614 = vpack.c.b16 %v612, %v611
    %617 = vmatprep.subr.bf16.mxu0 0
    %618 = vmatpush1.bf16.msra.mxu0 %v613
    %619 = vmatprep.subr.bf16.mxu0 0
    %620 = vmatpush1.bf16.msra.mxu0 %v614
    %621 = vmatprep.subr.bf16.mxu0 0
    %622 = vmatpush1.bf16.msra.mxu0 0
    %623 = vmatprep.subr.bf16.mxu0 0
    %624 = vmatpush1.bf16.msra.mxu0 0
    %625 = vmatprep.subr.bf16.mxu0 0
    %626 = vmatpush1.bf16.msra.mxu0 0
    %627 = vmatprep.subr.bf16.mxu0 0
    %628 = vmatpush1.bf16.msra.mxu0 0
    %629 = vmatprep.subr.bf16.mxu0 0
    %630 = vmatpush1.bf16.msra.mxu0 0
    %631 = vmatprep.subr.bf16.mxu0 0
    %632 = vmatpush1.bf16.msra.mxu0 0
    %633 = vmatprep.subr.bf16.mxu0 0
    %634 = vmatpush1.bf16.msra.mxu0 0
    %635 = vmatprep.subr.bf16.mxu0 0
    %636 = vmatpush1.bf16.msra.mxu0 0
    %637 = vmatprep.subr.bf16.mxu0 0
    %638 = vmatpush1.bf16.msra.mxu0 0
    %639 = vmatprep.subr.bf16.mxu0 0
    %640 = vmatpush1.bf16.msra.mxu0 0
    %641 = vmatprep.subr.bf16.mxu0 0
    %642 = vmatpush1.bf16.msra.mxu0 0
    %643 = vmatprep.subr.bf16.mxu0 0
    %644 = vmatpush1.bf16.msra.mxu0 0
    %645 = vmatprep.subr.bf16.mxu0 0
    %646 = vmatpush1.bf16.msra.mxu0 0
    %647 = vmatprep.subr.bf16.mxu0 0
    %648 = vmatpush1.bf16.msra.mxu0 0
    %649 = vmatprep.mubr.bf16.mxu0 0
    %650 = vmatmul.mubr.bf16.gmra.mrb[0].mxu0 %v314
    %v651 = vpop.f32.mrb[0].mxu0
    %v652 = vadd.f32 0.0, %v651
    %v653 = vpop.f32.mrb[0].mxu0
    %v654 = vpop.f32.mrb[0].mxu0
    %v655 = vpop.f32.mrb[0].mxu0
    %656 = vdwg.mxu0
    %v659 = vunpack.c.l.b16 %v208
    %v660 = vunpack.c.l.b16 %v209
    %v661 = vpack.c.b16 %v660, %v659
    %663 = vmatprep.subr.bf16.mxu0 0
    %664 = vmatpush1.bf16.msra.mxu0 %v661
    %665 = vmatprep.subr.bf16.mxu0 0
    %666 = vmatpush1.bf16.msra.mxu0 0
    %667 = vmatprep.subr.bf16.mxu0 0
    %668 = vmatpush1.bf16.msra.mxu0 0
    %669 = vmatprep.subr.bf16.mxu0 0
    %670 = vmatpush1.bf16.msra.mxu0 0
    %671 = vmatprep.subr.bf16.mxu0 0
    %672 = vmatpush1.bf16.msra.mxu0 0
    %673 = vmatprep.subr.bf16.mxu0 0
    %674 = vmatpush1.bf16.msra.mxu0 0
    %675 = vmatprep.subr.bf16.mxu0 0
    %676 = vmatpush1.bf16.msra.mxu0 0
    %677 = vmatprep.subr.bf16.mxu0 0
    %678 = vmatpush1.bf16.msra.mxu0 0
    %679 = vmatprep.subr.bf16.mxu0 0
    %680 = vmatpush1.bf16.msra.mxu0 0
    %681 = vmatprep.subr.bf16.mxu0 0
    %682 = vmatpush1.bf16.msra.mxu0 0
    %683 = vmatprep.subr.bf16.mxu0 0
    %684 = vmatpush1.bf16.msra.mxu0 0
    %685 = vmatprep.subr.bf16.mxu0 0
    %686 = vmatpush1.bf16.msra.mxu0 0
    %687 = vmatprep.subr.bf16.mxu0 0
    %688 = vmatpush1.bf16.msra.mxu0 0
    %689 = vmatprep.subr.bf16.mxu0 0
    %690 = vmatpush1.bf16.msra.mxu0 0
    %691 = vmatprep.subr.bf16.mxu0 0
    %692 = vmatpush1.bf16.msra.mxu0 0
    %693 = vmatprep.subr.bf16.mxu0 0
    %694 = vmatpush1.bf16.msra.mxu0 0
    %695 = vmatprep.mubr.bf16.mxu0 0
    %696 = vmatmul.mubr.bf16.gmra.mrb[0].mxu0 %v364
    %v697 = vpop.f32.mrb[0].mxu0
    %v698 = vadd.f32 %v652, %v697
    %v699 = vpop.f32.mrb[0].mxu0
    %v700 = vpop.f32.mrb[0].mxu0
    %v701 = vpop.f32.mrb[0].mxu0
    %702 = vdwg.mxu0
    %v703 = vadd.f32 %v698, %v221
    %v704 = vxor.u32 %v406, 2147483648
    %v705 = vmul.f32 %v704, 1.442695
    %v706 = vpow.pop %v705
    %v707 = vadd.f32 %v706, 1.0
    %v708 = vrcp.pop %v707
    %v709 = vmul.f32 1.0, %v708
    %v710 = vxor.u32 %v505, 2147483648
    %v711 = vmul.f32 %v710, 1.442695
    %v712 = vpow.pop %v711
    %v713 = vadd.f32 %v712, 1.0
    %v714 = vrcp.pop %v713
    %v715 = vmul.f32 1.0, %v714
    %v716 = vtanh.pop %v604
    %v717 = vxor.u32 %v703, 2147483648
    %v718 = vmul.f32 %v717, 1.442695
    %v719 = vpow.pop %v718
    %v720 = vadd.f32 %v719, 1.0
    %v721 = vrcp.pop %v720
    %v722 = vmul.f32 1.0, %v721
    %v723 = vmul.f32 %v715, %v295
    %v724 = vmul.f32 %v709, %v716
    %v725 = vadd.f32 %v723, %v724
    %v726 = vtanh.pop %v725
    %v727 = vmul.f32 %v722, %v726
    %v728 = vpack.c.bf16 %v727, %v727
    %v729 = vpack.c.bf16 %v294, %v294
    %v734 = vunpack.c.l.b16 %v227
    %v735 = vunpack.c.l.b16 %v228
    %v736 = vunpack.c.l.b16 %v229
    %v737 = vunpack.c.l.b16 %v230
    %v738 = vpack.c.b16 %v735, %v734
    %v739 = vpack.c.b16 %v737, %v736
    %v743 = vsel %vm312, %v729, 0
    %745 = vmatprep.subr.bf16.mxu0 0
    %746 = vmatpush1.bf16.msra.mxu0 %v738
    %747 = vmatprep.subr.bf16.mxu0 0
    %748 = vmatpush1.bf16.msra.mxu0 %v739
    %749 = vmatprep.subr.bf16.mxu0 0
    %750 = vmatpush1.bf16.msra.mxu0 0
    %751 = vmatprep.subr.bf16.mxu0 0
    %752 = vmatpush1.bf16.msra.mxu0 0
    %753 = vmatprep.subr.bf16.mxu0 0
    %754 = vmatpush1.bf16.msra.mxu0 0
    %755 = vmatprep.subr.bf16.mxu0 0
    %756 = vmatpush1.bf16.msra.mxu0 0
    %757 = vmatprep.subr.bf16.mxu0 0
    %758 = vmatpush1.bf16.msra.mxu0 0
    %759 = vmatprep.subr.bf16.mxu0 0
    %760 = vmatpush1.bf16.msra.mxu0 0
    %761 = vmatprep.subr.bf16.mxu0 0
    %762 = vmatpush1.bf16.msra.mxu0 0
    %763 = vmatprep.subr.bf16.mxu0 0
    %764 = vmatpush1.bf16.msra.mxu0 0
    %765 = vmatprep.subr.bf16.mxu0 0
    %766 = vmatpush1.bf16.msra.mxu0 0
    %767 = vmatprep.subr.bf16.mxu0 0
    %768 = vmatpush1.bf16.msra.mxu0 0
    %769 = vmatprep.subr.bf16.mxu0 0
    %770 = vmatpush1.bf16.msra.mxu0 0
    %771 = vmatprep.subr.bf16.mxu0 0
    %772 = vmatpush1.bf16.msra.mxu0 0
    %773 = vmatprep.subr.bf16.mxu0 0
    %774 = vmatpush1.bf16.msra.mxu0 0
    %775 = vmatprep.subr.bf16.mxu0 0
    %776 = vmatpush1.bf16.msra.mxu0 0
    %777 = vmatprep.mubr.bf16.mxu0 0
    %778 = vmatmul.mubr.bf16.gmra.mrb[0].mxu0 %v743
    %v779 = vpop.f32.mrb[0].mxu0
    %v780 = vadd.f32 0.0, %v779
    %v781 = vpop.f32.mrb[0].mxu0
    %v782 = vpop.f32.mrb[0].mxu0
    %v783 = vpop.f32.mrb[0].mxu0
    %784 = vdwg.mxu0
    %v789 = vunpack.c.l.b16 %v223
    %v790 = vunpack.c.l.b16 %v224
    %v791 = vunpack.c.l.b16 %v225
    %v792 = vunpack.c.l.b16 %v226
    %v793 = vpack.c.b16 %v790, %v789
    %v794 = vpack.c.b16 %v792, %v791
    %v798 = vsel %vm312, %v728, 0
    %800 = vmatprep.subr.bf16.mxu0 0
    %801 = vmatpush1.bf16.msra.mxu0 %v793
    %802 = vmatprep.subr.bf16.mxu0 0
    %803 = vmatpush1.bf16.msra.mxu0 %v794
    %804 = vmatprep.subr.bf16.mxu0 0
    %805 = vmatpush1.bf16.msra.mxu0 0
    %806 = vmatprep.subr.bf16.mxu0 0
    %807 = vmatpush1.bf16.msra.mxu0 0
    %808 = vmatprep.subr.bf16.mxu0 0
    %809 = vmatpush1.bf16.msra.mxu0 0
    %810 = vmatprep.subr.bf16.mxu0 0
    %811 = vmatpush1.bf16.msra.mxu0 0
    %812 = vmatprep.subr.bf16.mxu0 0
    %813 = vmatpush1.bf16.msra.mxu0 0
    %814 = vmatprep.subr.bf16.mxu0 0
    %815 = vmatpush1.bf16.msra.mxu0 0
    %816 = vmatprep.subr.bf16.mxu0 0
    %817 = vmatpush1.bf16.msra.mxu0 0
    %818 = vmatprep.subr.bf16.mxu0 0
    %819 = vmatpush1.bf16.msra.mxu0 0
    %820 = vmatprep.subr.bf16.mxu0 0
    %821 = vmatpush1.bf16.msra.mxu0 0
    %822 = vmatprep.subr.bf16.mxu0 0
    %823 = vmatpush1.bf16.msra.mxu0 0
    %824 = vmatprep.subr.bf16.mxu0 0
    %825 = vmatpush1.bf16.msra.mxu0 0
    %826 = vmatprep.subr.bf16.mxu0 0
    %827 = vmatpush1.bf16.msra.mxu0 0
    %828 = vmatprep.subr.bf16.mxu0 0
    %829 = vmatpush1.bf16.msra.mxu0 0
    %830 = vmatprep.subr.bf16.mxu0 0
    %831 = vmatpush1.bf16.msra.mxu0 0
    %832 = vmatprep.mubr.bf16.mxu0 0
    %833 = vmatmul.mubr.bf16.gmra.mrb[0].mxu0 %v798
    %v834 = vpop.f32.mrb[0].mxu0
    %v835 = vadd.f32 %v780, %v834
    %v836 = vpop.f32.mrb[0].mxu0
    %v837 = vpop.f32.mrb[0].mxu0
    %v838 = vpop.f32.mrb[0].mxu0
    %839 = vdwg.mxu0
    %v840 = vadd.f32 %v835, %v236
    %v845 = vunpack.c.l.b16 %v244
    %v846 = vunpack.c.l.b16 %v245
    %v847 = vunpack.c.l.b16 %v246
    %v848 = vunpack.c.l.b16 %v247
    %v849 = vpack.c.b16 %v846, %v845
    %v850 = vpack.c.b16 %v848, %v847
    %853 = vmatprep.subr.bf16.mxu0 0
    %854 = vmatpush1.bf16.msra.mxu0 %v849
    %855 = vmatprep.subr.bf16.mxu0 0
    %856 = vmatpush1.bf16.msra.mxu0 %v850
    %857 = vmatprep.subr.bf16.mxu0 0
    %858 = vmatpush1.bf16.msra.mxu0 0
    %859 = vmatprep.subr.bf16.mxu0 0
    %860 = vmatpush1.bf16.msra.mxu0 0
    %861 = vmatprep.subr.bf16.mxu0 0
    %862 = vmatpush1.bf16.msra.mxu0 0
    %863 = vmatprep.subr.bf16.mxu0 0
    %864 = vmatpush1.bf16.msra.mxu0 0
    %865 = vmatprep.subr.bf16.mxu0 0
    %866 = vmatpush1.bf16.msra.mxu0 0
    %867 = vmatprep.subr.bf16.mxu0 0
    %868 = vmatpush1.bf16.msra.mxu0 0
    %869 = vmatprep.subr.bf16.mxu0 0
    %870 = vmatpush1.bf16.msra.mxu0 0
    %871 = vmatprep.subr.bf16.mxu0 0
    %872 = vmatpush1.bf16.msra.mxu0 0
    %873 = vmatprep.subr.bf16.mxu0 0
    %874 = vmatpush1.bf16.msra.mxu0 0
    %875 = vmatprep.subr.bf16.mxu0 0
    %876 = vmatpush1.bf16.msra.mxu0 0
    %877 = vmatprep.subr.bf16.mxu0 0
    %878 = vmatpush1.bf16.msra.mxu0 0
    %879 = vmatprep.subr.bf16.mxu0 0
    %880 = vmatpush1.bf16.msra.mxu0 0
    %881 = vmatprep.subr.bf16.mxu0 0
    %882 = vmatpush1.bf16.msra.mxu0 0
    %883 = vmatprep.subr.bf16.mxu0 0
    %884 = vmatpush1.bf16.msra.mxu0 0
    %885 = vmatprep.mubr.bf16.mxu0 0
    %886 = vmatmul.mubr.bf16.gmra.mrb[0].mxu0 %v743
    %v887 = vpop.f32.mrb[0].mxu0
    %v888 = vadd.f32 0.0, %v887
    %v889 = vpop.f32.mrb[0].mxu0
    %v890 = vpop.f32.mrb[0].mxu0
    %v891 = vpop.f32.mrb[0].mxu0
    %892 = vdwg.mxu0
    %v897 = vunpack.c.l.b16 %v239
    %v898 = vunpack.c.l.b16 %v240
    %v899 = vunpack.c.l.b16 %v241
    %v900 = vunpack.c.l.b16 %v242
    %v901 = vpack.c.b16 %v898, %v897
    %v902 = vpack.c.b16 %v900, %v899
    %905 = vmatprep.subr.bf16.mxu0 0
    %906 = vmatpush1.bf16.msra.mxu0 %v901
    %907 = vmatprep.subr.bf16.mxu0 0
    %908 = vmatpush1.bf16.msra.mxu0 %v902
    %909 = vmatprep.subr.bf16.mxu0 0
    %910 = vmatpush1.bf16.msra.mxu0 0
    %911 = vmatprep.subr.bf16.mxu0 0
    %912 = vmatpush1.bf16.msra.mxu0 0
    %913 = vmatprep.subr.bf16.mxu0 0
    %914 = vmatpush1.bf16.msra.mxu0 0
    %915 = vmatprep.subr.bf16.mxu0 0
    %916 = vmatpush1.bf16.msra.mxu0 0
    %917 = vmatprep.subr.bf16.mxu0 0
    %918 = vmatpush1.bf16.msra.mxu0 0
    %919 = vmatprep.subr.bf16.mxu0 0
    %920 = vmatpush1.bf16.msra.mxu0 0
    %921 = vmatprep.subr.bf16.mxu0 0
    %922 = vmatpush1.bf16.msra.mxu0 0
    %923 = vmatprep.subr.bf16.mxu0 0
    %924 = vmatpush1.bf16.msra.mxu0 0
    %925 = vmatprep.subr.bf16.mxu0 0
    %926 = vmatpush1.bf16.msra.mxu0 0
    %927 = vmatprep.subr.bf16.mxu0 0
    %928 = vmatpush1.bf16.msra.mxu0 0
    %929 = vmatprep.subr.bf16.mxu0 0
    %930 = vmatpush1.bf16.msra.mxu0 0
    %931 = vmatprep.subr.bf16.mxu0 0
    %932 = vmatpush1.bf16.msra.mxu0 0
    %933 = vmatprep.subr.bf16.mxu0 0
    %934 = vmatpush1.bf16.msra.mxu0 0
    %935 = vmatprep.subr.bf16.mxu0 0
    %936 = vmatpush1.bf16.msra.mxu0 0
    %937 = vmatprep.mubr.bf16.mxu0 0
    %938 = vmatmul.mubr.bf16.gmra.mrb[0].mxu0 %v798
    %v939 = vpop.f32.mrb[0].mxu0
    %v940 = vadd.f32 %v888, %v939
    %v941 = vpop.f32.mrb[0].mxu0
    %v942 = vpop.f32.mrb[0].mxu0
    %v943 = vpop.f32.mrb[0].mxu0
    %944 = vdwg.mxu0
    %v945 = vadd.f32 %v940, %v254
    %v950 = vunpack.c.l.b16 %v262
    %v951 = vunpack.c.l.b16 %v263
    %v952 = vunpack.c.l.b16 %v264
    %v953 = vunpack.c.l.b16 %v265
    %v954 = vpack.c.b16 %v951, %v950
    %v955 = vpack.c.b16 %v953, %v952
    %958 = vmatprep.subr.bf16.mxu0 0
    %959 = vmatpush1.bf16.msra.mxu0 %v954
    %960 = vmatprep.subr.bf16.mxu0 0
    %961 = vmatpush1.bf16.msra.mxu0 %v955
    %962 = vmatprep.subr.bf16.mxu0 0
    %963 = vmatpush1.bf16.msra.mxu0 0
    %964 = vmatprep.subr.bf16.mxu0 0
    %965 = vmatpush1.bf16.msra.mxu0 0
    %966 = vmatprep.subr.bf16.mxu0 0
    %967 = vmatpush1.bf16.msra.mxu0 0
    %968 = vmatprep.subr.bf16.mxu0 0
    %969 = vmatpush1.bf16.msra.mxu0 0
    %970 = vmatprep.subr.bf16.mxu0 0
    %971 = vmatpush1.bf16.msra.mxu0 0
    %972 = vmatprep.subr.bf16.mxu0 0
    %973 = vmatpush1.bf16.msra.mxu0 0
    %974 = vmatprep.subr.bf16.mxu0 0
    %975 = vmatpush1.bf16.msra.mxu0 0
    %976 = vmatprep.subr.bf16.mxu0 0
    %977 = vmatpush1.bf16.msra.mxu0 0
    %978 = vmatprep.subr.bf16.mxu0 0
    %979 = vmatpush1.bf16.msra.mxu0 0
    %980 = vmatprep.subr.bf16.mxu0 0
    %981 = vmatpush1.bf16.msra.mxu0 0
    %982 = vmatprep.subr.bf16.mxu0 0
    %983 = vmatpush1.bf16.msra.mxu0 0
    %984 = vmatprep.subr.bf16.mxu0 0
    %985 = vmatpush1.bf16.msra.mxu0 0
    %986 = vmatprep.subr.bf16.mxu0 0
    %987 = vmatpush1.bf16.msra.mxu0 0
    %988 = vmatprep.subr.bf16.mxu0 0
    %989 = vmatpush1.bf16.msra.mxu0 0
    %990 = vmatprep.mubr.bf16.mxu0 0
    %991 = vmatmul.mubr.bf16.gmra.mrb[0].mxu0 %v743
    %v992 = vpop.f32.mrb[0].mxu0
    %v993 = vadd.f32 0.0, %v992
    %v994 = vpop.f32.mrb[0].mxu0
    %v995 = vpop.f32.mrb[0].mxu0
    %v996 = vpop.f32.mrb[0].mxu0
    %997 = vdwg.mxu0
    %v1002 = vunpack.c.l.b16 %v257
    %v1003 = vunpack.c.l.b16 %v258
    %v1004 = vunpack.c.l.b16 %v259
    %v1005 = vunpack.c.l.b16 %v260
    %v1006 = vpack.c.b16 %v1003, %v1002
    %v1007 = vpack.c.b16 %v1005, %v1004
    %1010 = vmatprep.subr.bf16.mxu0 0
    %1011 = vmatpush1.bf16.msra.mxu0 %v1006
    %1012 = vmatprep.subr.bf16.mxu0 0
    %1013 = vmatpush1.bf16.msra.mxu0 %v1007
    %1014 = vmatprep.subr.bf16.mxu0 0
    %1015 = vmatpush1.bf16.msra.mxu0 0
    %1016 = vmatprep.subr.bf16.mxu0 0
    %1017 = vmatpush1.bf16.msra.mxu0 0
    %1018 = vmatprep.subr.bf16.mxu0 0
    %1019 = vmatpush1.bf16.msra.mxu0 0
    %1020 = vmatprep.subr.bf16.mxu0 0
    %1021 = vmatpush1.bf16.msra.mxu0 0
    %1022 = vmatprep.subr.bf16.mxu0 0
    %1023 = vmatpush1.bf16.msra.mxu0 0
    %1024 = vmatprep.subr.bf16.mxu0 0
    %1025 = vmatpush1.bf16.msra.mxu0 0
    %1026 = vmatprep.subr.bf16.mxu0 0
    %1027 = vmatpush1.bf16.msra.mxu0 0
    %1028 = vmatprep.subr.bf16.mxu0 0
    %1029 = vmatpush1.bf16.msra.mxu0 0
    %1030 = vmatprep.subr.bf16.mxu0 0
    %1031 = vmatpush1.bf16.msra.mxu0 0
    %1032 = vmatprep.subr.bf16.mxu0 0
    %1033 = vmatpush1.bf16.msra.mxu0 0
    %1034 = vmatprep.subr.bf16.mxu0 0
    %1035 = vmatpush1.bf16.msra.mxu0 0
    %1036 = vmatprep.subr.bf16.mxu0 0
    %1037 = vmatpush1.bf16.msra.mxu0 0
    %1038 = vmatprep.subr.bf16.mxu0 0
    %1039 = vmatpush1.bf16.msra.mxu0 0
    %1040 = vmatprep.subr.bf16.mxu0 0
    %1041 = vmatpush1.bf16.msra.mxu0 0
    %1042 = vmatprep.mubr.bf16.mxu0 0
    %1043 = vmatmul.mubr.bf16.gmra.mrb[0].mxu0 %v798
    %v1044 = vpop.f32.mrb[0].mxu0
    %v1045 = vadd.f32 %v993, %v1044
    %v1046 = vpop.f32.mrb[0].mxu0
    %v1047 = vpop.f32.mrb[0].mxu0
    %v1048 = vpop.f32.mrb[0].mxu0
    %1049 = vdwg.mxu0
    %v1050 = vadd.f32 %v1045, %v272
    %v1055 = vunpack.c.l.b16 %v280
    %v1056 = vunpack.c.l.b16 %v281
    %v1057 = vunpack.c.l.b16 %v282
    %v1058 = vunpack.c.l.b16 %v283
    %v1059 = vpack.c.b16 %v1056, %v1055
    %v1060 = vpack.c.b16 %v1058, %v1057
    %1063 = vmatprep.subr.bf16.mxu0 0
    %1064 = vmatpush1.bf16.msra.mxu0 %v1059
    %1065 = vmatprep.subr.bf16.mxu0 0
    %1066 = vmatpush1.bf16.msra.mxu0 %v1060
    %1067 = vmatprep.subr.bf16.mxu0 0
    %1068 = vmatpush1.bf16.msra.mxu0 0
    %1069 = vmatprep.subr.bf16.mxu0 0
    %1070 = vmatpush1.bf16.msra.mxu0 0
    %1071 = vmatprep.subr.bf16.mxu0 0
    %1072 = vmatpush1.bf16.msra.mxu0 0
    %1073 = vmatprep.subr.bf16.mxu0 0
    %1074 = vmatpush1.bf16.msra.mxu0 0
    %1075 = vmatprep.subr.bf16.mxu0 0
    %1076 = vmatpush1.bf16.msra.mxu0 0
    %1077 = vmatprep.subr.bf16.mxu0 0
    %1078 = vmatpush1.bf16.msra.mxu0 0
    %1079 = vmatprep.subr.bf16.mxu0 0
    %1080 = vmatpush1.bf16.msra.mxu0 0
    %1081 = vmatprep.subr.bf16.mxu0 0
    %1082 = vmatpush1.bf16.msra.mxu0 0
    %1083 = vmatprep.subr.bf16.mxu0 0
    %1084 = vmatpush1.bf16.msra.mxu0 0
    %1085 = vmatprep.subr.bf16.mxu0 0
    %1086 = vmatpush1.bf16.msra.mxu0 0
    %1087 = vmatprep.subr.bf16.mxu0 0
    %1088 = vmatpush1.bf16.msra.mxu0 0
    %1089 = vmatprep.subr.bf16.mxu0 0
    %1090 = vmatpush1.bf16.msra.mxu0 0
    %1091 = vmatprep.subr.bf16.mxu0 0
    %1092 = vmatpush1.bf16.msra.mxu0 0
    %1093 = vmatprep.subr.bf16.mxu0 0
    %1094 = vmatpush1.bf16.msra.mxu0 0
    %1095 = vmatprep.mubr.bf16.mxu0 0
    %1096 = vmatmul.mubr.bf16.gmra.mrb[0].mxu0 %v743
    %v1097 = vpop.f32.mrb[0].mxu0
    %v1098 = vadd.f32 0.0, %v1097
    %v1099 = vpop.f32.mrb[0].mxu0
    %v1100 = vpop.f32.mrb[0].mxu0
    %v1101 = vpop.f32.mrb[0].mxu0
    %1102 = vdwg.mxu0
    %v1107 = vunpack.c.l.b16 %v275
    %v1108 = vunpack.c.l.b16 %v276
    %v1109 = vunpack.c.l.b16 %v277
    %v1110 = vunpack.c.l.b16 %v278
    %v1111 = vpack.c.b16 %v1108, %v1107
    %v1112 = vpack.c.b16 %v1110, %v1109
    %1115 = vmatprep.subr.bf16.mxu0 0
    %1116 = vmatpush1.bf16.msra.mxu0 %v1111
    %1117 = vmatprep.subr.bf16.mxu0 0
    %1118 = vmatpush1.bf16.msra.mxu0 %v1112
    %1119 = vmatprep.subr.bf16.mxu0 0
    %1120 = vmatpush1.bf16.msra.mxu0 0
    %1121 = vmatprep.subr.bf16.mxu0 0
    %1122 = vmatpush1.bf16.msra.mxu0 0
    %1123 = vmatprep.subr.bf16.mxu0 0
    %1124 = vmatpush1.bf16.msra.mxu0 0
    %1125 = vmatprep.subr.bf16.mxu0 0
    %1126 = vmatpush1.bf16.msra.mxu0 0
    %1127 = vmatprep.subr.bf16.mxu0 0
    %1128 = vmatpush1.bf16.msra.mxu0 0
    %1129 = vmatprep.subr.bf16.mxu0 0
    %1130 = vmatpush1.bf16.msra.mxu0 0
    %1131 = vmatprep.subr.bf16.mxu0 0
    %1132 = vmatpush1.bf16.msra.mxu0 0
    %1133 = vmatprep.subr.bf16.mxu0 0
    %1134 = vmatpush1.bf16.msra.mxu0 0
    %1135 = vmatprep.subr.bf16.mxu0 0
    %1136 = vmatpush1.bf16.msra.mxu0 0
    %1137 = vmatprep.subr.bf16.mxu0 0
    %1138 = vmatpush1.bf16.msra.mxu0 0
    %1139 = vmatprep.subr.bf16.mxu0 0
    %1140 = vmatpush1.bf16.msra.mxu0 0
    %1141 = vmatprep.subr.bf16.mxu0 0
    %1142 = vmatpush1.bf16.msra.mxu0 0
    %1143 = vmatprep.subr.bf16.mxu0 0
    %1144 = vmatpush1.bf16.msra.mxu0 0
    %1145 = vmatprep.subr.bf16.mxu0 0
    %1146 = vmatpush1.bf16.msra.mxu0 0
    %1147 = vmatprep.mubr.bf16.mxu0 0
    %1148 = vmatmul.mubr.bf16.gmra.mrb[0].mxu0 %v798
    %v1149 = vpop.f32.mrb[0].mxu0
    %v1150 = vadd.f32 %v1098, %v1149
    %v1151 = vpop.f32.mrb[0].mxu0
    %v1152 = vpop.f32.mrb[0].mxu0
    %v1153 = vpop.f32.mrb[0].mxu0
    %1154 = vdwg.mxu0
    %v1155 = vadd.f32 %v1150, %v290
    %v1156 = vxor.u32 %v840, 2147483648
    %v1157 = vmul.f32 %v1156, 1.442695
    %v1158 = vpow.pop %v1157
    %v1159 = vadd.f32 %v1158, 1.0
    %v1160 = vrcp.pop %v1159
    %v1161 = vmul.f32 1.0, %v1160
    %v1162 = vxor.u32 %v945, 2147483648
    %v1163 = vmul.f32 %v1162, 1.442695
    %v1164 = vpow.pop %v1163
    %v1165 = vadd.f32 %v1164, 1.0
    %v1166 = vrcp.pop %v1165
    %v1167 = vmul.f32 1.0, %v1166
    %v1168 = vtanh.pop %v1050
    %v1169 = vxor.u32 %v1155, 2147483648
    %v1170 = vmul.f32 %v1169, 1.442695
    %v1171 = vpow.pop %v1170
    %v1172 = vadd.f32 %v1171, 1.0
    %v1173 = vrcp.pop %v1172
    %v1174 = vmul.f32 1.0, %v1173
    %v1175 = vmul.f32 %v1167, %v297
    %v1176 = vmul.f32 %v1161, %v1168
    %v1177 = vadd.f32 %v1175, %v1176
    %v1178 = vtanh.pop %v1177
    %v1179 = vmul.f32 %v1174, %v1178
    %s1180 = scalar_lea.vmem [#allocation2], 4
    %v1181 = vld [vmem:[%s1180] sm:$0xf]
    %1182 = vmatprep.subr.bf16.mxu0 0
    %1183 = vmatpush1.bf16.msra.mxu0 %v308
    %1184 = vmatprep.subr.bf16.mxu0 0
    %1185 = vmatpush1.bf16.msra.mxu0 %v309
    %1186 = vmatprep.subr.bf16.mxu0 0
    %1187 = vmatpush1.bf16.msra.mxu0 0
    %1188 = vmatprep.subr.bf16.mxu0 0
    %1189 = vmatpush1.bf16.msra.mxu0 0
    %1190 = vmatprep.subr.bf16.mxu0 0
    %1191 = vmatpush1.bf16.msra.mxu0 0
    %1192 = vmatprep.subr.bf16.mxu0 0
    %1193 = vmatpush1.bf16.msra.mxu0 0
    %1194 = vmatprep.subr.bf16.mxu0 0
    %1195 = vmatpush1.bf16.msra.mxu0 0
    %1196 = vmatprep.subr.bf16.mxu0 0
    %1197 = vmatpush1.bf16.msra.mxu0 0
    %1198 = vmatprep.subr.bf16.mxu0 0
    %1199 = vmatpush1.bf16.msra.mxu0 0
    %1200 = vmatprep.subr.bf16.mxu0 0
    %1201 = vmatpush1.bf16.msra.mxu0 0
    %1202 = vmatprep.subr.bf16.mxu0 0
    %1203 = vmatpush1.bf16.msra.mxu0 0
    %1204 = vmatprep.subr.bf16.mxu0 0
    %1205 = vmatpush1.bf16.msra.mxu0 0
    %1206 = vmatprep.subr.bf16.mxu0 0
    %1207 = vmatpush1.bf16.msra.mxu0 0
    %1208 = vmatprep.subr.bf16.mxu0 0
    %1209 = vmatpush1.bf16.msra.mxu0 0
    %1210 = vmatprep.subr.bf16.mxu0 0
    %1211 = vmatpush1.bf16.msra.mxu0 0
    %1212 = vmatprep.subr.bf16.mxu0 0
    %1213 = vmatpush1.bf16.msra.mxu0 0
    %1214 = vmatprep.mubr.bf16.mxu0 0
    %1215 = vmatmul.mubr.bf16.gmra.mrb[0].mxu0 %v798
    %v1216 = vpop.f32.mrb[0].mxu0
    %v1217 = vadd.f32 0.0, %v1216
    %v1218 = vpop.f32.mrb[0].mxu0
    %v1219 = vpop.f32.mrb[0].mxu0
    %v1220 = vpop.f32.mrb[0].mxu0
    %1221 = vdwg.mxu0
    %v1223 = vsel %vm362, %v1181, 0
    %1225 = vmatprep.subr.bf16.mxu0 0
    %1226 = vmatpush1.bf16.msra.mxu0 %v360
    %1227 = vmatprep.subr.bf16.mxu0 0
    %1228 = vmatpush1.bf16.msra.mxu0 0
    %1229 = vmatprep.subr.bf16.mxu0 0
    %1230 = vmatpush1.bf16.msra.mxu0 0
    %1231 = vmatprep.subr.bf16.mxu0 0
    %1232 = vmatpush1.bf16.msra.mxu0 0
    %1233 = vmatprep.subr.bf16.mxu0 0
    %1234 = vmatpush1.bf16.msra.mxu0 0
    %1235 = vmatprep.subr.bf16.mxu0 0
    %1236 = vmatpush1.bf16.msra.mxu0 0
    %1237 = vmatprep.subr.bf16.mxu0 0
    %1238 = vmatpush1.bf16.msra.mxu0 0
    %1239 = vmatprep.subr.bf16.mxu0 0
    %1240 = vmatpush1.bf16.msra.mxu0 0
    %1241 = vmatprep.subr.bf16.mxu0 0
    %1242 = vmatpush1.bf16.msra.mxu0 0
    %1243 = vmatprep.subr.bf16.mxu0 0
    %1244 = vmatpush1.bf16.msra.mxu0 0
    %1245 = vmatprep.subr.bf16.mxu0 0
    %1246 = vmatpush1.bf16.msra.mxu0 0
    %1247 = vmatprep.subr.bf16.mxu0 0
    %1248 = vmatpush1.bf16.msra.mxu0 0
    %1249 = vmatprep.subr.bf16.mxu0 0
    %1250 = vmatpush1.bf16.msra.mxu0 0
    %1251 = vmatprep.subr.bf16.mxu0 0
    %1252 = vmatpush1.bf16.msra.mxu0 0
    %1253 = vmatprep.subr.bf16.mxu0 0
    %1254 = vmatpush1.bf16.msra.mxu0 0
    %1255 = vmatprep.subr.bf16.mxu0 0
    %1256 = vmatpush1.bf16.msra.mxu0 0
    %1257 = vmatprep.mubr.bf16.mxu0 0
    %1258 = vmatmul.mubr.bf16.gmra.mrb[0].mxu0 %v1223
    %v1259 = vpop.f32.mrb[0].mxu0
    %v1260 = vadd.f32 %v1217, %v1259
    %v1261 = vpop.f32.mrb[0].mxu0
    %v1262 = vpop.f32.mrb[0].mxu0
    %v1263 = vpop.f32.mrb[0].mxu0
    %1264 = vdwg.mxu0
    %v1265 = vadd.f32 %v1260, %v173
    %1266 = vmatprep.subr.bf16.mxu0 0
    %1267 = vmatpush1.bf16.msra.mxu0 %v415
    %1268 = vmatprep.subr.bf16.mxu0 0
    %1269 = vmatpush1.bf16.msra.mxu0 %v416
    %1270 = vmatprep.subr.bf16.mxu0 0
    %1271 = vmatpush1.bf16.msra.mxu0 0
    %1272 = vmatprep.subr.bf16.mxu0 0
    %1273 = vmatpush1.bf16.msra.mxu0 0
    %1274 = vmatprep.subr.bf16.mxu0 0
    %1275 = vmatpush1.bf16.msra.mxu0 0
    %1276 = vmatprep.subr.bf16.mxu0 0
    %1277 = vmatpush1.bf16.msra.mxu0 0
    %1278 = vmatprep.subr.bf16.mxu0 0
    %1279 = vmatpush1.bf16.msra.mxu0 0
    %1280 = vmatprep.subr.bf16.mxu0 0
    %1281 = vmatpush1.bf16.msra.mxu0 0
    %1282 = vmatprep.subr.bf16.mxu0 0
    %1283 = vmatpush1.bf16.msra.mxu0 0
    %1284 = vmatprep.subr.bf16.mxu0 0
    %1285 = vmatpush1.bf16.msra.mxu0 0
    %1286 = vmatprep.subr.bf16.mxu0 0
    %1287 = vmatpush1.bf16.msra.mxu0 0
    %1288 = vmatprep.subr.bf16.mxu0 0
    %1289 = vmatpush1.bf16.msra.mxu0 0
    %1290 = vmatprep.subr.bf16.mxu0 0
    %1291 = vmatpush1.bf16.msra.mxu0 0
    %1292 = vmatprep.subr.bf16.mxu0 0
    %1293 = vmatpush1.bf16.msra.mxu0 0
    %1294 = vmatprep.subr.bf16.mxu0 0
    %1295 = vmatpush1.bf16.msra.mxu0 0
    %1296 = vmatprep.subr.bf16.mxu0 0
    %1297 = vmatpush1.bf16.msra.mxu0 0
    %1298 = vmatprep.mubr.bf16.mxu0 0
    %1299 = vmatmul.mubr.bf16.gmra.mrb[0].mxu0 %v798
    %v1300 = vpop.f32.mrb[0].mxu0
    %v1301 = vadd.f32 0.0, %v1300
    %v1302 = vpop.f32.mrb[0].mxu0
    %v1303 = vpop.f32.mrb[0].mxu0
    %v1304 = vpop.f32.mrb[0].mxu0
    %1305 = vdwg.mxu0
    %1306 = vmatprep.subr.bf16.mxu0 0
    %1307 = vmatpush1.bf16.msra.mxu0 %v463
    %1308 = vmatprep.subr.bf16.mxu0 0
    %1309 = vmatpush1.bf16.msra.mxu0 0
    %1310 = vmatprep.subr.bf16.mxu0 0
    %1311 = vmatpush1.bf16.msra.mxu0 0
    %1312 = vmatprep.subr.bf16.mxu0 0
    %1313 = vmatpush1.bf16.msra.mxu0 0
    %1314 = vmatprep.subr.bf16.mxu0 0
    %1315 = vmatpush1.bf16.msra.mxu0 0
    %1316 = vmatprep.subr.bf16.mxu0 0
    %1317 = vmatpush1.bf16.msra.mxu0 0
    %1318 = vmatprep.subr.bf16.mxu0 0
    %1319 = vmatpush1.bf16.msra.mxu0 0
    %1320 = vmatprep.subr.bf16.mxu0 0
    %1321 = vmatpush1.bf16.msra.mxu0 0
    %1322 = vmatprep.subr.bf16.mxu0 0
    %1323 = vmatpush1.bf16.msra.mxu0 0
    %1324 = vmatprep.subr.bf16.mxu0 0
    %1325 = vmatpush1.bf16.msra.mxu0 0
    %1326 = vmatprep.subr.bf16.mxu0 0
    %1327 = vmatpush1.bf16.msra.mxu0 0
    %1328 = vmatprep.subr.bf16.mxu0 0
    %1329 = vmatpush1.bf16.msra.mxu0 0
    %1330 = vmatprep.subr.bf16.mxu0 0
    %1331 = vmatpush1.bf16.msra.mxu0 0
    %1332 = vmatprep.subr.bf16.mxu0 0
    %1333 = vmatpush1.bf16.msra.mxu0 0
    %1334 = vmatprep.subr.bf16.mxu0 0
    %1335 = vmatpush1.bf16.msra.mxu0 0
    %1336 = vmatprep.subr.bf16.mxu0 0
    %1337 = vmatpush1.bf16.msra.mxu0 0
    %1338 = vmatprep.mubr.bf16.mxu0 0
    %1339 = vmatmul.mubr.bf16.gmra.mrb[0].mxu0 %v1223
    %v1340 = vpop.f32.mrb[0].mxu0
    %v1341 = vadd.f32 %v1301, %v1340
    %v1342 = vpop.f32.mrb[0].mxu0
    %v1343 = vpop.f32.mrb[0].mxu0
    %v1344 = vpop.f32.mrb[0].mxu0
    %1345 = vdwg.mxu0
    %v1346 = vadd.f32 %v1341, %v189
    %1347 = vmatprep.subr.bf16.mxu0 0
    %1348 = vmatpush1.bf16.msra.mxu0 %v514
    %1349 = vmatprep.subr.bf16.mxu0 0
    %1350 = vmatpush1.bf16.msra.mxu0 %v515
    %1351 = vmatprep.subr.bf16.mxu0 0
    %1352 = vmatpush1.bf16.msra.mxu0 0
    %1353 = vmatprep.subr.bf16.mxu0 0
    %1354 = vmatpush1.bf16.msra.mxu0 0
    %1355 = vmatprep.subr.bf16.mxu0 0
    %1356 = vmatpush1.bf16.msra.mxu0 0
    %1357 = vmatprep.subr.bf16.mxu0 0
    %1358 = vmatpush1.bf16.msra.mxu0 0
    %1359 = vmatprep.subr.bf16.mxu0 0
    %1360 = vmatpush1.bf16.msra.mxu0 0
    %1361 = vmatprep.subr.bf16.mxu0 0
    %1362 = vmatpush1.bf16.msra.mxu0 0
    %1363 = vmatprep.subr.bf16.mxu0 0
    %1364 = vmatpush1.bf16.msra.mxu0 0
    %1365 = vmatprep.subr.bf16.mxu0 0
    %1366 = vmatpush1.bf16.msra.mxu0 0
    %1367 = vmatprep.subr.bf16.mxu0 0
    %1368 = vmatpush1.bf16.msra.mxu0 0
    %1369 = vmatprep.subr.bf16.mxu0 0
    %1370 = vmatpush1.bf16.msra.mxu0 0
    %1371 = vmatprep.subr.bf16.mxu0 0
    %1372 = vmatpush1.bf16.msra.mxu0 0
    %1373 = vmatprep.subr.bf16.mxu0 0
    %1374 = vmatpush1.bf16.msra.mxu0 0
    %1375 = vmatprep.subr.bf16.mxu0 0
    %1376 = vmatpush1.bf16.msra.mxu0 0
    %1377 = vmatprep.subr.bf16.mxu0 0
    %1378 = vmatpush1.bf16.msra.mxu0 0
    %1379 = vmatprep.mubr.bf16.mxu0 0
    %1380 = vmatmul.mubr.bf16.gmra.mrb[0].mxu0 %v798
    %v1381 = vpop.f32.mrb[0].mxu0
    %v1382 = vadd.f32 0.0, %v1381
    %v1383 = vpop.f32.mrb[0].mxu0
    %v1384 = vpop.f32.mrb[0].mxu0
    %v1385 = vpop.f32.mrb[0].mxu0
    %1386 = vdwg.mxu0
    %1387 = vmatprep.subr.bf16.mxu0 0
    %1388 = vmatpush1.bf16.msra.mxu0 %v562
    %1389 = vmatprep.subr.bf16.mxu0 0
    %1390 = vmatpush1.bf16.msra.mxu0 0
    %1391 = vmatprep.subr.bf16.mxu0 0
    %1392 = vmatpush1.bf16.msra.mxu0 0
    %1393 = vmatprep.subr.bf16.mxu0 0
    %1394 = vmatpush1.bf16.msra.mxu0 0
    %1395 = vmatprep.subr.bf16.mxu0 0
    %1396 = vmatpush1.bf16.msra.mxu0 0
    %1397 = vmatprep.subr.bf16.mxu0 0
    %1398 = vmatpush1.bf16.msra.mxu0 0
    %1399 = vmatprep.subr.bf16.mxu0 0
    %1400 = vmatpush1.bf16.msra.mxu0 0
    %1401 = vmatprep.subr.bf16.mxu0 0
    %1402 = vmatpush1.bf16.msra.mxu0 0
    %1403 = vmatprep.subr.bf16.mxu0 0
    %1404 = vmatpush1.bf16.msra.mxu0 0
    %1405 = vmatprep.subr.bf16.mxu0 0
    %1406 = vmatpush1.bf16.msra.mxu0 0
    %1407 = vmatprep.subr.bf16.mxu0 0
    %1408 = vmatpush1.bf16.msra.mxu0 0
    %1409 = vmatprep.subr.bf16.mxu0 0
    %1410 = vmatpush1.bf16.msra.mxu0 0
    %1411 = vmatprep.subr.bf16.mxu0 0
    %1412 = vmatpush1.bf16.msra.mxu0 0
    %1413 = vmatprep.subr.bf16.mxu0 0
    %1414 = vmatpush1.bf16.msra.mxu0 0
    %1415 = vmatprep.subr.bf16.mxu0 0
    %1416 = vmatpush1.bf16.msra.mxu0 0
    %1417 = vmatprep.subr.bf16.mxu0 0
    %1418 = vmatpush1.bf16.msra.mxu0 0
    %1419 = vmatprep.mubr.bf16.mxu0 0
    %1420 = vmatmul.mubr.bf16.gmra.mrb[0].mxu0 %v1223
    %v1421 = vpop.f32.mrb[0].mxu0
    %v1422 = vadd.f32 %v1382, %v1421
    %v1423 = vpop.f32.mrb[0].mxu0
    %v1424 = vpop.f32.mrb[0].mxu0
    %v1425 = vpop.f32.mrb[0].mxu0
    %1426 = vdwg.mxu0
    %v1427 = vadd.f32 %v1422, %v205
    %1428 = vmatprep.subr.bf16.mxu0 0
    %1429 = vmatpush1.bf16.msra.mxu0 %v613
    %1430 = vmatprep.subr.bf16.mxu0 0
    %1431 = vmatpush1.bf16.msra.mxu0 %v614
    %1432 = vmatprep.subr.bf16.mxu0 0
    %1433 = vmatpush1.bf16.msra.mxu0 0
    %1434 = vmatprep.subr.bf16.mxu0 0
    %1435 = vmatpush1.bf16.msra.mxu0 0
    %1436 = vmatprep.subr.bf16.mxu0 0
    %1437 = vmatpush1.bf16.msra.mxu0 0
    %1438 = vmatprep.subr.bf16.mxu0 0
    %1439 = vmatpush1.bf16.msra.mxu0 0
    %1440 = vmatprep.subr.bf16.mxu0 0
    %1441 = vmatpush1.bf16.msra.mxu0 0
    %1442 = vmatprep.subr.bf16.mxu0 0
    %1443 = vmatpush1.bf16.msra.mxu0 0
    %1444 = vmatprep.subr.bf16.mxu0 0
    %1445 = vmatpush1.bf16.msra.mxu0 0
    %1446 = vmatprep.subr.bf16.mxu0 0
    %1447 = vmatpush1.bf16.msra.mxu0 0
    %1448 = vmatprep.subr.bf16.mxu0 0
    %1449 = vmatpush1.bf16.msra.mxu0 0
    %1450 = vmatprep.subr.bf16.mxu0 0
    %1451 = vmatpush1.bf16.msra.mxu0 0
    %1452 = vmatprep.subr.bf16.mxu0 0
    %1453 = vmatpush1.bf16.msra.mxu0 0
    %1454 = vmatprep.subr.bf16.mxu0 0
    %1455 = vmatpush1.bf16.msra.mxu0 0
    %1456 = vmatprep.subr.bf16.mxu0 0
    %1457 = vmatpush1.bf16.msra.mxu0 0
    %1458 = vmatprep.subr.bf16.mxu0 0
    %1459 = vmatpush1.bf16.msra.mxu0 0
    %1460 = vmatprep.mubr.bf16.mxu0 0
    %1461 = vmatmul.mubr.bf16.gmra.mrb[0].mxu0 %v798
    %v1462 = vpop.f32.mrb[0].mxu0
    %v1463 = vadd.f32 0.0, %v1462
    %v1464 = vpop.f32.mrb[0].mxu0
    %v1465 = vpop.f32.mrb[0].mxu0
    %v1466 = vpop.f32.mrb[0].mxu0
    %1467 = vdwg.mxu0
    %1468 = vmatprep.subr.bf16.mxu0 0
    %1469 = vmatpush1.bf16.msra.mxu0 %v661
    %1470 = vmatprep.subr.bf16.mxu0 0
    %1471 = vmatpush1.bf16.msra.mxu0 0
    %1472 = vmatprep.subr.bf16.mxu0 0
    %1473 = vmatpush1.bf16.msra.mxu0 0
    %1474 = vmatprep.subr.bf16.mxu0 0
    %1475 = vmatpush1.bf16.msra.mxu0 0
    %1476 = vmatprep.subr.bf16.mxu0 0
    %1477 = vmatpush1.bf16.msra.mxu0 0
    %1478 = vmatprep.subr.bf16.mxu0 0
    %1479 = vmatpush1.bf16.msra.mxu0 0
    %1480 = vmatprep.subr.bf16.mxu0 0
    %1481 = vmatpush1.bf16.msra.mxu0 0
    %1482 = vmatprep.subr.bf16.mxu0 0
    %1483 = vmatpush1.bf16.msra.mxu0 0
    %1484 = vmatprep.subr.bf16.mxu0 0
    %1485 = vmatpush1.bf16.msra.mxu0 0
    %1486 = vmatprep.subr.bf16.mxu0 0
    %1487 = vmatpush1.bf16.msra.mxu0 0
    %1488 = vmatprep.subr.bf16.mxu0 0
    %1489 = vmatpush1.bf16.msra.mxu0 0
    %1490 = vmatprep.subr.bf16.mxu0 0
    %1491 = vmatpush1.bf16.msra.mxu0 0
    %1492 = vmatprep.subr.bf16.mxu0 0
    %1493 = vmatpush1.bf16.msra.mxu0 0
    %1494 = vmatprep.subr.bf16.mxu0 0
    %1495 = vmatpush1.bf16.msra.mxu0 0
    %1496 = vmatprep.subr.bf16.mxu0 0
    %1497 = vmatpush1.bf16.msra.mxu0 0
    %1498 = vmatprep.subr.bf16.mxu0 0
    %1499 = vmatpush1.bf16.msra.mxu0 0
    %1500 = vmatprep.mubr.bf16.mxu0 0
    %1501 = vmatmul.mubr.bf16.gmra.mrb[0].mxu0 %v1223
    %v1502 = vpop.f32.mrb[0].mxu0
    %v1503 = vadd.f32 %v1463, %v1502
    %v1504 = vpop.f32.mrb[0].mxu0
    %v1505 = vpop.f32.mrb[0].mxu0
    %v1506 = vpop.f32.mrb[0].mxu0
    %1507 = vdwg.mxu0
    %v1508 = vadd.f32 %v1503, %v221
    %v1509 = vxor.u32 %v1265, 2147483648
    %v1510 = vmul.f32 %v1509, 1.442695
    %v1511 = vpow.pop %v1510
    %v1512 = vadd.f32 %v1511, 1.0
    %v1513 = vrcp.pop %v1512
    %v1514 = vmul.f32 1.0, %v1513
    %v1515 = vxor.u32 %v1346, 2147483648
    %v1516 = vmul.f32 %v1515, 1.442695
    %v1517 = vpow.pop %v1516
    %v1518 = vadd.f32 %v1517, 1.0
    %v1519 = vrcp.pop %v1518
    %v1520 = vmul.f32 1.0, %v1519
    %v1521 = vtanh.pop %v1427
    %v1522 = vxor.u32 %v1508, 2147483648
    %v1523 = vmul.f32 %v1522, 1.442695
    %v1524 = vpow.pop %v1523
    %v1525 = vadd.f32 %v1524, 1.0
    %v1526 = vrcp.pop %v1525
    %v1527 = vmul.f32 1.0, %v1526
    %v1528 = vmul.f32 %v1520, %v725
    %v1529 = vmul.f32 %v1514, %v1521
    %v1530 = vadd.f32 %v1528, %v1529
    %v1531 = vtanh.pop %v1530
    %v1532 = vmul.f32 %v1527, %v1531
    %v1533 = vpack.c.bf16 %v1532, %v1532
    %v1534 = vpack.c.bf16 %v1179, %v1179
    %v1536 = vsel %vm312, %v1534, 0
    %1538 = vmatprep.subr.bf16.mxu0 0
    %1539 = vmatpush1.bf16.msra.mxu0 %v738
    %1540 = vmatprep.subr.bf16.mxu0 0
    %1541 = vmatpush1.bf16.msra.mxu0 %v739
    %1542 = vmatprep.subr.bf16.mxu0 0
    %1543 = vmatpush1.bf16.msra.mxu0 0
    %1544 = vmatprep.subr.bf16.mxu0 0
    %1545 = vmatpush1.bf16.msra.mxu0 0
    %1546 = vmatprep.subr.bf16.mxu0 0
    %1547 = vmatpush1.bf16.msra.mxu0 0
    %1548 = vmatprep.subr.bf16.mxu0 0
    %1549 = vmatpush1.bf16.msra.mxu0 0
    %1550 = vmatprep.subr.bf16.mxu0 0
    %1551 = vmatpush1.bf16.msra.mxu0 0
    %1552 = vmatprep.subr.bf16.mxu0 0
    %1553 = vmatpush1.bf16.msra.mxu0 0
    %1554 = vmatprep.subr.bf16.mxu0 0
    %1555 = vmatpush1.bf16.msra.mxu0 0
    %1556 = vmatprep.subr.bf16.mxu0 0
    %1557 = vmatpush1.bf16.msra.mxu0 0
    %1558 = vmatprep.subr.bf16.mxu0 0
    %1559 = vmatpush1.bf16.msra.mxu0 0
    %1560 = vmatprep.subr.bf16.mxu0 0
    %1561 = vmatpush1.bf16.msra.mxu0 0
    %1562 = vmatprep.subr.bf16.mxu0 0
    %1563 = vmatpush1.bf16.msra.mxu0 0
    %1564 = vmatprep.subr.bf16.mxu0 0
    %1565 = vmatpush1.bf16.msra.mxu0 0
    %1566 = vmatprep.subr.bf16.mxu0 0
    %1567 = vmatpush1.bf16.msra.mxu0 0
    %1568 = vmatprep.subr.bf16.mxu0 0
    %1569 = vmatpush1.bf16.msra.mxu0 0
    %1570 = vmatprep.mubr.bf16.mxu0 0
    %1571 = vmatmul.mubr.bf16.gmra.mrb[0].mxu0 %v1536
    %v1572 = vpop.f32.mrb[0].mxu0
    %v1573 = vadd.f32 0.0, %v1572
    %v1574 = vpop.f32.mrb[0].mxu0
    %v1575 = vpop.f32.mrb[0].mxu0
    %v1576 = vpop.f32.mrb[0].mxu0
    %1577 = vdwg.mxu0
    %v1579 = vsel %vm312, %v1533, 0
    %1581 = vmatprep.subr.bf16.mxu0 0
    %1582 = vmatpush1.bf16.msra.mxu0 %v793
    %1583 = vmatprep.subr.bf16.mxu0 0
    %1584 = vmatpush1.bf16.msra.mxu0 %v794
    %1585 = vmatprep.subr.bf16.mxu0 0
    %1586 = vmatpush1.bf16.msra.mxu0 0
    %1587 = vmatprep.subr.bf16.mxu0 0
    %1588 = vmatpush1.bf16.msra.mxu0 0
    %1589 = vmatprep.subr.bf16.mxu0 0
    %1590 = vmatpush1.bf16.msra.mxu0 0
    %1591 = vmatprep.subr.bf16.mxu0 0
    %1592 = vmatpush1.bf16.msra.mxu0 0
    %1593 = vmatprep.subr.bf16.mxu0 0
    %1594 = vmatpush1.bf16.msra.mxu0 0
    %1595 = vmatprep.subr.bf16.mxu0 0
    %1596 = vmatpush1.bf16.msra.mxu0 0
    %1597 = vmatprep.subr.bf16.mxu0 0
    %1598 = vmatpush1.bf16.msra.mxu0 0
    %1599 = vmatprep.subr.bf16.mxu0 0
    %1600 = vmatpush1.bf16.msra.mxu0 0
    %1601 = vmatprep.subr.bf16.mxu0 0
    %1602 = vmatpush1.bf16.msra.mxu0 0
    %1603 = vmatprep.subr.bf16.mxu0 0
    %1604 = vmatpush1.bf16.msra.mxu0 0
    %1605 = vmatprep.subr.bf16.mxu0 0
    %1606 = vmatpush1.bf16.msra.mxu0 0
    %1607 = vmatprep.subr.bf16.mxu0 0
    %1608 = vmatpush1.bf16.msra.mxu0 0
    %1609 = vmatprep.subr.bf16.mxu0 0
    %1610 = vmatpush1.bf16.msra.mxu0 0
    %1611 = vmatprep.subr.bf16.mxu0 0
    %1612 = vmatpush1.bf16.msra.mxu0 0
    %1613 = vmatprep.mubr.bf16.mxu0 0
    %1614 = vmatmul.mubr.bf16.gmra.mrb[0].mxu0 %v1579
    %v1615 = vpop.f32.mrb[0].mxu0
    %v1616 = vadd.f32 %v1573, %v1615
    %v1617 = vpop.f32.mrb[0].mxu0
    %v1618 = vpop.f32.mrb[0].mxu0
    %v1619 = vpop.f32.mrb[0].mxu0
    %1620 = vdwg.mxu0
    %v1621 = vadd.f32 %v1616, %v236
    %1622 = vmatprep.subr.bf16.mxu0 0
    %1623 = vmatpush1.bf16.msra.mxu0 %v849
    %1624 = vmatprep.subr.bf16.mxu0 0
    %1625 = vmatpush1.bf16.msra.mxu0 %v850
    %1626 = vmatprep.subr.bf16.mxu0 0
    %1627 = vmatpush1.bf16.msra.mxu0 0
    %1628 = vmatprep.subr.bf16.mxu0 0
    %1629 = vmatpush1.bf16.msra.mxu0 0
    %1630 = vmatprep.subr.bf16.mxu0 0
    %1631 = vmatpush1.bf16.msra.mxu0 0
    %1632 = vmatprep.subr.bf16.mxu0 0
    %1633 = vmatpush1.bf16.msra.mxu0 0
    %1634 = vmatprep.subr.bf16.mxu0 0
    %1635 = vmatpush1.bf16.msra.mxu0 0
    %1636 = vmatprep.subr.bf16.mxu0 0
    %1637 = vmatpush1.bf16.msra.mxu0 0
    %1638 = vmatprep.subr.bf16.mxu0 0
    %1639 = vmatpush1.bf16.msra.mxu0 0
    %1640 = vmatprep.subr.bf16.mxu0 0
    %1641 = vmatpush1.bf16.msra.mxu0 0
    %1642 = vmatprep.subr.bf16.mxu0 0
    %1643 = vmatpush1.bf16.msra.mxu0 0
    %1644 = vmatprep.subr.bf16.mxu0 0
    %1645 = vmatpush1.bf16.msra.mxu0 0
    %1646 = vmatprep.subr.bf16.mxu0 0
    %1647 = vmatpush1.bf16.msra.mxu0 0
    %1648 = vmatprep.subr.bf16.mxu0 0
    %1649 = vmatpush1.bf16.msra.mxu0 0
    %1650 = vmatprep.subr.bf16.mxu0 0
    %1651 = vmatpush1.bf16.msra.mxu0 0
    %1652 = vmatprep.subr.bf16.mxu0 0
    %1653 = vmatpush1.bf16.msra.mxu0 0
    %1654 = vmatprep.mubr.bf16.mxu0 0
    %1655 = vmatmul.mubr.bf16.gmra.mrb[0].mxu0 %v1536
    %v1656 = vpop.f32.mrb[0].mxu0
    %v1657 = vadd.f32 0.0, %v1656
    %v1658 = vpop.f32.mrb[0].mxu0
    %v1659 = vpop.f32.mrb[0].mxu0
    %v1660 = vpop.f32.mrb[0].mxu0
    %1661 = vdwg.mxu0
    %1662 = vmatprep.subr.bf16.mxu0 0
    %1663 = vmatpush1.bf16.msra.mxu0 %v901
    %1664 = vmatprep.subr.bf16.mxu0 0
    %1665 = vmatpush1.bf16.msra.mxu0 %v902
    %1666 = vmatprep.subr.bf16.mxu0 0
    %1667 = vmatpush1.bf16.msra.mxu0 0
    %1668 = vmatprep.subr.bf16.mxu0 0
    %1669 = vmatpush1.bf16.msra.mxu0 0
    %1670 = vmatprep.subr.bf16.mxu0 0
    %1671 = vmatpush1.bf16.msra.mxu0 0
    %1672 = vmatprep.subr.bf16.mxu0 0
    %1673 = vmatpush1.bf16.msra.mxu0 0
    %1674 = vmatprep.subr.bf16.mxu0 0
    %1675 = vmatpush1.bf16.msra.mxu0 0
    %1676 = vmatprep.subr.bf16.mxu0 0
    %1677 = vmatpush1.bf16.msra.mxu0 0
    %1678 = vmatprep.subr.bf16.mxu0 0
    %1679 = vmatpush1.bf16.msra.mxu0 0
    %1680 = vmatprep.subr.bf16.mxu0 0
    %1681 = vmatpush1.bf16.msra.mxu0 0
    %1682 = vmatprep.subr.bf16.mxu0 0
    %1683 = vmatpush1.bf16.msra.mxu0 0
    %1684 = vmatprep.subr.bf16.mxu0 0
    %1685 = vmatpush1.bf16.msra.mxu0 0
    %1686 = vmatprep.subr.bf16.mxu0 0
    %1687 = vmatpush1.bf16.msra.mxu0 0
    %1688 = vmatprep.subr.bf16.mxu0 0
    %1689 = vmatpush1.bf16.msra.mxu0 0
    %1690 = vmatprep.subr.bf16.mxu0 0
    %1691 = vmatpush1.bf16.msra.mxu0 0
    %1692 = vmatprep.subr.bf16.mxu0 0
    %1693 = vmatpush1.bf16.msra.mxu0 0
    %1694 = vmatprep.mubr.bf16.mxu0 0
    %1695 = vmatmul.mubr.bf16.gmra.mrb[0].mxu0 %v1579
    %v1696 = vpop.f32.mrb[0].mxu0
    %v1697 = vadd.f32 %v1657, %v1696
    %v1698 = vpop.f32.mrb[0].mxu0
    %v1699 = vpop.f32.mrb[0].mxu0
    %v1700 = vpop.f32.mrb[0].mxu0
    %1701 = vdwg.mxu0
    %v1702 = vadd.f32 %v1697, %v254
    %1703 = vmatprep.subr.bf16.mxu0 0
    %1704 = vmatpush1.bf16.msra.mxu0 %v954
    %1705 = vmatprep.subr.bf16.mxu0 0
    %1706 = vmatpush1.bf16.msra.mxu0 %v955
    %1707 = vmatprep.subr.bf16.mxu0 0
    %1708 = vmatpush1.bf16.msra.mxu0 0
    %1709 = vmatprep.subr.bf16.mxu0 0
    %1710 = vmatpush1.bf16.msra.mxu0 0
    %1711 = vmatprep.subr.bf16.mxu0 0
    %1712 = vmatpush1.bf16.msra.mxu0 0
    %1713 = vmatprep.subr.bf16.mxu0 0
    %1714 = vmatpush1.bf16.msra.mxu0 0
    %1715 = vmatprep.subr.bf16.mxu0 0
    %1716 = vmatpush1.bf16.msra.mxu0 0
    %1717 = vmatprep.subr.bf16.mxu0 0
    %1718 = vmatpush1.bf16.msra.mxu0 0
    %1719 = vmatprep.subr.bf16.mxu0 0
    %1720 = vmatpush1.bf16.msra.mxu0 0
    %1721 = vmatprep.subr.bf16.mxu0 0
    %1722 = vmatpush1.bf16.msra.mxu0 0
    %1723 = vmatprep.subr.bf16.mxu0 0
    %1724 = vmatpush1.bf16.msra.mxu0 0
    %1725 = vmatprep.subr.bf16.mxu0 0
    %1726 = vmatpush1.bf16.msra.mxu0 0
    %1727 = vmatprep.subr.bf16.mxu0 0
    %1728 = vmatpush1.bf16.msra.mxu0 0
    %1729 = vmatprep.subr.bf16.mxu0 0
    %1730 = vmatpush1.bf16.msra.mxu0 0
    %1731 = vmatprep.subr.bf16.mxu0 0
    %1732 = vmatpush1.bf16.msra.mxu0 0
    %1733 = vmatprep.subr.bf16.mxu0 0
    %1734 = vmatpush1.bf16.msra.mxu0 0
    %1735 = vmatprep.mubr.bf16.mxu0 0
    %1736 = vmatmul.mubr.bf16.gmra.mrb[0].mxu0 %v1536
    %v1737 = vpop.f32.mrb[0].mxu0
    %v1738 = vadd.f32 0.0, %v1737
    %v1739 = vpop.f32.mrb[0].mxu0
    %v1740 = vpop.f32.mrb[0].mxu0
    %v1741 = vpop.f32.mrb[0].mxu0
    %1742 = vdwg.mxu0
    %1743 = vmatprep.subr.bf16.mxu0 0
    %1744 = vmatpush1.bf16.msra.mxu0 %v1006
    %1745 = vmatprep.subr.bf16.mxu0 0
    %1746 = vmatpush1.bf16.msra.mxu0 %v1007
    %1747 = vmatprep.subr.bf16.mxu0 0
    %1748 = vmatpush1.bf16.msra.mxu0 0
    %1749 = vmatprep.subr.bf16.mxu0 0
    %1750 = vmatpush1.bf16.msra.mxu0 0
    %1751 = vmatprep.subr.bf16.mxu0 0
    %1752 = vmatpush1.bf16.msra.mxu0 0
    %1753 = vmatprep.subr.bf16.mxu0 0
    %1754 = vmatpush1.bf16.msra.mxu0 0
    %1755 = vmatprep.subr.bf16.mxu0 0
    %1756 = vmatpush1.bf16.msra.mxu0 0
    %1757 = vmatprep.subr.bf16.mxu0 0
    %1758 = vmatpush1.bf16.msra.mxu0 0
    %1759 = vmatprep.subr.bf16.mxu0 0
    %1760 = vmatpush1.bf16.msra.mxu0 0
    %1761 = vmatprep.subr.bf16.mxu0 0
    %1762 = vmatpush1.bf16.msra.mxu0 0
    %1763 = vmatprep.subr.bf16.mxu0 0
    %1764 = vmatpush1.bf16.msra.mxu0 0
    %1765 = vmatprep.subr.bf16.mxu0 0
    %1766 = vmatpush1.bf16.msra.mxu0 0
    %1767 = vmatprep.subr.bf16.mxu0 0
    %1768 = vmatpush1.bf16.msra.mxu0 0
    %1769 = vmatprep.subr.bf16.mxu0 0
    %1770 = vmatpush1.bf16.msra.mxu0 0
    %1771 = vmatprep.subr.bf16.mxu0 0
    %1772 = vmatpush1.bf16.msra.mxu0 0
    %1773 = vmatprep.subr.bf16.mxu0 0
    %1774 = vmatpush1.bf16.msra.mxu0 0
    %1775 = vmatprep.mubr.bf16.mxu0 0
    %1776 = vmatmul.mubr.bf16.gmra.mrb[0].mxu0 %v1579
    %v1777 = vpop.f32.mrb[0].mxu0
    %v1778 = vadd.f32 %v1738, %v1777
    %v1779 = vpop.f32.mrb[0].mxu0
    %v1780 = vpop.f32.mrb[0].mxu0
    %v1781 = vpop.f32.mrb[0].mxu0
    %1782 = vdwg.mxu0
    %v1783 = vadd.f32 %v1778, %v272
    %1784 = vmatprep.subr.bf16.mxu0 0
    %1785 = vmatpush1.bf16.msra.mxu0 %v1059
    %1786 = vmatprep.subr.bf16.mxu0 0
    %1787 = vmatpush1.bf16.msra.mxu0 %v1060
    %1788 = vmatprep.subr.bf16.mxu0 0
    %1789 = vmatpush1.bf16.msra.mxu0 0
    %1790 = vmatprep.subr.bf16.mxu0 0
    %1791 = vmatpush1.bf16.msra.mxu0 0
    %1792 = vmatprep.subr.bf16.mxu0 0
    %1793 = vmatpush1.bf16.msra.mxu0 0
    %1794 = vmatprep.subr.bf16.mxu0 0
    %1795 = vmatpush1.bf16.msra.mxu0 0
    %1796 = vmatprep.subr.bf16.mxu0 0
    %1797 = vmatpush1.bf16.msra.mxu0 0
    %1798 = vmatprep.subr.bf16.mxu0 0
    %1799 = vmatpush1.bf16.msra.mxu0 0
    %1800 = vmatprep.subr.bf16.mxu0 0
    %1801 = vmatpush1.bf16.msra.mxu0 0
    %1802 = vmatprep.subr.bf16.mxu0 0
    %1803 = vmatpush1.bf16.msra.mxu0 0
    %1804 = vmatprep.subr.bf16.mxu0 0
    %1805 = vmatpush1.bf16.msra.mxu0 0
    %1806 = vmatprep.subr.bf16.mxu0 0
    %1807 = vmatpush1.bf16.msra.mxu0 0
    %1808 = vmatprep.subr.bf16.mxu0 0
    %1809 = vmatpush1.bf16.msra.mxu0 0
    %1810 = vmatprep.subr.bf16.mxu0 0
    %1811 = vmatpush1.bf16.msra.mxu0 0
    %1812 = vmatprep.subr.bf16.mxu0 0
    %1813 = vmatpush1.bf16.msra.mxu0 0
    %1814 = vmatprep.subr.bf16.mxu0 0
    %1815 = vmatpush1.bf16.msra.mxu0 0
    %1816 = vmatprep.mubr.bf16.mxu0 0
    %1817 = vmatmul.mubr.bf16.gmra.mrb[0].mxu0 %v1536
    %v1818 = vpop.f32.mrb[0].mxu0
    %v1819 = vadd.f32 0.0, %v1818
    %v1820 = vpop.f32.mrb[0].mxu0
    %v1821 = vpop.f32.mrb[0].mxu0
    %v1822 = vpop.f32.mrb[0].mxu0
    %1823 = vdwg.mxu0
    %1824 = vmatprep.subr.bf16.mxu0 0
    %1825 = vmatpush1.bf16.msra.mxu0 %v1111
    %1826 = vmatprep.subr.bf16.mxu0 0
    %1827 = vmatpush1.bf16.msra.mxu0 %v1112
    %1828 = vmatprep.subr.bf16.mxu0 0
    %1829 = vmatpush1.bf16.msra.mxu0 0
    %1830 = vmatprep.subr.bf16.mxu0 0
    %1831 = vmatpush1.bf16.msra.mxu0 0
    %1832 = vmatprep.subr.bf16.mxu0 0
    %1833 = vmatpush1.bf16.msra.mxu0 0
    %1834 = vmatprep.subr.bf16.mxu0 0
    %1835 = vmatpush1.bf16.msra.mxu0 0
    %1836 = vmatprep.subr.bf16.mxu0 0
    %1837 = vmatpush1.bf16.msra.mxu0 0
    %1838 = vmatprep.subr.bf16.mxu0 0
    %1839 = vmatpush1.bf16.msra.mxu0 0
    %1840 = vmatprep.subr.bf16.mxu0 0
    %1841 = vmatpush1.bf16.msra.mxu0 0
    %1842 = vmatprep.subr.bf16.mxu0 0
    %1843 = vmatpush1.bf16.msra.mxu0 0
    %1844 = vmatprep.subr.bf16.mxu0 0
    %1845 = vmatpush1.bf16.msra.mxu0 0
    %1846 = vmatprep.subr.bf16.mxu0 0
    %1847 = vmatpush1.bf16.msra.mxu0 0
    %1848 = vmatprep.subr.bf16.mxu0 0
    %1849 = vmatpush1.bf16.msra.mxu0 0
    %1850 = vmatprep.subr.bf16.mxu0 0
    %1851 = vmatpush1.bf16.msra.mxu0 0
    %1852 = vmatprep.subr.bf16.mxu0 0
    %1853 = vmatpush1.bf16.msra.mxu0 0
    %1854 = vmatprep.subr.bf16.mxu0 0
    %1855 = vmatpush1.bf16.msra.mxu0 0
    %1856 = vmatprep.mubr.bf16.mxu0 0
    %1857 = vmatmul.mubr.bf16.gmra.mrb[0].mxu0 %v1579
    %v1858 = vpop.f32.mrb[0].mxu0
    %v1859 = vadd.f32 %v1819, %v1858
    %v1860 = vpop.f32.mrb[0].mxu0
    %v1861 = vpop.f32.mrb[0].mxu0
    %v1862 = vpop.f32.mrb[0].mxu0
    %1863 = vdwg.mxu0
    %v1864 = vadd.f32 %v1859, %v290
    %v1865 = vxor.u32 %v1621, 2147483648
    %v1866 = vmul.f32 %v1865, 1.442695
    %v1867 = vpow.pop %v1866
    %v1868 = vadd.f32 %v1867, 1.0
    %v1869 = vrcp.pop %v1868
    %v1870 = vmul.f32 1.0, %v1869
    %v1871 = vxor.u32 %v1702, 2147483648
    %v1872 = vmul.f32 %v1871, 1.442695
    %v1873 = vpow.pop %v1872
    %v1874 = vadd.f32 %v1873, 1.0
    %v1875 = vrcp.pop %v1874
    %v1876 = vmul.f32 1.0, %v1875
    %v1877 = vtanh.pop %v1783
    %v1878 = vxor.u32 %v1864, 2147483648
    %v1879 = vmul.f32 %v1878, 1.442695
    %v1880 = vpow.pop %v1879
    %v1881 = vadd.f32 %v1880, 1.0
    %v1882 = vrcp.pop %v1881
    %v1883 = vmul.f32 1.0, %v1882
    %v1884 = vmul.f32 %v1876, %v1177
    %v1885 = vmul.f32 %v1870, %v1877
    %v1886 = vadd.f32 %v1884, %v1885
    %v1887 = vtanh.pop %v1886
    %v1888 = vmul.f32 %v1883, %v1887
    %s1889 = scalar_lea.vmem [#allocation2], 8
    %v1890 = vld [vmem:[%s1889] sm:$0xf]
    %1891 = vmatprep.subr.bf16.mxu0 0
    %1892 = vmatpush1.bf16.msra.mxu0 %v308
    %1893 = vmatprep.subr.bf16.mxu0 0
    %1894 = vmatpush1.bf16.msra.mxu0 %v309
    %1895 = vmatprep.subr.bf16.mxu0 0
    %1896 = vmatpush1.bf16.msra.mxu0 0
    %1897 = vmatprep.subr.bf16.mxu0 0
    %1898 = vmatpush1.bf16.msra.mxu0 0
    %1899 = vmatprep.subr.bf16.mxu0 0
    %1900 = vmatpush1.bf16.msra.mxu0 0
    %1901 = vmatprep.subr.bf16.mxu0 0
    %1902 = vmatpush1.bf16.msra.mxu0 0
    %1903 = vmatprep.subr.bf16.mxu0 0
    %1904 = vmatpush1.bf16.msra.mxu0 0
    %1905 = vmatprep.subr.bf16.mxu0 0
    %1906 = vmatpush1.bf16.msra.mxu0 0
    %1907 = vmatprep.subr.bf16.mxu0 0
    %1908 = vmatpush1.bf16.msra.mxu0 0
    %1909 = vmatprep.subr.bf16.mxu0 0
    %1910 = vmatpush1.bf16.msra.mxu0 0
    %1911 = vmatprep.subr.bf16.mxu0 0
    %1912 = vmatpush1.bf16.msra.mxu0 0
    %1913 = vmatprep.subr.bf16.mxu0 0
    %1914 = vmatpush1.bf16.msra.mxu0 0
    %1915 = vmatprep.subr.bf16.mxu0 0
    %1916 = vmatpush1.bf16.msra.mxu0 0
    %1917 = vmatprep.subr.bf16.mxu0 0
    %1918 = vmatpush1.bf16.msra.mxu0 0
    %1919 = vmatprep.subr.bf16.mxu0 0
    %1920 = vmatpush1.bf16.msra.mxu0 0
    %1921 = vmatprep.subr.bf16.mxu0 0
    %1922 = vmatpush1.bf16.msra.mxu0 0
    %1923 = vmatprep.mubr.bf16.mxu0 0
    %1924 = vmatmul.mubr.bf16.gmra.mrb[0].mxu0 %v1579
    %v1925 = vpop.f32.mrb[0].mxu0
    %v1926 = vadd.f32 0.0, %v1925
    %v1927 = vpop.f32.mrb[0].mxu0
    %v1928 = vpop.f32.mrb[0].mxu0
    %v1929 = vpop.f32.mrb[0].mxu0
    %1930 = vdwg.mxu0
    %v1932 = vsel %vm362, %v1890, 0
    %1934 = vmatprep.subr.bf16.mxu0 0
    %1935 = vmatpush1.bf16.msra.mxu0 %v360
    %1936 = vmatprep.subr.bf16.mxu0 0
    %1937 = vmatpush1.bf16.msra.mxu0 0
    %1938 = vmatprep.subr.bf16.mxu0 0
    %1939 = vmatpush1.bf16.msra.mxu0 0
    %1940 = vmatprep.subr.bf16.mxu0 0
    %1941 = vmatpush1.bf16.msra.mxu0 0
    %1942 = vmatprep.subr.bf16.mxu0 0
    %1943 = vmatpush1.bf16.msra.mxu0 0
    %1944 = vmatprep.subr.bf16.mxu0 0
    %1945 = vmatpush1.bf16.msra.mxu0 0
    %1946 = vmatprep.subr.bf16.mxu0 0
    %1947 = vmatpush1.bf16.msra.mxu0 0
    %1948 = vmatprep.subr.bf16.mxu0 0
    %1949 = vmatpush1.bf16.msra.mxu0 0
    %1950 = vmatprep.subr.bf16.mxu0 0
    %1951 = vmatpush1.bf16.msra.mxu0 0
    %1952 = vmatprep.subr.bf16.mxu0 0
    %1953 = vmatpush1.bf16.msra.mxu0 0
    %1954 = vmatprep.subr.bf16.mxu0 0
    %1955 = vmatpush1.bf16.msra.mxu0 0
    %1956 = vmatprep.subr.bf16.mxu0 0
    %1957 = vmatpush1.bf16.msra.mxu0 0
    %1958 = vmatprep.subr.bf16.mxu0 0
    %1959 = vmatpush1.bf16.msra.mxu0 0
    %1960 = vmatprep.subr.bf16.mxu0 0
    %1961 = vmatpush1.bf16.msra.mxu0 0
    %1962 = vmatprep.subr.bf16.mxu0 0
    %1963 = vmatpush1.bf16.msra.mxu0 0
    %1964 = vmatprep.subr.bf16.mxu0 0
    %1965 = vmatpush1.bf16.msra.mxu0 0
    %1966 = vmatprep.mubr.bf16.mxu0 0
    %1967 = vmatmul.mubr.bf16.gmra.mrb[0].mxu0 %v1932
    %v1968 = vpop.f32.mrb[0].mxu0
    %v1969 = vadd.f32 %v1926, %v1968
    %v1970 = vpop.f32.mrb[0].mxu0
    %v1971 = vpop.f32.mrb[0].mxu0
    %v1972 = vpop.f32.mrb[0].mxu0
    %1973 = vdwg.mxu0
    %v1974 = vadd.f32 %v1969, %v173
    %1975 = vmatprep.subr.bf16.mxu0 0
    %1976 = vmatpush1.bf16.msra.mxu0 %v415
    %1977 = vmatprep.subr.bf16.mxu0 0
    %1978 = vmatpush1.bf16.msra.mxu0 %v416
    %1979 = vmatprep.subr.bf16.mxu0 0
    %1980 = vmatpush1.bf16.msra.mxu0 0
    %1981 = vmatprep.subr.bf16.mxu0 0
    %1982 = vmatpush1.bf16.msra.mxu0 0
    %1983 = vmatprep.subr.bf16.mxu0 0
    %1984 = vmatpush1.bf16.msra.mxu0 0
    %1985 = vmatprep.subr.bf16.mxu0 0
    %1986 = vmatpush1.bf16.msra.mxu0 0
    %1987 = vmatprep.subr.bf16.mxu0 0
    %1988 = vmatpush1.bf16.msra.mxu0 0
    %1989 = vmatprep.subr.bf16.mxu0 0
    %1990 = vmatpush1.bf16.msra.mxu0 0
    %1991 = vmatprep.subr.bf16.mxu0 0
    %1992 = vmatpush1.bf16.msra.mxu0 0
    %1993 = vmatprep.subr.bf16.mxu0 0
    %1994 = vmatpush1.bf16.msra.mxu0 0
    %1995 = vmatprep.subr.bf16.mxu0 0
    %1996 = vmatpush1.bf16.msra.mxu0 0
    %1997 = vmatprep.subr.bf16.mxu0 0
    %1998 = vmatpush1.bf16.msra.mxu0 0
    %1999 = vmatprep.subr.bf16.mxu0 0
    %2000 = vmatpush1.bf16.msra.mxu0 0
    %2001 = vmatprep.subr.bf16.mxu0 0
    %2002 = vmatpush1.bf16.msra.mxu0 0
    %2003 = vmatprep.subr.bf16.mxu0 0
    %2004 = vmatpush1.bf16.msra.mxu0 0
    %2005 = vmatprep.subr.bf16.mxu0 0
    %2006 = vmatpush1.bf16.msra.mxu0 0
    %2007 = vmatprep.mubr.bf16.mxu0 0
    %2008 = vmatmul.mubr.bf16.gmra.mrb[0].mxu0 %v1579
    %v2009 = vpop.f32.mrb[0].mxu0
    %v2010 = vadd.f32 0.0, %v2009
    %v2011 = vpop.f32.mrb[0].mxu0
    %v2012 = vpop.f32.mrb[0].mxu0
    %v2013 = vpop.f32.mrb[0].mxu0
    %2014 = vdwg.mxu0
    %2015 = vmatprep.subr.bf16.mxu0 0
    %2016 = vmatpush1.bf16.msra.mxu0 %v463
    %2017 = vmatprep.subr.bf16.mxu0 0
    %2018 = vmatpush1.bf16.msra.mxu0 0
    %2019 = vmatprep.subr.bf16.mxu0 0
    %2020 = vmatpush1.bf16.msra.mxu0 0
    %2021 = vmatprep.subr.bf16.mxu0 0
    %2022 = vmatpush1.bf16.msra.mxu0 0
    %2023 = vmatprep.subr.bf16.mxu0 0
    %2024 = vmatpush1.bf16.msra.mxu0 0
    %2025 = vmatprep.subr.bf16.mxu0 0
    %2026 = vmatpush1.bf16.msra.mxu0 0
    %2027 = vmatprep.subr.bf16.mxu0 0
    %2028 = vmatpush1.bf16.msra.mxu0 0
    %2029 = vmatprep.subr.bf16.mxu0 0
    %2030 = vmatpush1.bf16.msra.mxu0 0
    %2031 = vmatprep.subr.bf16.mxu0 0
    %2032 = vmatpush1.bf16.msra.mxu0 0
    %2033 = vmatprep.subr.bf16.mxu0 0
    %2034 = vmatpush1.bf16.msra.mxu0 0
    %2035 = vmatprep.subr.bf16.mxu0 0
    %2036 = vmatpush1.bf16.msra.mxu0 0
    %2037 = vmatprep.subr.bf16.mxu0 0
    %2038 = vmatpush1.bf16.msra.mxu0 0
    %2039 = vmatprep.subr.bf16.mxu0 0
    %2040 = vmatpush1.bf16.msra.mxu0 0
    %2041 = vmatprep.subr.bf16.mxu0 0
    %2042 = vmatpush1.bf16.msra.mxu0 0
    %2043 = vmatprep.subr.bf16.mxu0 0
    %2044 = vmatpush1.bf16.msra.mxu0 0
    %2045 = vmatprep.subr.bf16.mxu0 0
    %2046 = vmatpush1.bf16.msra.mxu0 0
    %2047 = vmatprep.mubr.bf16.mxu0 0
    %2048 = vmatmul.mubr.bf16.gmra.mrb[0].mxu0 %v1932
    %v2049 = vpop.f32.mrb[0].mxu0
    %v2050 = vadd.f32 %v2010, %v2049
    %v2051 = vpop.f32.mrb[0].mxu0
    %v2052 = vpop.f32.mrb[0].mxu0
    %v2053 = vpop.f32.mrb[0].mxu0
    %2054 = vdwg.mxu0
    %v2055 = vadd.f32 %v2050, %v189
    %2056 = vmatprep.subr.bf16.mxu0 0
    %2057 = vmatpush1.bf16.msra.mxu0 %v514
    %2058 = vmatprep.subr.bf16.mxu0 0
    %2059 = vmatpush1.bf16.msra.mxu0 %v515
    %2060 = vmatprep.subr.bf16.mxu0 0
    %2061 = vmatpush1.bf16.msra.mxu0 0
    %2062 = vmatprep.subr.bf16.mxu0 0
    %2063 = vmatpush1.bf16.msra.mxu0 0
    %2064 = vmatprep.subr.bf16.mxu0 0
    %2065 = vmatpush1.bf16.msra.mxu0 0
    %2066 = vmatprep.subr.bf16.mxu0 0
    %2067 = vmatpush1.bf16.msra.mxu0 0
    %2068 = vmatprep.subr.bf16.mxu0 0
    %2069 = vmatpush1.bf16.msra.mxu0 0
    %2070 = vmatprep.subr.bf16.mxu0 0
    %2071 = vmatpush1.bf16.msra.mxu0 0
    %2072 = vmatprep.subr.bf16.mxu0 0
    %2073 = vmatpush1.bf16.msra.mxu0 0
    %2074 = vmatprep.subr.bf16.mxu0 0
    %2075 = vmatpush1.bf16.msra.mxu0 0
    %2076 = vmatprep.subr.bf16.mxu0 0
    %2077 = vmatpush1.bf16.msra.mxu0 0
    %2078 = vmatprep.subr.bf16.mxu0 0
    %2079 = vmatpush1.bf16.msra.mxu0 0
    %2080 = vmatprep.subr.bf16.mxu0 0
    %2081 = vmatpush1.bf16.msra.mxu0 0
    %2082 = vmatprep.subr.bf16.mxu0 0
    %2083 = vmatpush1.bf16.msra.mxu0 0
    %2084 = vmatprep.subr.bf16.mxu0 0
    %2085 = vmatpush1.bf16.msra.mxu0 0
    %2086 = vmatprep.subr.bf16.mxu0 0
    %2087 = vmatpush1.bf16.msra.mxu0 0
    %2088 = vmatprep.mubr.bf16.mxu0 0
    %2089 = vmatmul.mubr.bf16.gmra.mrb[0].mxu0 %v1579
    %v2090 = vpop.f32.mrb[0].mxu0
    %v2091 = vadd.f32 0.0, %v2090
    %v2092 = vpop.f32.mrb[0].mxu0
    %v2093 = vpop.f32.mrb[0].mxu0
    %v2094 = vpop.f32.mrb[0].mxu0
    %2095 = vdwg.mxu0
    %2096 = vmatprep.subr.bf16.mxu0 0
    %2097 = vmatpush1.bf16.msra.mxu0 %v562
    %2098 = vmatprep.subr.bf16.mxu0 0
    %2099 = vmatpush1.bf16.msra.mxu0 0
    %2100 = vmatprep.subr.bf16.mxu0 0
    %2101 = vmatpush1.bf16.msra.mxu0 0
    %2102 = vmatprep.subr.bf16.mxu0 0
    %2103 = vmatpush1.bf16.msra.mxu0 0
    %2104 = vmatprep.subr.bf16.mxu0 0
    %2105 = vmatpush1.bf16.msra.mxu0 0
    %2106 = vmatprep.subr.bf16.mxu0 0
    %2107 = vmatpush1.bf16.msra.mxu0 0
    %2108 = vmatprep.subr.bf16.mxu0 0
    %2109 = vmatpush1.bf16.msra.mxu0 0
    %2110 = vmatprep.subr.bf16.mxu0 0
    %2111 = vmatpush1.bf16.msra.mxu0 0
    %2112 = vmatprep.subr.bf16.mxu0 0
    %2113 = vmatpush1.bf16.msra.mxu0 0
    %2114 = vmatprep.subr.bf16.mxu0 0
    %2115 = vmatpush1.bf16.msra.mxu0 0
    %2116 = vmatprep.subr.bf16.mxu0 0
    %2117 = vmatpush1.bf16.msra.mxu0 0
    %2118 = vmatprep.subr.bf16.mxu0 0
    %2119 = vmatpush1.bf16.msra.mxu0 0
    %2120 = vmatprep.subr.bf16.mxu0 0
    %2121 = vmatpush1.bf16.msra.mxu0 0
    %2122 = vmatprep.subr.bf16.mxu0 0
    %2123 = vmatpush1.bf16.msra.mxu0 0
    %2124 = vmatprep.subr.bf16.mxu0 0
    %2125 = vmatpush1.bf16.msra.mxu0 0
    %2126 = vmatprep.subr.bf16.mxu0 0
    %2127 = vmatpush1.bf16.msra.mxu0 0
    %2128 = vmatprep.mubr.bf16.mxu0 0
    %2129 = vmatmul.mubr.bf16.gmra.mrb[0].mxu0 %v1932
    %v2130 = vpop.f32.mrb[0].mxu0
    %v2131 = vadd.f32 %v2091, %v2130
    %v2132 = vpop.f32.mrb[0].mxu0
    %v2133 = vpop.f32.mrb[0].mxu0
    %v2134 = vpop.f32.mrb[0].mxu0
    %2135 = vdwg.mxu0
    %v2136 = vadd.f32 %v2131, %v205
    %2137 = vmatprep.subr.bf16.mxu0 0
    %2138 = vmatpush1.bf16.msra.mxu0 %v613
    %2139 = vmatprep.subr.bf16.mxu0 0
    %2140 = vmatpush1.bf16.msra.mxu0 %v614
    %2141 = vmatprep.subr.bf16.mxu0 0
    %2142 = vmatpush1.bf16.msra.mxu0 0
    %2143 = vmatprep.subr.bf16.mxu0 0
    %2144 = vmatpush1.bf16.msra.mxu0 0
    %2145 = vmatprep.subr.bf16.mxu0 0
    %2146 = vmatpush1.bf16.msra.mxu0 0
    %2147 = vmatprep.subr.bf16.mxu0 0
    %2148 = vmatpush1.bf16.msra.mxu0 0
    %2149 = vmatprep.subr.bf16.mxu0 0
    %2150 = vmatpush1.bf16.msra.mxu0 0
    %2151 = vmatprep.subr.bf16.mxu0 0
    %2152 = vmatpush1.bf16.msra.mxu0 0
    %2153 = vmatprep.subr.bf16.mxu0 0
    %2154 = vmatpush1.bf16.msra.mxu0 0
    %2155 = vmatprep.subr.bf16.mxu0 0
    %2156 = vmatpush1.bf16.msra.mxu0 0
    %2157 = vmatprep.subr.bf16.mxu0 0
    %2158 = vmatpush1.bf16.msra.mxu0 0
    %2159 = vmatprep.subr.bf16.mxu0 0
    %2160 = vmatpush1.bf16.msra.mxu0 0
    %2161 = vmatprep.subr.bf16.mxu0 0
    %2162 = vmatpush1.bf16.msra.mxu0 0
    %2163 = vmatprep.subr.bf16.mxu0 0
    %2164 = vmatpush1.bf16.msra.mxu0 0
    %2165 = vmatprep.subr.bf16.mxu0 0
    %2166 = vmatpush1.bf16.msra.mxu0 0
    %2167 = vmatprep.subr.bf16.mxu0 0
    %2168 = vmatpush1.bf16.msra.mxu0 0
    %2169 = vmatprep.mubr.bf16.mxu0 0
    %2170 = vmatmul.mubr.bf16.gmra.mrb[0].mxu0 %v1579
    %v2171 = vpop.f32.mrb[0].mxu0
    %v2172 = vadd.f32 0.0, %v2171
    %v2173 = vpop.f32.mrb[0].mxu0
    %v2174 = vpop.f32.mrb[0].mxu0
    %v2175 = vpop.f32.mrb[0].mxu0
    %2176 = vdwg.mxu0
    %2177 = vmatprep.subr.bf16.mxu0 0
    %2178 = vmatpush1.bf16.msra.mxu0 %v661
    %2179 = vmatprep.subr.bf16.mxu0 0
    %2180 = vmatpush1.bf16.msra.mxu0 0
    %2181 = vmatprep.subr.bf16.mxu0 0
    %2182 = vmatpush1.bf16.msra.mxu0 0
    %2183 = vmatprep.subr.bf16.mxu0 0
    %2184 = vmatpush1.bf16.msra.mxu0 0
    %2185 = vmatprep.subr.bf16.mxu0 0
    %2186 = vmatpush1.bf16.msra.mxu0 0
    %2187 = vmatprep.subr.bf16.mxu0 0
    %2188 = vmatpush1.bf16.msra.mxu0 0
    %2189 = vmatprep.subr.bf16.mxu0 0
    %2190 = vmatpush1.bf16.msra.mxu0 0
    %2191 = vmatprep.subr.bf16.mxu0 0
    %2192 = vmatpush1.bf16.msra.mxu0 0
    %2193 = vmatprep.subr.bf16.mxu0 0
    %2194 = vmatpush1.bf16.msra.mxu0 0
    %2195 = vmatprep.subr.bf16.mxu0 0
    %2196 = vmatpush1.bf16.msra.mxu0 0
    %2197 = vmatprep.subr.bf16.mxu0 0
    %2198 = vmatpush1.bf16.msra.mxu0 0
    %2199 = vmatprep.subr.bf16.mxu0 0
    %2200 = vmatpush1.bf16.msra.mxu0 0
    %2201 = vmatprep.subr.bf16.mxu0 0
    %2202 = vmatpush1.bf16.msra.mxu0 0
    %2203 = vmatprep.subr.bf16.mxu0 0
    %2204 = vmatpush1.bf16.msra.mxu0 0
    %2205 = vmatprep.subr.bf16.mxu0 0
    %2206 = vmatpush1.bf16.msra.mxu0 0
    %2207 = vmatprep.subr.bf16.mxu0 0
    %2208 = vmatpush1.bf16.msra.mxu0 0
    %2209 = vmatprep.mubr.bf16.mxu0 0
    %2210 = vmatmul.mubr.bf16.gmra.mrb[0].mxu0 %v1932
    %v2211 = vpop.f32.mrb[0].mxu0
    %v2212 = vadd.f32 %v2172, %v2211
    %v2213 = vpop.f32.mrb[0].mxu0
    %v2214 = vpop.f32.mrb[0].mxu0
    %v2215 = vpop.f32.mrb[0].mxu0
    %2216 = vdwg.mxu0
    %v2217 = vadd.f32 %v2212, %v221
    %v2218 = vxor.u32 %v1974, 2147483648
    %v2219 = vmul.f32 %v2218, 1.442695
    %v2220 = vpow.pop %v2219
    %v2221 = vadd.f32 %v2220, 1.0
    %v2222 = vrcp.pop %v2221
    %v2223 = vmul.f32 1.0, %v2222
    %v2224 = vxor.u32 %v2055, 2147483648
    %v2225 = vmul.f32 %v2224, 1.442695
    %v2226 = vpow.pop %v2225
    %v2227 = vadd.f32 %v2226, 1.0
    %v2228 = vrcp.pop %v2227
    %v2229 = vmul.f32 1.0, %v2228
    %v2230 = vtanh.pop %v2136
    %v2231 = vxor.u32 %v2217, 2147483648
    %v2232 = vmul.f32 %v2231, 1.442695
    %v2233 = vpow.pop %v2232
    %v2234 = vadd.f32 %v2233, 1.0
    %v2235 = vrcp.pop %v2234
    %v2236 = vmul.f32 1.0, %v2235
    %v2237 = vmul.f32 %v2229, %v1530
    %v2238 = vmul.f32 %v2223, %v2230
    %v2239 = vadd.f32 %v2237, %v2238
    %v2240 = vtanh.pop %v2239
    %v2241 = vmul.f32 %v2236, %v2240
    %v2242 = vpack.c.bf16 %v2241, %v2241
    %v2243 = vpack.c.bf16 %v1888, %v1888
    %v2245 = vsel %vm312, %v2243, 0
    %2247 = vmatprep.subr.bf16.mxu0 0
    %2248 = vmatpush1.bf16.msra.mxu0 %v738
    %2249 = vmatprep.subr.bf16.mxu0 0
    %2250 = vmatpush1.bf16.msra.mxu0 %v739
    %2251 = vmatprep.subr.bf16.mxu0 0
    %2252 = vmatpush1.bf16.msra.mxu0 0
    %2253 = vmatprep.subr.bf16.mxu0 0
    %2254 = vmatpush1.bf16.msra.mxu0 0
    %2255 = vmatprep.subr.bf16.mxu0 0
    %2256 = vmatpush1.bf16.msra.mxu0 0
    %2257 = vmatprep.subr.bf16.mxu0 0
    %2258 = vmatpush1.bf16.msra.mxu0 0
    %2259 = vmatprep.subr.bf16.mxu0 0
    %2260 = vmatpush1.bf16.msra.mxu0 0
    %2261 = vmatprep.subr.bf16.mxu0 0
    %2262 = vmatpush1.bf16.msra.mxu0 0
    %2263 = vmatprep.subr.bf16.mxu0 0
    %2264 = vmatpush1.bf16.msra.mxu0 0
    %2265 = vmatprep.subr.bf16.mxu0 0
    %2266 = vmatpush1.bf16.msra.mxu0 0
    %2267 = vmatprep.subr.bf16.mxu0 0
    %2268 = vmatpush1.bf16.msra.mxu0 0
    %2269 = vmatprep.subr.bf16.mxu0 0
    %2270 = vmatpush1.bf16.msra.mxu0 0
    %2271 = vmatprep.subr.bf16.mxu0 0
    %2272 = vmatpush1.bf16.msra.mxu0 0
    %2273 = vmatprep.subr.bf16.mxu0 0
    %2274 = vmatpush1.bf16.msra.mxu0 0
    %2275 = vmatprep.subr.bf16.mxu0 0
    %2276 = vmatpush1.bf16.msra.mxu0 0
    %2277 = vmatprep.subr.bf16.mxu0 0
    %2278 = vmatpush1.bf16.msra.mxu0 0
    %2279 = vmatprep.mubr.bf16.mxu0 0
    %2280 = vmatmul.mubr.bf16.gmra.mrb[0].mxu0 %v2245
    %v2281 = vpop.f32.mrb[0].mxu0
    %v2282 = vadd.f32 0.0, %v2281
    %v2283 = vpop.f32.mrb[0].mxu0
    %v2284 = vpop.f32.mrb[0].mxu0
    %v2285 = vpop.f32.mrb[0].mxu0
    %2286 = vdwg.mxu0
    %v2288 = vsel %vm312, %v2242, 0
    %2290 = vmatprep.subr.bf16.mxu0 0
    %2291 = vmatpush1.bf16.msra.mxu0 %v793
    %2292 = vmatprep.subr.bf16.mxu0 0
    %2293 = vmatpush1.bf16.msra.mxu0 %v794
    %2294 = vmatprep.subr.bf16.mxu0 0
    %2295 = vmatpush1.bf16.msra.mxu0 0
    %2296 = vmatprep.subr.bf16.mxu0 0
    %2297 = vmatpush1.bf16.msra.mxu0 0
    %2298 = vmatprep.subr.bf16.mxu0 0
    %2299 = vmatpush1.bf16.msra.mxu0 0
    %2300 = vmatprep.subr.bf16.mxu0 0
    %2301 = vmatpush1.bf16.msra.mxu0 0
    %2302 = vmatprep.subr.bf16.mxu0 0
    %2303 = vmatpush1.bf16.msra.mxu0 0
    %2304 = vmatprep.subr.bf16.mxu0 0
    %2305 = vmatpush1.bf16.msra.mxu0 0
    %2306 = vmatprep.subr.bf16.mxu0 0
    %2307 = vmatpush1.bf16.msra.mxu0 0
    %2308 = vmatprep.subr.bf16.mxu0 0
    %2309 = vmatpush1.bf16.msra.mxu0 0
    %2310 = vmatprep.subr.bf16.mxu0 0
    %2311 = vmatpush1.bf16.msra.mxu0 0
    %2312 = vmatprep.subr.bf16.mxu0 0
    %2313 = vmatpush1.bf16.msra.mxu0 0
    %2314 = vmatprep.subr.bf16.mxu0 0
    %2315 = vmatpush1.bf16.msra.mxu0 0
    %2316 = vmatprep.subr.bf16.mxu0 0
    %2317 = vmatpush1.bf16.msra.mxu0 0
    %2318 = vmatprep.subr.bf16.mxu0 0
    %2319 = vmatpush1.bf16.msra.mxu0 0
    %2320 = vmatprep.subr.bf16.mxu0 0
    %2321 = vmatpush1.bf16.msra.mxu0 0
    %2322 = vmatprep.mubr.bf16.mxu0 0
    %2323 = vmatmul.mubr.bf16.gmra.mrb[0].mxu0 %v2288
    %v2324 = vpop.f32.mrb[0].mxu0
    %v2325 = vadd.f32 %v2282, %v2324
    %v2326 = vpop.f32.mrb[0].mxu0
    %v2327 = vpop.f32.mrb[0].mxu0
    %v2328 = vpop.f32.mrb[0].mxu0
    %2329 = vdwg.mxu0
    %v2330 = vadd.f32 %v2325, %v236
    %2331 = vmatprep.subr.bf16.mxu0 0
    %2332 = vmatpush1.bf16.msra.mxu0 %v849
    %2333 = vmatprep.subr.bf16.mxu0 0
    %2334 = vmatpush1.bf16.msra.mxu0 %v850
    %2335 = vmatprep.subr.bf16.mxu0 0
    %2336 = vmatpush1.bf16.msra.mxu0 0
    %2337 = vmatprep.subr.bf16.mxu0 0
    %2338 = vmatpush1.bf16.msra.mxu0 0
    %2339 = vmatprep.subr.bf16.mxu0 0
    %2340 = vmatpush1.bf16.msra.mxu0 0
    %2341 = vmatprep.subr.bf16.mxu0 0
    %2342 = vmatpush1.bf16.msra.mxu0 0
    %2343 = vmatprep.subr.bf16.mxu0 0
    %2344 = vmatpush1.bf16.msra.mxu0 0
    %2345 = vmatprep.subr.bf16.mxu0 0
    %2346 = vmatpush1.bf16.msra.mxu0 0
    %2347 = vmatprep.subr.bf16.mxu0 0
    %2348 = vmatpush1.bf16.msra.mxu0 0
    %2349 = vmatprep.subr.bf16.mxu0 0
    %2350 = vmatpush1.bf16.msra.mxu0 0
    %2351 = vmatprep.subr.bf16.mxu0 0
    %2352 = vmatpush1.bf16.msra.mxu0 0
    %2353 = vmatprep.subr.bf16.mxu0 0
    %2354 = vmatpush1.bf16.msra.mxu0 0
    %2355 = vmatprep.subr.bf16.mxu0 0
    %2356 = vmatpush1.bf16.msra.mxu0 0
    %2357 = vmatprep.subr.bf16.mxu0 0
    %2358 = vmatpush1.bf16.msra.mxu0 0
    %2359 = vmatprep.subr.bf16.mxu0 0
    %2360 = vmatpush1.bf16.msra.mxu0 0
    %2361 = vmatprep.subr.bf16.mxu0 0
    %2362 = vmatpush1.bf16.msra.mxu0 0
    %2363 = vmatprep.mubr.bf16.mxu0 0
    %2364 = vmatmul.mubr.bf16.gmra.mrb[0].mxu0 %v2245
    %v2365 = vpop.f32.mrb[0].mxu0
    %v2366 = vadd.f32 0.0, %v2365
    %v2367 = vpop.f32.mrb[0].mxu0
    %v2368 = vpop.f32.mrb[0].mxu0
    %v2369 = vpop.f32.mrb[0].mxu0
    %2370 = vdwg.mxu0
    %2371 = vmatprep.subr.bf16.mxu0 0
    %2372 = vmatpush1.bf16.msra.mxu0 %v901
    %2373 = vmatprep.subr.bf16.mxu0 0
    %2374 = vmatpush1.bf16.msra.mxu0 %v902
    %2375 = vmatprep.subr.bf16.mxu0 0
    %2376 = vmatpush1.bf16.msra.mxu0 0
    %2377 = vmatprep.subr.bf16.mxu0 0
    %2378 = vmatpush1.bf16.msra.mxu0 0
    %2379 = vmatprep.subr.bf16.mxu0 0
    %2380 = vmatpush1.bf16.msra.mxu0 0
    %2381 = vmatprep.subr.bf16.mxu0 0
    %2382 = vmatpush1.bf16.msra.mxu0 0
    %2383 = vmatprep.subr.bf16.mxu0 0
    %2384 = vmatpush1.bf16.msra.mxu0 0
    %2385 = vmatprep.subr.bf16.mxu0 0
    %2386 = vmatpush1.bf16.msra.mxu0 0
    %2387 = vmatprep.subr.bf16.mxu0 0
    %2388 = vmatpush1.bf16.msra.mxu0 0
    %2389 = vmatprep.subr.bf16.mxu0 0
    %2390 = vmatpush1.bf16.msra.mxu0 0
    %2391 = vmatprep.subr.bf16.mxu0 0
    %2392 = vmatpush1.bf16.msra.mxu0 0
    %2393 = vmatprep.subr.bf16.mxu0 0
    %2394 = vmatpush1.bf16.msra.mxu0 0
    %2395 = vmatprep.subr.bf16.mxu0 0
    %2396 = vmatpush1.bf16.msra.mxu0 0
    %2397 = vmatprep.subr.bf16.mxu0 0
    %2398 = vmatpush1.bf16.msra.mxu0 0
    %2399 = vmatprep.subr.bf16.mxu0 0
    %2400 = vmatpush1.bf16.msra.mxu0 0
    %2401 = vmatprep.subr.bf16.mxu0 0
    %2402 = vmatpush1.bf16.msra.mxu0 0
    %2403 = vmatprep.mubr.bf16.mxu0 0
    %2404 = vmatmul.mubr.bf16.gmra.mrb[0].mxu0 %v2288
    %v2405 = vpop.f32.mrb[0].mxu0
    %v2406 = vadd.f32 %v2366, %v2405
    %v2407 = vpop.f32.mrb[0].mxu0
    %v2408 = vpop.f32.mrb[0].mxu0
    %v2409 = vpop.f32.mrb[0].mxu0
    %2410 = vdwg.mxu0
    %v2411 = vadd.f32 %v2406, %v254
    %2412 = vmatprep.subr.bf16.mxu0 0
    %2413 = vmatpush1.bf16.msra.mxu0 %v954
    %2414 = vmatprep.subr.bf16.mxu0 0
    %2415 = vmatpush1.bf16.msra.mxu0 %v955
    %2416 = vmatprep.subr.bf16.mxu0 0
    %2417 = vmatpush1.bf16.msra.mxu0 0
    %2418 = vmatprep.subr.bf16.mxu0 0
    %2419 = vmatpush1.bf16.msra.mxu0 0
    %2420 = vmatprep.subr.bf16.mxu0 0
    %2421 = vmatpush1.bf16.msra.mxu0 0
    %2422 = vmatprep.subr.bf16.mxu0 0
    %2423 = vmatpush1.bf16.msra.mxu0 0
    %2424 = vmatprep.subr.bf16.mxu0 0
    %2425 = vmatpush1.bf16.msra.mxu0 0
    %2426 = vmatprep.subr.bf16.mxu0 0
    %2427 = vmatpush1.bf16.msra.mxu0 0
    %2428 = vmatprep.subr.bf16.mxu0 0
    %2429 = vmatpush1.bf16.msra.mxu0 0
    %2430 = vmatprep.subr.bf16.mxu0 0
    %2431 = vmatpush1.bf16.msra.mxu0 0
    %2432 = vmatprep.subr.bf16.mxu0 0
    %2433 = vmatpush1.bf16.msra.mxu0 0
    %2434 = vmatprep.subr.bf16.mxu0 0
    %2435 = vmatpush1.bf16.msra.mxu0 0
    %2436 = vmatprep.subr.bf16.mxu0 0
    %2437 = vmatpush1.bf16.msra.mxu0 0
    %2438 = vmatprep.subr.bf16.mxu0 0
    %2439 = vmatpush1.bf16.msra.mxu0 0
    %2440 = vmatprep.subr.bf16.mxu0 0
    %2441 = vmatpush1.bf16.msra.mxu0 0
    %2442 = vmatprep.subr.bf16.mxu0 0
    %2443 = vmatpush1.bf16.msra.mxu0 0
    %2444 = vmatprep.mubr.bf16.mxu0 0
    %2445 = vmatmul.mubr.bf16.gmra.mrb[0].mxu0 %v2245
    %v2446 = vpop.f32.mrb[0].mxu0
    %v2447 = vadd.f32 0.0, %v2446
    %v2448 = vpop.f32.mrb[0].mxu0
    %v2449 = vpop.f32.mrb[0].mxu0
    %v2450 = vpop.f32.mrb[0].mxu0
    %2451 = vdwg.mxu0
    %2452 = vmatprep.subr.bf16.mxu0 0
    %2453 = vmatpush1.bf16.msra.mxu0 %v1006
    %2454 = vmatprep.subr.bf16.mxu0 0
    %2455 = vmatpush1.bf16.msra.mxu0 %v1007
    %2456 = vmatprep.subr.bf16.mxu0 0
    %2457 = vmatpush1.bf16.msra.mxu0 0
    %2458 = vmatprep.subr.bf16.mxu0 0
    %2459 = vmatpush1.bf16.msra.mxu0 0
    %2460 = vmatprep.subr.bf16.mxu0 0
    %2461 = vmatpush1.bf16.msra.mxu0 0
    %2462 = vmatprep.subr.bf16.mxu0 0
    %2463 = vmatpush1.bf16.msra.mxu0 0
    %2464 = vmatprep.subr.bf16.mxu0 0
    %2465 = vmatpush1.bf16.msra.mxu0 0
    %2466 = vmatprep.subr.bf16.mxu0 0
    %2467 = vmatpush1.bf16.msra.mxu0 0
    %2468 = vmatprep.subr.bf16.mxu0 0
    %2469 = vmatpush1.bf16.msra.mxu0 0
    %2470 = vmatprep.subr.bf16.mxu0 0
    %2471 = vmatpush1.bf16.msra.mxu0 0
    %2472 = vmatprep.subr.bf16.mxu0 0
    %2473 = vmatpush1.bf16.msra.mxu0 0
    %2474 = vmatprep.subr.bf16.mxu0 0
    %2475 = vmatpush1.bf16.msra.mxu0 0
    %2476 = vmatprep.subr.bf16.mxu0 0
    %2477 = vmatpush1.bf16.msra.mxu0 0
    %2478 = vmatprep.subr.bf16.mxu0 0
    %2479 = vmatpush1.bf16.msra.mxu0 0
    %2480 = vmatprep.subr.bf16.mxu0 0
    %2481 = vmatpush1.bf16.msra.mxu0 0
    %2482 = vmatprep.subr.bf16.mxu0 0
    %2483 = vmatpush1.bf16.msra.mxu0 0
    %2484 = vmatprep.mubr.bf16.mxu0 0
    %2485 = vmatmul.mubr.bf16.gmra.mrb[0].mxu0 %v2288
    %v2486 = vpop.f32.mrb[0].mxu0
    %v2487 = vadd.f32 %v2447, %v2486
    %v2488 = vpop.f32.mrb[0].mxu0
    %v2489 = vpop.f32.mrb[0].mxu0
    %v2490 = vpop.f32.mrb[0].mxu0
    %2491 = vdwg.mxu0
    %v2492 = vadd.f32 %v2487, %v272
    %2493 = vmatprep.subr.bf16.mxu0 0
    %2494 = vmatpush1.bf16.msra.mxu0 %v1059
    %2495 = vmatprep.subr.bf16.mxu0 0
    %2496 = vmatpush1.bf16.msra.mxu0 %v1060
    %2497 = vmatprep.subr.bf16.mxu0 0
    %2498 = vmatpush1.bf16.msra.mxu0 0
    %2499 = vmatprep.subr.bf16.mxu0 0
    %2500 = vmatpush1.bf16.msra.mxu0 0
    %2501 = vmatprep.subr.bf16.mxu0 0
    %2502 = vmatpush1.bf16.msra.mxu0 0
    %2503 = vmatprep.subr.bf16.mxu0 0
    %2504 = vmatpush1.bf16.msra.mxu0 0
    %2505 = vmatprep.subr.bf16.mxu0 0
    %2506 = vmatpush1.bf16.msra.mxu0 0
    %2507 = vmatprep.subr.bf16.mxu0 0
    %2508 = vmatpush1.bf16.msra.mxu0 0
    %2509 = vmatprep.subr.bf16.mxu0 0
    %2510 = vmatpush1.bf16.msra.mxu0 0
    %2511 = vmatprep.subr.bf16.mxu0 0
    %2512 = vmatpush1.bf16.msra.mxu0 0
    %2513 = vmatprep.subr.bf16.mxu0 0
    %2514 = vmatpush1.bf16.msra.mxu0 0
    %2515 = vmatprep.subr.bf16.mxu0 0
    %2516 = vmatpush1.bf16.msra.mxu0 0
    %2517 = vmatprep.subr.bf16.mxu0 0
    %2518 = vmatpush1.bf16.msra.mxu0 0
    %2519 = vmatprep.subr.bf16.mxu0 0
    %2520 = vmatpush1.bf16.msra.mxu0 0
    %2521 = vmatprep.subr.bf16.mxu0 0
    %2522 = vmatpush1.bf16.msra.mxu0 0
    %2523 = vmatprep.subr.bf16.mxu0 0
    %2524 = vmatpush1.bf16.msra.mxu0 0
    %2525 = vmatprep.mubr.bf16.mxu0 0
    %2526 = vmatmul.mubr.bf16.gmra.mrb[0].mxu0 %v2245
    %v2527 = vpop.f32.mrb[0].mxu0
    %v2528 = vadd.f32 0.0, %v2527
    %v2529 = vpop.f32.mrb[0].mxu0
    %v2530 = vpop.f32.mrb[0].mxu0
    %v2531 = vpop.f32.mrb[0].mxu0
    %2532 = vdwg.mxu0
    %2533 = vmatprep.subr.bf16.mxu0 0
    %2534 = vmatpush1.bf16.msra.mxu0 %v1111
    %2535 = vmatprep.subr.bf16.mxu0 0
    %2536 = vmatpush1.bf16.msra.mxu0 %v1112
    %2537 = vmatprep.subr.bf16.mxu0 0
    %2538 = vmatpush1.bf16.msra.mxu0 0
    %2539 = vmatprep.subr.bf16.mxu0 0
    %2540 = vmatpush1.bf16.msra.mxu0 0
    %2541 = vmatprep.subr.bf16.mxu0 0
    %2542 = vmatpush1.bf16.msra.mxu0 0
    %2543 = vmatprep.subr.bf16.mxu0 0
    %2544 = vmatpush1.bf16.msra.mxu0 0
    %2545 = vmatprep.subr.bf16.mxu0 0
    %2546 = vmatpush1.bf16.msra.mxu0 0
    %2547 = vmatprep.subr.bf16.mxu0 0
    %2548 = vmatpush1.bf16.msra.mxu0 0
    %2549 = vmatprep.subr.bf16.mxu0 0
    %2550 = vmatpush1.bf16.msra.mxu0 0
    %2551 = vmatprep.subr.bf16.mxu0 0
    %2552 = vmatpush1.bf16.msra.mxu0 0
    %2553 = vmatprep.subr.bf16.mxu0 0
    %2554 = vmatpush1.bf16.msra.mxu0 0
    %2555 = vmatprep.subr.bf16.mxu0 0
    %2556 = vmatpush1.bf16.msra.mxu0 0
    %2557 = vmatprep.subr.bf16.mxu0 0
    %2558 = vmatpush1.bf16.msra.mxu0 0
    %2559 = vmatprep.subr.bf16.mxu0 0
    %2560 = vmatpush1.bf16.msra.mxu0 0
    %2561 = vmatprep.subr.bf16.mxu0 0
    %2562 = vmatpush1.bf16.msra.mxu0 0
    %2563 = vmatprep.subr.bf16.mxu0 0
    %2564 = vmatpush1.bf16.msra.mxu0 0
    %2565 = vmatprep.mubr.bf16.mxu0 0
    %2566 = vmatmul.mubr.bf16.gmra.mrb[0].mxu0 %v2288
    %v2567 = vpop.f32.mrb[0].mxu0
    %v2568 = vadd.f32 %v2528, %v2567
    %v2569 = vpop.f32.mrb[0].mxu0
    %v2570 = vpop.f32.mrb[0].mxu0
    %v2571 = vpop.f32.mrb[0].mxu0
    %2572 = vdwg.mxu0
    %v2573 = vadd.f32 %v2568, %v290
    %v2574 = vxor.u32 %v2330, 2147483648
    %v2575 = vmul.f32 %v2574, 1.442695
    %v2576 = vpow.pop %v2575
    %v2577 = vadd.f32 %v2576, 1.0
    %v2578 = vrcp.pop %v2577
    %v2579 = vmul.f32 1.0, %v2578
    %v2580 = vxor.u32 %v2411, 2147483648
    %v2581 = vmul.f32 %v2580, 1.442695
    %v2582 = vpow.pop %v2581
    %v2583 = vadd.f32 %v2582, 1.0
    %v2584 = vrcp.pop %v2583
    %v2585 = vmul.f32 1.0, %v2584
    %v2586 = vtanh.pop %v2492
    %v2587 = vxor.u32 %v2573, 2147483648
    %v2588 = vmul.f32 %v2587, 1.442695
    %v2589 = vpow.pop %v2588
    %v2590 = vadd.f32 %v2589, 1.0
    %v2591 = vrcp.pop %v2590
    %v2592 = vmul.f32 1.0, %v2591
    %v2593 = vmul.f32 %v2585, %v1886
    %v2594 = vmul.f32 %v2579, %v2586
    %v2595 = vadd.f32 %v2593, %v2594
    %v2596 = vtanh.pop %v2595
    %v2597 = vmul.f32 %v2592, %v2596
    %s2598 = scalar_lea.vmem [#allocation2], 12
    %v2599 = vld [vmem:[%s2598] sm:$0xf]
    %2600 = vmatprep.subr.bf16.mxu0 0
    %2601 = vmatpush1.bf16.msra.mxu0 %v308
    %2602 = vmatprep.subr.bf16.mxu0 0
    %2603 = vmatpush1.bf16.msra.mxu0 %v309
    %2604 = vmatprep.subr.bf16.mxu0 0
    %2605 = vmatpush1.bf16.msra.mxu0 0
    %2606 = vmatprep.subr.bf16.mxu0 0
    %2607 = vmatpush1.bf16.msra.mxu0 0
    %2608 = vmatprep.subr.bf16.mxu0 0
    %2609 = vmatpush1.bf16.msra.mxu0 0
    %2610 = vmatprep.subr.bf16.mxu0 0
    %2611 = vmatpush1.bf16.msra.mxu0 0
    %2612 = vmatprep.subr.bf16.mxu0 0
    %2613 = vmatpush1.bf16.msra.mxu0 0
    %2614 = vmatprep.subr.bf16.mxu0 0
    %2615 = vmatpush1.bf16.msra.mxu0 0
    %2616 = vmatprep.subr.bf16.mxu0 0
    %2617 = vmatpush1.bf16.msra.mxu0 0
    %2618 = vmatprep.subr.bf16.mxu0 0
    %2619 = vmatpush1.bf16.msra.mxu0 0
    %2620 = vmatprep.subr.bf16.mxu0 0
    %2621 = vmatpush1.bf16.msra.mxu0 0
    %2622 = vmatprep.subr.bf16.mxu0 0
    %2623 = vmatpush1.bf16.msra.mxu0 0
    %2624 = vmatprep.subr.bf16.mxu0 0
    %2625 = vmatpush1.bf16.msra.mxu0 0
    %2626 = vmatprep.subr.bf16.mxu0 0
    %2627 = vmatpush1.bf16.msra.mxu0 0
    %2628 = vmatprep.subr.bf16.mxu0 0
    %2629 = vmatpush1.bf16.msra.mxu0 0
    %2630 = vmatprep.subr.bf16.mxu0 0
    %2631 = vmatpush1.bf16.msra.mxu0 0
    %2632 = vmatprep.mubr.bf16.mxu0 0
    %2633 = vmatmul.mubr.bf16.gmra.mrb[0].mxu0 %v2288
    %v2634 = vpop.f32.mrb[0].mxu0
    %v2635 = vadd.f32 0.0, %v2634
    %v2636 = vpop.f32.mrb[0].mxu0
    %v2637 = vpop.f32.mrb[0].mxu0
    %v2638 = vpop.f32.mrb[0].mxu0
    %2639 = vdwg.mxu0
    %v2641 = vsel %vm362, %v2599, 0
    %2643 = vmatprep.subr.bf16.mxu0 0
    %2644 = vmatpush1.bf16.msra.mxu0 %v360
    %2645 = vmatprep.subr.bf16.mxu0 0
    %2646 = vmatpush1.bf16.msra.mxu0 0
    %2647 = vmatprep.subr.bf16.mxu0 0
    %2648 = vmatpush1.bf16.msra.mxu0 0
    %2649 = vmatprep.subr.bf16.mxu0 0
    %2650 = vmatpush1.bf16.msra.mxu0 0
    %2651 = vmatprep.subr.bf16.mxu0 0
    %2652 = vmatpush1.bf16.msra.mxu0 0
    %2653 = vmatprep.subr.bf16.mxu0 0
    %2654 = vmatpush1.bf16.msra.mxu0 0
    %2655 = vmatprep.subr.bf16.mxu0 0
    %2656 = vmatpush1.bf16.msra.mxu0 0
    %2657 = vmatprep.subr.bf16.mxu0 0
    %2658 = vmatpush1.bf16.msra.mxu0 0
    %2659 = vmatprep.subr.bf16.mxu0 0
    %2660 = vmatpush1.bf16.msra.mxu0 0
    %2661 = vmatprep.subr.bf16.mxu0 0
    %2662 = vmatpush1.bf16.msra.mxu0 0
    %2663 = vmatprep.subr.bf16.mxu0 0
    %2664 = vmatpush1.bf16.msra.mxu0 0
    %2665 = vmatprep.subr.bf16.mxu0 0
    %2666 = vmatpush1.bf16.msra.mxu0 0
    %2667 = vmatprep.subr.bf16.mxu0 0
    %2668 = vmatpush1.bf16.msra.mxu0 0
    %2669 = vmatprep.subr.bf16.mxu0 0
    %2670 = vmatpush1.bf16.msra.mxu0 0
    %2671 = vmatprep.subr.bf16.mxu0 0
    %2672 = vmatpush1.bf16.msra.mxu0 0
    %2673 = vmatprep.subr.bf16.mxu0 0
    %2674 = vmatpush1.bf16.msra.mxu0 0
    %2675 = vmatprep.mubr.bf16.mxu0 0
    %2676 = vmatmul.mubr.bf16.gmra.mrb[0].mxu0 %v2641
    %v2677 = vpop.f32.mrb[0].mxu0
    %v2678 = vadd.f32 %v2635, %v2677
    %v2679 = vpop.f32.mrb[0].mxu0
    %v2680 = vpop.f32.mrb[0].mxu0
    %v2681 = vpop.f32.mrb[0].mxu0
    %2682 = vdwg.mxu0
    %v2683 = vadd.f32 %v2678, %v173
    %2684 = vmatprep.subr.bf16.mxu0 0
    %2685 = vmatpush1.bf16.msra.mxu0 %v415
    %2686 = vmatprep.subr.bf16.mxu0 0
    %2687 = vmatpush1.bf16.msra.mxu0 %v416
    %2688 = vmatprep.subr.bf16.mxu0 0
    %2689 = vmatpush1.bf16.msra.mxu0 0
    %2690 = vmatprep.subr.bf16.mxu0 0
    %2691 = vmatpush1.bf16.msra.mxu0 0
    %2692 = vmatprep.subr.bf16.mxu0 0
    %2693 = vmatpush1.bf16.msra.mxu0 0
    %2694 = vmatprep.subr.bf16.mxu0 0
    %2695 = vmatpush1.bf16.msra.mxu0 0
    %2696 = vmatprep.subr.bf16.mxu0 0
    %2697 = vmatpush1.bf16.msra.mxu0 0
    %2698 = vmatprep.subr.bf16.mxu0 0
    %2699 = vmatpush1.bf16.msra.mxu0 0
    %2700 = vmatprep.subr.bf16.mxu0 0
    %2701 = vmatpush1.bf16.msra.mxu0 0
    %2702 = vmatprep.subr.bf16.mxu0 0
    %2703 = vmatpush1.bf16.msra.mxu0 0
    %2704 = vmatprep.subr.bf16.mxu0 0
    %2705 = vmatpush1.bf16.msra.mxu0 0
    %2706 = vmatprep.subr.bf16.mxu0 0
    %2707 = vmatpush1.bf16.msra.mxu0 0
    %2708 = vmatprep.subr.bf16.mxu0 0
    %2709 = vmatpush1.bf16.msra.mxu0 0
    %2710 = vmatprep.subr.bf16.mxu0 0
    %2711 = vmatpush1.bf16.msra.mxu0 0
    %2712 = vmatprep.subr.bf16.mxu0 0
    %2713 = vmatpush1.bf16.msra.mxu0 0
    %2714 = vmatprep.subr.bf16.mxu0 0
    %2715 = vmatpush1.bf16.msra.mxu0 0
    %2716 = vmatprep.mubr.bf16.mxu0 0
    %2717 = vmatmul.mubr.bf16.gmra.mrb[0].mxu0 %v2288
    %v2718 = vpop.f32.mrb[0].mxu0
    %v2719 = vadd.f32 0.0, %v2718
    %v2720 = vpop.f32.mrb[0].mxu0
    %v2721 = vpop.f32.mrb[0].mxu0
    %v2722 = vpop.f32.mrb[0].mxu0
    %2723 = vdwg.mxu0
    %2724 = vmatprep.subr.bf16.mxu0 0
    %2725 = vmatpush1.bf16.msra.mxu0 %v463
    %2726 = vmatprep.subr.bf16.mxu0 0
    %2727 = vmatpush1.bf16.msra.mxu0 0
    %2728 = vmatprep.subr.bf16.mxu0 0
    %2729 = vmatpush1.bf16.msra.mxu0 0
    %2730 = vmatprep.subr.bf16.mxu0 0
    %2731 = vmatpush1.bf16.msra.mxu0 0
    %2732 = vmatprep.subr.bf16.mxu0 0
    %2733 = vmatpush1.bf16.msra.mxu0 0
    %2734 = vmatprep.subr.bf16.mxu0 0
    %2735 = vmatpush1.bf16.msra.mxu0 0
    %2736 = vmatprep.subr.bf16.mxu0 0
    %2737 = vmatpush1.bf16.msra.mxu0 0
    %2738 = vmatprep.subr.bf16.mxu0 0
    %2739 = vmatpush1.bf16.msra.mxu0 0
    %2740 = vmatprep.subr.bf16.mxu0 0
    %2741 = vmatpush1.bf16.msra.mxu0 0
    %2742 = vmatprep.subr.bf16.mxu0 0
    %2743 = vmatpush1.bf16.msra.mxu0 0
    %2744 = vmatprep.subr.bf16.mxu0 0
    %2745 = vmatpush1.bf16.msra.mxu0 0
    %2746 = vmatprep.subr.bf16.mxu0 0
    %2747 = vmatpush1.bf16.msra.mxu0 0
    %2748 = vmatprep.subr.bf16.mxu0 0
    %2749 = vmatpush1.bf16.msra.mxu0 0
    %2750 = vmatprep.subr.bf16.mxu0 0
    %2751 = vmatpush1.bf16.msra.mxu0 0
    %2752 = vmatprep.subr.bf16.mxu0 0
    %2753 = vmatpush1.bf16.msra.mxu0 0
    %2754 = vmatprep.subr.bf16.mxu0 0
    %2755 = vmatpush1.bf16.msra.mxu0 0
    %2756 = vmatprep.mubr.bf16.mxu0 0
    %2757 = vmatmul.mubr.bf16.gmra.mrb[0].mxu0 %v2641
    %v2758 = vpop.f32.mrb[0].mxu0
    %v2759 = vadd.f32 %v2719, %v2758
    %v2760 = vpop.f32.mrb[0].mxu0
    %v2761 = vpop.f32.mrb[0].mxu0
    %v2762 = vpop.f32.mrb[0].mxu0
    %2763 = vdwg.mxu0
    %v2764 = vadd.f32 %v2759, %v189
    %2765 = vmatprep.subr.bf16.mxu0 0
    %2766 = vmatpush1.bf16.msra.mxu0 %v514
    %2767 = vmatprep.subr.bf16.mxu0 0
    %2768 = vmatpush1.bf16.msra.mxu0 %v515
    %2769 = vmatprep.subr.bf16.mxu0 0
    %2770 = vmatpush1.bf16.msra.mxu0 0
    %2771 = vmatprep.subr.bf16.mxu0 0
    %2772 = vmatpush1.bf16.msra.mxu0 0
    %2773 = vmatprep.subr.bf16.mxu0 0
    %2774 = vmatpush1.bf16.msra.mxu0 0
    %2775 = vmatprep.subr.bf16.mxu0 0
    %2776 = vmatpush1.bf16.msra.mxu0 0
    %2777 = vmatprep.subr.bf16.mxu0 0
    %2778 = vmatpush1.bf16.msra.mxu0 0
    %2779 = vmatprep.subr.bf16.mxu0 0
    %2780 = vmatpush1.bf16.msra.mxu0 0
    %2781 = vmatprep.subr.bf16.mxu0 0
    %2782 = vmatpush1.bf16.msra.mxu0 0
    %2783 = vmatprep.subr.bf16.mxu0 0
    %2784 = vmatpush1.bf16.msra.mxu0 0
    %2785 = vmatprep.subr.bf16.mxu0 0
    %2786 = vmatpush1.bf16.msra.mxu0 0
    %2787 = vmatprep.subr.bf16.mxu0 0
    %2788 = vmatpush1.bf16.msra.mxu0 0
    %2789 = vmatprep.subr.bf16.mxu0 0
    %2790 = vmatpush1.bf16.msra.mxu0 0
    %2791 = vmatprep.subr.bf16.mxu0 0
    %2792 = vmatpush1.bf16.msra.mxu0 0
    %2793 = vmatprep.subr.bf16.mxu0 0
    %2794 = vmatpush1.bf16.msra.mxu0 0
    %2795 = vmatprep.subr.bf16.mxu0 0
    %2796 = vmatpush1.bf16.msra.mxu0 0
    %2797 = vmatprep.mubr.bf16.mxu0 0
    %2798 = vmatmul.mubr.bf16.gmra.mrb[0].mxu0 %v2288
    %v2799 = vpop.f32.mrb[0].mxu0
    %v2800 = vadd.f32 0.0, %v2799
    %v2801 = vpop.f32.mrb[0].mxu0
    %v2802 = vpop.f32.mrb[0].mxu0
    %v2803 = vpop.f32.mrb[0].mxu0
    %2804 = vdwg.mxu0
    %2805 = vmatprep.subr.bf16.mxu0 0
    %2806 = vmatpush1.bf16.msra.mxu0 %v562
    %2807 = vmatprep.subr.bf16.mxu0 0
    %2808 = vmatpush1.bf16.msra.mxu0 0
    %2809 = vmatprep.subr.bf16.mxu0 0
    %2810 = vmatpush1.bf16.msra.mxu0 0
    %2811 = vmatprep.subr.bf16.mxu0 0
    %2812 = vmatpush1.bf16.msra.mxu0 0
    %2813 = vmatprep.subr.bf16.mxu0 0
    %2814 = vmatpush1.bf16.msra.mxu0 0
    %2815 = vmatprep.subr.bf16.mxu0 0
    %2816 = vmatpush1.bf16.msra.mxu0 0
    %2817 = vmatprep.subr.bf16.mxu0 0
    %2818 = vmatpush1.bf16.msra.mxu0 0
    %2819 = vmatprep.subr.bf16.mxu0 0
    %2820 = vmatpush1.bf16.msra.mxu0 0
    %2821 = vmatprep.subr.bf16.mxu0 0
    %2822 = vmatpush1.bf16.msra.mxu0 0
    %2823 = vmatprep.subr.bf16.mxu0 0
    %2824 = vmatpush1.bf16.msra.mxu0 0
    %2825 = vmatprep.subr.bf16.mxu0 0
    %2826 = vmatpush1.bf16.msra.mxu0 0
    %2827 = vmatprep.subr.bf16.mxu0 0
    %2828 = vmatpush1.bf16.msra.mxu0 0
    %2829 = vmatprep.subr.bf16.mxu0 0
    %2830 = vmatpush1.bf16.msra.mxu0 0
    %2831 = vmatprep.subr.bf16.mxu0 0
    %2832 = vmatpush1.bf16.msra.mxu0 0
    %2833 = vmatprep.subr.bf16.mxu0 0
    %2834 = vmatpush1.bf16.msra.mxu0 0
    %2835 = vmatprep.subr.bf16.mxu0 0
    %2836 = vmatpush1.bf16.msra.mxu0 0
    %2837 = vmatprep.mubr.bf16.mxu0 0
    %2838 = vmatmul.mubr.bf16.gmra.mrb[0].mxu0 %v2641
    %v2839 = vpop.f32.mrb[0].mxu0
    %v2840 = vadd.f32 %v2800, %v2839
    %v2841 = vpop.f32.mrb[0].mxu0
    %v2842 = vpop.f32.mrb[0].mxu0
    %v2843 = vpop.f32.mrb[0].mxu0
    %2844 = vdwg.mxu0
    %v2845 = vadd.f32 %v2840, %v205
    %2846 = vmatprep.subr.bf16.mxu0 0
    %2847 = vmatpush1.bf16.msra.mxu0 %v613
    %2848 = vmatprep.subr.bf16.mxu0 0
    %2849 = vmatpush1.bf16.msra.mxu0 %v614
    %2850 = vmatprep.subr.bf16.mxu0 0
    %2851 = vmatpush1.bf16.msra.mxu0 0
    %2852 = vmatprep.subr.bf16.mxu0 0
    %2853 = vmatpush1.bf16.msra.mxu0 0
    %2854 = vmatprep.subr.bf16.mxu0 0
    %2855 = vmatpush1.bf16.msra.mxu0 0
    %2856 = vmatprep.subr.bf16.mxu0 0
    %2857 = vmatpush1.bf16.msra.mxu0 0
    %2858 = vmatprep.subr.bf16.mxu0 0
    %2859 = vmatpush1.bf16.msra.mxu0 0
    %2860 = vmatprep.subr.bf16.mxu0 0
    %2861 = vmatpush1.bf16.msra.mxu0 0
    %2862 = vmatprep.subr.bf16.mxu0 0
    %2863 = vmatpush1.bf16.msra.mxu0 0
    %2864 = vmatprep.subr.bf16.mxu0 0
    %2865 = vmatpush1.bf16.msra.mxu0 0
    %2866 = vmatprep.subr.bf16.mxu0 0
    %2867 = vmatpush1.bf16.msra.mxu0 0
    %2868 = vmatprep.subr.bf16.mxu0 0
    %2869 = vmatpush1.bf16.msra.mxu0 0
    %2870 = vmatprep.subr.bf16.mxu0 0
    %2871 = vmatpush1.bf16.msra.mxu0 0
    %2872 = vmatprep.subr.bf16.mxu0 0
    %2873 = vmatpush1.bf16.msra.mxu0 0
    %2874 = vmatprep.subr.bf16.mxu0 0
    %2875 = vmatpush1.bf16.msra.mxu0 0
    %2876 = vmatprep.subr.bf16.mxu0 0
    %2877 = vmatpush1.bf16.msra.mxu0 0
    %2878 = vmatprep.mubr.bf16.mxu0 0
    %2879 = vmatmul.mubr.bf16.gmra.mrb[0].mxu0 %v2288
    %v2880 = vpop.f32.mrb[0].mxu0
    %v2881 = vadd.f32 0.0, %v2880
    %v2882 = vpop.f32.mrb[0].mxu0
    %v2883 = vpop.f32.mrb[0].mxu0
    %v2884 = vpop.f32.mrb[0].mxu0
    %2885 = vdwg.mxu0
    %2886 = vmatprep.subr.bf16.mxu0 0
    %2887 = vmatpush1.bf16.msra.mxu0 %v661
    %2888 = vmatprep.subr.bf16.mxu0 0
    %2889 = vmatpush1.bf16.msra.mxu0 0
    %2890 = vmatprep.subr.bf16.mxu0 0
    %2891 = vmatpush1.bf16.msra.mxu0 0
    %2892 = vmatprep.subr.bf16.mxu0 0
    %2893 = vmatpush1.bf16.msra.mxu0 0
    %2894 = vmatprep.subr.bf16.mxu0 0
    %2895 = vmatpush1.bf16.msra.mxu0 0
    %2896 = vmatprep.subr.bf16.mxu0 0
    %2897 = vmatpush1.bf16.msra.mxu0 0
    %2898 = vmatprep.subr.bf16.mxu0 0
    %2899 = vmatpush1.bf16.msra.mxu0 0
    %2900 = vmatprep.subr.bf16.mxu0 0
    %2901 = vmatpush1.bf16.msra.mxu0 0
    %2902 = vmatprep.subr.bf16.mxu0 0
    %2903 = vmatpush1.bf16.msra.mxu0 0
    %2904 = vmatprep.subr.bf16.mxu0 0
    %2905 = vmatpush1.bf16.msra.mxu0 0
    %2906 = vmatprep.subr.bf16.mxu0 0
    %2907 = vmatpush1.bf16.msra.mxu0 0
    %2908 = vmatprep.subr.bf16.mxu0 0
    %2909 = vmatpush1.bf16.msra.mxu0 0
    %2910 = vmatprep.subr.bf16.mxu0 0
    %2911 = vmatpush1.bf16.msra.mxu0 0
    %2912 = vmatprep.subr.bf16.mxu0 0
    %2913 = vmatpush1.bf16.msra.mxu0 0
    %2914 = vmatprep.subr.bf16.mxu0 0
    %2915 = vmatpush1.bf16.msra.mxu0 0
    %2916 = vmatprep.subr.bf16.mxu0 0
    %2917 = vmatpush1.bf16.msra.mxu0 0
    %2918 = vmatprep.mubr.bf16.mxu0 0
    %2919 = vmatmul.mubr.bf16.gmra.mrb[0].mxu0 %v2641
    %v2920 = vpop.f32.mrb[0].mxu0
    %v2921 = vadd.f32 %v2881, %v2920
    %v2922 = vpop.f32.mrb[0].mxu0
    %v2923 = vpop.f32.mrb[0].mxu0
    %v2924 = vpop.f32.mrb[0].mxu0
    %2925 = vdwg.mxu0
    %v2926 = vadd.f32 %v2921, %v221
    %v2927 = vxor.u32 %v2683, 2147483648
    %v2928 = vmul.f32 %v2927, 1.442695
    %v2929 = vpow.pop %v2928
    %v2930 = vadd.f32 %v2929, 1.0
    %v2931 = vrcp.pop %v2930
    %v2932 = vmul.f32 1.0, %v2931
    %v2933 = vxor.u32 %v2764, 2147483648
    %v2934 = vmul.f32 %v2933, 1.442695
    %v2935 = vpow.pop %v2934
    %v2936 = vadd.f32 %v2935, 1.0
    %v2937 = vrcp.pop %v2936
    %v2938 = vmul.f32 1.0, %v2937
    %v2939 = vtanh.pop %v2845
    %v2940 = vxor.u32 %v2926, 2147483648
    %v2941 = vmul.f32 %v2940, 1.442695
    %v2942 = vpow.pop %v2941
    %v2943 = vadd.f32 %v2942, 1.0
    %v2944 = vrcp.pop %v2943
    %v2945 = vmul.f32 1.0, %v2944
    %v2946 = vmul.f32 %v2938, %v2239
    %v2947 = vmul.f32 %v2932, %v2939
    %v2948 = vadd.f32 %v2946, %v2947
    %v2949 = vtanh.pop %v2948
    %v2950 = vmul.f32 %v2945, %v2949
    %v2951 = vpack.c.bf16 %v2950, %v2950
    %v2952 = vpack.c.bf16 %v2597, %v2597
    %v2954 = vsel %vm312, %v2952, 0
    %2956 = vmatprep.subr.bf16.mxu0 0
    %2957 = vmatpush1.bf16.msra.mxu0 %v738
    %2958 = vmatprep.subr.bf16.mxu0 0
    %2959 = vmatpush1.bf16.msra.mxu0 %v739
    %2960 = vmatprep.subr.bf16.mxu0 0
    %2961 = vmatpush1.bf16.msra.mxu0 0
    %2962 = vmatprep.subr.bf16.mxu0 0
    %2963 = vmatpush1.bf16.msra.mxu0 0
    %2964 = vmatprep.subr.bf16.mxu0 0
    %2965 = vmatpush1.bf16.msra.mxu0 0
    %2966 = vmatprep.subr.bf16.mxu0 0
    %2967 = vmatpush1.bf16.msra.mxu0 0
    %2968 = vmatprep.subr.bf16.mxu0 0
    %2969 = vmatpush1.bf16.msra.mxu0 0
    %2970 = vmatprep.subr.bf16.mxu0 0
    %2971 = vmatpush1.bf16.msra.mxu0 0
    %2972 = vmatprep.subr.bf16.mxu0 0
    %2973 = vmatpush1.bf16.msra.mxu0 0
    %2974 = vmatprep.subr.bf16.mxu0 0
    %2975 = vmatpush1.bf16.msra.mxu0 0
    %2976 = vmatprep.subr.bf16.mxu0 0
    %2977 = vmatpush1.bf16.msra.mxu0 0
    %2978 = vmatprep.subr.bf16.mxu0 0
    %2979 = vmatpush1.bf16.msra.mxu0 0
    %2980 = vmatprep.subr.bf16.mxu0 0
    %2981 = vmatpush1.bf16.msra.mxu0 0
    %2982 = vmatprep.subr.bf16.mxu0 0
    %2983 = vmatpush1.bf16.msra.mxu0 0
    %2984 = vmatprep.subr.bf16.mxu0 0
    %2985 = vmatpush1.bf16.msra.mxu0 0
    %2986 = vmatprep.subr.bf16.mxu0 0
    %2987 = vmatpush1.bf16.msra.mxu0 0
    %2988 = vmatprep.mubr.bf16.mxu0 0
    %2989 = vmatmul.mubr.bf16.gmra.mrb[0].mxu0 %v2954
    %v2990 = vpop.f32.mrb[0].mxu0
    %v2991 = vadd.f32 0.0, %v2990
    %v2992 = vpop.f32.mrb[0].mxu0
    %v2993 = vpop.f32.mrb[0].mxu0
    %v2994 = vpop.f32.mrb[0].mxu0
    %2995 = vdwg.mxu0
    %v2997 = vsel %vm312, %v2951, 0
    %2999 = vmatprep.subr.bf16.mxu0 0
    %3000 = vmatpush1.bf16.msra.mxu0 %v793
    %3001 = vmatprep.subr.bf16.mxu0 0
    %3002 = vmatpush1.bf16.msra.mxu0 %v794
    %3003 = vmatprep.subr.bf16.mxu0 0
    %3004 = vmatpush1.bf16.msra.mxu0 0
    %3005 = vmatprep.subr.bf16.mxu0 0
    %3006 = vmatpush1.bf16.msra.mxu0 0
    %3007 = vmatprep.subr.bf16.mxu0 0
    %3008 = vmatpush1.bf16.msra.mxu0 0
    %3009 = vmatprep.subr.bf16.mxu0 0
    %3010 = vmatpush1.bf16.msra.mxu0 0
    %3011 = vmatprep.subr.bf16.mxu0 0
    %3012 = vmatpush1.bf16.msra.mxu0 0
    %3013 = vmatprep.subr.bf16.mxu0 0
    %3014 = vmatpush1.bf16.msra.mxu0 0
    %3015 = vmatprep.subr.bf16.mxu0 0
    %3016 = vmatpush1.bf16.msra.mxu0 0
    %3017 = vmatprep.subr.bf16.mxu0 0
    %3018 = vmatpush1.bf16.msra.mxu0 0
    %3019 = vmatprep.subr.bf16.mxu0 0
    %3020 = vmatpush1.bf16.msra.mxu0 0
    %3021 = vmatprep.subr.bf16.mxu0 0
    %3022 = vmatpush1.bf16.msra.mxu0 0
    %3023 = vmatprep.subr.bf16.mxu0 0
    %3024 = vmatpush1.bf16.msra.mxu0 0
    %3025 = vmatprep.subr.bf16.mxu0 0
    %3026 = vmatpush1.bf16.msra.mxu0 0
    %3027 = vmatprep.subr.bf16.mxu0 0
    %3028 = vmatpush1.bf16.msra.mxu0 0
    %3029 = vmatprep.subr.bf16.mxu0 0
    %3030 = vmatpush1.bf16.msra.mxu0 0
    %3031 = vmatprep.mubr.bf16.mxu0 0
    %3032 = vmatmul.mubr.bf16.gmra.mrb[0].mxu0 %v2997
    %v3033 = vpop.f32.mrb[0].mxu0
    %v3034 = vadd.f32 %v2991, %v3033
    %v3035 = vpop.f32.mrb[0].mxu0
    %v3036 = vpop.f32.mrb[0].mxu0
    %v3037 = vpop.f32.mrb[0].mxu0
    %3038 = vdwg.mxu0
    %v3039 = vadd.f32 %v3034, %v236
    %3040 = vmatprep.subr.bf16.mxu0 0
    %3041 = vmatpush1.bf16.msra.mxu0 %v849
    %3042 = vmatprep.subr.bf16.mxu0 0
    %3043 = vmatpush1.bf16.msra.mxu0 %v850
    %3044 = vmatprep.subr.bf16.mxu0 0
    %3045 = vmatpush1.bf16.msra.mxu0 0
    %3046 = vmatprep.subr.bf16.mxu0 0
    %3047 = vmatpush1.bf16.msra.mxu0 0
    %3048 = vmatprep.subr.bf16.mxu0 0
    %3049 = vmatpush1.bf16.msra.mxu0 0
    %3050 = vmatprep.subr.bf16.mxu0 0
    %3051 = vmatpush1.bf16.msra.mxu0 0
    %3052 = vmatprep.subr.bf16.mxu0 0
    %3053 = vmatpush1.bf16.msra.mxu0 0
    %3054 = vmatprep.subr.bf16.mxu0 0
    %3055 = vmatpush1.bf16.msra.mxu0 0
    %3056 = vmatprep.subr.bf16.mxu0 0
    %3057 = vmatpush1.bf16.msra.mxu0 0
    %3058 = vmatprep.subr.bf16.mxu0 0
    %3059 = vmatpush1.bf16.msra.mxu0 0
    %3060 = vmatprep.subr.bf16.mxu0 0
    %3061 = vmatpush1.bf16.msra.mxu0 0
    %3062 = vmatprep.subr.bf16.mxu0 0
    %3063 = vmatpush1.bf16.msra.mxu0 0
    %3064 = vmatprep.subr.bf16.mxu0 0
    %3065 = vmatpush1.bf16.msra.mxu0 0
    %3066 = vmatprep.subr.bf16.mxu0 0
    %3067 = vmatpush1.bf16.msra.mxu0 0
    %3068 = vmatprep.subr.bf16.mxu0 0
    %3069 = vmatpush1.bf16.msra.mxu0 0
    %3070 = vmatprep.subr.bf16.mxu0 0
    %3071 = vmatpush1.bf16.msra.mxu0 0
    %3072 = vmatprep.mubr.bf16.mxu0 0
    %3073 = vmatmul.mubr.bf16.gmra.mrb[0].mxu0 %v2954
    %v3074 = vpop.f32.mrb[0].mxu0
    %v3075 = vadd.f32 0.0, %v3074
    %v3076 = vpop.f32.mrb[0].mxu0
    %v3077 = vpop.f32.mrb[0].mxu0
    %v3078 = vpop.f32.mrb[0].mxu0
    %3079 = vdwg.mxu0
    %3080 = vmatprep.subr.bf16.mxu0 0
    %3081 = vmatpush1.bf16.msra.mxu0 %v901
    %3082 = vmatprep.subr.bf16.mxu0 0
    %3083 = vmatpush1.bf16.msra.mxu0 %v902
    %3084 = vmatprep.subr.bf16.mxu0 0
    %3085 = vmatpush1.bf16.msra.mxu0 0
    %3086 = vmatprep.subr.bf16.mxu0 0
    %3087 = vmatpush1.bf16.msra.mxu0 0
    %3088 = vmatprep.subr.bf16.mxu0 0
    %3089 = vmatpush1.bf16.msra.mxu0 0
    %3090 = vmatprep.subr.bf16.mxu0 0
    %3091 = vmatpush1.bf16.msra.mxu0 0
    %3092 = vmatprep.subr.bf16.mxu0 0
    %3093 = vmatpush1.bf16.msra.mxu0 0
    %3094 = vmatprep.subr.bf16.mxu0 0
    %3095 = vmatpush1.bf16.msra.mxu0 0
    %3096 = vmatprep.subr.bf16.mxu0 0
    %3097 = vmatpush1.bf16.msra.mxu0 0
    %3098 = vmatprep.subr.bf16.mxu0 0
    %3099 = vmatpush1.bf16.msra.mxu0 0
    %3100 = vmatprep.subr.bf16.mxu0 0
    %3101 = vmatpush1.bf16.msra.mxu0 0
    %3102 = vmatprep.subr.bf16.mxu0 0
    %3103 = vmatpush1.bf16.msra.mxu0 0
    %3104 = vmatprep.subr.bf16.mxu0 0
    %3105 = vmatpush1.bf16.msra.mxu0 0
    %3106 = vmatprep.subr.bf16.mxu0 0
    %3107 = vmatpush1.bf16.msra.mxu0 0
    %3108 = vmatprep.subr.bf16.mxu0 0
    %3109 = vmatpush1.bf16.msra.mxu0 0
    %3110 = vmatprep.subr.bf16.mxu0 0
    %3111 = vmatpush1.bf16.msra.mxu0 0
    %3112 = vmatprep.mubr.bf16.mxu0 0
    %3113 = vmatmul.mubr.bf16.gmra.mrb[0].mxu0 %v2997
    %v3114 = vpop.f32.mrb[0].mxu0
    %v3115 = vadd.f32 %v3075, %v3114
    %v3116 = vpop.f32.mrb[0].mxu0
    %v3117 = vpop.f32.mrb[0].mxu0
    %v3118 = vpop.f32.mrb[0].mxu0
    %3119 = vdwg.mxu0
    %v3120 = vadd.f32 %v3115, %v254
    %3121 = vmatprep.subr.bf16.mxu0 0
    %3122 = vmatpush1.bf16.msra.mxu0 %v954
    %3123 = vmatprep.subr.bf16.mxu0 0
    %3124 = vmatpush1.bf16.msra.mxu0 %v955
    %3125 = vmatprep.subr.bf16.mxu0 0
    %3126 = vmatpush1.bf16.msra.mxu0 0
    %3127 = vmatprep.subr.bf16.mxu0 0
    %3128 = vmatpush1.bf16.msra.mxu0 0
    %3129 = vmatprep.subr.bf16.mxu0 0
    %3130 = vmatpush1.bf16.msra.mxu0 0
    %3131 = vmatprep.subr.bf16.mxu0 0
    %3132 = vmatpush1.bf16.msra.mxu0 0
    %3133 = vmatprep.subr.bf16.mxu0 0
    %3134 = vmatpush1.bf16.msra.mxu0 0
    %3135 = vmatprep.subr.bf16.mxu0 0
    %3136 = vmatpush1.bf16.msra.mxu0 0
    %3137 = vmatprep.subr.bf16.mxu0 0
    %3138 = vmatpush1.bf16.msra.mxu0 0
    %3139 = vmatprep.subr.bf16.mxu0 0
    %3140 = vmatpush1.bf16.msra.mxu0 0
    %3141 = vmatprep.subr.bf16.mxu0 0
    %3142 = vmatpush1.bf16.msra.mxu0 0
    %3143 = vmatprep.subr.bf16.mxu0 0
    %3144 = vmatpush1.bf16.msra.mxu0 0
    %3145 = vmatprep.subr.bf16.mxu0 0
    %3146 = vmatpush1.bf16.msra.mxu0 0
    %3147 = vmatprep.subr.bf16.mxu0 0
    %3148 = vmatpush1.bf16.msra.mxu0 0
    %3149 = vmatprep.subr.bf16.mxu0 0
    %3150 = vmatpush1.bf16.msra.mxu0 0
    %3151 = vmatprep.subr.bf16.mxu0 0
    %3152 = vmatpush1.bf16.msra.mxu0 0
    %3153 = vmatprep.mubr.bf16.mxu0 0
    %3154 = vmatmul.mubr.bf16.gmra.mrb[0].mxu0 %v2954
    %v3155 = vpop.f32.mrb[0].mxu0
    %v3156 = vadd.f32 0.0, %v3155
    %v3157 = vpop.f32.mrb[0].mxu0
    %v3158 = vpop.f32.mrb[0].mxu0
    %v3159 = vpop.f32.mrb[0].mxu0
    %3160 = vdwg.mxu0
    %3161 = vmatprep.subr.bf16.mxu0 0
    %3162 = vmatpush1.bf16.msra.mxu0 %v1006
    %3163 = vmatprep.subr.bf16.mxu0 0
    %3164 = vmatpush1.bf16.msra.mxu0 %v1007
    %3165 = vmatprep.subr.bf16.mxu0 0
    %3166 = vmatpush1.bf16.msra.mxu0 0
    %3167 = vmatprep.subr.bf16.mxu0 0
    %3168 = vmatpush1.bf16.msra.mxu0 0
    %3169 = vmatprep.subr.bf16.mxu0 0
    %3170 = vmatpush1.bf16.msra.mxu0 0
    %3171 = vmatprep.subr.bf16.mxu0 0
    %3172 = vmatpush1.bf16.msra.mxu0 0
    %3173 = vmatprep.subr.bf16.mxu0 0
    %3174 = vmatpush1.bf16.msra.mxu0 0
    %3175 = vmatprep.subr.bf16.mxu0 0
    %3176 = vmatpush1.bf16.msra.mxu0 0
    %3177 = vmatprep.subr.bf16.mxu0 0
    %3178 = vmatpush1.bf16.msra.mxu0 0
    %3179 = vmatprep.subr.bf16.mxu0 0
    %3180 = vmatpush1.bf16.msra.mxu0 0
    %3181 = vmatprep.subr.bf16.mxu0 0
    %3182 = vmatpush1.bf16.msra.mxu0 0
    %3183 = vmatprep.subr.bf16.mxu0 0
    %3184 = vmatpush1.bf16.msra.mxu0 0
    %3185 = vmatprep.subr.bf16.mxu0 0
    %3186 = vmatpush1.bf16.msra.mxu0 0
    %3187 = vmatprep.subr.bf16.mxu0 0
    %3188 = vmatpush1.bf16.msra.mxu0 0
    %3189 = vmatprep.subr.bf16.mxu0 0
    %3190 = vmatpush1.bf16.msra.mxu0 0
    %3191 = vmatprep.subr.bf16.mxu0 0
    %3192 = vmatpush1.bf16.msra.mxu0 0
    %3193 = vmatprep.mubr.bf16.mxu0 0
    %3194 = vmatmul.mubr.bf16.gmra.mrb[0].mxu0 %v2997
    %v3195 = vpop.f32.mrb[0].mxu0
    %v3196 = vadd.f32 %v3156, %v3195
    %v3197 = vpop.f32.mrb[0].mxu0
    %v3198 = vpop.f32.mrb[0].mxu0
    %v3199 = vpop.f32.mrb[0].mxu0
    %3200 = vdwg.mxu0
    %v3201 = vadd.f32 %v3196, %v272
    %3202 = vmatprep.subr.bf16.mxu0 0
    %3203 = vmatpush1.bf16.msra.mxu0 %v1059
    %3204 = vmatprep.subr.bf16.mxu0 0
    %3205 = vmatpush1.bf16.msra.mxu0 %v1060
    %3206 = vmatprep.subr.bf16.mxu0 0
    %3207 = vmatpush1.bf16.msra.mxu0 0
    %3208 = vmatprep.subr.bf16.mxu0 0
    %3209 = vmatpush1.bf16.msra.mxu0 0
    %3210 = vmatprep.subr.bf16.mxu0 0
    %3211 = vmatpush1.bf16.msra.mxu0 0
    %3212 = vmatprep.subr.bf16.mxu0 0
    %3213 = vmatpush1.bf16.msra.mxu0 0
    %3214 = vmatprep.subr.bf16.mxu0 0
    %3215 = vmatpush1.bf16.msra.mxu0 0
    %3216 = vmatprep.subr.bf16.mxu0 0
    %3217 = vmatpush1.bf16.msra.mxu0 0
    %3218 = vmatprep.subr.bf16.mxu0 0
    %3219 = vmatpush1.bf16.msra.mxu0 0
    %3220 = vmatprep.subr.bf16.mxu0 0
    %3221 = vmatpush1.bf16.msra.mxu0 0
    %3222 = vmatprep.subr.bf16.mxu0 0
    %3223 = vmatpush1.bf16.msra.mxu0 0
    %3224 = vmatprep.subr.bf16.mxu0 0
    %3225 = vmatpush1.bf16.msra.mxu0 0
    %3226 = vmatprep.subr.bf16.mxu0 0
    %3227 = vmatpush1.bf16.msra.mxu0 0
    %3228 = vmatprep.subr.bf16.mxu0 0
    %3229 = vmatpush1.bf16.msra.mxu0 0
    %3230 = vmatprep.subr.bf16.mxu0 0
    %3231 = vmatpush1.bf16.msra.mxu0 0
    %3232 = vmatprep.subr.bf16.mxu0 0
    %3233 = vmatpush1.bf16.msra.mxu0 0
    %3234 = vmatprep.mubr.bf16.mxu0 0
    %3235 = vmatmul.mubr.bf16.gmra.mrb[0].mxu0 %v2954
    %v3236 = vpop.f32.mrb[0].mxu0
    %v3237 = vadd.f32 0.0, %v3236
    %v3238 = vpop.f32.mrb[0].mxu0
    %v3239 = vpop.f32.mrb[0].mxu0
    %v3240 = vpop.f32.mrb[0].mxu0
    %3241 = vdwg.mxu0
    %3242 = vmatprep.subr.bf16.mxu0 0
    %3243 = vmatpush1.bf16.msra.mxu0 %v1111
    %3244 = vmatprep.subr.bf16.mxu0 0
    %3245 = vmatpush1.bf16.msra.mxu0 %v1112
    %3246 = vmatprep.subr.bf16.mxu0 0
    %3247 = vmatpush1.bf16.msra.mxu0 0
    %3248 = vmatprep.subr.bf16.mxu0 0
    %3249 = vmatpush1.bf16.msra.mxu0 0
    %3250 = vmatprep.subr.bf16.mxu0 0
    %3251 = vmatpush1.bf16.msra.mxu0 0
    %3252 = vmatprep.subr.bf16.mxu0 0
    %3253 = vmatpush1.bf16.msra.mxu0 0
    %3254 = vmatprep.subr.bf16.mxu0 0
    %3255 = vmatpush1.bf16.msra.mxu0 0
    %3256 = vmatprep.subr.bf16.mxu0 0
    %3257 = vmatpush1.bf16.msra.mxu0 0
    %3258 = vmatprep.subr.bf16.mxu0 0
    %3259 = vmatpush1.bf16.msra.mxu0 0
    %3260 = vmatprep.subr.bf16.mxu0 0
    %3261 = vmatpush1.bf16.msra.mxu0 0
    %3262 = vmatprep.subr.bf16.mxu0 0
    %3263 = vmatpush1.bf16.msra.mxu0 0
    %3264 = vmatprep.subr.bf16.mxu0 0
    %3265 = vmatpush1.bf16.msra.mxu0 0
    %3266 = vmatprep.subr.bf16.mxu0 0
    %3267 = vmatpush1.bf16.msra.mxu0 0
    %3268 = vmatprep.subr.bf16.mxu0 0
    %3269 = vmatpush1.bf16.msra.mxu0 0
    %3270 = vmatprep.subr.bf16.mxu0 0
    %3271 = vmatpush1.bf16.msra.mxu0 0
    %3272 = vmatprep.subr.bf16.mxu0 0
    %3273 = vmatpush1.bf16.msra.mxu0 0
    %3274 = vmatprep.mubr.bf16.mxu0 0
    %3275 = vmatmul.mubr.bf16.gmra.mrb[0].mxu0 %v2997
    %v3276 = vpop.f32.mrb[0].mxu0
    %v3277 = vadd.f32 %v3237, %v3276
    %v3278 = vpop.f32.mrb[0].mxu0
    %v3279 = vpop.f32.mrb[0].mxu0
    %v3280 = vpop.f32.mrb[0].mxu0
    %3281 = vdwg.mxu0
    %v3282 = vadd.f32 %v3277, %v290
    %v3283 = vxor.u32 %v3039, 2147483648
    %v3284 = vmul.f32 %v3283, 1.442695
    %v3285 = vpow.pop %v3284
    %v3286 = vadd.f32 %v3285, 1.0
    %v3287 = vrcp.pop %v3286
    %v3288 = vmul.f32 1.0, %v3287
    %v3289 = vxor.u32 %v3120, 2147483648
    %v3290 = vmul.f32 %v3289, 1.442695
    %v3291 = vpow.pop %v3290
    %v3292 = vadd.f32 %v3291, 1.0
    %v3293 = vrcp.pop %v3292
    %v3294 = vmul.f32 1.0, %v3293
    %v3295 = vtanh.pop %v3201
    %v3296 = vxor.u32 %v3282, 2147483648
    %v3297 = vmul.f32 %v3296, 1.442695
    %v3298 = vpow.pop %v3297
    %v3299 = vadd.f32 %v3298, 1.0
    %v3300 = vrcp.pop %v3299
    %v3301 = vmul.f32 1.0, %v3300
    %v3302 = vmul.f32 %v3294, %v2595
    %v3303 = vmul.f32 %v3288, %v3295
    %v3304 = vadd.f32 %v3302, %v3303
    %v3305 = vtanh.pop %v3304
    %v3306 = vmul.f32 %v3301, %v3305
    %s3307 = scalar_lea.vmem [#allocation2], 16
    %v3308 = vld [vmem:[%s3307] sm:$0xf]
    %3309 = vmatprep.subr.bf16.mxu0 0
    %3310 = vmatpush1.bf16.msra.mxu0 %v308
    %3311 = vmatprep.subr.bf16.mxu0 0
    %3312 = vmatpush1.bf16.msra.mxu0 %v309
    %3313 = vmatprep.subr.bf16.mxu0 0
    %3314 = vmatpush1.bf16.msra.mxu0 0
    %3315 = vmatprep.subr.bf16.mxu0 0
    %3316 = vmatpush1.bf16.msra.mxu0 0
    %3317 = vmatprep.subr.bf16.mxu0 0
    %3318 = vmatpush1.bf16.msra.mxu0 0
    %3319 = vmatprep.subr.bf16.mxu0 0
    %3320 = vmatpush1.bf16.msra.mxu0 0
    %3321 = vmatprep.subr.bf16.mxu0 0
    %3322 = vmatpush1.bf16.msra.mxu0 0
    %3323 = vmatprep.subr.bf16.mxu0 0
    %3324 = vmatpush1.bf16.msra.mxu0 0
    %3325 = vmatprep.subr.bf16.mxu0 0
    %3326 = vmatpush1.bf16.msra.mxu0 0
    %3327 = vmatprep.subr.bf16.mxu0 0
    %3328 = vmatpush1.bf16.msra.mxu0 0
    %3329 = vmatprep.subr.bf16.mxu0 0
    %3330 = vmatpush1.bf16.msra.mxu0 0
    %3331 = vmatprep.subr.bf16.mxu0 0
    %3332 = vmatpush1.bf16.msra.mxu0 0
    %3333 = vmatprep.subr.bf16.mxu0 0
    %3334 = vmatpush1.bf16.msra.mxu0 0
    %3335 = vmatprep.subr.bf16.mxu0 0
    %3336 = vmatpush1.bf16.msra.mxu0 0
    %3337 = vmatprep.subr.bf16.mxu0 0
    %3338 = vmatpush1.bf16.msra.mxu0 0
    %3339 = vmatprep.subr.bf16.mxu0 0
    %3340 = vmatpush1.bf16.msra.mxu0 0
    %3341 = vmatprep.mubr.bf16.mxu0 0
    %3342 = vmatmul.mubr.bf16.gmra.mrb[0].mxu0 %v2997
    %v3343 = vpop.f32.mrb[0].mxu0
    %v3344 = vadd.f32 0.0, %v3343
    %v3345 = vpop.f32.mrb[0].mxu0
    %v3346 = vpop.f32.mrb[0].mxu0
    %v3347 = vpop.f32.mrb[0].mxu0
    %3348 = vdwg.mxu0
    %v3350 = vsel %vm362, %v3308, 0
    %3352 = vmatprep.subr.bf16.mxu0 0
    %3353 = vmatpush1.bf16.msra.mxu0 %v360
    %3354 = vmatprep.subr.bf16.mxu0 0
    %3355 = vmatpush1.bf16.msra.mxu0 0
    %3356 = vmatprep.subr.bf16.mxu0 0
    %3357 = vmatpush1.bf16.msra.mxu0 0
    %3358 = vmatprep.subr.bf16.mxu0 0
    %3359 = vmatpush1.bf16.msra.mxu0 0
    %3360 = vmatprep.subr.bf16.mxu0 0
    %3361 = vmatpush1.bf16.msra.mxu0 0
    %3362 = vmatprep.subr.bf16.mxu0 0
    %3363 = vmatpush1.bf16.msra.mxu0 0
    %3364 = vmatprep.subr.bf16.mxu0 0
    %3365 = vmatpush1.bf16.msra.mxu0 0
    %3366 = vmatprep.subr.bf16.mxu0 0
    %3367 = vmatpush1.bf16.msra.mxu0 0
    %3368 = vmatprep.subr.bf16.mxu0 0
    %3369 = vmatpush1.bf16.msra.mxu0 0
    %3370 = vmatprep.subr.bf16.mxu0 0
    %3371 = vmatpush1.bf16.msra.mxu0 0
    %3372 = vmatprep.subr.bf16.mxu0 0
    %3373 = vmatpush1.bf16.msra.mxu0 0
    %3374 = vmatprep.subr.bf16.mxu0 0
    %3375 = vmatpush1.bf16.msra.mxu0 0
    %3376 = vmatprep.subr.bf16.mxu0 0
    %3377 = vmatpush1.bf16.msra.mxu0 0
    %3378 = vmatprep.subr.bf16.mxu0 0
    %3379 = vmatpush1.bf16.msra.mxu0 0
    %3380 = vmatprep.subr.bf16.mxu0 0
    %3381 = vmatpush1.bf16.msra.mxu0 0
    %3382 = vmatprep.subr.bf16.mxu0 0
    %3383 = vmatpush1.bf16.msra.mxu0 0
    %3384 = vmatprep.mubr.bf16.mxu0 0
    %3385 = vmatmul.mubr.bf16.gmra.mrb[0].mxu0 %v3350
    %v3386 = vpop.f32.mrb[0].mxu0
    %v3387 = vadd.f32 %v3344, %v3386
    %v3388 = vpop.f32.mrb[0].mxu0
    %v3389 = vpop.f32.mrb[0].mxu0
    %v3390 = vpop.f32.mrb[0].mxu0
    %3391 = vdwg.mxu0
    %v3392 = vadd.f32 %v3387, %v173
    %3393 = vmatprep.subr.bf16.mxu0 0
    %3394 = vmatpush1.bf16.msra.mxu0 %v415
    %3395 = vmatprep.subr.bf16.mxu0 0
    %3396 = vmatpush1.bf16.msra.mxu0 %v416
    %3397 = vmatprep.subr.bf16.mxu0 0
    %3398 = vmatpush1.bf16.msra.mxu0 0
    %3399 = vmatprep.subr.bf16.mxu0 0
    %3400 = vmatpush1.bf16.msra.mxu0 0
    %3401 = vmatprep.subr.bf16.mxu0 0
    %3402 = vmatpush1.bf16.msra.mxu0 0
    %3403 = vmatprep.subr.bf16.mxu0 0
    %3404 = vmatpush1.bf16.msra.mxu0 0
    %3405 = vmatprep.subr.bf16.mxu0 0
    %3406 = vmatpush1.bf16.msra.mxu0 0
    %3407 = vmatprep.subr.bf16.mxu0 0
    %3408 = vmatpush1.bf16.msra.mxu0 0
    %3409 = vmatprep.subr.bf16.mxu0 0
    %3410 = vmatpush1.bf16.msra.mxu0 0
    %3411 = vmatprep.subr.bf16.mxu0 0
    %3412 = vmatpush1.bf16.msra.mxu0 0
    %3413 = vmatprep.subr.bf16.mxu0 0
    %3414 = vmatpush1.bf16.msra.mxu0 0
    %3415 = vmatprep.subr.bf16.mxu0 0
    %3416 = vmatpush1.bf16.msra.mxu0 0
    %3417 = vmatprep.subr.bf16.mxu0 0
    %3418 = vmatpush1.bf16.msra.mxu0 0
    %3419 = vmatprep.subr.bf16.mxu0 0
    %3420 = vmatpush1.bf16.msra.mxu0 0
    %3421 = vmatprep.subr.bf16.mxu0 0
    %3422 = vmatpush1.bf16.msra.mxu0 0
    %3423 = vmatprep.subr.bf16.mxu0 0
    %3424 = vmatpush1.bf16.msra.mxu0 0
    %3425 = vmatprep.mubr.bf16.mxu0 0
    %3426 = vmatmul.mubr.bf16.gmra.mrb[0].mxu0 %v2997
    %v3427 = vpop.f32.mrb[0].mxu0
    %v3428 = vadd.f32 0.0, %v3427
    %v3429 = vpop.f32.mrb[0].mxu0
    %v3430 = vpop.f32.mrb[0].mxu0
    %v3431 = vpop.f32.mrb[0].mxu0
    %3432 = vdwg.mxu0
    %3433 = vmatprep.subr.bf16.mxu0 0
    %3434 = vmatpush1.bf16.msra.mxu0 %v463
    %3435 = vmatprep.subr.bf16.mxu0 0
    %3436 = vmatpush1.bf16.msra.mxu0 0
    %3437 = vmatprep.subr.bf16.mxu0 0
    %3438 = vmatpush1.bf16.msra.mxu0 0
    %3439 = vmatprep.subr.bf16.mxu0 0
    %3440 = vmatpush1.bf16.msra.mxu0 0
    %3441 = vmatprep.subr.bf16.mxu0 0
    %3442 = vmatpush1.bf16.msra.mxu0 0
    %3443 = vmatprep.subr.bf16.mxu0 0
    %3444 = vmatpush1.bf16.msra.mxu0 0
    %3445 = vmatprep.subr.bf16.mxu0 0
    %3446 = vmatpush1.bf16.msra.mxu0 0
    %3447 = vmatprep.subr.bf16.mxu0 0
    %3448 = vmatpush1.bf16.msra.mxu0 0
    %3449 = vmatprep.subr.bf16.mxu0 0
    %3450 = vmatpush1.bf16.msra.mxu0 0
    %3451 = vmatprep.subr.bf16.mxu0 0
    %3452 = vmatpush1.bf16.msra.mxu0 0
    %3453 = vmatprep.subr.bf16.mxu0 0
    %3454 = vmatpush1.bf16.msra.mxu0 0
    %3455 = vmatprep.subr.bf16.mxu0 0
    %3456 = vmatpush1.bf16.msra.mxu0 0
    %3457 = vmatprep.subr.bf16.mxu0 0
    %3458 = vmatpush1.bf16.msra.mxu0 0
    %3459 = vmatprep.subr.bf16.mxu0 0
    %3460 = vmatpush1.bf16.msra.mxu0 0
    %3461 = vmatprep.subr.bf16.mxu0 0
    %3462 = vmatpush1.bf16.msra.mxu0 0
    %3463 = vmatprep.subr.bf16.mxu0 0
    %3464 = vmatpush1.bf16.msra.mxu0 0
    %3465 = vmatprep.mubr.bf16.mxu0 0
    %3466 = vmatmul.mubr.bf16.gmra.mrb[0].mxu0 %v3350
    %v3467 = vpop.f32.mrb[0].mxu0
    %v3468 = vadd.f32 %v3428, %v3467
    %v3469 = vpop.f32.mrb[0].mxu0
    %v3470 = vpop.f32.mrb[0].mxu0
    %v3471 = vpop.f32.mrb[0].mxu0
    %3472 = vdwg.mxu0
    %v3473 = vadd.f32 %v3468, %v189
    %3474 = vmatprep.subr.bf16.mxu0 0
    %3475 = vmatpush1.bf16.msra.mxu0 %v514
    %3476 = vmatprep.subr.bf16.mxu0 0
    %3477 = vmatpush1.bf16.msra.mxu0 %v515
    %3478 = vmatprep.subr.bf16.mxu0 0
    %3479 = vmatpush1.bf16.msra.mxu0 0
    %3480 = vmatprep.subr.bf16.mxu0 0
    %3481 = vmatpush1.bf16.msra.mxu0 0
    %3482 = vmatprep.subr.bf16.mxu0 0
    %3483 = vmatpush1.bf16.msra.mxu0 0
    %3484 = vmatprep.subr.bf16.mxu0 0
    %3485 = vmatpush1.bf16.msra.mxu0 0
    %3486 = vmatprep.subr.bf16.mxu0 0
    %3487 = vmatpush1.bf16.msra.mxu0 0
    %3488 = vmatprep.subr.bf16.mxu0 0
    %3489 = vmatpush1.bf16.msra.mxu0 0
    %3490 = vmatprep.subr.bf16.mxu0 0
    %3491 = vmatpush1.bf16.msra.mxu0 0
    %3492 = vmatprep.subr.bf16.mxu0 0
    %3493 = vmatpush1.bf16.msra.mxu0 0
    %3494 = vmatprep.subr.bf16.mxu0 0
    %3495 = vmatpush1.bf16.msra.mxu0 0
    %3496 = vmatprep.subr.bf16.mxu0 0
    %3497 = vmatpush1.bf16.msra.mxu0 0
    %3498 = vmatprep.subr.bf16.mxu0 0
    %3499 = vmatpush1.bf16.msra.mxu0 0
    %3500 = vmatprep.subr.bf16.mxu0 0
    %3501 = vmatpush1.bf16.msra.mxu0 0
    %3502 = vmatprep.subr.bf16.mxu0 0
    %3503 = vmatpush1.bf16.msra.mxu0 0
    %3504 = vmatprep.subr.bf16.mxu0 0
    %3505 = vmatpush1.bf16.msra.mxu0 0
    %3506 = vmatprep.mubr.bf16.mxu0 0
    %3507 = vmatmul.mubr.bf16.gmra.mrb[0].mxu0 %v2997
    %v3508 = vpop.f32.mrb[0].mxu0
    %v3509 = vadd.f32 0.0, %v3508
    %v3510 = vpop.f32.mrb[0].mxu0
    %v3511 = vpop.f32.mrb[0].mxu0
    %v3512 = vpop.f32.mrb[0].mxu0
    %3513 = vdwg.mxu0
    %3514 = vmatprep.subr.bf16.mxu0 0
    %3515 = vmatpush1.bf16.msra.mxu0 %v562
    %3516 = vmatprep.subr.bf16.mxu0 0
    %3517 = vmatpush1.bf16.msra.mxu0 0
    %3518 = vmatprep.subr.bf16.mxu0 0
    %3519 = vmatpush1.bf16.msra.mxu0 0
    %3520 = vmatprep.subr.bf16.mxu0 0
    %3521 = vmatpush1.bf16.msra.mxu0 0
    %3522 = vmatprep.subr.bf16.mxu0 0
    %3523 = vmatpush1.bf16.msra.mxu0 0
    %3524 = vmatprep.subr.bf16.mxu0 0
    %3525 = vmatpush1.bf16.msra.mxu0 0
    %3526 = vmatprep.subr.bf16.mxu0 0
    %3527 = vmatpush1.bf16.msra.mxu0 0
    %3528 = vmatprep.subr.bf16.mxu0 0
    %3529 = vmatpush1.bf16.msra.mxu0 0
    %3530 = vmatprep.subr.bf16.mxu0 0
    %3531 = vmatpush1.bf16.msra.mxu0 0
    %3532 = vmatprep.subr.bf16.mxu0 0
    %3533 = vmatpush1.bf16.msra.mxu0 0
    %3534 = vmatprep.subr.bf16.mxu0 0
    %3535 = vmatpush1.bf16.msra.mxu0 0
    %3536 = vmatprep.subr.bf16.mxu0 0
    %3537 = vmatpush1.bf16.msra.mxu0 0
    %3538 = vmatprep.subr.bf16.mxu0 0
    %3539 = vmatpush1.bf16.msra.mxu0 0
    %3540 = vmatprep.subr.bf16.mxu0 0
    %3541 = vmatpush1.bf16.msra.mxu0 0
    %3542 = vmatprep.subr.bf16.mxu0 0
    %3543 = vmatpush1.bf16.msra.mxu0 0
    %3544 = vmatprep.subr.bf16.mxu0 0
    %3545 = vmatpush1.bf16.msra.mxu0 0
    %3546 = vmatprep.mubr.bf16.mxu0 0
    %3547 = vmatmul.mubr.bf16.gmra.mrb[0].mxu0 %v3350
    %v3548 = vpop.f32.mrb[0].mxu0
    %v3549 = vadd.f32 %v3509, %v3548
    %v3550 = vpop.f32.mrb[0].mxu0
    %v3551 = vpop.f32.mrb[0].mxu0
    %v3552 = vpop.f32.mrb[0].mxu0
    %3553 = vdwg.mxu0
    %v3554 = vadd.f32 %v3549, %v205
    %3555 = vmatprep.subr.bf16.mxu0 0
    %3556 = vmatpush1.bf16.msra.mxu0 %v613
    %3557 = vmatprep.subr.bf16.mxu0 0
    %3558 = vmatpush1.bf16.msra.mxu0 %v614
    %3559 = vmatprep.subr.bf16.mxu0 0
    %3560 = vmatpush1.bf16.msra.mxu0 0
    %3561 = vmatprep.subr.bf16.mxu0 0
    %3562 = vmatpush1.bf16.msra.mxu0 0
    %3563 = vmatprep.subr.bf16.mxu0 0
    %3564 = vmatpush1.bf16.msra.mxu0 0
    %3565 = vmatprep.subr.bf16.mxu0 0
    %3566 = vmatpush1.bf16.msra.mxu0 0
    %3567 = vmatprep.subr.bf16.mxu0 0
    %3568 = vmatpush1.bf16.msra.mxu0 0
    %3569 = vmatprep.subr.bf16.mxu0 0
    %3570 = vmatpush1.bf16.msra.mxu0 0
    %3571 = vmatprep.subr.bf16.mxu0 0
    %3572 = vmatpush1.bf16.msra.mxu0 0
    %3573 = vmatprep.subr.bf16.mxu0 0
    %3574 = vmatpush1.bf16.msra.mxu0 0
    %3575 = vmatprep.subr.bf16.mxu0 0
    %3576 = vmatpush1.bf16.msra.mxu0 0
    %3577 = vmatprep.subr.bf16.mxu0 0
    %3578 = vmatpush1.bf16.msra.mxu0 0
    %3579 = vmatprep.subr.bf16.mxu0 0
    %3580 = vmatpush1.bf16.msra.mxu0 0
    %3581 = vmatprep.subr.bf16.mxu0 0
    %3582 = vmatpush1.bf16.msra.mxu0 0
    %3583 = vmatprep.subr.bf16.mxu0 0
    %3584 = vmatpush1.bf16.msra.mxu0 0
    %3585 = vmatprep.subr.bf16.mxu0 0
    %3586 = vmatpush1.bf16.msra.mxu0 0
    %3587 = vmatprep.mubr.bf16.mxu0 0
    %3588 = vmatmul.mubr.bf16.gmra.mrb[0].mxu0 %v2997
    %v3589 = vpop.f32.mrb[0].mxu0
    %v3590 = vadd.f32 0.0, %v3589
    %v3591 = vpop.f32.mrb[0].mxu0
    %v3592 = vpop.f32.mrb[0].mxu0
    %v3593 = vpop.f32.mrb[0].mxu0
    %3594 = vdwg.mxu0
    %3595 = vmatprep.subr.bf16.mxu0 0
    %3596 = vmatpush1.bf16.msra.mxu0 %v661
    %3597 = vmatprep.subr.bf16.mxu0 0
    %3598 = vmatpush1.bf16.msra.mxu0 0
    %3599 = vmatprep.subr.bf16.mxu0 0
    %3600 = vmatpush1.bf16.msra.mxu0 0
    %3601 = vmatprep.subr.bf16.mxu0 0
    %3602 = vmatpush1.bf16.msra.mxu0 0
    %3603 = vmatprep.subr.bf16.mxu0 0
    %3604 = vmatpush1.bf16.msra.mxu0 0
    %3605 = vmatprep.subr.bf16.mxu0 0
    %3606 = vmatpush1.bf16.msra.mxu0 0
    %3607 = vmatprep.subr.bf16.mxu0 0
    %3608 = vmatpush1.bf16.msra.mxu0 0
    %3609 = vmatprep.subr.bf16.mxu0 0
    %3610 = vmatpush1.bf16.msra.mxu0 0
    %3611 = vmatprep.subr.bf16.mxu0 0
    %3612 = vmatpush1.bf16.msra.mxu0 0
    %3613 = vmatprep.subr.bf16.mxu0 0
    %3614 = vmatpush1.bf16.msra.mxu0 0
    %3615 = vmatprep.subr.bf16.mxu0 0
    %3616 = vmatpush1.bf16.msra.mxu0 0
    %3617 = vmatprep.subr.bf16.mxu0 0
    %3618 = vmatpush1.bf16.msra.mxu0 0
    %3619 = vmatprep.subr.bf16.mxu0 0
    %3620 = vmatpush1.bf16.msra.mxu0 0
    %3621 = vmatprep.subr.bf16.mxu0 0
    %3622 = vmatpush1.bf16.msra.mxu0 0
    %3623 = vmatprep.subr.bf16.mxu0 0
    %3624 = vmatpush1.bf16.msra.mxu0 0
    %3625 = vmatprep.subr.bf16.mxu0 0
    %3626 = vmatpush1.bf16.msra.mxu0 0
    %3627 = vmatprep.mubr.bf16.mxu0 0
    %3628 = vmatmul.mubr.bf16.gmra.mrb[0].mxu0 %v3350
    %v3629 = vpop.f32.mrb[0].mxu0
    %v3630 = vadd.f32 %v3590, %v3629
    %v3631 = vpop.f32.mrb[0].mxu0
    %v3632 = vpop.f32.mrb[0].mxu0
    %v3633 = vpop.f32.mrb[0].mxu0
    %3634 = vdwg.mxu0
    %v3635 = vadd.f32 %v3630, %v221
    %v3636 = vxor.u32 %v3392, 2147483648
    %v3637 = vmul.f32 %v3636, 1.442695
    %v3638 = vpow.pop %v3637
    %v3639 = vadd.f32 %v3638, 1.0
    %v3640 = vrcp.pop %v3639
    %v3641 = vmul.f32 1.0, %v3640
    %v3642 = vxor.u32 %v3473, 2147483648
    %v3643 = vmul.f32 %v3642, 1.442695
    %v3644 = vpow.pop %v3643
    %v3645 = vadd.f32 %v3644, 1.0
    %v3646 = vrcp.pop %v3645
    %v3647 = vmul.f32 1.0, %v3646
    %v3648 = vtanh.pop %v3554
    %v3649 = vxor.u32 %v3635, 2147483648
    %v3650 = vmul.f32 %v3649, 1.442695
    %v3651 = vpow.pop %v3650
    %v3652 = vadd.f32 %v3651, 1.0
    %v3653 = vrcp.pop %v3652
    %v3654 = vmul.f32 1.0, %v3653
    %v3655 = vmul.f32 %v3647, %v2948
    %v3656 = vmul.f32 %v3641, %v3648
    %v3657 = vadd.f32 %v3655, %v3656
    %v3658 = vtanh.pop %v3657
    %v3659 = vmul.f32 %v3654, %v3658
    %v3660 = vpack.c.bf16 %v3659, %v3659
    %v3661 = vpack.c.bf16 %v3306, %v3306
    %v3663 = vsel %vm312, %v3661, 0
    %3665 = vmatprep.subr.bf16.mxu0 0
    %3666 = vmatpush1.bf16.msra.mxu0 %v738
    %3667 = vmatprep.subr.bf16.mxu0 0
    %3668 = vmatpush1.bf16.msra.mxu0 %v739
    %3669 = vmatprep.subr.bf16.mxu0 0
    %3670 = vmatpush1.bf16.msra.mxu0 0
    %3671 = vmatprep.subr.bf16.mxu0 0
    %3672 = vmatpush1.bf16.msra.mxu0 0
    %3673 = vmatprep.subr.bf16.mxu0 0
    %3674 = vmatpush1.bf16.msra.mxu0 0
    %3675 = vmatprep.subr.bf16.mxu0 0
    %3676 = vmatpush1.bf16.msra.mxu0 0
    %3677 = vmatprep.subr.bf16.mxu0 0
    %3678 = vmatpush1.bf16.msra.mxu0 0
    %3679 = vmatprep.subr.bf16.mxu0 0
    %3680 = vmatpush1.bf16.msra.mxu0 0
    %3681 = vmatprep.subr.bf16.mxu0 0
    %3682 = vmatpush1.bf16.msra.mxu0 0
    %3683 = vmatprep.subr.bf16.mxu0 0
    %3684 = vmatpush1.bf16.msra.mxu0 0
    %3685 = vmatprep.subr.bf16.mxu0 0
    %3686 = vmatpush1.bf16.msra.mxu0 0
    %3687 = vmatprep.subr.bf16.mxu0 0
    %3688 = vmatpush1.bf16.msra.mxu0 0
    %3689 = vmatprep.subr.bf16.mxu0 0
    %3690 = vmatpush1.bf16.msra.mxu0 0
    %3691 = vmatprep.subr.bf16.mxu0 0
    %3692 = vmatpush1.bf16.msra.mxu0 0
    %3693 = vmatprep.subr.bf16.mxu0 0
    %3694 = vmatpush1.bf16.msra.mxu0 0
    %3695 = vmatprep.subr.bf16.mxu0 0
    %3696 = vmatpush1.bf16.msra.mxu0 0
    %3697 = vmatprep.mubr.bf16.mxu0 0
    %3698 = vmatmul.mubr.bf16.gmra.mrb[0].mxu0 %v3663
    %v3699 = vpop.f32.mrb[0].mxu0
    %v3700 = vadd.f32 0.0, %v3699
    %v3701 = vpop.f32.mrb[0].mxu0
    %v3702 = vpop.f32.mrb[0].mxu0
    %v3703 = vpop.f32.mrb[0].mxu0
    %3704 = vdwg.mxu0
    %v3706 = vsel %vm312, %v3660, 0
    %3708 = vmatprep.subr.bf16.mxu0 0
    %3709 = vmatpush1.bf16.msra.mxu0 %v793
    %3710 = vmatprep.subr.bf16.mxu0 0
    %3711 = vmatpush1.bf16.msra.mxu0 %v794
    %3712 = vmatprep.subr.bf16.mxu0 0
    %3713 = vmatpush1.bf16.msra.mxu0 0
    %3714 = vmatprep.subr.bf16.mxu0 0
    %3715 = vmatpush1.bf16.msra.mxu0 0
    %3716 = vmatprep.subr.bf16.mxu0 0
    %3717 = vmatpush1.bf16.msra.mxu0 0
    %3718 = vmatprep.subr.bf16.mxu0 0
    %3719 = vmatpush1.bf16.msra.mxu0 0
    %3720 = vmatprep.subr.bf16.mxu0 0
    %3721 = vmatpush1.bf16.msra.mxu0 0
    %3722 = vmatprep.subr.bf16.mxu0 0
    %3723 = vmatpush1.bf16.msra.mxu0 0
    %3724 = vmatprep.subr.bf16.mxu0 0
    %3725 = vmatpush1.bf16.msra.mxu0 0
    %3726 = vmatprep.subr.bf16.mxu0 0
    %3727 = vmatpush1.bf16.msra.mxu0 0
    %3728 = vmatprep.subr.bf16.mxu0 0
    %3729 = vmatpush1.bf16.msra.mxu0 0
    %3730 = vmatprep.subr.bf16.mxu0 0
    %3731 = vmatpush1.bf16.msra.mxu0 0
    %3732 = vmatprep.subr.bf16.mxu0 0
    %3733 = vmatpush1.bf16.msra.mxu0 0
    %3734 = vmatprep.subr.bf16.mxu0 0
    %3735 = vmatpush1.bf16.msra.mxu0 0
    %3736 = vmatprep.subr.bf16.mxu0 0
    %3737 = vmatpush1.bf16.msra.mxu0 0
    %3738 = vmatprep.subr.bf16.mxu0 0
    %3739 = vmatpush1.bf16.msra.mxu0 0
    %3740 = vmatprep.mubr.bf16.mxu0 0
    %3741 = vmatmul.mubr.bf16.gmra.mrb[0].mxu0 %v3706
    %v3742 = vpop.f32.mrb[0].mxu0
    %v3743 = vadd.f32 %v3700, %v3742
    %v3744 = vpop.f32.mrb[0].mxu0
    %v3745 = vpop.f32.mrb[0].mxu0
    %v3746 = vpop.f32.mrb[0].mxu0
    %3747 = vdwg.mxu0
    %v3748 = vadd.f32 %v3743, %v236
    %3749 = vmatprep.subr.bf16.mxu0 0
    %3750 = vmatpush1.bf16.msra.mxu0 %v849
    %3751 = vmatprep.subr.bf16.mxu0 0
    %3752 = vmatpush1.bf16.msra.mxu0 %v850
    %3753 = vmatprep.subr.bf16.mxu0 0
    %3754 = vmatpush1.bf16.msra.mxu0 0
    %3755 = vmatprep.subr.bf16.mxu0 0
    %3756 = vmatpush1.bf16.msra.mxu0 0
    %3757 = vmatprep.subr.bf16.mxu0 0
    %3758 = vmatpush1.bf16.msra.mxu0 0
    %3759 = vmatprep.subr.bf16.mxu0 0
    %3760 = vmatpush1.bf16.msra.mxu0 0
    %3761 = vmatprep.subr.bf16.mxu0 0
    %3762 = vmatpush1.bf16.msra.mxu0 0
    %3763 = vmatprep.subr.bf16.mxu0 0
    %3764 = vmatpush1.bf16.msra.mxu0 0
    %3765 = vmatprep.subr.bf16.mxu0 0
    %3766 = vmatpush1.bf16.msra.mxu0 0
    %3767 = vmatprep.subr.bf16.mxu0 0
    %3768 = vmatpush1.bf16.msra.mxu0 0
    %3769 = vmatprep.subr.bf16.mxu0 0
    %3770 = vmatpush1.bf16.msra.mxu0 0
    %3771 = vmatprep.subr.bf16.mxu0 0
    %3772 = vmatpush1.bf16.msra.mxu0 0
    %3773 = vmatprep.subr.bf16.mxu0 0
    %3774 = vmatpush1.bf16.msra.mxu0 0
    %3775 = vmatprep.subr.bf16.mxu0 0
    %3776 = vmatpush1.bf16.msra.mxu0 0
    %3777 = vmatprep.subr.bf16.mxu0 0
    %3778 = vmatpush1.bf16.msra.mxu0 0
    %3779 = vmatprep.subr.bf16.mxu0 0
    %3780 = vmatpush1.bf16.msra.mxu0 0
    %3781 = vmatprep.mubr.bf16.mxu0 0
    %3782 = vmatmul.mubr.bf16.gmra.mrb[0].mxu0 %v3663
    %v3783 = vpop.f32.mrb[0].mxu0
    %v3784 = vadd.f32 0.0, %v3783
    %v3785 = vpop.f32.mrb[0].mxu0
    %v3786 = vpop.f32.mrb[0].mxu0
    %v3787 = vpop.f32.mrb[0].mxu0
    %3788 = vdwg.mxu0
    %3789 = vmatprep.subr.bf16.mxu0 0
    %3790 = vmatpush1.bf16.msra.mxu0 %v901
    %3791 = vmatprep.subr.bf16.mxu0 0
    %3792 = vmatpush1.bf16.msra.mxu0 %v902
    %3793 = vmatprep.subr.bf16.mxu0 0
    %3794 = vmatpush1.bf16.msra.mxu0 0
    %3795 = vmatprep.subr.bf16.mxu0 0
    %3796 = vmatpush1.bf16.msra.mxu0 0
    %3797 = vmatprep.subr.bf16.mxu0 0
    %3798 = vmatpush1.bf16.msra.mxu0 0
    %3799 = vmatprep.subr.bf16.mxu0 0
    %3800 = vmatpush1.bf16.msra.mxu0 0
    %3801 = vmatprep.subr.bf16.mxu0 0
    %3802 = vmatpush1.bf16.msra.mxu0 0
    %3803 = vmatprep.subr.bf16.mxu0 0
    %3804 = vmatpush1.bf16.msra.mxu0 0
    %3805 = vmatprep.subr.bf16.mxu0 0
    %3806 = vmatpush1.bf16.msra.mxu0 0
    %3807 = vmatprep.subr.bf16.mxu0 0
    %3808 = vmatpush1.bf16.msra.mxu0 0
    %3809 = vmatprep.subr.bf16.mxu0 0
    %3810 = vmatpush1.bf16.msra.mxu0 0
    %3811 = vmatprep.subr.bf16.mxu0 0
    %3812 = vmatpush1.bf16.msra.mxu0 0
    %3813 = vmatprep.subr.bf16.mxu0 0
    %3814 = vmatpush1.bf16.msra.mxu0 0
    %3815 = vmatprep.subr.bf16.mxu0 0
    %3816 = vmatpush1.bf16.msra.mxu0 0
    %3817 = vmatprep.subr.bf16.mxu0 0
    %3818 = vmatpush1.bf16.msra.mxu0 0
    %3819 = vmatprep.subr.bf16.mxu0 0
    %3820 = vmatpush1.bf16.msra.mxu0 0
    %3821 = vmatprep.mubr.bf16.mxu0 0
    %3822 = vmatmul.mubr.bf16.gmra.mrb[0].mxu0 %v3706
    %v3823 = vpop.f32.mrb[0].mxu0
    %v3824 = vadd.f32 %v3784, %v3823
    %v3825 = vpop.f32.mrb[0].mxu0
    %v3826 = vpop.f32.mrb[0].mxu0
    %v3827 = vpop.f32.mrb[0].mxu0
    %3828 = vdwg.mxu0
    %v3829 = vadd.f32 %v3824, %v254
    %3830 = vmatprep.subr.bf16.mxu0 0
    %3831 = vmatpush1.bf16.msra.mxu0 %v954
    %3832 = vmatprep.subr.bf16.mxu0 0
    %3833 = vmatpush1.bf16.msra.mxu0 %v955
    %3834 = vmatprep.subr.bf16.mxu0 0
    %3835 = vmatpush1.bf16.msra.mxu0 0
    %3836 = vmatprep.subr.bf16.mxu0 0
    %3837 = vmatpush1.bf16.msra.mxu0 0
    %3838 = vmatprep.subr.bf16.mxu0 0
    %3839 = vmatpush1.bf16.msra.mxu0 0
    %3840 = vmatprep.subr.bf16.mxu0 0
    %3841 = vmatpush1.bf16.msra.mxu0 0
    %3842 = vmatprep.subr.bf16.mxu0 0
    %3843 = vmatpush1.bf16.msra.mxu0 0
    %3844 = vmatprep.subr.bf16.mxu0 0
    %3845 = vmatpush1.bf16.msra.mxu0 0
    %3846 = vmatprep.subr.bf16.mxu0 0
    %3847 = vmatpush1.bf16.msra.mxu0 0
    %3848 = vmatprep.subr.bf16.mxu0 0
    %3849 = vmatpush1.bf16.msra.mxu0 0
    %3850 = vmatprep.subr.bf16.mxu0 0
    %3851 = vmatpush1.bf16.msra.mxu0 0
    %3852 = vmatprep.subr.bf16.mxu0 0
    %3853 = vmatpush1.bf16.msra.mxu0 0
    %3854 = vmatprep.subr.bf16.mxu0 0
    %3855 = vmatpush1.bf16.msra.mxu0 0
    %3856 = vmatprep.subr.bf16.mxu0 0
    %3857 = vmatpush1.bf16.msra.mxu0 0
    %3858 = vmatprep.subr.bf16.mxu0 0
    %3859 = vmatpush1.bf16.msra.mxu0 0
    %3860 = vmatprep.subr.bf16.mxu0 0
    %3861 = vmatpush1.bf16.msra.mxu0 0
    %3862 = vmatprep.mubr.bf16.mxu0 0
    %3863 = vmatmul.mubr.bf16.gmra.mrb[0].mxu0 %v3663
    %v3864 = vpop.f32.mrb[0].mxu0
    %v3865 = vadd.f32 0.0, %v3864
    %v3866 = vpop.f32.mrb[0].mxu0
    %v3867 = vpop.f32.mrb[0].mxu0
    %v3868 = vpop.f32.mrb[0].mxu0
    %3869 = vdwg.mxu0
    %3870 = vmatprep.subr.bf16.mxu0 0
    %3871 = vmatpush1.bf16.msra.mxu0 %v1006
    %3872 = vmatprep.subr.bf16.mxu0 0
    %3873 = vmatpush1.bf16.msra.mxu0 %v1007
    %3874 = vmatprep.subr.bf16.mxu0 0
    %3875 = vmatpush1.bf16.msra.mxu0 0
    %3876 = vmatprep.subr.bf16.mxu0 0
    %3877 = vmatpush1.bf16.msra.mxu0 0
    %3878 = vmatprep.subr.bf16.mxu0 0
    %3879 = vmatpush1.bf16.msra.mxu0 0
    %3880 = vmatprep.subr.bf16.mxu0 0
    %3881 = vmatpush1.bf16.msra.mxu0 0
    %3882 = vmatprep.subr.bf16.mxu0 0
    %3883 = vmatpush1.bf16.msra.mxu0 0
    %3884 = vmatprep.subr.bf16.mxu0 0
    %3885 = vmatpush1.bf16.msra.mxu0 0
    %3886 = vmatprep.subr.bf16.mxu0 0
    %3887 = vmatpush1.bf16.msra.mxu0 0
    %3888 = vmatprep.subr.bf16.mxu0 0
    %3889 = vmatpush1.bf16.msra.mxu0 0
    %3890 = vmatprep.subr.bf16.mxu0 0
    %3891 = vmatpush1.bf16.msra.mxu0 0
    %3892 = vmatprep.subr.bf16.mxu0 0
    %3893 = vmatpush1.bf16.msra.mxu0 0
    %3894 = vmatprep.subr.bf16.mxu0 0
    %3895 = vmatpush1.bf16.msra.mxu0 0
    %3896 = vmatprep.subr.bf16.mxu0 0
    %3897 = vmatpush1.bf16.msra.mxu0 0
    %3898 = vmatprep.subr.bf16.mxu0 0
    %3899 = vmatpush1.bf16.msra.mxu0 0
    %3900 = vmatprep.subr.bf16.mxu0 0
    %3901 = vmatpush1.bf16.msra.mxu0 0
    %3902 = vmatprep.mubr.bf16.mxu0 0
    %3903 = vmatmul.mubr.bf16.gmra.mrb[0].mxu0 %v3706
    %v3904 = vpop.f32.mrb[0].mxu0
    %v3905 = vadd.f32 %v3865, %v3904
    %v3906 = vpop.f32.mrb[0].mxu0
    %v3907 = vpop.f32.mrb[0].mxu0
    %v3908 = vpop.f32.mrb[0].mxu0
    %3909 = vdwg.mxu0
    %v3910 = vadd.f32 %v3905, %v272
    %3911 = vmatprep.subr.bf16.mxu0 0
    %3912 = vmatpush1.bf16.msra.mxu0 %v1059
    %3913 = vmatprep.subr.bf16.mxu0 0
    %3914 = vmatpush1.bf16.msra.mxu0 %v1060
    %3915 = vmatprep.subr.bf16.mxu0 0
    %3916 = vmatpush1.bf16.msra.mxu0 0
    %3917 = vmatprep.subr.bf16.mxu0 0
    %3918 = vmatpush1.bf16.msra.mxu0 0
    %3919 = vmatprep.subr.bf16.mxu0 0
    %3920 = vmatpush1.bf16.msra.mxu0 0
    %3921 = vmatprep.subr.bf16.mxu0 0
    %3922 = vmatpush1.bf16.msra.mxu0 0
    %3923 = vmatprep.subr.bf16.mxu0 0
    %3924 = vmatpush1.bf16.msra.mxu0 0
    %3925 = vmatprep.subr.bf16.mxu0 0
    %3926 = vmatpush1.bf16.msra.mxu0 0
    %3927 = vmatprep.subr.bf16.mxu0 0
    %3928 = vmatpush1.bf16.msra.mxu0 0
    %3929 = vmatprep.subr.bf16.mxu0 0
    %3930 = vmatpush1.bf16.msra.mxu0 0
    %3931 = vmatprep.subr.bf16.mxu0 0
    %3932 = vmatpush1.bf16.msra.mxu0 0
    %3933 = vmatprep.subr.bf16.mxu0 0
    %3934 = vmatpush1.bf16.msra.mxu0 0
    %3935 = vmatprep.subr.bf16.mxu0 0
    %3936 = vmatpush1.bf16.msra.mxu0 0
    %3937 = vmatprep.subr.bf16.mxu0 0
    %3938 = vmatpush1.bf16.msra.mxu0 0
    %3939 = vmatprep.subr.bf16.mxu0 0
    %3940 = vmatpush1.bf16.msra.mxu0 0
    %3941 = vmatprep.subr.bf16.mxu0 0
    %3942 = vmatpush1.bf16.msra.mxu0 0
    %3943 = vmatprep.mubr.bf16.mxu0 0
    %3944 = vmatmul.mubr.bf16.gmra.mrb[0].mxu0 %v3663
    %v3945 = vpop.f32.mrb[0].mxu0
    %v3946 = vadd.f32 0.0, %v3945
    %v3947 = vpop.f32.mrb[0].mxu0
    %v3948 = vpop.f32.mrb[0].mxu0
    %v3949 = vpop.f32.mrb[0].mxu0
    %3950 = vdwg.mxu0
    %3951 = vmatprep.subr.bf16.mxu0 0
    %3952 = vmatpush1.bf16.msra.mxu0 %v1111
    %3953 = vmatprep.subr.bf16.mxu0 0
    %3954 = vmatpush1.bf16.msra.mxu0 %v1112
    %3955 = vmatprep.subr.bf16.mxu0 0
    %3956 = vmatpush1.bf16.msra.mxu0 0
    %3957 = vmatprep.subr.bf16.mxu0 0
    %3958 = vmatpush1.bf16.msra.mxu0 0
    %3959 = vmatprep.subr.bf16.mxu0 0
    %3960 = vmatpush1.bf16.msra.mxu0 0
    %3961 = vmatprep.subr.bf16.mxu0 0
    %3962 = vmatpush1.bf16.msra.mxu0 0
    %3963 = vmatprep.subr.bf16.mxu0 0
    %3964 = vmatpush1.bf16.msra.mxu0 0
    %3965 = vmatprep.subr.bf16.mxu0 0
    %3966 = vmatpush1.bf16.msra.mxu0 0
    %3967 = vmatprep.subr.bf16.mxu0 0
    %3968 = vmatpush1.bf16.msra.mxu0 0
    %3969 = vmatprep.subr.bf16.mxu0 0
    %3970 = vmatpush1.bf16.msra.mxu0 0
    %3971 = vmatprep.subr.bf16.mxu0 0
    %3972 = vmatpush1.bf16.msra.mxu0 0
    %3973 = vmatprep.subr.bf16.mxu0 0
    %3974 = vmatpush1.bf16.msra.mxu0 0
    %3975 = vmatprep.subr.bf16.mxu0 0
    %3976 = vmatpush1.bf16.msra.mxu0 0
    %3977 = vmatprep.subr.bf16.mxu0 0
    %3978 = vmatpush1.bf16.msra.mxu0 0
    %3979 = vmatprep.subr.bf16.mxu0 0
    %3980 = vmatpush1.bf16.msra.mxu0 0
    %3981 = vmatprep.subr.bf16.mxu0 0
    %3982 = vmatpush1.bf16.msra.mxu0 0
    %3983 = vmatprep.mubr.bf16.mxu0 0
    %3984 = vmatmul.mubr.bf16.gmra.mrb[0].mxu0 %v3706
    %v3985 = vpop.f32.mrb[0].mxu0
    %v3986 = vadd.f32 %v3946, %v3985
    %v3987 = vpop.f32.mrb[0].mxu0
    %v3988 = vpop.f32.mrb[0].mxu0
    %v3989 = vpop.f32.mrb[0].mxu0
    %3990 = vdwg.mxu0
    %v3991 = vadd.f32 %v3986, %v290
    %v3992 = vxor.u32 %v3748, 2147483648
    %v3993 = vmul.f32 %v3992, 1.442695
    %v3994 = vpow.pop %v3993
    %v3995 = vadd.f32 %v3994, 1.0
    %v3996 = vrcp.pop %v3995
    %v3997 = vmul.f32 1.0, %v3996
    %v3998 = vxor.u32 %v3829, 2147483648
    %v3999 = vmul.f32 %v3998, 1.442695
    %v4000 = vpow.pop %v3999
    %v4001 = vadd.f32 %v4000, 1.0
    %v4002 = vrcp.pop %v4001
    %v4003 = vmul.f32 1.0, %v4002
    %v4004 = vtanh.pop %v3910
    %v4005 = vxor.u32 %v3991, 2147483648
    %v4006 = vmul.f32 %v4005, 1.442695
    %v4007 = vpow.pop %v4006
    %v4008 = vadd.f32 %v4007, 1.0
    %v4009 = vrcp.pop %v4008
    %v4010 = vmul.f32 1.0, %v4009
    %v4011 = vmul.f32 %v4003, %v3304
    %v4012 = vmul.f32 %v3997, %v4004
    %v4013 = vadd.f32 %v4011, %v4012
    %v4014 = vtanh.pop %v4013
    %v4015 = vmul.f32 %v4010, %v4014
    %s4016 = scalar_lea.vmem [#allocation2], 20
    %v4017 = vld [vmem:[%s4016] sm:$0xf]
    %4018 = vmatprep.subr.bf16.mxu0 0
    %4019 = vmatpush1.bf16.msra.mxu0 %v308
    %4020 = vmatprep.subr.bf16.mxu0 0
    %4021 = vmatpush1.bf16.msra.mxu0 %v309
    %4022 = vmatprep.subr.bf16.mxu0 0
    %4023 = vmatpush1.bf16.msra.mxu0 0
    %4024 = vmatprep.subr.bf16.mxu0 0
    %4025 = vmatpush1.bf16.msra.mxu0 0
    %4026 = vmatprep.subr.bf16.mxu0 0
    %4027 = vmatpush1.bf16.msra.mxu0 0
    %4028 = vmatprep.subr.bf16.mxu0 0
    %4029 = vmatpush1.bf16.msra.mxu0 0
    %4030 = vmatprep.subr.bf16.mxu0 0
    %4031 = vmatpush1.bf16.msra.mxu0 0
    %4032 = vmatprep.subr.bf16.mxu0 0
    %4033 = vmatpush1.bf16.msra.mxu0 0
    %4034 = vmatprep.subr.bf16.mxu0 0
    %4035 = vmatpush1.bf16.msra.mxu0 0
    %4036 = vmatprep.subr.bf16.mxu0 0
    %4037 = vmatpush1.bf16.msra.mxu0 0
    %4038 = vmatprep.subr.bf16.mxu0 0
    %4039 = vmatpush1.bf16.msra.mxu0 0
    %4040 = vmatprep.subr.bf16.mxu0 0
    %4041 = vmatpush1.bf16.msra.mxu0 0
    %4042 = vmatprep.subr.bf16.mxu0 0
    %4043 = vmatpush1.bf16.msra.mxu0 0
    %4044 = vmatprep.subr.bf16.mxu0 0
    %4045 = vmatpush1.bf16.msra.mxu0 0
    %4046 = vmatprep.subr.bf16.mxu0 0
    %4047 = vmatpush1.bf16.msra.mxu0 0
    %4048 = vmatprep.subr.bf16.mxu0 0
    %4049 = vmatpush1.bf16.msra.mxu0 0
    %4050 = vmatprep.mubr.bf16.mxu0 0
    %4051 = vmatmul.mubr.bf16.gmra.mrb[0].mxu0 %v3706
    %v4052 = vpop.f32.mrb[0].mxu0
    %v4053 = vadd.f32 0.0, %v4052
    %v4054 = vpop.f32.mrb[0].mxu0
    %v4055 = vpop.f32.mrb[0].mxu0
    %v4056 = vpop.f32.mrb[0].mxu0
    %4057 = vdwg.mxu0
    %v4059 = vsel %vm362, %v4017, 0
    %4061 = vmatprep.subr.bf16.mxu0 0
    %4062 = vmatpush1.bf16.msra.mxu0 %v360
    %4063 = vmatprep.subr.bf16.mxu0 0
    %4064 = vmatpush1.bf16.msra.mxu0 0
    %4065 = vmatprep.subr.bf16.mxu0 0
    %4066 = vmatpush1.bf16.msra.mxu0 0
    %4067 = vmatprep.subr.bf16.mxu0 0
    %4068 = vmatpush1.bf16.msra.mxu0 0
    %4069 = vmatprep.subr.bf16.mxu0 0
    %4070 = vmatpush1.bf16.msra.mxu0 0
    %4071 = vmatprep.subr.bf16.mxu0 0
    %4072 = vmatpush1.bf16.msra.mxu0 0
    %4073 = vmatprep.subr.bf16.mxu0 0
    %4074 = vmatpush1.bf16.msra.mxu0 0
    %4075 = vmatprep.subr.bf16.mxu0 0
    %4076 = vmatpush1.bf16.msra.mxu0 0
    %4077 = vmatprep.subr.bf16.mxu0 0
    %4078 = vmatpush1.bf16.msra.mxu0 0
    %4079 = vmatprep.subr.bf16.mxu0 0
    %4080 = vmatpush1.bf16.msra.mxu0 0
    %4081 = vmatprep.subr.bf16.mxu0 0
    %4082 = vmatpush1.bf16.msra.mxu0 0
    %4083 = vmatprep.subr.bf16.mxu0 0
    %4084 = vmatpush1.bf16.msra.mxu0 0
    %4085 = vmatprep.subr.bf16.mxu0 0
    %4086 = vmatpush1.bf16.msra.mxu0 0
    %4087 = vmatprep.subr.bf16.mxu0 0
    %4088 = vmatpush1.bf16.msra.mxu0 0
    %4089 = vmatprep.subr.bf16.mxu0 0
    %4090 = vmatpush1.bf16.msra.mxu0 0
    %4091 = vmatprep.subr.bf16.mxu0 0
    %4092 = vmatpush1.bf16.msra.mxu0 0
    %4093 = vmatprep.mubr.bf16.mxu0 0
    %4094 = vmatmul.mubr.bf16.gmra.mrb[0].mxu0 %v4059
    %v4095 = vpop.f32.mrb[0].mxu0
    %v4096 = vadd.f32 %v4053, %v4095
    %v4097 = vpop.f32.mrb[0].mxu0
    %v4098 = vpop.f32.mrb[0].mxu0
    %v4099 = vpop.f32.mrb[0].mxu0
    %4100 = vdwg.mxu0
    %v4101 = vadd.f32 %v4096, %v173
    %4102 = vmatprep.subr.bf16.mxu0 0
    %4103 = vmatpush1.bf16.msra.mxu0 %v415
    %4104 = vmatprep.subr.bf16.mxu0 0
    %4105 = vmatpush1.bf16.msra.mxu0 %v416
    %4106 = vmatprep.subr.bf16.mxu0 0
    %4107 = vmatpush1.bf16.msra.mxu0 0
    %4108 = vmatprep.subr.bf16.mxu0 0
    %4109 = vmatpush1.bf16.msra.mxu0 0
    %4110 = vmatprep.subr.bf16.mxu0 0
    %4111 = vmatpush1.bf16.msra.mxu0 0
    %4112 = vmatprep.subr.bf16.mxu0 0
    %4113 = vmatpush1.bf16.msra.mxu0 0
    %4114 = vmatprep.subr.bf16.mxu0 0
    %4115 = vmatpush1.bf16.msra.mxu0 0
    %4116 = vmatprep.subr.bf16.mxu0 0
    %4117 = vmatpush1.bf16.msra.mxu0 0
    %4118 = vmatprep.subr.bf16.mxu0 0
    %4119 = vmatpush1.bf16.msra.mxu0 0
    %4120 = vmatprep.subr.bf16.mxu0 0
    %4121 = vmatpush1.bf16.msra.mxu0 0
    %4122 = vmatprep.subr.bf16.mxu0 0
    %4123 = vmatpush1.bf16.msra.mxu0 0
    %4124 = vmatprep.subr.bf16.mxu0 0
    %4125 = vmatpush1.bf16.msra.mxu0 0
    %4126 = vmatprep.subr.bf16.mxu0 0
    %4127 = vmatpush1.bf16.msra.mxu0 0
    %4128 = vmatprep.subr.bf16.mxu0 0
    %4129 = vmatpush1.bf16.msra.mxu0 0
    %4130 = vmatprep.subr.bf16.mxu0 0
    %4131 = vmatpush1.bf16.msra.mxu0 0
    %4132 = vmatprep.subr.bf16.mxu0 0
    %4133 = vmatpush1.bf16.msra.mxu0 0
    %4134 = vmatprep.mubr.bf16.mxu0 0
    %4135 = vmatmul.mubr.bf16.gmra.mrb[0].mxu0 %v3706
    %v4136 = vpop.f32.mrb[0].mxu0
    %v4137 = vadd.f32 0.0, %v4136
    %v4138 = vpop.f32.mrb[0].mxu0
    %v4139 = vpop.f32.mrb[0].mxu0
    %v4140 = vpop.f32.mrb[0].mxu0
    %4141 = vdwg.mxu0
    %4142 = vmatprep.subr.bf16.mxu0 0
    %4143 = vmatpush1.bf16.msra.mxu0 %v463
    %4144 = vmatprep.subr.bf16.mxu0 0
    %4145 = vmatpush1.bf16.msra.mxu0 0
    %4146 = vmatprep.subr.bf16.mxu0 0
    %4147 = vmatpush1.bf16.msra.mxu0 0
    %4148 = vmatprep.subr.bf16.mxu0 0
    %4149 = vmatpush1.bf16.msra.mxu0 0
    %4150 = vmatprep.subr.bf16.mxu0 0
    %4151 = vmatpush1.bf16.msra.mxu0 0
    %4152 = vmatprep.subr.bf16.mxu0 0
    %4153 = vmatpush1.bf16.msra.mxu0 0
    %4154 = vmatprep.subr.bf16.mxu0 0
    %4155 = vmatpush1.bf16.msra.mxu0 0
    %4156 = vmatprep.subr.bf16.mxu0 0
    %4157 = vmatpush1.bf16.msra.mxu0 0
    %4158 = vmatprep.subr.bf16.mxu0 0
    %4159 = vmatpush1.bf16.msra.mxu0 0
    %4160 = vmatprep.subr.bf16.mxu0 0
    %4161 = vmatpush1.bf16.msra.mxu0 0
    %4162 = vmatprep.subr.bf16.mxu0 0
    %4163 = vmatpush1.bf16.msra.mxu0 0
    %4164 = vmatprep.subr.bf16.mxu0 0
    %4165 = vmatpush1.bf16.msra.mxu0 0
    %4166 = vmatprep.subr.bf16.mxu0 0
    %4167 = vmatpush1.bf16.msra.mxu0 0
    %4168 = vmatprep.subr.bf16.mxu0 0
    %4169 = vmatpush1.bf16.msra.mxu0 0
    %4170 = vmatprep.subr.bf16.mxu0 0
    %4171 = vmatpush1.bf16.msra.mxu0 0
    %4172 = vmatprep.subr.bf16.mxu0 0
    %4173 = vmatpush1.bf16.msra.mxu0 0
    %4174 = vmatprep.mubr.bf16.mxu0 0
    %4175 = vmatmul.mubr.bf16.gmra.mrb[0].mxu0 %v4059
    %v4176 = vpop.f32.mrb[0].mxu0
    %v4177 = vadd.f32 %v4137, %v4176
    %v4178 = vpop.f32.mrb[0].mxu0
    %v4179 = vpop.f32.mrb[0].mxu0
    %v4180 = vpop.f32.mrb[0].mxu0
    %4181 = vdwg.mxu0
    %v4182 = vadd.f32 %v4177, %v189
    %4183 = vmatprep.subr.bf16.mxu0 0
    %4184 = vmatpush1.bf16.msra.mxu0 %v514
    %4185 = vmatprep.subr.bf16.mxu0 0
    %4186 = vmatpush1.bf16.msra.mxu0 %v515
    %4187 = vmatprep.subr.bf16.mxu0 0
    %4188 = vmatpush1.bf16.msra.mxu0 0
    %4189 = vmatprep.subr.bf16.mxu0 0
    %4190 = vmatpush1.bf16.msra.mxu0 0
    %4191 = vmatprep.subr.bf16.mxu0 0
    %4192 = vmatpush1.bf16.msra.mxu0 0
    %4193 = vmatprep.subr.bf16.mxu0 0
    %4194 = vmatpush1.bf16.msra.mxu0 0
    %4195 = vmatprep.subr.bf16.mxu0 0
    %4196 = vmatpush1.bf16.msra.mxu0 0
    %4197 = vmatprep.subr.bf16.mxu0 0
    %4198 = vmatpush1.bf16.msra.mxu0 0
    %4199 = vmatprep.subr.bf16.mxu0 0
    %4200 = vmatpush1.bf16.msra.mxu0 0
    %4201 = vmatprep.subr.bf16.mxu0 0
    %4202 = vmatpush1.bf16.msra.mxu0 0
    %4203 = vmatprep.subr.bf16.mxu0 0
    %4204 = vmatpush1.bf16.msra.mxu0 0
    %4205 = vmatprep.subr.bf16.mxu0 0
    %4206 = vmatpush1.bf16.msra.mxu0 0
    %4207 = vmatprep.subr.bf16.mxu0 0
    %4208 = vmatpush1.bf16.msra.mxu0 0
    %4209 = vmatprep.subr.bf16.mxu0 0
    %4210 = vmatpush1.bf16.msra.mxu0 0
    %4211 = vmatprep.subr.bf16.mxu0 0
    %4212 = vmatpush1.bf16.msra.mxu0 0
    %4213 = vmatprep.subr.bf16.mxu0 0
    %4214 = vmatpush1.bf16.msra.mxu0 0
    %4215 = vmatprep.mubr.bf16.mxu0 0
    %4216 = vmatmul.mubr.bf16.gmra.mrb[0].mxu0 %v3706
    %v4217 = vpop.f32.mrb[0].mxu0
    %v4218 = vadd.f32 0.0, %v4217
    %v4219 = vpop.f32.mrb[0].mxu0
    %v4220 = vpop.f32.mrb[0].mxu0
    %v4221 = vpop.f32.mrb[0].mxu0
    %4222 = vdwg.mxu0
    %4223 = vmatprep.subr.bf16.mxu0 0
    %4224 = vmatpush1.bf16.msra.mxu0 %v562
    %4225 = vmatprep.subr.bf16.mxu0 0
    %4226 = vmatpush1.bf16.msra.mxu0 0
    %4227 = vmatprep.subr.bf16.mxu0 0
    %4228 = vmatpush1.bf16.msra.mxu0 0
    %4229 = vmatprep.subr.bf16.mxu0 0
    %4230 = vmatpush1.bf16.msra.mxu0 0
    %4231 = vmatprep.subr.bf16.mxu0 0
    %4232 = vmatpush1.bf16.msra.mxu0 0
    %4233 = vmatprep.subr.bf16.mxu0 0
    %4234 = vmatpush1.bf16.msra.mxu0 0
    %4235 = vmatprep.subr.bf16.mxu0 0
    %4236 = vmatpush1.bf16.msra.mxu0 0
    %4237 = vmatprep.subr.bf16.mxu0 0
    %4238 = vmatpush1.bf16.msra.mxu0 0
    %4239 = vmatprep.subr.bf16.mxu0 0
    %4240 = vmatpush1.bf16.msra.mxu0 0
    %4241 = vmatprep.subr.bf16.mxu0 0
    %4242 = vmatpush1.bf16.msra.mxu0 0
    %4243 = vmatprep.subr.bf16.mxu0 0
    %4244 = vmatpush1.bf16.msra.mxu0 0
    %4245 = vmatprep.subr.bf16.mxu0 0
    %4246 = vmatpush1.bf16.msra.mxu0 0
    %4247 = vmatprep.subr.bf16.mxu0 0
    %4248 = vmatpush1.bf16.msra.mxu0 0
    %4249 = vmatprep.subr.bf16.mxu0 0
    %4250 = vmatpush1.bf16.msra.mxu0 0
    %4251 = vmatprep.subr.bf16.mxu0 0
    %4252 = vmatpush1.bf16.msra.mxu0 0
    %4253 = vmatprep.subr.bf16.mxu0 0
    %4254 = vmatpush1.bf16.msra.mxu0 0
    %4255 = vmatprep.mubr.bf16.mxu0 0
    %4256 = vmatmul.mubr.bf16.gmra.mrb[0].mxu0 %v4059
    %v4257 = vpop.f32.mrb[0].mxu0
    %v4258 = vadd.f32 %v4218, %v4257
    %v4259 = vpop.f32.mrb[0].mxu0
    %v4260 = vpop.f32.mrb[0].mxu0
    %v4261 = vpop.f32.mrb[0].mxu0
    %4262 = vdwg.mxu0
    %v4263 = vadd.f32 %v4258, %v205
    %4264 = vmatprep.subr.bf16.mxu0 0
    %4265 = vmatpush1.bf16.msra.mxu0 %v613
    %4266 = vmatprep.subr.bf16.mxu0 0
    %4267 = vmatpush1.bf16.msra.mxu0 %v614
    %4268 = vmatprep.subr.bf16.mxu0 0
    %4269 = vmatpush1.bf16.msra.mxu0 0
    %4270 = vmatprep.subr.bf16.mxu0 0
    %4271 = vmatpush1.bf16.msra.mxu0 0
    %4272 = vmatprep.subr.bf16.mxu0 0
    %4273 = vmatpush1.bf16.msra.mxu0 0
    %4274 = vmatprep.subr.bf16.mxu0 0
    %4275 = vmatpush1.bf16.msra.mxu0 0
    %4276 = vmatprep.subr.bf16.mxu0 0
    %4277 = vmatpush1.bf16.msra.mxu0 0
    %4278 = vmatprep.subr.bf16.mxu0 0
    %4279 = vmatpush1.bf16.msra.mxu0 0
    %4280 = vmatprep.subr.bf16.mxu0 0
    %4281 = vmatpush1.bf16.msra.mxu0 0
    %4282 = vmatprep.subr.bf16.mxu0 0
    %4283 = vmatpush1.bf16.msra.mxu0 0
    %4284 = vmatprep.subr.bf16.mxu0 0
    %4285 = vmatpush1.bf16.msra.mxu0 0
    %4286 = vmatprep.subr.bf16.mxu0 0
    %4287 = vmatpush1.bf16.msra.mxu0 0
    %4288 = vmatprep.subr.bf16.mxu0 0
    %4289 = vmatpush1.bf16.msra.mxu0 0
    %4290 = vmatprep.subr.bf16.mxu0 0
    %4291 = vmatpush1.bf16.msra.mxu0 0
    %4292 = vmatprep.subr.bf16.mxu0 0
    %4293 = vmatpush1.bf16.msra.mxu0 0
    %4294 = vmatprep.subr.bf16.mxu0 0
    %4295 = vmatpush1.bf16.msra.mxu0 0
    %4296 = vmatprep.mubr.bf16.mxu0 0
    %4297 = vmatmul.mubr.bf16.gmra.mrb[0].mxu0 %v3706
    %v4298 = vpop.f32.mrb[0].mxu0
    %v4299 = vadd.f32 0.0, %v4298
    %v4300 = vpop.f32.mrb[0].mxu0
    %v4301 = vpop.f32.mrb[0].mxu0
    %v4302 = vpop.f32.mrb[0].mxu0
    %4303 = vdwg.mxu0
    %4304 = vmatprep.subr.bf16.mxu0 0
    %4305 = vmatpush1.bf16.msra.mxu0 %v661
    %4306 = vmatprep.subr.bf16.mxu0 0
    %4307 = vmatpush1.bf16.msra.mxu0 0
    %4308 = vmatprep.subr.bf16.mxu0 0
    %4309 = vmatpush1.bf16.msra.mxu0 0
    %4310 = vmatprep.subr.bf16.mxu0 0
    %4311 = vmatpush1.bf16.msra.mxu0 0
    %4312 = vmatprep.subr.bf16.mxu0 0
    %4313 = vmatpush1.bf16.msra.mxu0 0
    %4314 = vmatprep.subr.bf16.mxu0 0
    %4315 = vmatpush1.bf16.msra.mxu0 0
    %4316 = vmatprep.subr.bf16.mxu0 0
    %4317 = vmatpush1.bf16.msra.mxu0 0
    %4318 = vmatprep.subr.bf16.mxu0 0
    %4319 = vmatpush1.bf16.msra.mxu0 0
    %4320 = vmatprep.subr.bf16.mxu0 0
    %4321 = vmatpush1.bf16.msra.mxu0 0
    %4322 = vmatprep.subr.bf16.mxu0 0
    %4323 = vmatpush1.bf16.msra.mxu0 0
    %4324 = vmatprep.subr.bf16.mxu0 0
    %4325 = vmatpush1.bf16.msra.mxu0 0
    %4326 = vmatprep.subr.bf16.mxu0 0
    %4327 = vmatpush1.bf16.msra.mxu0 0
    %4328 = vmatprep.subr.bf16.mxu0 0
    %4329 = vmatpush1.bf16.msra.mxu0 0
    %4330 = vmatprep.subr.bf16.mxu0 0
    %4331 = vmatpush1.bf16.msra.mxu0 0
    %4332 = vmatprep.subr.bf16.mxu0 0
    %4333 = vmatpush1.bf16.msra.mxu0 0
    %4334 = vmatprep.subr.bf16.mxu0 0
    %4335 = vmatpush1.bf16.msra.mxu0 0
    %4336 = vmatprep.mubr.bf16.mxu0 0
    %4337 = vmatmul.mubr.bf16.gmra.mrb[0].mxu0 %v4059
    %v4338 = vpop.f32.mrb[0].mxu0
    %v4339 = vadd.f32 %v4299, %v4338
    %v4340 = vpop.f32.mrb[0].mxu0
    %v4341 = vpop.f32.mrb[0].mxu0
    %v4342 = vpop.f32.mrb[0].mxu0
    %4343 = vdwg.mxu0
    %v4344 = vadd.f32 %v4339, %v221
    %v4345 = vxor.u32 %v4101, 2147483648
    %v4346 = vmul.f32 %v4345, 1.442695
    %v4347 = vpow.pop %v4346
    %v4348 = vadd.f32 %v4347, 1.0
    %v4349 = vrcp.pop %v4348
    %v4350 = vmul.f32 1.0, %v4349
    %v4351 = vxor.u32 %v4182, 2147483648
    %v4352 = vmul.f32 %v4351, 1.442695
    %v4353 = vpow.pop %v4352
    %v4354 = vadd.f32 %v4353, 1.0
    %v4355 = vrcp.pop %v4354
    %v4356 = vmul.f32 1.0, %v4355
    %v4357 = vtanh.pop %v4263
    %v4358 = vxor.u32 %v4344, 2147483648
    %v4359 = vmul.f32 %v4358, 1.442695
    %v4360 = vpow.pop %v4359
    %v4361 = vadd.f32 %v4360, 1.0
    %v4362 = vrcp.pop %v4361
    %v4363 = vmul.f32 1.0, %v4362
    %v4364 = vmul.f32 %v4356, %v3657
    %v4365 = vmul.f32 %v4350, %v4357
    %v4366 = vadd.f32 %v4364, %v4365
    %v4367 = vtanh.pop %v4366
    %v4368 = vmul.f32 %v4363, %v4367
    %v4369 = vpack.c.bf16 %v4368, %v4368
    %v4370 = vpack.c.bf16 %v4015, %v4015
    %v4372 = vsel %vm312, %v4370, 0
    %4374 = vmatprep.subr.bf16.mxu0 0
    %4375 = vmatpush1.bf16.msra.mxu0 %v738
    %4376 = vmatprep.subr.bf16.mxu0 0
    %4377 = vmatpush1.bf16.msra.mxu0 %v739
    %4378 = vmatprep.subr.bf16.mxu0 0
    %4379 = vmatpush1.bf16.msra.mxu0 0
    %4380 = vmatprep.subr.bf16.mxu0 0
    %4381 = vmatpush1.bf16.msra.mxu0 0
    %4382 = vmatprep.subr.bf16.mxu0 0
    %4383 = vmatpush1.bf16.msra.mxu0 0
    %4384 = vmatprep.subr.bf16.mxu0 0
    %4385 = vmatpush1.bf16.msra.mxu0 0
    %4386 = vmatprep.subr.bf16.mxu0 0
    %4387 = vmatpush1.bf16.msra.mxu0 0
    %4388 = vmatprep.subr.bf16.mxu0 0
    %4389 = vmatpush1.bf16.msra.mxu0 0
    %4390 = vmatprep.subr.bf16.mxu0 0
    %4391 = vmatpush1.bf16.msra.mxu0 0
    %4392 = vmatprep.subr.bf16.mxu0 0
    %4393 = vmatpush1.bf16.msra.mxu0 0
    %4394 = vmatprep.subr.bf16.mxu0 0
    %4395 = vmatpush1.bf16.msra.mxu0 0
    %4396 = vmatprep.subr.bf16.mxu0 0
    %4397 = vmatpush1.bf16.msra.mxu0 0
    %4398 = vmatprep.subr.bf16.mxu0 0
    %4399 = vmatpush1.bf16.msra.mxu0 0
    %4400 = vmatprep.subr.bf16.mxu0 0
    %4401 = vmatpush1.bf16.msra.mxu0 0
    %4402 = vmatprep.subr.bf16.mxu0 0
    %4403 = vmatpush1.bf16.msra.mxu0 0
    %4404 = vmatprep.subr.bf16.mxu0 0
    %4405 = vmatpush1.bf16.msra.mxu0 0
    %4406 = vmatprep.mubr.bf16.mxu0 0
    %4407 = vmatmul.mubr.bf16.gmra.mrb[0].mxu0 %v4372
    %v4408 = vpop.f32.mrb[0].mxu0
    %v4409 = vadd.f32 0.0, %v4408
    %v4410 = vpop.f32.mrb[0].mxu0
    %v4411 = vpop.f32.mrb[0].mxu0
    %v4412 = vpop.f32.mrb[0].mxu0
    %4413 = vdwg.mxu0
    %v4415 = vsel %vm312, %v4369, 0
    %4417 = vmatprep.subr.bf16.mxu0 0
    %4418 = vmatpush1.bf16.msra.mxu0 %v793
    %4419 = vmatprep.subr.bf16.mxu0 0
    %4420 = vmatpush1.bf16.msra.mxu0 %v794
    %4421 = vmatprep.subr.bf16.mxu0 0
    %4422 = vmatpush1.bf16.msra.mxu0 0
    %4423 = vmatprep.subr.bf16.mxu0 0
    %4424 = vmatpush1.bf16.msra.mxu0 0
    %4425 = vmatprep.subr.bf16.mxu0 0
    %4426 = vmatpush1.bf16.msra.mxu0 0
    %4427 = vmatprep.subr.bf16.mxu0 0
    %4428 = vmatpush1.bf16.msra.mxu0 0
    %4429 = vmatprep.subr.bf16.mxu0 0
    %4430 = vmatpush1.bf16.msra.mxu0 0
    %4431 = vmatprep.subr.bf16.mxu0 0
    %4432 = vmatpush1.bf16.msra.mxu0 0
    %4433 = vmatprep.subr.bf16.mxu0 0
    %4434 = vmatpush1.bf16.msra.mxu0 0
    %4435 = vmatprep.subr.bf16.mxu0 0
    %4436 = vmatpush1.bf16.msra.mxu0 0
    %4437 = vmatprep.subr.bf16.mxu0 0
    %4438 = vmatpush1.bf16.msra.mxu0 0
    %4439 = vmatprep.subr.bf16.mxu0 0
    %4440 = vmatpush1.bf16.msra.mxu0 0
    %4441 = vmatprep.subr.bf16.mxu0 0
    %4442 = vmatpush1.bf16.msra.mxu0 0
    %4443 = vmatprep.subr.bf16.mxu0 0
    %4444 = vmatpush1.bf16.msra.mxu0 0
    %4445 = vmatprep.subr.bf16.mxu0 0
    %4446 = vmatpush1.bf16.msra.mxu0 0
    %4447 = vmatprep.subr.bf16.mxu0 0
    %4448 = vmatpush1.bf16.msra.mxu0 0
    %4449 = vmatprep.mubr.bf16.mxu0 0
    %4450 = vmatmul.mubr.bf16.gmra.mrb[0].mxu0 %v4415
    %v4451 = vpop.f32.mrb[0].mxu0
    %v4452 = vadd.f32 %v4409, %v4451
    %v4453 = vpop.f32.mrb[0].mxu0
    %v4454 = vpop.f32.mrb[0].mxu0
    %v4455 = vpop.f32.mrb[0].mxu0
    %4456 = vdwg.mxu0
    %v4457 = vadd.f32 %v4452, %v236
    %4458 = vmatprep.subr.bf16.mxu0 0
    %4459 = vmatpush1.bf16.msra.mxu0 %v849
    %4460 = vmatprep.subr.bf16.mxu0 0
    %4461 = vmatpush1.bf16.msra.mxu0 %v850
    %4462 = vmatprep.subr.bf16.mxu0 0
    %4463 = vmatpush1.bf16.msra.mxu0 0
    %4464 = vmatprep.subr.bf16.mxu0 0
    %4465 = vmatpush1.bf16.msra.mxu0 0
    %4466 = vmatprep.subr.bf16.mxu0 0
    %4467 = vmatpush1.bf16.msra.mxu0 0
    %4468 = vmatprep.subr.bf16.mxu0 0
    %4469 = vmatpush1.bf16.msra.mxu0 0
    %4470 = vmatprep.subr.bf16.mxu0 0
    %4471 = vmatpush1.bf16.msra.mxu0 0
    %4472 = vmatprep.subr.bf16.mxu0 0
    %4473 = vmatpush1.bf16.msra.mxu0 0
    %4474 = vmatprep.subr.bf16.mxu0 0
    %4475 = vmatpush1.bf16.msra.mxu0 0
    %4476 = vmatprep.subr.bf16.mxu0 0
    %4477 = vmatpush1.bf16.msra.mxu0 0
    %4478 = vmatprep.subr.bf16.mxu0 0
    %4479 = vmatpush1.bf16.msra.mxu0 0
    %4480 = vmatprep.subr.bf16.mxu0 0
    %4481 = vmatpush1.bf16.msra.mxu0 0
    %4482 = vmatprep.subr.bf16.mxu0 0
    %4483 = vmatpush1.bf16.msra.mxu0 0
    %4484 = vmatprep.subr.bf16.mxu0 0
    %4485 = vmatpush1.bf16.msra.mxu0 0
    %4486 = vmatprep.subr.bf16.mxu0 0
    %4487 = vmatpush1.bf16.msra.mxu0 0
    %4488 = vmatprep.subr.bf16.mxu0 0
    %4489 = vmatpush1.bf16.msra.mxu0 0
    %4490 = vmatprep.mubr.bf16.mxu0 0
    %4491 = vmatmul.mubr.bf16.gmra.mrb[0].mxu0 %v4372
    %v4492 = vpop.f32.mrb[0].mxu0
    %v4493 = vadd.f32 0.0, %v4492
    %v4494 = vpop.f32.mrb[0].mxu0
    %v4495 = vpop.f32.mrb[0].mxu0
    %v4496 = vpop.f32.mrb[0].mxu0
    %4497 = vdwg.mxu0
    %4498 = vmatprep.subr.bf16.mxu0 0
    %4499 = vmatpush1.bf16.msra.mxu0 %v901
    %4500 = vmatprep.subr.bf16.mxu0 0
    %4501 = vmatpush1.bf16.msra.mxu0 %v902
    %4502 = vmatprep.subr.bf16.mxu0 0
    %4503 = vmatpush1.bf16.msra.mxu0 0
    %4504 = vmatprep.subr.bf16.mxu0 0
    %4505 = vmatpush1.bf16.msra.mxu0 0
    %4506 = vmatprep.subr.bf16.mxu0 0
    %4507 = vmatpush1.bf16.msra.mxu0 0
    %4508 = vmatprep.subr.bf16.mxu0 0
    %4509 = vmatpush1.bf16.msra.mxu0 0
    %4510 = vmatprep.subr.bf16.mxu0 0
    %4511 = vmatpush1.bf16.msra.mxu0 0
    %4512 = vmatprep.subr.bf16.mxu0 0
    %4513 = vmatpush1.bf16.msra.mxu0 0
    %4514 = vmatprep.subr.bf16.mxu0 0
    %4515 = vmatpush1.bf16.msra.mxu0 0
    %4516 = vmatprep.subr.bf16.mxu0 0
    %4517 = vmatpush1.bf16.msra.mxu0 0
    %4518 = vmatprep.subr.bf16.mxu0 0
    %4519 = vmatpush1.bf16.msra.mxu0 0
    %4520 = vmatprep.subr.bf16.mxu0 0
    %4521 = vmatpush1.bf16.msra.mxu0 0
    %4522 = vmatprep.subr.bf16.mxu0 0
    %4523 = vmatpush1.bf16.msra.mxu0 0
    %4524 = vmatprep.subr.bf16.mxu0 0
    %4525 = vmatpush1.bf16.msra.mxu0 0
    %4526 = vmatprep.subr.bf16.mxu0 0
    %4527 = vmatpush1.bf16.msra.mxu0 0
    %4528 = vmatprep.subr.bf16.mxu0 0
    %4529 = vmatpush1.bf16.msra.mxu0 0
    %4530 = vmatprep.mubr.bf16.mxu0 0
    %4531 = vmatmul.mubr.bf16.gmra.mrb[0].mxu0 %v4415
    %v4532 = vpop.f32.mrb[0].mxu0
    %v4533 = vadd.f32 %v4493, %v4532
    %v4534 = vpop.f32.mrb[0].mxu0
    %v4535 = vpop.f32.mrb[0].mxu0
    %v4536 = vpop.f32.mrb[0].mxu0
    %4537 = vdwg.mxu0
    %v4538 = vadd.f32 %v4533, %v254
    %4539 = vmatprep.subr.bf16.mxu0 0
    %4540 = vmatpush1.bf16.msra.mxu0 %v954
    %4541 = vmatprep.subr.bf16.mxu0 0
    %4542 = vmatpush1.bf16.msra.mxu0 %v955
    %4543 = vmatprep.subr.bf16.mxu0 0
    %4544 = vmatpush1.bf16.msra.mxu0 0
    %4545 = vmatprep.subr.bf16.mxu0 0
    %4546 = vmatpush1.bf16.msra.mxu0 0
    %4547 = vmatprep.subr.bf16.mxu0 0
    %4548 = vmatpush1.bf16.msra.mxu0 0
    %4549 = vmatprep.subr.bf16.mxu0 0
    %4550 = vmatpush1.bf16.msra.mxu0 0
    %4551 = vmatprep.subr.bf16.mxu0 0
    %4552 = vmatpush1.bf16.msra.mxu0 0
    %4553 = vmatprep.subr.bf16.mxu0 0
    %4554 = vmatpush1.bf16.msra.mxu0 0
    %4555 = vmatprep.subr.bf16.mxu0 0
    %4556 = vmatpush1.bf16.msra.mxu0 0
    %4557 = vmatprep.subr.bf16.mxu0 0
    %4558 = vmatpush1.bf16.msra.mxu0 0
    %4559 = vmatprep.subr.bf16.mxu0 0
    %4560 = vmatpush1.bf16.msra.mxu0 0
    %4561 = vmatprep.subr.bf16.mxu0 0
    %4562 = vmatpush1.bf16.msra.mxu0 0
    %4563 = vmatprep.subr.bf16.mxu0 0
    %4564 = vmatpush1.bf16.msra.mxu0 0
    %4565 = vmatprep.subr.bf16.mxu0 0
    %4566 = vmatpush1.bf16.msra.mxu0 0
    %4567 = vmatprep.subr.bf16.mxu0 0
    %4568 = vmatpush1.bf16.msra.mxu0 0
    %4569 = vmatprep.subr.bf16.mxu0 0
    %4570 = vmatpush1.bf16.msra.mxu0 0
    %4571 = vmatprep.mubr.bf16.mxu0 0
    %4572 = vmatmul.mubr.bf16.gmra.mrb[0].mxu0 %v4372
    %v4573 = vpop.f32.mrb[0].mxu0
    %v4574 = vadd.f32 0.0, %v4573
    %v4575 = vpop.f32.mrb[0].mxu0
    %v4576 = vpop.f32.mrb[0].mxu0
    %v4577 = vpop.f32.mrb[0].mxu0
    %4578 = vdwg.mxu0
    %4579 = vmatprep.subr.bf16.mxu0 0
    %4580 = vmatpush1.bf16.msra.mxu0 %v1006
    %4581 = vmatprep.subr.bf16.mxu0 0
    %4582 = vmatpush1.bf16.msra.mxu0 %v1007
    %4583 = vmatprep.subr.bf16.mxu0 0
    %4584 = vmatpush1.bf16.msra.mxu0 0
    %4585 = vmatprep.subr.bf16.mxu0 0
    %4586 = vmatpush1.bf16.msra.mxu0 0
    %4587 = vmatprep.subr.bf16.mxu0 0
    %4588 = vmatpush1.bf16.msra.mxu0 0
    %4589 = vmatprep.subr.bf16.mxu0 0
    %4590 = vmatpush1.bf16.msra.mxu0 0
    %4591 = vmatprep.subr.bf16.mxu0 0
    %4592 = vmatpush1.bf16.msra.mxu0 0
    %4593 = vmatprep.subr.bf16.mxu0 0
    %4594 = vmatpush1.bf16.msra.mxu0 0
    %4595 = vmatprep.subr.bf16.mxu0 0
    %4596 = vmatpush1.bf16.msra.mxu0 0
    %4597 = vmatprep.subr.bf16.mxu0 0
    %4598 = vmatpush1.bf16.msra.mxu0 0
    %4599 = vmatprep.subr.bf16.mxu0 0
    %4600 = vmatpush1.bf16.msra.mxu0 0
    %4601 = vmatprep.subr.bf16.mxu0 0
    %4602 = vmatpush1.bf16.msra.mxu0 0
    %4603 = vmatprep.subr.bf16.mxu0 0
    %4604 = vmatpush1.bf16.msra.mxu0 0
    %4605 = vmatprep.subr.bf16.mxu0 0
    %4606 = vmatpush1.bf16.msra.mxu0 0
    %4607 = vmatprep.subr.bf16.mxu0 0
    %4608 = vmatpush1.bf16.msra.mxu0 0
    %4609 = vmatprep.subr.bf16.mxu0 0
    %4610 = vmatpush1.bf16.msra.mxu0 0
    %4611 = vmatprep.mubr.bf16.mxu0 0
    %4612 = vmatmul.mubr.bf16.gmra.mrb[0].mxu0 %v4415
    %v4613 = vpop.f32.mrb[0].mxu0
    %v4614 = vadd.f32 %v4574, %v4613
    %v4615 = vpop.f32.mrb[0].mxu0
    %v4616 = vpop.f32.mrb[0].mxu0
    %v4617 = vpop.f32.mrb[0].mxu0
    %4618 = vdwg.mxu0
    %v4619 = vadd.f32 %v4614, %v272
    %4620 = vmatprep.subr.bf16.mxu0 0
    %4621 = vmatpush1.bf16.msra.mxu0 %v1059
    %4622 = vmatprep.subr.bf16.mxu0 0
    %4623 = vmatpush1.bf16.msra.mxu0 %v1060
    %4624 = vmatprep.subr.bf16.mxu0 0
    %4625 = vmatpush1.bf16.msra.mxu0 0
    %4626 = vmatprep.subr.bf16.mxu0 0
    %4627 = vmatpush1.bf16.msra.mxu0 0
    %4628 = vmatprep.subr.bf16.mxu0 0
    %4629 = vmatpush1.bf16.msra.mxu0 0
    %4630 = vmatprep.subr.bf16.mxu0 0
    %4631 = vmatpush1.bf16.msra.mxu0 0
    %4632 = vmatprep.subr.bf16.mxu0 0
    %4633 = vmatpush1.bf16.msra.mxu0 0
    %4634 = vmatprep.subr.bf16.mxu0 0
    %4635 = vmatpush1.bf16.msra.mxu0 0
    %4636 = vmatprep.subr.bf16.mxu0 0
    %4637 = vmatpush1.bf16.msra.mxu0 0
    %4638 = vmatprep.subr.bf16.mxu0 0
    %4639 = vmatpush1.bf16.msra.mxu0 0
    %4640 = vmatprep.subr.bf16.mxu0 0
    %4641 = vmatpush1.bf16.msra.mxu0 0
    %4642 = vmatprep.subr.bf16.mxu0 0
    %4643 = vmatpush1.bf16.msra.mxu0 0
    %4644 = vmatprep.subr.bf16.mxu0 0
    %4645 = vmatpush1.bf16.msra.mxu0 0
    %4646 = vmatprep.subr.bf16.mxu0 0
    %4647 = vmatpush1.bf16.msra.mxu0 0
    %4648 = vmatprep.subr.bf16.mxu0 0
    %4649 = vmatpush1.bf16.msra.mxu0 0
    %4650 = vmatprep.subr.bf16.mxu0 0
    %4651 = vmatpush1.bf16.msra.mxu0 0
    %4652 = vmatprep.mubr.bf16.mxu0 0
    %4653 = vmatmul.mubr.bf16.gmra.mrb[0].mxu0 %v4372
    %v4654 = vpop.f32.mrb[0].mxu0
    %v4655 = vadd.f32 0.0, %v4654
    %v4656 = vpop.f32.mrb[0].mxu0
    %v4657 = vpop.f32.mrb[0].mxu0
    %v4658 = vpop.f32.mrb[0].mxu0
    %4659 = vdwg.mxu0
    %4660 = vmatprep.subr.bf16.mxu0 0
    %4661 = vmatpush1.bf16.msra.mxu0 %v1111
    %4662 = vmatprep.subr.bf16.mxu0 0
    %4663 = vmatpush1.bf16.msra.mxu0 %v1112
    %4664 = vmatprep.subr.bf16.mxu0 0
    %4665 = vmatpush1.bf16.msra.mxu0 0
    %4666 = vmatprep.subr.bf16.mxu0 0
    %4667 = vmatpush1.bf16.msra.mxu0 0
    %4668 = vmatprep.subr.bf16.mxu0 0
    %4669 = vmatpush1.bf16.msra.mxu0 0
    %4670 = vmatprep.subr.bf16.mxu0 0
    %4671 = vmatpush1.bf16.msra.mxu0 0
    %4672 = vmatprep.subr.bf16.mxu0 0
    %4673 = vmatpush1.bf16.msra.mxu0 0
    %4674 = vmatprep.subr.bf16.mxu0 0
    %4675 = vmatpush1.bf16.msra.mxu0 0
    %4676 = vmatprep.subr.bf16.mxu0 0
    %4677 = vmatpush1.bf16.msra.mxu0 0
    %4678 = vmatprep.subr.bf16.mxu0 0
    %4679 = vmatpush1.bf16.msra.mxu0 0
    %4680 = vmatprep.subr.bf16.mxu0 0
    %4681 = vmatpush1.bf16.msra.mxu0 0
    %4682 = vmatprep.subr.bf16.mxu0 0
    %4683 = vmatpush1.bf16.msra.mxu0 0
    %4684 = vmatprep.subr.bf16.mxu0 0
    %4685 = vmatpush1.bf16.msra.mxu0 0
    %4686 = vmatprep.subr.bf16.mxu0 0
    %4687 = vmatpush1.bf16.msra.mxu0 0
    %4688 = vmatprep.subr.bf16.mxu0 0
    %4689 = vmatpush1.bf16.msra.mxu0 0
    %4690 = vmatprep.subr.bf16.mxu0 0
    %4691 = vmatpush1.bf16.msra.mxu0 0
    %4692 = vmatprep.mubr.bf16.mxu0 0
    %4693 = vmatmul.mubr.bf16.gmra.mrb[0].mxu0 %v4415
    %v4694 = vpop.f32.mrb[0].mxu0
    %v4695 = vadd.f32 %v4655, %v4694
    %v4696 = vpop.f32.mrb[0].mxu0
    %v4697 = vpop.f32.mrb[0].mxu0
    %v4698 = vpop.f32.mrb[0].mxu0
    %4699 = vdwg.mxu0
    %v4700 = vadd.f32 %v4695, %v290
    %v4701 = vxor.u32 %v4457, 2147483648
    %v4702 = vmul.f32 %v4701, 1.442695
    %v4703 = vpow.pop %v4702
    %v4704 = vadd.f32 %v4703, 1.0
    %v4705 = vrcp.pop %v4704
    %v4706 = vmul.f32 1.0, %v4705
    %v4707 = vxor.u32 %v4538, 2147483648
    %v4708 = vmul.f32 %v4707, 1.442695
    %v4709 = vpow.pop %v4708
    %v4710 = vadd.f32 %v4709, 1.0
    %v4711 = vrcp.pop %v4710
    %v4712 = vmul.f32 1.0, %v4711
    %v4713 = vtanh.pop %v4619
    %v4714 = vxor.u32 %v4700, 2147483648
    %v4715 = vmul.f32 %v4714, 1.442695
    %v4716 = vpow.pop %v4715
    %v4717 = vadd.f32 %v4716, 1.0
    %v4718 = vrcp.pop %v4717
    %v4719 = vmul.f32 1.0, %v4718
    %v4720 = vmul.f32 %v4712, %v4013
    %v4721 = vmul.f32 %v4706, %v4713
    %v4722 = vadd.f32 %v4720, %v4721
    %v4723 = vtanh.pop %v4722
    %v4724 = vmul.f32 %v4719, %v4723
    %s4725 = scalar_lea.vmem [#allocation2], 24
    %v4726 = vld [vmem:[%s4725] sm:$0xf]
    %4727 = vmatprep.subr.bf16.mxu0 0
    %4728 = vmatpush1.bf16.msra.mxu0 %v308
    %4729 = vmatprep.subr.bf16.mxu0 0
    %4730 = vmatpush1.bf16.msra.mxu0 %v309
    %4731 = vmatprep.subr.bf16.mxu0 0
    %4732 = vmatpush1.bf16.msra.mxu0 0
    %4733 = vmatprep.subr.bf16.mxu0 0
    %4734 = vmatpush1.bf16.msra.mxu0 0
    %4735 = vmatprep.subr.bf16.mxu0 0
    %4736 = vmatpush1.bf16.msra.mxu0 0
    %4737 = vmatprep.subr.bf16.mxu0 0
    %4738 = vmatpush1.bf16.msra.mxu0 0
    %4739 = vmatprep.subr.bf16.mxu0 0
    %4740 = vmatpush1.bf16.msra.mxu0 0
    %4741 = vmatprep.subr.bf16.mxu0 0
    %4742 = vmatpush1.bf16.msra.mxu0 0
    %4743 = vmatprep.subr.bf16.mxu0 0
    %4744 = vmatpush1.bf16.msra.mxu0 0
    %4745 = vmatprep.subr.bf16.mxu0 0
    %4746 = vmatpush1.bf16.msra.mxu0 0
    %4747 = vmatprep.subr.bf16.mxu0 0
    %4748 = vmatpush1.bf16.msra.mxu0 0
    %4749 = vmatprep.subr.bf16.mxu0 0
    %4750 = vmatpush1.bf16.msra.mxu0 0
    %4751 = vmatprep.subr.bf16.mxu0 0
    %4752 = vmatpush1.bf16.msra.mxu0 0
    %4753 = vmatprep.subr.bf16.mxu0 0
    %4754 = vmatpush1.bf16.msra.mxu0 0
    %4755 = vmatprep.subr.bf16.mxu0 0
    %4756 = vmatpush1.bf16.msra.mxu0 0
    %4757 = vmatprep.subr.bf16.mxu0 0
    %4758 = vmatpush1.bf16.msra.mxu0 0
    %4759 = vmatprep.mubr.bf16.mxu0 0
    %4760 = vmatmul.mubr.bf16.gmra.mrb[0].mxu0 %v4415
    %v4761 = vpop.f32.mrb[0].mxu0
    %v4762 = vadd.f32 0.0, %v4761
    %v4763 = vpop.f32.mrb[0].mxu0
    %v4764 = vpop.f32.mrb[0].mxu0
    %v4765 = vpop.f32.mrb[0].mxu0
    %4766 = vdwg.mxu0
    %v4768 = vsel %vm362, %v4726, 0
    %4770 = vmatprep.subr.bf16.mxu0 0
    %4771 = vmatpush1.bf16.msra.mxu0 %v360
    %4772 = vmatprep.subr.bf16.mxu0 0
    %4773 = vmatpush1.bf16.msra.mxu0 0
    %4774 = vmatprep.subr.bf16.mxu0 0
    %4775 = vmatpush1.bf16.msra.mxu0 0
    %4776 = vmatprep.subr.bf16.mxu0 0
    %4777 = vmatpush1.bf16.msra.mxu0 0
    %4778 = vmatprep.subr.bf16.mxu0 0
    %4779 = vmatpush1.bf16.msra.mxu0 0
    %4780 = vmatprep.subr.bf16.mxu0 0
    %4781 = vmatpush1.bf16.msra.mxu0 0
    %4782 = vmatprep.subr.bf16.mxu0 0
    %4783 = vmatpush1.bf16.msra.mxu0 0
    %4784 = vmatprep.subr.bf16.mxu0 0
    %4785 = vmatpush1.bf16.msra.mxu0 0
    %4786 = vmatprep.subr.bf16.mxu0 0
    %4787 = vmatpush1.bf16.msra.mxu0 0
    %4788 = vmatprep.subr.bf16.mxu0 0
    %4789 = vmatpush1.bf16.msra.mxu0 0
    %4790 = vmatprep.subr.bf16.mxu0 0
    %4791 = vmatpush1.bf16.msra.mxu0 0
    %4792 = vmatprep.subr.bf16.mxu0 0
    %4793 = vmatpush1.bf16.msra.mxu0 0
    %4794 = vmatprep.subr.bf16.mxu0 0
    %4795 = vmatpush1.bf16.msra.mxu0 0
    %4796 = vmatprep.subr.bf16.mxu0 0
    %4797 = vmatpush1.bf16.msra.mxu0 0
    %4798 = vmatprep.subr.bf16.mxu0 0
    %4799 = vmatpush1.bf16.msra.mxu0 0
    %4800 = vmatprep.subr.bf16.mxu0 0
    %4801 = vmatpush1.bf16.msra.mxu0 0
    %4802 = vmatprep.mubr.bf16.mxu0 0
    %4803 = vmatmul.mubr.bf16.gmra.mrb[0].mxu0 %v4768
    %v4804 = vpop.f32.mrb[0].mxu0
    %v4805 = vadd.f32 %v4762, %v4804
    %v4806 = vpop.f32.mrb[0].mxu0
    %v4807 = vpop.f32.mrb[0].mxu0
    %v4808 = vpop.f32.mrb[0].mxu0
    %4809 = vdwg.mxu0
    %v4810 = vadd.f32 %v4805, %v173
    %4811 = vmatprep.subr.bf16.mxu0 0
    %4812 = vmatpush1.bf16.msra.mxu0 %v415
    %4813 = vmatprep.subr.bf16.mxu0 0
    %4814 = vmatpush1.bf16.msra.mxu0 %v416
    %4815 = vmatprep.subr.bf16.mxu0 0
    %4816 = vmatpush1.bf16.msra.mxu0 0
    %4817 = vmatprep.subr.bf16.mxu0 0
    %4818 = vmatpush1.bf16.msra.mxu0 0
    %4819 = vmatprep.subr.bf16.mxu0 0
    %4820 = vmatpush1.bf16.msra.mxu0 0
    %4821 = vmatprep.subr.bf16.mxu0 0
    %4822 = vmatpush1.bf16.msra.mxu0 0
    %4823 = vmatprep.subr.bf16.mxu0 0
    %4824 = vmatpush1.bf16.msra.mxu0 0
    %4825 = vmatprep.subr.bf16.mxu0 0
    %4826 = vmatpush1.bf16.msra.mxu0 0
    %4827 = vmatprep.subr.bf16.mxu0 0
    %4828 = vmatpush1.bf16.msra.mxu0 0
    %4829 = vmatprep.subr.bf16.mxu0 0
    %4830 = vmatpush1.bf16.msra.mxu0 0
    %4831 = vmatprep.subr.bf16.mxu0 0
    %4832 = vmatpush1.bf16.msra.mxu0 0
    %4833 = vmatprep.subr.bf16.mxu0 0
    %4834 = vmatpush1.bf16.msra.mxu0 0
    %4835 = vmatprep.subr.bf16.mxu0 0
    %4836 = vmatpush1.bf16.msra.mxu0 0
    %4837 = vmatprep.subr.bf16.mxu0 0
    %4838 = vmatpush1.bf16.msra.mxu0 0
    %4839 = vmatprep.subr.bf16.mxu0 0
    %4840 = vmatpush1.bf16.msra.mxu0 0
    %4841 = vmatprep.subr.bf16.mxu0 0
    %4842 = vmatpush1.bf16.msra.mxu0 0
    %4843 = vmatprep.mubr.bf16.mxu0 0
    %4844 = vmatmul.mubr.bf16.gmra.mrb[0].mxu0 %v4415
    %v4845 = vpop.f32.mrb[0].mxu0
    %v4846 = vadd.f32 0.0, %v4845
    %v4847 = vpop.f32.mrb[0].mxu0
    %v4848 = vpop.f32.mrb[0].mxu0
    %v4849 = vpop.f32.mrb[0].mxu0
    %4850 = vdwg.mxu0
    %4851 = vmatprep.subr.bf16.mxu0 0
    %4852 = vmatpush1.bf16.msra.mxu0 %v463
    %4853 = vmatprep.subr.bf16.mxu0 0
    %4854 = vmatpush1.bf16.msra.mxu0 0
    %4855 = vmatprep.subr.bf16.mxu0 0
    %4856 = vmatpush1.bf16.msra.mxu0 0
    %4857 = vmatprep.subr.bf16.mxu0 0
    %4858 = vmatpush1.bf16.msra.mxu0 0
    %4859 = vmatprep.subr.bf16.mxu0 0
    %4860 = vmatpush1.bf16.msra.mxu0 0
    %4861 = vmatprep.subr.bf16.mxu0 0
    %4862 = vmatpush1.bf16.msra.mxu0 0
    %4863 = vmatprep.subr.bf16.mxu0 0
    %4864 = vmatpush1.bf16.msra.mxu0 0
    %4865 = vmatprep.subr.bf16.mxu0 0
    %4866 = vmatpush1.bf16.msra.mxu0 0
    %4867 = vmatprep.subr.bf16.mxu0 0
    %4868 = vmatpush1.bf16.msra.mxu0 0
    %4869 = vmatprep.subr.bf16.mxu0 0
    %4870 = vmatpush1.bf16.msra.mxu0 0
    %4871 = vmatprep.subr.bf16.mxu0 0
    %4872 = vmatpush1.bf16.msra.mxu0 0
    %4873 = vmatprep.subr.bf16.mxu0 0
    %4874 = vmatpush1.bf16.msra.mxu0 0
    %4875 = vmatprep.subr.bf16.mxu0 0
    %4876 = vmatpush1.bf16.msra.mxu0 0
    %4877 = vmatprep.subr.bf16.mxu0 0
    %4878 = vmatpush1.bf16.msra.mxu0 0
    %4879 = vmatprep.subr.bf16.mxu0 0
    %4880 = vmatpush1.bf16.msra.mxu0 0
    %4881 = vmatprep.subr.bf16.mxu0 0
    %4882 = vmatpush1.bf16.msra.mxu0 0
    %4883 = vmatprep.mubr.bf16.mxu0 0
    %4884 = vmatmul.mubr.bf16.gmra.mrb[0].mxu0 %v4768
    %v4885 = vpop.f32.mrb[0].mxu0
    %v4886 = vadd.f32 %v4846, %v4885
    %v4887 = vpop.f32.mrb[0].mxu0
    %v4888 = vpop.f32.mrb[0].mxu0
    %v4889 = vpop.f32.mrb[0].mxu0
    %4890 = vdwg.mxu0
    %v4891 = vadd.f32 %v4886, %v189
    %4892 = vmatprep.subr.bf16.mxu0 0
    %4893 = vmatpush1.bf16.msra.mxu0 %v514
    %4894 = vmatprep.subr.bf16.mxu0 0
    %4895 = vmatpush1.bf16.msra.mxu0 %v515
    %4896 = vmatprep.subr.bf16.mxu0 0
    %4897 = vmatpush1.bf16.msra.mxu0 0
    %4898 = vmatprep.subr.bf16.mxu0 0
    %4899 = vmatpush1.bf16.msra.mxu0 0
    %4900 = vmatprep.subr.bf16.mxu0 0
    %4901 = vmatpush1.bf16.msra.mxu0 0
    %4902 = vmatprep.subr.bf16.mxu0 0
    %4903 = vmatpush1.bf16.msra.mxu0 0
    %4904 = vmatprep.subr.bf16.mxu0 0
    %4905 = vmatpush1.bf16.msra.mxu0 0
    %4906 = vmatprep.subr.bf16.mxu0 0
    %4907 = vmatpush1.bf16.msra.mxu0 0
    %4908 = vmatprep.subr.bf16.mxu0 0
    %4909 = vmatpush1.bf16.msra.mxu0 0
    %4910 = vmatprep.subr.bf16.mxu0 0
    %4911 = vmatpush1.bf16.msra.mxu0 0
    %4912 = vmatprep.subr.bf16.mxu0 0
    %4913 = vmatpush1.bf16.msra.mxu0 0
    %4914 = vmatprep.subr.bf16.mxu0 0
    %4915 = vmatpush1.bf16.msra.mxu0 0
    %4916 = vmatprep.subr.bf16.mxu0 0
    %4917 = vmatpush1.bf16.msra.mxu0 0
    %4918 = vmatprep.subr.bf16.mxu0 0
    %4919 = vmatpush1.bf16.msra.mxu0 0
    %4920 = vmatprep.subr.bf16.mxu0 0
    %4921 = vmatpush1.bf16.msra.mxu0 0
    %4922 = vmatprep.subr.bf16.mxu0 0
    %4923 = vmatpush1.bf16.msra.mxu0 0
    %4924 = vmatprep.mubr.bf16.mxu0 0
    %4925 = vmatmul.mubr.bf16.gmra.mrb[0].mxu0 %v4415
    %v4926 = vpop.f32.mrb[0].mxu0
    %v4927 = vadd.f32 0.0, %v4926
    %v4928 = vpop.f32.mrb[0].mxu0
    %v4929 = vpop.f32.mrb[0].mxu0
    %v4930 = vpop.f32.mrb[0].mxu0
    %4931 = vdwg.mxu0
    %4932 = vmatprep.subr.bf16.mxu0 0
    %4933 = vmatpush1.bf16.msra.mxu0 %v562
    %4934 = vmatprep.subr.bf16.mxu0 0
    %4935 = vmatpush1.bf16.msra.mxu0 0
    %4936 = vmatprep.subr.bf16.mxu0 0
    %4937 = vmatpush1.bf16.msra.mxu0 0
    %4938 = vmatprep.subr.bf16.mxu0 0
    %4939 = vmatpush1.bf16.msra.mxu0 0
    %4940 = vmatprep.subr.bf16.mxu0 0
    %4941 = vmatpush1.bf16.msra.mxu0 0
    %4942 = vmatprep.subr.bf16.mxu0 0
    %4943 = vmatpush1.bf16.msra.mxu0 0
    %4944 = vmatprep.subr.bf16.mxu0 0
    %4945 = vmatpush1.bf16.msra.mxu0 0
    %4946 = vmatprep.subr.bf16.mxu0 0
    %4947 = vmatpush1.bf16.msra.mxu0 0
    %4948 = vmatprep.subr.bf16.mxu0 0
    %4949 = vmatpush1.bf16.msra.mxu0 0
    %4950 = vmatprep.subr.bf16.mxu0 0
    %4951 = vmatpush1.bf16.msra.mxu0 0
    %4952 = vmatprep.subr.bf16.mxu0 0
    %4953 = vmatpush1.bf16.msra.mxu0 0
    %4954 = vmatprep.subr.bf16.mxu0 0
    %4955 = vmatpush1.bf16.msra.mxu0 0
    %4956 = vmatprep.subr.bf16.mxu0 0
    %4957 = vmatpush1.bf16.msra.mxu0 0
    %4958 = vmatprep.subr.bf16.mxu0 0
    %4959 = vmatpush1.bf16.msra.mxu0 0
    %4960 = vmatprep.subr.bf16.mxu0 0
    %4961 = vmatpush1.bf16.msra.mxu0 0
    %4962 = vmatprep.subr.bf16.mxu0 0
    %4963 = vmatpush1.bf16.msra.mxu0 0
    %4964 = vmatprep.mubr.bf16.mxu0 0
    %4965 = vmatmul.mubr.bf16.gmra.mrb[0].mxu0 %v4768
    %v4966 = vpop.f32.mrb[0].mxu0
    %v4967 = vadd.f32 %v4927, %v4966
    %v4968 = vpop.f32.mrb[0].mxu0
    %v4969 = vpop.f32.mrb[0].mxu0
    %v4970 = vpop.f32.mrb[0].mxu0
    %4971 = vdwg.mxu0
    %v4972 = vadd.f32 %v4967, %v205
    %4973 = vmatprep.subr.bf16.mxu0 0
    %4974 = vmatpush1.bf16.msra.mxu0 %v613
    %4975 = vmatprep.subr.bf16.mxu0 0
    %4976 = vmatpush1.bf16.msra.mxu0 %v614
    %4977 = vmatprep.subr.bf16.mxu0 0
    %4978 = vmatpush1.bf16.msra.mxu0 0
    %4979 = vmatprep.subr.bf16.mxu0 0
    %4980 = vmatpush1.bf16.msra.mxu0 0
    %4981 = vmatprep.subr.bf16.mxu0 0
    %4982 = vmatpush1.bf16.msra.mxu0 0
    %4983 = vmatprep.subr.bf16.mxu0 0
    %4984 = vmatpush1.bf16.msra.mxu0 0
    %4985 = vmatprep.subr.bf16.mxu0 0
    %4986 = vmatpush1.bf16.msra.mxu0 0
    %4987 = vmatprep.subr.bf16.mxu0 0
    %4988 = vmatpush1.bf16.msra.mxu0 0
    %4989 = vmatprep.subr.bf16.mxu0 0
    %4990 = vmatpush1.bf16.msra.mxu0 0
    %4991 = vmatprep.subr.bf16.mxu0 0
    %4992 = vmatpush1.bf16.msra.mxu0 0
    %4993 = vmatprep.subr.bf16.mxu0 0
    %4994 = vmatpush1.bf16.msra.mxu0 0
    %4995 = vmatprep.subr.bf16.mxu0 0
    %4996 = vmatpush1.bf16.msra.mxu0 0
    %4997 = vmatprep.subr.bf16.mxu0 0
    %4998 = vmatpush1.bf16.msra.mxu0 0
    %4999 = vmatprep.subr.bf16.mxu0 0
    %5000 = vmatpush1.bf16.msra.mxu0 0
    %5001 = vmatprep.subr.bf16.mxu0 0
    %5002 = vmatpush1.bf16.msra.mxu0 0
    %5003 = vmatprep.subr.bf16.mxu0 0
    %5004 = vmatpush1.bf16.msra.mxu0 0
    %5005 = vmatprep.mubr.bf16.mxu0 0
    %5006 = vmatmul.mubr.bf16.gmra.mrb[0].mxu0 %v4415
    %v5007 = vpop.f32.mrb[0].mxu0
    %v5008 = vadd.f32 0.0, %v5007
    %v5009 = vpop.f32.mrb[0].mxu0
    %v5010 = vpop.f32.mrb[0].mxu0
    %v5011 = vpop.f32.mrb[0].mxu0
    %5012 = vdwg.mxu0
    %5013 = vmatprep.subr.bf16.mxu0 0
    %5014 = vmatpush1.bf16.msra.mxu0 %v661
    %5015 = vmatprep.subr.bf16.mxu0 0
    %5016 = vmatpush1.bf16.msra.mxu0 0
    %5017 = vmatprep.subr.bf16.mxu0 0
    %5018 = vmatpush1.bf16.msra.mxu0 0
    %5019 = vmatprep.subr.bf16.mxu0 0
    %5020 = vmatpush1.bf16.msra.mxu0 0
    %5021 = vmatprep.subr.bf16.mxu0 0
    %5022 = vmatpush1.bf16.msra.mxu0 0
    %5023 = vmatprep.subr.bf16.mxu0 0
    %5024 = vmatpush1.bf16.msra.mxu0 0
    %5025 = vmatprep.subr.bf16.mxu0 0
    %5026 = vmatpush1.bf16.msra.mxu0 0
    %5027 = vmatprep.subr.bf16.mxu0 0
    %5028 = vmatpush1.bf16.msra.mxu0 0
    %5029 = vmatprep.subr.bf16.mxu0 0
    %5030 = vmatpush1.bf16.msra.mxu0 0
    %5031 = vmatprep.subr.bf16.mxu0 0
    %5032 = vmatpush1.bf16.msra.mxu0 0
    %5033 = vmatprep.subr.bf16.mxu0 0
    %5034 = vmatpush1.bf16.msra.mxu0 0
    %5035 = vmatprep.subr.bf16.mxu0 0
    %5036 = vmatpush1.bf16.msra.mxu0 0
    %5037 = vmatprep.subr.bf16.mxu0 0
    %5038 = vmatpush1.bf16.msra.mxu0 0
    %5039 = vmatprep.subr.bf16.mxu0 0
    %5040 = vmatpush1.bf16.msra.mxu0 0
    %5041 = vmatprep.subr.bf16.mxu0 0
    %5042 = vmatpush1.bf16.msra.mxu0 0
    %5043 = vmatprep.subr.bf16.mxu0 0
    %5044 = vmatpush1.bf16.msra.mxu0 0
    %5045 = vmatprep.mubr.bf16.mxu0 0
    %5046 = vmatmul.mubr.bf16.gmra.mrb[0].mxu0 %v4768
    %v5047 = vpop.f32.mrb[0].mxu0
    %v5048 = vadd.f32 %v5008, %v5047
    %v5049 = vpop.f32.mrb[0].mxu0
    %v5050 = vpop.f32.mrb[0].mxu0
    %v5051 = vpop.f32.mrb[0].mxu0
    %5052 = vdwg.mxu0
    %v5053 = vadd.f32 %v5048, %v221
    %v5054 = vxor.u32 %v4810, 2147483648
    %v5055 = vmul.f32 %v5054, 1.442695
    %v5056 = vpow.pop %v5055
    %v5057 = vadd.f32 %v5056, 1.0
    %v5058 = vrcp.pop %v5057
    %v5059 = vmul.f32 1.0, %v5058
    %v5060 = vxor.u32 %v4891, 2147483648
    %v5061 = vmul.f32 %v5060, 1.442695
    %v5062 = vpow.pop %v5061
    %v5063 = vadd.f32 %v5062, 1.0
    %v5064 = vrcp.pop %v5063
    %v5065 = vmul.f32 1.0, %v5064
    %v5066 = vtanh.pop %v4972
    %v5067 = vxor.u32 %v5053, 2147483648
    %v5068 = vmul.f32 %v5067, 1.442695
    %v5069 = vpow.pop %v5068
    %v5070 = vadd.f32 %v5069, 1.0
    %v5071 = vrcp.pop %v5070
    %v5072 = vmul.f32 1.0, %v5071
    %v5073 = vmul.f32 %v5065, %v4366
    %v5074 = vmul.f32 %v5059, %v5066
    %v5075 = vadd.f32 %v5073, %v5074
    %v5076 = vtanh.pop %v5075
    %v5077 = vmul.f32 %v5072, %v5076
    %v5078 = vpack.c.bf16 %v5077, %v5077
    %v5079 = vpack.c.bf16 %v4724, %v4724
    %v5081 = vsel %vm312, %v5079, 0
    %5083 = vmatprep.subr.bf16.mxu0 0
    %5084 = vmatpush1.bf16.msra.mxu0 %v738
    %5085 = vmatprep.subr.bf16.mxu0 0
    %5086 = vmatpush1.bf16.msra.mxu0 %v739
    %5087 = vmatprep.subr.bf16.mxu0 0
    %5088 = vmatpush1.bf16.msra.mxu0 0
    %5089 = vmatprep.subr.bf16.mxu0 0
    %5090 = vmatpush1.bf16.msra.mxu0 0
    %5091 = vmatprep.subr.bf16.mxu0 0
    %5092 = vmatpush1.bf16.msra.mxu0 0
    %5093 = vmatprep.subr.bf16.mxu0 0
    %5094 = vmatpush1.bf16.msra.mxu0 0
    %5095 = vmatprep.subr.bf16.mxu0 0
    %5096 = vmatpush1.bf16.msra.mxu0 0
    %5097 = vmatprep.subr.bf16.mxu0 0
    %5098 = vmatpush1.bf16.msra.mxu0 0
    %5099 = vmatprep.subr.bf16.mxu0 0
    %5100 = vmatpush1.bf16.msra.mxu0 0
    %5101 = vmatprep.subr.bf16.mxu0 0
    %5102 = vmatpush1.bf16.msra.mxu0 0
    %5103 = vmatprep.subr.bf16.mxu0 0
    %5104 = vmatpush1.bf16.msra.mxu0 0
    %5105 = vmatprep.subr.bf16.mxu0 0
    %5106 = vmatpush1.bf16.msra.mxu0 0
    %5107 = vmatprep.subr.bf16.mxu0 0
    %5108 = vmatpush1.bf16.msra.mxu0 0
    %5109 = vmatprep.subr.bf16.mxu0 0
    %5110 = vmatpush1.bf16.msra.mxu0 0
    %5111 = vmatprep.subr.bf16.mxu0 0
    %5112 = vmatpush1.bf16.msra.mxu0 0
    %5113 = vmatprep.subr.bf16.mxu0 0
    %5114 = vmatpush1.bf16.msra.mxu0 0
    %5115 = vmatprep.mubr.bf16.mxu0 0
    %5116 = vmatmul.mubr.bf16.gmra.mrb[0].mxu0 %v5081
    %v5117 = vpop.f32.mrb[0].mxu0
    %v5118 = vadd.f32 0.0, %v5117
    %v5119 = vpop.f32.mrb[0].mxu0
    %v5120 = vpop.f32.mrb[0].mxu0
    %v5121 = vpop.f32.mrb[0].mxu0
    %5122 = vdwg.mxu0
    %v5124 = vsel %vm312, %v5078, 0
    %5126 = vmatprep.subr.bf16.mxu0 0
    %5127 = vmatpush1.bf16.msra.mxu0 %v793
    %5128 = vmatprep.subr.bf16.mxu0 0
    %5129 = vmatpush1.bf16.msra.mxu0 %v794
    %5130 = vmatprep.subr.bf16.mxu0 0
    %5131 = vmatpush1.bf16.msra.mxu0 0
    %5132 = vmatprep.subr.bf16.mxu0 0
    %5133 = vmatpush1.bf16.msra.mxu0 0
    %5134 = vmatprep.subr.bf16.mxu0 0
    %5135 = vmatpush1.bf16.msra.mxu0 0
    %5136 = vmatprep.subr.bf16.mxu0 0
    %5137 = vmatpush1.bf16.msra.mxu0 0
    %5138 = vmatprep.subr.bf16.mxu0 0
    %5139 = vmatpush1.bf16.msra.mxu0 0
    %5140 = vmatprep.subr.bf16.mxu0 0
    %5141 = vmatpush1.bf16.msra.mxu0 0
    %5142 = vmatprep.subr.bf16.mxu0 0
    %5143 = vmatpush1.bf16.msra.mxu0 0
    %5144 = vmatprep.subr.bf16.mxu0 0
    %5145 = vmatpush1.bf16.msra.mxu0 0
    %5146 = vmatprep.subr.bf16.mxu0 0
    %5147 = vmatpush1.bf16.msra.mxu0 0
    %5148 = vmatprep.subr.bf16.mxu0 0
    %5149 = vmatpush1.bf16.msra.mxu0 0
    %5150 = vmatprep.subr.bf16.mxu0 0
    %5151 = vmatpush1.bf16.msra.mxu0 0
    %5152 = vmatprep.subr.bf16.mxu0 0
    %5153 = vmatpush1.bf16.msra.mxu0 0
    %5154 = vmatprep.subr.bf16.mxu0 0
    %5155 = vmatpush1.bf16.msra.mxu0 0
    %5156 = vmatprep.subr.bf16.mxu0 0
    %5157 = vmatpush1.bf16.msra.mxu0 0
    %5158 = vmatprep.mubr.bf16.mxu0 0
    %5159 = vmatmul.mubr.bf16.gmra.mrb[0].mxu0 %v5124
    %v5160 = vpop.f32.mrb[0].mxu0
    %v5161 = vadd.f32 %v5118, %v5160
    %v5162 = vpop.f32.mrb[0].mxu0
    %v5163 = vpop.f32.mrb[0].mxu0
    %v5164 = vpop.f32.mrb[0].mxu0
    %5165 = vdwg.mxu0
    %v5166 = vadd.f32 %v5161, %v236
    %5167 = vmatprep.subr.bf16.mxu0 0
    %5168 = vmatpush1.bf16.msra.mxu0 %v849
    %5169 = vmatprep.subr.bf16.mxu0 0
    %5170 = vmatpush1.bf16.msra.mxu0 %v850
    %5171 = vmatprep.subr.bf16.mxu0 0
    %5172 = vmatpush1.bf16.msra.mxu0 0
    %5173 = vmatprep.subr.bf16.mxu0 0
    %5174 = vmatpush1.bf16.msra.mxu0 0
    %5175 = vmatprep.subr.bf16.mxu0 0
    %5176 = vmatpush1.bf16.msra.mxu0 0
    %5177 = vmatprep.subr.bf16.mxu0 0
    %5178 = vmatpush1.bf16.msra.mxu0 0
    %5179 = vmatprep.subr.bf16.mxu0 0
    %5180 = vmatpush1.bf16.msra.mxu0 0
    %5181 = vmatprep.subr.bf16.mxu0 0
    %5182 = vmatpush1.bf16.msra.mxu0 0
    %5183 = vmatprep.subr.bf16.mxu0 0
    %5184 = vmatpush1.bf16.msra.mxu0 0
    %5185 = vmatprep.subr.bf16.mxu0 0
    %5186 = vmatpush1.bf16.msra.mxu0 0
    %5187 = vmatprep.subr.bf16.mxu0 0
    %5188 = vmatpush1.bf16.msra.mxu0 0
    %5189 = vmatprep.subr.bf16.mxu0 0
    %5190 = vmatpush1.bf16.msra.mxu0 0
    %5191 = vmatprep.subr.bf16.mxu0 0
    %5192 = vmatpush1.bf16.msra.mxu0 0
    %5193 = vmatprep.subr.bf16.mxu0 0
    %5194 = vmatpush1.bf16.msra.mxu0 0
    %5195 = vmatprep.subr.bf16.mxu0 0
    %5196 = vmatpush1.bf16.msra.mxu0 0
    %5197 = vmatprep.subr.bf16.mxu0 0
    %5198 = vmatpush1.bf16.msra.mxu0 0
    %5199 = vmatprep.mubr.bf16.mxu0 0
    %5200 = vmatmul.mubr.bf16.gmra.mrb[0].mxu0 %v5081
    %v5201 = vpop.f32.mrb[0].mxu0
    %v5202 = vadd.f32 0.0, %v5201
    %v5203 = vpop.f32.mrb[0].mxu0
    %v5204 = vpop.f32.mrb[0].mxu0
    %v5205 = vpop.f32.mrb[0].mxu0
    %5206 = vdwg.mxu0
    %5207 = vmatprep.subr.bf16.mxu0 0
    %5208 = vmatpush1.bf16.msra.mxu0 %v901
    %5209 = vmatprep.subr.bf16.mxu0 0
    %5210 = vmatpush1.bf16.msra.mxu0 %v902
    %5211 = vmatprep.subr.bf16.mxu0 0
    %5212 = vmatpush1.bf16.msra.mxu0 0
    %5213 = vmatprep.subr.bf16.mxu0 0
    %5214 = vmatpush1.bf16.msra.mxu0 0
    %5215 = vmatprep.subr.bf16.mxu0 0
    %5216 = vmatpush1.bf16.msra.mxu0 0
    %5217 = vmatprep.subr.bf16.mxu0 0
    %5218 = vmatpush1.bf16.msra.mxu0 0
    %5219 = vmatprep.subr.bf16.mxu0 0
    %5220 = vmatpush1.bf16.msra.mxu0 0
    %5221 = vmatprep.subr.bf16.mxu0 0
    %5222 = vmatpush1.bf16.msra.mxu0 0
    %5223 = vmatprep.subr.bf16.mxu0 0
    %5224 = vmatpush1.bf16.msra.mxu0 0
    %5225 = vmatprep.subr.bf16.mxu0 0
    %5226 = vmatpush1.bf16.msra.mxu0 0
    %5227 = vmatprep.subr.bf16.mxu0 0
    %5228 = vmatpush1.bf16.msra.mxu0 0
    %5229 = vmatprep.subr.bf16.mxu0 0
    %5230 = vmatpush1.bf16.msra.mxu0 0
    %5231 = vmatprep.subr.bf16.mxu0 0
    %5232 = vmatpush1.bf16.msra.mxu0 0
    %5233 = vmatprep.subr.bf16.mxu0 0
    %5234 = vmatpush1.bf16.msra.mxu0 0
    %5235 = vmatprep.subr.bf16.mxu0 0
    %5236 = vmatpush1.bf16.msra.mxu0 0
    %5237 = vmatprep.subr.bf16.mxu0 0
    %5238 = vmatpush1.bf16.msra.mxu0 0
    %5239 = vmatprep.mubr.bf16.mxu0 0
    %5240 = vmatmul.mubr.bf16.gmra.mrb[0].mxu0 %v5124
    %v5241 = vpop.f32.mrb[0].mxu0
    %v5242 = vadd.f32 %v5202, %v5241
    %v5243 = vpop.f32.mrb[0].mxu0
    %v5244 = vpop.f32.mrb[0].mxu0
    %v5245 = vpop.f32.mrb[0].mxu0
    %5246 = vdwg.mxu0
    %v5247 = vadd.f32 %v5242, %v254
    %5248 = vmatprep.subr.bf16.mxu0 0
    %5249 = vmatpush1.bf16.msra.mxu0 %v954
    %5250 = vmatprep.subr.bf16.mxu0 0
    %5251 = vmatpush1.bf16.msra.mxu0 %v955
    %5252 = vmatprep.subr.bf16.mxu0 0
    %5253 = vmatpush1.bf16.msra.mxu0 0
    %5254 = vmatprep.subr.bf16.mxu0 0
    %5255 = vmatpush1.bf16.msra.mxu0 0
    %5256 = vmatprep.subr.bf16.mxu0 0
    %5257 = vmatpush1.bf16.msra.mxu0 0
    %5258 = vmatprep.subr.bf16.mxu0 0
    %5259 = vmatpush1.bf16.msra.mxu0 0
    %5260 = vmatprep.subr.bf16.mxu0 0
    %5261 = vmatpush1.bf16.msra.mxu0 0
    %5262 = vmatprep.subr.bf16.mxu0 0
    %5263 = vmatpush1.bf16.msra.mxu0 0
    %5264 = vmatprep.subr.bf16.mxu0 0
    %5265 = vmatpush1.bf16.msra.mxu0 0
    %5266 = vmatprep.subr.bf16.mxu0 0
    %5267 = vmatpush1.bf16.msra.mxu0 0
    %5268 = vmatprep.subr.bf16.mxu0 0
    %5269 = vmatpush1.bf16.msra.mxu0 0
    %5270 = vmatprep.subr.bf16.mxu0 0
    %5271 = vmatpush1.bf16.msra.mxu0 0
    %5272 = vmatprep.subr.bf16.mxu0 0
    %5273 = vmatpush1.bf16.msra.mxu0 0
    %5274 = vmatprep.subr.bf16.mxu0 0
    %5275 = vmatpush1.bf16.msra.mxu0 0
    %5276 = vmatprep.subr.bf16.mxu0 0
    %5277 = vmatpush1.bf16.msra.mxu0 0
    %5278 = vmatprep.subr.bf16.mxu0 0
    %5279 = vmatpush1.bf16.msra.mxu0 0
    %5280 = vmatprep.mubr.bf16.mxu0 0
    %5281 = vmatmul.mubr.bf16.gmra.mrb[0].mxu0 %v5081
    %v5282 = vpop.f32.mrb[0].mxu0
    %v5283 = vadd.f32 0.0, %v5282
    %v5284 = vpop.f32.mrb[0].mxu0
    %v5285 = vpop.f32.mrb[0].mxu0
    %v5286 = vpop.f32.mrb[0].mxu0
    %5287 = vdwg.mxu0
    %5288 = vmatprep.subr.bf16.mxu0 0
    %5289 = vmatpush1.bf16.msra.mxu0 %v1006
    %5290 = vmatprep.subr.bf16.mxu0 0
    %5291 = vmatpush1.bf16.msra.mxu0 %v1007
    %5292 = vmatprep.subr.bf16.mxu0 0
    %5293 = vmatpush1.bf16.msra.mxu0 0
    %5294 = vmatprep.subr.bf16.mxu0 0
    %5295 = vmatpush1.bf16.msra.mxu0 0
    %5296 = vmatprep.subr.bf16.mxu0 0
    %5297 = vmatpush1.bf16.msra.mxu0 0
    %5298 = vmatprep.subr.bf16.mxu0 0
    %5299 = vmatpush1.bf16.msra.mxu0 0
    %5300 = vmatprep.subr.bf16.mxu0 0
    %5301 = vmatpush1.bf16.msra.mxu0 0
    %5302 = vmatprep.subr.bf16.mxu0 0
    %5303 = vmatpush1.bf16.msra.mxu0 0
    %5304 = vmatprep.subr.bf16.mxu0 0
    %5305 = vmatpush1.bf16.msra.mxu0 0
    %5306 = vmatprep.subr.bf16.mxu0 0
    %5307 = vmatpush1.bf16.msra.mxu0 0
    %5308 = vmatprep.subr.bf16.mxu0 0
    %5309 = vmatpush1.bf16.msra.mxu0 0
    %5310 = vmatprep.subr.bf16.mxu0 0
    %5311 = vmatpush1.bf16.msra.mxu0 0
    %5312 = vmatprep.subr.bf16.mxu0 0
    %5313 = vmatpush1.bf16.msra.mxu0 0
    %5314 = vmatprep.subr.bf16.mxu0 0
    %5315 = vmatpush1.bf16.msra.mxu0 0
    %5316 = vmatprep.subr.bf16.mxu0 0
    %5317 = vmatpush1.bf16.msra.mxu0 0
    %5318 = vmatprep.subr.bf16.mxu0 0
    %5319 = vmatpush1.bf16.msra.mxu0 0
    %5320 = vmatprep.mubr.bf16.mxu0 0
    %5321 = vmatmul.mubr.bf16.gmra.mrb[0].mxu0 %v5124
    %v5322 = vpop.f32.mrb[0].mxu0
    %v5323 = vadd.f32 %v5283, %v5322
    %v5324 = vpop.f32.mrb[0].mxu0
    %v5325 = vpop.f32.mrb[0].mxu0
    %v5326 = vpop.f32.mrb[0].mxu0
    %5327 = vdwg.mxu0
    %v5328 = vadd.f32 %v5323, %v272
    %5329 = vmatprep.subr.bf16.mxu0 0
    %5330 = vmatpush1.bf16.msra.mxu0 %v1059
    %5331 = vmatprep.subr.bf16.mxu0 0
    %5332 = vmatpush1.bf16.msra.mxu0 %v1060
    %5333 = vmatprep.subr.bf16.mxu0 0
    %5334 = vmatpush1.bf16.msra.mxu0 0
    %5335 = vmatprep.subr.bf16.mxu0 0
    %5336 = vmatpush1.bf16.msra.mxu0 0
    %5337 = vmatprep.subr.bf16.mxu0 0
    %5338 = vmatpush1.bf16.msra.mxu0 0
    %5339 = vmatprep.subr.bf16.mxu0 0
    %5340 = vmatpush1.bf16.msra.mxu0 0
    %5341 = vmatprep.subr.bf16.mxu0 0
    %5342 = vmatpush1.bf16.msra.mxu0 0
    %5343 = vmatprep.subr.bf16.mxu0 0
    %5344 = vmatpush1.bf16.msra.mxu0 0
    %5345 = vmatprep.subr.bf16.mxu0 0
    %5346 = vmatpush1.bf16.msra.mxu0 0
    %5347 = vmatprep.subr.bf16.mxu0 0
    %5348 = vmatpush1.bf16.msra.mxu0 0
    %5349 = vmatprep.subr.bf16.mxu0 0
    %5350 = vmatpush1.bf16.msra.mxu0 0
    %5351 = vmatprep.subr.bf16.mxu0 0
    %5352 = vmatpush1.bf16.msra.mxu0 0
    %5353 = vmatprep.subr.bf16.mxu0 0
    %5354 = vmatpush1.bf16.msra.mxu0 0
    %5355 = vmatprep.subr.bf16.mxu0 0
    %5356 = vmatpush1.bf16.msra.mxu0 0
    %5357 = vmatprep.subr.bf16.mxu0 0
    %5358 = vmatpush1.bf16.msra.mxu0 0
    %5359 = vmatprep.subr.bf16.mxu0 0
    %5360 = vmatpush1.bf16.msra.mxu0 0
    %5361 = vmatprep.mubr.bf16.mxu0 0
    %5362 = vmatmul.mubr.bf16.gmra.mrb[0].mxu0 %v5081
    %v5363 = vpop.f32.mrb[0].mxu0
    %v5364 = vadd.f32 0.0, %v5363
    %v5365 = vpop.f32.mrb[0].mxu0
    %v5366 = vpop.f32.mrb[0].mxu0
    %v5367 = vpop.f32.mrb[0].mxu0
    %5368 = vdwg.mxu0
    %5369 = vmatprep.subr.bf16.mxu0 0
    %5370 = vmatpush1.bf16.msra.mxu0 %v1111
    %5371 = vmatprep.subr.bf16.mxu0 0
    %5372 = vmatpush1.bf16.msra.mxu0 %v1112
    %5373 = vmatprep.subr.bf16.mxu0 0
    %5374 = vmatpush1.bf16.msra.mxu0 0
    %5375 = vmatprep.subr.bf16.mxu0 0
    %5376 = vmatpush1.bf16.msra.mxu0 0
    %5377 = vmatprep.subr.bf16.mxu0 0
    %5378 = vmatpush1.bf16.msra.mxu0 0
    %5379 = vmatprep.subr.bf16.mxu0 0
    %5380 = vmatpush1.bf16.msra.mxu0 0
    %5381 = vmatprep.subr.bf16.mxu0 0
    %5382 = vmatpush1.bf16.msra.mxu0 0
    %5383 = vmatprep.subr.bf16.mxu0 0
    %5384 = vmatpush1.bf16.msra.mxu0 0
    %5385 = vmatprep.subr.bf16.mxu0 0
    %5386 = vmatpush1.bf16.msra.mxu0 0
    %5387 = vmatprep.subr.bf16.mxu0 0
    %5388 = vmatpush1.bf16.msra.mxu0 0
    %5389 = vmatprep.subr.bf16.mxu0 0
    %5390 = vmatpush1.bf16.msra.mxu0 0
    %5391 = vmatprep.subr.bf16.mxu0 0
    %5392 = vmatpush1.bf16.msra.mxu0 0
    %5393 = vmatprep.subr.bf16.mxu0 0
    %5394 = vmatpush1.bf16.msra.mxu0 0
    %5395 = vmatprep.subr.bf16.mxu0 0
    %5396 = vmatpush1.bf16.msra.mxu0 0
    %5397 = vmatprep.subr.bf16.mxu0 0
    %5398 = vmatpush1.bf16.msra.mxu0 0
    %5399 = vmatprep.subr.bf16.mxu0 0
    %5400 = vmatpush1.bf16.msra.mxu0 0
    %5401 = vmatprep.mubr.bf16.mxu0 0
    %5402 = vmatmul.mubr.bf16.gmra.mrb[0].mxu0 %v5124
    %v5403 = vpop.f32.mrb[0].mxu0
    %v5404 = vadd.f32 %v5364, %v5403
    %v5405 = vpop.f32.mrb[0].mxu0
    %v5406 = vpop.f32.mrb[0].mxu0
    %v5407 = vpop.f32.mrb[0].mxu0
    %5408 = vdwg.mxu0
    %v5409 = vadd.f32 %v5404, %v290
    %v5410 = vxor.u32 %v5166, 2147483648
    %v5411 = vmul.f32 %v5410, 1.442695
    %v5412 = vpow.pop %v5411
    %v5413 = vadd.f32 %v5412, 1.0
    %v5414 = vrcp.pop %v5413
    %v5415 = vmul.f32 1.0, %v5414
    %v5416 = vxor.u32 %v5247, 2147483648
    %v5417 = vmul.f32 %v5416, 1.442695
    %v5418 = vpow.pop %v5417
    %v5419 = vadd.f32 %v5418, 1.0
    %v5420 = vrcp.pop %v5419
    %v5421 = vmul.f32 1.0, %v5420
    %v5422 = vtanh.pop %v5328
    %v5423 = vxor.u32 %v5409, 2147483648
    %v5424 = vmul.f32 %v5423, 1.442695
    %v5425 = vpow.pop %v5424
    %v5426 = vadd.f32 %v5425, 1.0
    %v5427 = vrcp.pop %v5426
    %v5428 = vmul.f32 1.0, %v5427
    %v5429 = vmul.f32 %v5421, %v4722
    %v5430 = vmul.f32 %v5415, %v5422
    %v5431 = vadd.f32 %v5429, %v5430
    %v5432 = vtanh.pop %v5431
    %v5433 = vmul.f32 %v5428, %v5432
    %s5434 = scalar_lea.vmem [#allocation2], 28
    %v5435 = vld [vmem:[%s5434] sm:$0xf]
    %5436 = vmatprep.subr.bf16.mxu0 0
    %5437 = vmatpush1.bf16.msra.mxu0 %v308
    %5438 = vmatprep.subr.bf16.mxu0 0
    %5439 = vmatpush1.bf16.msra.mxu0 %v309
    %5440 = vmatprep.subr.bf16.mxu0 0
    %5441 = vmatpush1.bf16.msra.mxu0 0
    %5442 = vmatprep.subr.bf16.mxu0 0
    %5443 = vmatpush1.bf16.msra.mxu0 0
    %5444 = vmatprep.subr.bf16.mxu0 0
    %5445 = vmatpush1.bf16.msra.mxu0 0
    %5446 = vmatprep.subr.bf16.mxu0 0
    %5447 = vmatpush1.bf16.msra.mxu0 0
    %5448 = vmatprep.subr.bf16.mxu0 0
    %5449 = vmatpush1.bf16.msra.mxu0 0
    %5450 = vmatprep.subr.bf16.mxu0 0
    %5451 = vmatpush1.bf16.msra.mxu0 0
    %5452 = vmatprep.subr.bf16.mxu0 0
    %5453 = vmatpush1.bf16.msra.mxu0 0
    %5454 = vmatprep.subr.bf16.mxu0 0
    %5455 = vmatpush1.bf16.msra.mxu0 0
    %5456 = vmatprep.subr.bf16.mxu0 0
    %5457 = vmatpush1.bf16.msra.mxu0 0
    %5458 = vmatprep.subr.bf16.mxu0 0
    %5459 = vmatpush1.bf16.msra.mxu0 0
    %5460 = vmatprep.subr.bf16.mxu0 0
    %5461 = vmatpush1.bf16.msra.mxu0 0
    %5462 = vmatprep.subr.bf16.mxu0 0
    %5463 = vmatpush1.bf16.msra.mxu0 0
    %5464 = vmatprep.subr.bf16.mxu0 0
    %5465 = vmatpush1.bf16.msra.mxu0 0
    %5466 = vmatprep.subr.bf16.mxu0 0
    %5467 = vmatpush1.bf16.msra.mxu0 0
    %5468 = vmatprep.mubr.bf16.mxu0 0
    %5469 = vmatmul.mubr.bf16.gmra.mrb[0].mxu0 %v5124
    %v5470 = vpop.f32.mrb[0].mxu0
    %v5471 = vadd.f32 0.0, %v5470
    %v5472 = vpop.f32.mrb[0].mxu0
    %v5473 = vpop.f32.mrb[0].mxu0
    %v5474 = vpop.f32.mrb[0].mxu0
    %5475 = vdwg.mxu0
    %v5477 = vsel %vm362, %v5435, 0
    %5479 = vmatprep.subr.bf16.mxu0 0
    %5480 = vmatpush1.bf16.msra.mxu0 %v360
    %5481 = vmatprep.subr.bf16.mxu0 0
    %5482 = vmatpush1.bf16.msra.mxu0 0
    %5483 = vmatprep.subr.bf16.mxu0 0
    %5484 = vmatpush1.bf16.msra.mxu0 0
    %5485 = vmatprep.subr.bf16.mxu0 0
    %5486 = vmatpush1.bf16.msra.mxu0 0
    %5487 = vmatprep.subr.bf16.mxu0 0
    %5488 = vmatpush1.bf16.msra.mxu0 0
    %5489 = vmatprep.subr.bf16.mxu0 0
    %5490 = vmatpush1.bf16.msra.mxu0 0
    %5491 = vmatprep.subr.bf16.mxu0 0
    %5492 = vmatpush1.bf16.msra.mxu0 0
    %5493 = vmatprep.subr.bf16.mxu0 0
    %5494 = vmatpush1.bf16.msra.mxu0 0
    %5495 = vmatprep.subr.bf16.mxu0 0
    %5496 = vmatpush1.bf16.msra.mxu0 0
    %5497 = vmatprep.subr.bf16.mxu0 0
    %5498 = vmatpush1.bf16.msra.mxu0 0
    %5499 = vmatprep.subr.bf16.mxu0 0
    %5500 = vmatpush1.bf16.msra.mxu0 0
    %5501 = vmatprep.subr.bf16.mxu0 0
    %5502 = vmatpush1.bf16.msra.mxu0 0
    %5503 = vmatprep.subr.bf16.mxu0 0
    %5504 = vmatpush1.bf16.msra.mxu0 0
    %5505 = vmatprep.subr.bf16.mxu0 0
    %5506 = vmatpush1.bf16.msra.mxu0 0
    %5507 = vmatprep.subr.bf16.mxu0 0
    %5508 = vmatpush1.bf16.msra.mxu0 0
    %5509 = vmatprep.subr.bf16.mxu0 0
    %5510 = vmatpush1.bf16.msra.mxu0 0
    %5511 = vmatprep.mubr.bf16.mxu0 0
    %5512 = vmatmul.mubr.bf16.gmra.mrb[0].mxu0 %v5477
    %v5513 = vpop.f32.mrb[0].mxu0
    %v5514 = vadd.f32 %v5471, %v5513
    %v5515 = vpop.f32.mrb[0].mxu0
    %v5516 = vpop.f32.mrb[0].mxu0
    %v5517 = vpop.f32.mrb[0].mxu0
    %5518 = vdwg.mxu0
    %v5519 = vadd.f32 %v5514, %v173
    %5520 = vmatprep.subr.bf16.mxu0 0
    %5521 = vmatpush1.bf16.msra.mxu0 %v415
    %5522 = vmatprep.subr.bf16.mxu0 0
    %5523 = vmatpush1.bf16.msra.mxu0 %v416
    %5524 = vmatprep.subr.bf16.mxu0 0
    %5525 = vmatpush1.bf16.msra.mxu0 0
    %5526 = vmatprep.subr.bf16.mxu0 0
    %5527 = vmatpush1.bf16.msra.mxu0 0
    %5528 = vmatprep.subr.bf16.mxu0 0
    %5529 = vmatpush1.bf16.msra.mxu0 0
    %5530 = vmatprep.subr.bf16.mxu0 0
    %5531 = vmatpush1.bf16.msra.mxu0 0
    %5532 = vmatprep.subr.bf16.mxu0 0
    %5533 = vmatpush1.bf16.msra.mxu0 0
    %5534 = vmatprep.subr.bf16.mxu0 0
    %5535 = vmatpush1.bf16.msra.mxu0 0
    %5536 = vmatprep.subr.bf16.mxu0 0
    %5537 = vmatpush1.bf16.msra.mxu0 0
    %5538 = vmatprep.subr.bf16.mxu0 0
    %5539 = vmatpush1.bf16.msra.mxu0 0
    %5540 = vmatprep.subr.bf16.mxu0 0
    %5541 = vmatpush1.bf16.msra.mxu0 0
    %5542 = vmatprep.subr.bf16.mxu0 0
    %5543 = vmatpush1.bf16.msra.mxu0 0
    %5544 = vmatprep.subr.bf16.mxu0 0
    %5545 = vmatpush1.bf16.msra.mxu0 0
    %5546 = vmatprep.subr.bf16.mxu0 0
    %5547 = vmatpush1.bf16.msra.mxu0 0
    %5548 = vmatprep.subr.bf16.mxu0 0
    %5549 = vmatpush1.bf16.msra.mxu0 0
    %5550 = vmatprep.subr.bf16.mxu0 0
    %5551 = vmatpush1.bf16.msra.mxu0 0
    %5552 = vmatprep.mubr.bf16.mxu0 0
    %5553 = vmatmul.mubr.bf16.gmra.mrb[0].mxu0 %v5124
    %v5554 = vpop.f32.mrb[0].mxu0
    %v5555 = vadd.f32 0.0, %v5554
    %v5556 = vpop.f32.mrb[0].mxu0
    %v5557 = vpop.f32.mrb[0].mxu0
    %v5558 = vpop.f32.mrb[0].mxu0
    %5559 = vdwg.mxu0
    %5560 = vmatprep.subr.bf16.mxu0 0
    %5561 = vmatpush1.bf16.msra.mxu0 %v463
    %5562 = vmatprep.subr.bf16.mxu0 0
    %5563 = vmatpush1.bf16.msra.mxu0 0
    %5564 = vmatprep.subr.bf16.mxu0 0
    %5565 = vmatpush1.bf16.msra.mxu0 0
    %5566 = vmatprep.subr.bf16.mxu0 0
    %5567 = vmatpush1.bf16.msra.mxu0 0
    %5568 = vmatprep.subr.bf16.mxu0 0
    %5569 = vmatpush1.bf16.msra.mxu0 0
    %5570 = vmatprep.subr.bf16.mxu0 0
    %5571 = vmatpush1.bf16.msra.mxu0 0
    %5572 = vmatprep.subr.bf16.mxu0 0
    %5573 = vmatpush1.bf16.msra.mxu0 0
    %5574 = vmatprep.subr.bf16.mxu0 0
    %5575 = vmatpush1.bf16.msra.mxu0 0
    %5576 = vmatprep.subr.bf16.mxu0 0
    %5577 = vmatpush1.bf16.msra.mxu0 0
    %5578 = vmatprep.subr.bf16.mxu0 0
    %5579 = vmatpush1.bf16.msra.mxu0 0
    %5580 = vmatprep.subr.bf16.mxu0 0
    %5581 = vmatpush1.bf16.msra.mxu0 0
    %5582 = vmatprep.subr.bf16.mxu0 0
    %5583 = vmatpush1.bf16.msra.mxu0 0
    %5584 = vmatprep.subr.bf16.mxu0 0
    %5585 = vmatpush1.bf16.msra.mxu0 0
    %5586 = vmatprep.subr.bf16.mxu0 0
    %5587 = vmatpush1.bf16.msra.mxu0 0
    %5588 = vmatprep.subr.bf16.mxu0 0
    %5589 = vmatpush1.bf16.msra.mxu0 0
    %5590 = vmatprep.subr.bf16.mxu0 0
    %5591 = vmatpush1.bf16.msra.mxu0 0
    %5592 = vmatprep.mubr.bf16.mxu0 0
    %5593 = vmatmul.mubr.bf16.gmra.mrb[0].mxu0 %v5477
    %v5594 = vpop.f32.mrb[0].mxu0
    %v5595 = vadd.f32 %v5555, %v5594
    %v5596 = vpop.f32.mrb[0].mxu0
    %v5597 = vpop.f32.mrb[0].mxu0
    %v5598 = vpop.f32.mrb[0].mxu0
    %5599 = vdwg.mxu0
    %v5600 = vadd.f32 %v5595, %v189
    %5601 = vmatprep.subr.bf16.mxu0 0
    %5602 = vmatpush1.bf16.msra.mxu0 %v514
    %5603 = vmatprep.subr.bf16.mxu0 0
    %5604 = vmatpush1.bf16.msra.mxu0 %v515
    %5605 = vmatprep.subr.bf16.mxu0 0
    %5606 = vmatpush1.bf16.msra.mxu0 0
    %5607 = vmatprep.subr.bf16.mxu0 0
    %5608 = vmatpush1.bf16.msra.mxu0 0
    %5609 = vmatprep.subr.bf16.mxu0 0
    %5610 = vmatpush1.bf16.msra.mxu0 0
    %5611 = vmatprep.subr.bf16.mxu0 0
    %5612 = vmatpush1.bf16.msra.mxu0 0
    %5613 = vmatprep.subr.bf16.mxu0 0
    %5614 = vmatpush1.bf16.msra.mxu0 0
    %5615 = vmatprep.subr.bf16.mxu0 0
    %5616 = vmatpush1.bf16.msra.mxu0 0
    %5617 = vmatprep.subr.bf16.mxu0 0
    %5618 = vmatpush1.bf16.msra.mxu0 0
    %5619 = vmatprep.subr.bf16.mxu0 0
    %5620 = vmatpush1.bf16.msra.mxu0 0
    %5621 = vmatprep.subr.bf16.mxu0 0
    %5622 = vmatpush1.bf16.msra.mxu0 0
    %5623 = vmatprep.subr.bf16.mxu0 0
    %5624 = vmatpush1.bf16.msra.mxu0 0
    %5625 = vmatprep.subr.bf16.mxu0 0
    %5626 = vmatpush1.bf16.msra.mxu0 0
    %5627 = vmatprep.subr.bf16.mxu0 0
    %5628 = vmatpush1.bf16.msra.mxu0 0
    %5629 = vmatprep.subr.bf16.mxu0 0
    %5630 = vmatpush1.bf16.msra.mxu0 0
    %5631 = vmatprep.subr.bf16.mxu0 0
    %5632 = vmatpush1.bf16.msra.mxu0 0
    %5633 = vmatprep.mubr.bf16.mxu0 0
    %5634 = vmatmul.mubr.bf16.gmra.mrb[0].mxu0 %v5124
    %v5635 = vpop.f32.mrb[0].mxu0
    %v5636 = vadd.f32 0.0, %v5635
    %v5637 = vpop.f32.mrb[0].mxu0
    %v5638 = vpop.f32.mrb[0].mxu0
    %v5639 = vpop.f32.mrb[0].mxu0
    %5640 = vdwg.mxu0
    %5641 = vmatprep.subr.bf16.mxu0 0
    %5642 = vmatpush1.bf16.msra.mxu0 %v562
    %5643 = vmatprep.subr.bf16.mxu0 0
    %5644 = vmatpush1.bf16.msra.mxu0 0
    %5645 = vmatprep.subr.bf16.mxu0 0
    %5646 = vmatpush1.bf16.msra.mxu0 0
    %5647 = vmatprep.subr.bf16.mxu0 0
    %5648 = vmatpush1.bf16.msra.mxu0 0
    %5649 = vmatprep.subr.bf16.mxu0 0
    %5650 = vmatpush1.bf16.msra.mxu0 0
    %5651 = vmatprep.subr.bf16.mxu0 0
    %5652 = vmatpush1.bf16.msra.mxu0 0
    %5653 = vmatprep.subr.bf16.mxu0 0
    %5654 = vmatpush1.bf16.msra.mxu0 0
    %5655 = vmatprep.subr.bf16.mxu0 0
    %5656 = vmatpush1.bf16.msra.mxu0 0
    %5657 = vmatprep.subr.bf16.mxu0 0
    %5658 = vmatpush1.bf16.msra.mxu0 0
    %5659 = vmatprep.subr.bf16.mxu0 0
    %5660 = vmatpush1.bf16.msra.mxu0 0
    %5661 = vmatprep.subr.bf16.mxu0 0
    %5662 = vmatpush1.bf16.msra.mxu0 0
    %5663 = vmatprep.subr.bf16.mxu0 0
    %5664 = vmatpush1.bf16.msra.mxu0 0
    %5665 = vmatprep.subr.bf16.mxu0 0
    %5666 = vmatpush1.bf16.msra.mxu0 0
    %5667 = vmatprep.subr.bf16.mxu0 0
    %5668 = vmatpush1.bf16.msra.mxu0 0
    %5669 = vmatprep.subr.bf16.mxu0 0
    %5670 = vmatpush1.bf16.msra.mxu0 0
    %5671 = vmatprep.subr.bf16.mxu0 0
    %5672 = vmatpush1.bf16.msra.mxu0 0
    %5673 = vmatprep.mubr.bf16.mxu0 0
    %5674 = vmatmul.mubr.bf16.gmra.mrb[0].mxu0 %v5477
    %v5675 = vpop.f32.mrb[0].mxu0
    %v5676 = vadd.f32 %v5636, %v5675
    %v5677 = vpop.f32.mrb[0].mxu0
    %v5678 = vpop.f32.mrb[0].mxu0
    %v5679 = vpop.f32.mrb[0].mxu0
    %5680 = vdwg.mxu0
    %v5681 = vadd.f32 %v5676, %v205
    %5682 = vmatprep.subr.bf16.mxu0 0
    %5683 = vmatpush1.bf16.msra.mxu0 %v613
    %5684 = vmatprep.subr.bf16.mxu0 0
    %5685 = vmatpush1.bf16.msra.mxu0 %v614
    %5686 = vmatprep.subr.bf16.mxu0 0
    %5687 = vmatpush1.bf16.msra.mxu0 0
    %5688 = vmatprep.subr.bf16.mxu0 0
    %5689 = vmatpush1.bf16.msra.mxu0 0
    %5690 = vmatprep.subr.bf16.mxu0 0
    %5691 = vmatpush1.bf16.msra.mxu0 0
    %5692 = vmatprep.subr.bf16.mxu0 0
    %5693 = vmatpush1.bf16.msra.mxu0 0
    %5694 = vmatprep.subr.bf16.mxu0 0
    %5695 = vmatpush1.bf16.msra.mxu0 0
    %5696 = vmatprep.subr.bf16.mxu0 0
    %5697 = vmatpush1.bf16.msra.mxu0 0
    %5698 = vmatprep.subr.bf16.mxu0 0
    %5699 = vmatpush1.bf16.msra.mxu0 0
    %5700 = vmatprep.subr.bf16.mxu0 0
    %5701 = vmatpush1.bf16.msra.mxu0 0
    %5702 = vmatprep.subr.bf16.mxu0 0
    %5703 = vmatpush1.bf16.msra.mxu0 0
    %5704 = vmatprep.subr.bf16.mxu0 0
    %5705 = vmatpush1.bf16.msra.mxu0 0
    %5706 = vmatprep.subr.bf16.mxu0 0
    %5707 = vmatpush1.bf16.msra.mxu0 0
    %5708 = vmatprep.subr.bf16.mxu0 0
    %5709 = vmatpush1.bf16.msra.mxu0 0
    %5710 = vmatprep.subr.bf16.mxu0 0
    %5711 = vmatpush1.bf16.msra.mxu0 0
    %5712 = vmatprep.subr.bf16.mxu0 0
    %5713 = vmatpush1.bf16.msra.mxu0 0
    %5714 = vmatprep.mubr.bf16.mxu0 0
    %5715 = vmatmul.mubr.bf16.gmra.mrb[0].mxu0 %v5124
    %v5716 = vpop.f32.mrb[0].mxu0
    %v5717 = vadd.f32 0.0, %v5716
    %v5718 = vpop.f32.mrb[0].mxu0
    %v5719 = vpop.f32.mrb[0].mxu0
    %v5720 = vpop.f32.mrb[0].mxu0
    %5721 = vdwg.mxu0
    %5722 = vmatprep.subr.bf16.mxu0 0
    %5723 = vmatpush1.bf16.msra.mxu0 %v661
    %5724 = vmatprep.subr.bf16.mxu0 0
    %5725 = vmatpush1.bf16.msra.mxu0 0
    %5726 = vmatprep.subr.bf16.mxu0 0
    %5727 = vmatpush1.bf16.msra.mxu0 0
    %5728 = vmatprep.subr.bf16.mxu0 0
    %5729 = vmatpush1.bf16.msra.mxu0 0
    %5730 = vmatprep.subr.bf16.mxu0 0
    %5731 = vmatpush1.bf16.msra.mxu0 0
    %5732 = vmatprep.subr.bf16.mxu0 0
    %5733 = vmatpush1.bf16.msra.mxu0 0
    %5734 = vmatprep.subr.bf16.mxu0 0
    %5735 = vmatpush1.bf16.msra.mxu0 0
    %5736 = vmatprep.subr.bf16.mxu0 0
    %5737 = vmatpush1.bf16.msra.mxu0 0
    %5738 = vmatprep.subr.bf16.mxu0 0
    %5739 = vmatpush1.bf16.msra.mxu0 0
    %5740 = vmatprep.subr.bf16.mxu0 0
    %5741 = vmatpush1.bf16.msra.mxu0 0
    %5742 = vmatprep.subr.bf16.mxu0 0
    %5743 = vmatpush1.bf16.msra.mxu0 0
    %5744 = vmatprep.subr.bf16.mxu0 0
    %5745 = vmatpush1.bf16.msra.mxu0 0
    %5746 = vmatprep.subr.bf16.mxu0 0
    %5747 = vmatpush1.bf16.msra.mxu0 0
    %5748 = vmatprep.subr.bf16.mxu0 0
    %5749 = vmatpush1.bf16.msra.mxu0 0
    %5750 = vmatprep.subr.bf16.mxu0 0
    %5751 = vmatpush1.bf16.msra.mxu0 0
    %5752 = vmatprep.subr.bf16.mxu0 0
    %5753 = vmatpush1.bf16.msra.mxu0 0
    %5754 = vmatprep.mubr.bf16.mxu0 0
    %5755 = vmatmul.mubr.bf16.gmra.mrb[0].mxu0 %v5477
    %v5756 = vpop.f32.mrb[0].mxu0
    %v5757 = vadd.f32 %v5717, %v5756
    %v5758 = vpop.f32.mrb[0].mxu0
    %v5759 = vpop.f32.mrb[0].mxu0
    %v5760 = vpop.f32.mrb[0].mxu0
    %5761 = vdwg.mxu0
    %v5762 = vadd.f32 %v5757, %v221
    %v5763 = vxor.u32 %v5519, 2147483648
    %v5764 = vmul.f32 %v5763, 1.442695
    %v5765 = vpow.pop %v5764
    %v5766 = vadd.f32 %v5765, 1.0
    %v5767 = vrcp.pop %v5766
    %v5768 = vmul.f32 1.0, %v5767
    %v5769 = vxor.u32 %v5600, 2147483648
    %v5770 = vmul.f32 %v5769, 1.442695
    %v5771 = vpow.pop %v5770
    %v5772 = vadd.f32 %v5771, 1.0
    %v5773 = vrcp.pop %v5772
    %v5774 = vmul.f32 1.0, %v5773
    %v5775 = vtanh.pop %v5681
    %v5776 = vxor.u32 %v5762, 2147483648
    %v5777 = vmul.f32 %v5776, 1.442695
    %v5778 = vpow.pop %v5777
    %v5779 = vadd.f32 %v5778, 1.0
    %v5780 = vrcp.pop %v5779
    %v5781 = vmul.f32 1.0, %v5780
    %v5782 = vmul.f32 %v5774, %v5075
    %v5783 = vmul.f32 %v5768, %v5775
    %v5784 = vadd.f32 %v5782, %v5783
    %v5785 = vtanh.pop %v5784
    %v5786 = vmul.f32 %v5781, %v5785
    %v5787 = vpack.c.bf16 %v5786, %v5786
    %v5788 = vpack.c.bf16 %v5433, %v5433
    %v5790 = vsel %vm312, %v5788, 0
    %5792 = vmatprep.subr.bf16.mxu0 0
    %5793 = vmatpush1.bf16.msra.mxu0 %v738
    %5794 = vmatprep.subr.bf16.mxu0 0
    %5795 = vmatpush1.bf16.msra.mxu0 %v739
    %5796 = vmatprep.subr.bf16.mxu0 0
    %5797 = vmatpush1.bf16.msra.mxu0 0
    %5798 = vmatprep.subr.bf16.mxu0 0
    %5799 = vmatpush1.bf16.msra.mxu0 0
    %5800 = vmatprep.subr.bf16.mxu0 0
    %5801 = vmatpush1.bf16.msra.mxu0 0
    %5802 = vmatprep.subr.bf16.mxu0 0
    %5803 = vmatpush1.bf16.msra.mxu0 0
    %5804 = vmatprep.subr.bf16.mxu0 0
    %5805 = vmatpush1.bf16.msra.mxu0 0
    %5806 = vmatprep.subr.bf16.mxu0 0
    %5807 = vmatpush1.bf16.msra.mxu0 0
    %5808 = vmatprep.subr.bf16.mxu0 0
    %5809 = vmatpush1.bf16.msra.mxu0 0
    %5810 = vmatprep.subr.bf16.mxu0 0
    %5811 = vmatpush1.bf16.msra.mxu0 0
    %5812 = vmatprep.subr.bf16.mxu0 0
    %5813 = vmatpush1.bf16.msra.mxu0 0
    %5814 = vmatprep.subr.bf16.mxu0 0
    %5815 = vmatpush1.bf16.msra.mxu0 0
    %5816 = vmatprep.subr.bf16.mxu0 0
    %5817 = vmatpush1.bf16.msra.mxu0 0
    %5818 = vmatprep.subr.bf16.mxu0 0
    %5819 = vmatpush1.bf16.msra.mxu0 0
    %5820 = vmatprep.subr.bf16.mxu0 0
    %5821 = vmatpush1.bf16.msra.mxu0 0
    %5822 = vmatprep.subr.bf16.mxu0 0
    %5823 = vmatpush1.bf16.msra.mxu0 0
    %5824 = vmatprep.mubr.bf16.mxu0 0
    %5825 = vmatmul.mubr.bf16.gmra.mrb[0].mxu0 %v5790
    %v5826 = vpop.f32.mrb[0].mxu0
    %v5827 = vadd.f32 0.0, %v5826
    %v5828 = vpop.f32.mrb[0].mxu0
    %v5829 = vpop.f32.mrb[0].mxu0
    %v5830 = vpop.f32.mrb[0].mxu0
    %5831 = vdwg.mxu0
    %v5833 = vsel %vm312, %v5787, 0
    %5835 = vmatprep.subr.bf16.mxu0 0
    %5836 = vmatpush1.bf16.msra.mxu0 %v793
    %5837 = vmatprep.subr.bf16.mxu0 0
    %5838 = vmatpush1.bf16.msra.mxu0 %v794
    %5839 = vmatprep.subr.bf16.mxu0 0
    %5840 = vmatpush1.bf16.msra.mxu0 0
    %5841 = vmatprep.subr.bf16.mxu0 0
    %5842 = vmatpush1.bf16.msra.mxu0 0
    %5843 = vmatprep.subr.bf16.mxu0 0
    %5844 = vmatpush1.bf16.msra.mxu0 0
    %5845 = vmatprep.subr.bf16.mxu0 0
    %5846 = vmatpush1.bf16.msra.mxu0 0
    %5847 = vmatprep.subr.bf16.mxu0 0
    %5848 = vmatpush1.bf16.msra.mxu0 0
    %5849 = vmatprep.subr.bf16.mxu0 0
    %5850 = vmatpush1.bf16.msra.mxu0 0
    %5851 = vmatprep.subr.bf16.mxu0 0
    %5852 = vmatpush1.bf16.msra.mxu0 0
    %5853 = vmatprep.subr.bf16.mxu0 0
    %5854 = vmatpush1.bf16.msra.mxu0 0
    %5855 = vmatprep.subr.bf16.mxu0 0
    %5856 = vmatpush1.bf16.msra.mxu0 0
    %5857 = vmatprep.subr.bf16.mxu0 0
    %5858 = vmatpush1.bf16.msra.mxu0 0
    %5859 = vmatprep.subr.bf16.mxu0 0
    %5860 = vmatpush1.bf16.msra.mxu0 0
    %5861 = vmatprep.subr.bf16.mxu0 0
    %5862 = vmatpush1.bf16.msra.mxu0 0
    %5863 = vmatprep.subr.bf16.mxu0 0
    %5864 = vmatpush1.bf16.msra.mxu0 0
    %5865 = vmatprep.subr.bf16.mxu0 0
    %5866 = vmatpush1.bf16.msra.mxu0 0
    %5867 = vmatprep.mubr.bf16.mxu0 0
    %5868 = vmatmul.mubr.bf16.gmra.mrb[0].mxu0 %v5833
    %v5869 = vpop.f32.mrb[0].mxu0
    %v5870 = vadd.f32 %v5827, %v5869
    %v5871 = vpop.f32.mrb[0].mxu0
    %v5872 = vpop.f32.mrb[0].mxu0
    %v5873 = vpop.f32.mrb[0].mxu0
    %5874 = vdwg.mxu0
    %v5875 = vadd.f32 %v5870, %v236
    %5876 = vmatprep.subr.bf16.mxu0 0
    %5877 = vmatpush1.bf16.msra.mxu0 %v849
    %5878 = vmatprep.subr.bf16.mxu0 0
    %5879 = vmatpush1.bf16.msra.mxu0 %v850
    %5880 = vmatprep.subr.bf16.mxu0 0
    %5881 = vmatpush1.bf16.msra.mxu0 0
    %5882 = vmatprep.subr.bf16.mxu0 0
    %5883 = vmatpush1.bf16.msra.mxu0 0
    %5884 = vmatprep.subr.bf16.mxu0 0
    %5885 = vmatpush1.bf16.msra.mxu0 0
    %5886 = vmatprep.subr.bf16.mxu0 0
    %5887 = vmatpush1.bf16.msra.mxu0 0
    %5888 = vmatprep.subr.bf16.mxu0 0
    %5889 = vmatpush1.bf16.msra.mxu0 0
    %5890 = vmatprep.subr.bf16.mxu0 0
    %5891 = vmatpush1.bf16.msra.mxu0 0
    %5892 = vmatprep.subr.bf16.mxu0 0
    %5893 = vmatpush1.bf16.msra.mxu0 0
    %5894 = vmatprep.subr.bf16.mxu0 0
    %5895 = vmatpush1.bf16.msra.mxu0 0
    %5896 = vmatprep.subr.bf16.mxu0 0
    %5897 = vmatpush1.bf16.msra.mxu0 0
    %5898 = vmatprep.subr.bf16.mxu0 0
    %5899 = vmatpush1.bf16.msra.mxu0 0
    %5900 = vmatprep.subr.bf16.mxu0 0
    %5901 = vmatpush1.bf16.msra.mxu0 0
    %5902 = vmatprep.subr.bf16.mxu0 0
    %5903 = vmatpush1.bf16.msra.mxu0 0
    %5904 = vmatprep.subr.bf16.mxu0 0
    %5905 = vmatpush1.bf16.msra.mxu0 0
    %5906 = vmatprep.subr.bf16.mxu0 0
    %5907 = vmatpush1.bf16.msra.mxu0 0
    %5908 = vmatprep.mubr.bf16.mxu0 0
    %5909 = vmatmul.mubr.bf16.gmra.mrb[0].mxu0 %v5790
    %v5910 = vpop.f32.mrb[0].mxu0
    %v5911 = vadd.f32 0.0, %v5910
    %v5912 = vpop.f32.mrb[0].mxu0
    %v5913 = vpop.f32.mrb[0].mxu0
    %v5914 = vpop.f32.mrb[0].mxu0
    %5915 = vdwg.mxu0
    %5916 = vmatprep.subr.bf16.mxu0 0
    %5917 = vmatpush1.bf16.msra.mxu0 %v901
    %5918 = vmatprep.subr.bf16.mxu0 0
    %5919 = vmatpush1.bf16.msra.mxu0 %v902
    %5920 = vmatprep.subr.bf16.mxu0 0
    %5921 = vmatpush1.bf16.msra.mxu0 0
    %5922 = vmatprep.subr.bf16.mxu0 0
    %5923 = vmatpush1.bf16.msra.mxu0 0
    %5924 = vmatprep.subr.bf16.mxu0 0
    %5925 = vmatpush1.bf16.msra.mxu0 0
    %5926 = vmatprep.subr.bf16.mxu0 0
    %5927 = vmatpush1.bf16.msra.mxu0 0
    %5928 = vmatprep.subr.bf16.mxu0 0
    %5929 = vmatpush1.bf16.msra.mxu0 0
    %5930 = vmatprep.subr.bf16.mxu0 0
    %5931 = vmatpush1.bf16.msra.mxu0 0
    %5932 = vmatprep.subr.bf16.mxu0 0
    %5933 = vmatpush1.bf16.msra.mxu0 0
    %5934 = vmatprep.subr.bf16.mxu0 0
    %5935 = vmatpush1.bf16.msra.mxu0 0
    %5936 = vmatprep.subr.bf16.mxu0 0
    %5937 = vmatpush1.bf16.msra.mxu0 0
    %5938 = vmatprep.subr.bf16.mxu0 0
    %5939 = vmatpush1.bf16.msra.mxu0 0
    %5940 = vmatprep.subr.bf16.mxu0 0
    %5941 = vmatpush1.bf16.msra.mxu0 0
    %5942 = vmatprep.subr.bf16.mxu0 0
    %5943 = vmatpush1.bf16.msra.mxu0 0
    %5944 = vmatprep.subr.bf16.mxu0 0
    %5945 = vmatpush1.bf16.msra.mxu0 0
    %5946 = vmatprep.subr.bf16.mxu0 0
    %5947 = vmatpush1.bf16.msra.mxu0 0
    %5948 = vmatprep.mubr.bf16.mxu0 0
    %5949 = vmatmul.mubr.bf16.gmra.mrb[0].mxu0 %v5833
    %v5950 = vpop.f32.mrb[0].mxu0
    %v5951 = vadd.f32 %v5911, %v5950
    %v5952 = vpop.f32.mrb[0].mxu0
    %v5953 = vpop.f32.mrb[0].mxu0
    %v5954 = vpop.f32.mrb[0].mxu0
    %5955 = vdwg.mxu0
    %v5956 = vadd.f32 %v5951, %v254
    %5957 = vmatprep.subr.bf16.mxu0 0
    %5958 = vmatpush1.bf16.msra.mxu0 %v954
    %5959 = vmatprep.subr.bf16.mxu0 0
    %5960 = vmatpush1.bf16.msra.mxu0 %v955
    %5961 = vmatprep.subr.bf16.mxu0 0
    %5962 = vmatpush1.bf16.msra.mxu0 0
    %5963 = vmatprep.subr.bf16.mxu0 0
    %5964 = vmatpush1.bf16.msra.mxu0 0
    %5965 = vmatprep.subr.bf16.mxu0 0
    %5966 = vmatpush1.bf16.msra.mxu0 0
    %5967 = vmatprep.subr.bf16.mxu0 0
    %5968 = vmatpush1.bf16.msra.mxu0 0
    %5969 = vmatprep.subr.bf16.mxu0 0
    %5970 = vmatpush1.bf16.msra.mxu0 0
    %5971 = vmatprep.subr.bf16.mxu0 0
    %5972 = vmatpush1.bf16.msra.mxu0 0
    %5973 = vmatprep.subr.bf16.mxu0 0
    %5974 = vmatpush1.bf16.msra.mxu0 0
    %5975 = vmatprep.subr.bf16.mxu0 0
    %5976 = vmatpush1.bf16.msra.mxu0 0
    %5977 = vmatprep.subr.bf16.mxu0 0
    %5978 = vmatpush1.bf16.msra.mxu0 0
    %5979 = vmatprep.subr.bf16.mxu0 0
    %5980 = vmatpush1.bf16.msra.mxu0 0
    %5981 = vmatprep.subr.bf16.mxu0 0
    %5982 = vmatpush1.bf16.msra.mxu0 0
    %5983 = vmatprep.subr.bf16.mxu0 0
    %5984 = vmatpush1.bf16.msra.mxu0 0
    %5985 = vmatprep.subr.bf16.mxu0 0
    %5986 = vmatpush1.bf16.msra.mxu0 0
    %5987 = vmatprep.subr.bf16.mxu0 0
    %5988 = vmatpush1.bf16.msra.mxu0 0
    %5989 = vmatprep.mubr.bf16.mxu0 0
    %5990 = vmatmul.mubr.bf16.gmra.mrb[0].mxu0 %v5790
    %v5991 = vpop.f32.mrb[0].mxu0
    %v5992 = vadd.f32 0.0, %v5991
    %v5993 = vpop.f32.mrb[0].mxu0
    %v5994 = vpop.f32.mrb[0].mxu0
    %v5995 = vpop.f32.mrb[0].mxu0
    %5996 = vdwg.mxu0
    %5997 = vmatprep.subr.bf16.mxu0 0
    %5998 = vmatpush1.bf16.msra.mxu0 %v1006
    %5999 = vmatprep.subr.bf16.mxu0 0
    %6000 = vmatpush1.bf16.msra.mxu0 %v1007
    %6001 = vmatprep.subr.bf16.mxu0 0
    %6002 = vmatpush1.bf16.msra.mxu0 0
    %6003 = vmatprep.subr.bf16.mxu0 0
    %6004 = vmatpush1.bf16.msra.mxu0 0
    %6005 = vmatprep.subr.bf16.mxu0 0
    %6006 = vmatpush1.bf16.msra.mxu0 0
    %6007 = vmatprep.subr.bf16.mxu0 0
    %6008 = vmatpush1.bf16.msra.mxu0 0
    %6009 = vmatprep.subr.bf16.mxu0 0
    %6010 = vmatpush1.bf16.msra.mxu0 0
    %6011 = vmatprep.subr.bf16.mxu0 0
    %6012 = vmatpush1.bf16.msra.mxu0 0
    %6013 = vmatprep.subr.bf16.mxu0 0
    %6014 = vmatpush1.bf16.msra.mxu0 0
    %6015 = vmatprep.subr.bf16.mxu0 0
    %6016 = vmatpush1.bf16.msra.mxu0 0
    %6017 = vmatprep.subr.bf16.mxu0 0
    %6018 = vmatpush1.bf16.msra.mxu0 0
    %6019 = vmatprep.subr.bf16.mxu0 0
    %6020 = vmatpush1.bf16.msra.mxu0 0
    %6021 = vmatprep.subr.bf16.mxu0 0
    %6022 = vmatpush1.bf16.msra.mxu0 0
    %6023 = vmatprep.subr.bf16.mxu0 0
    %6024 = vmatpush1.bf16.msra.mxu0 0
    %6025 = vmatprep.subr.bf16.mxu0 0
    %6026 = vmatpush1.bf16.msra.mxu0 0
    %6027 = vmatprep.subr.bf16.mxu0 0
    %6028 = vmatpush1.bf16.msra.mxu0 0
    %6029 = vmatprep.mubr.bf16.mxu0 0
    %6030 = vmatmul.mubr.bf16.gmra.mrb[0].mxu0 %v5833
    %v6031 = vpop.f32.mrb[0].mxu0
    %v6032 = vadd.f32 %v5992, %v6031
    %v6033 = vpop.f32.mrb[0].mxu0
    %v6034 = vpop.f32.mrb[0].mxu0
    %v6035 = vpop.f32.mrb[0].mxu0
    %6036 = vdwg.mxu0
    %v6037 = vadd.f32 %v6032, %v272
    %6038 = vmatprep.subr.bf16.mxu0 0
    %6039 = vmatpush1.bf16.msra.mxu0 %v1059
    %6040 = vmatprep.subr.bf16.mxu0 0
    %6041 = vmatpush1.bf16.msra.mxu0 %v1060
    %6042 = vmatprep.subr.bf16.mxu0 0
    %6043 = vmatpush1.bf16.msra.mxu0 0
    %6044 = vmatprep.subr.bf16.mxu0 0
    %6045 = vmatpush1.bf16.msra.mxu0 0
    %6046 = vmatprep.subr.bf16.mxu0 0
    %6047 = vmatpush1.bf16.msra.mxu0 0
    %6048 = vmatprep.subr.bf16.mxu0 0
    %6049 = vmatpush1.bf16.msra.mxu0 0
    %6050 = vmatprep.subr.bf16.mxu0 0
    %6051 = vmatpush1.bf16.msra.mxu0 0
    %6052 = vmatprep.subr.bf16.mxu0 0
    %6053 = vmatpush1.bf16.msra.mxu0 0
    %6054 = vmatprep.subr.bf16.mxu0 0
    %6055 = vmatpush1.bf16.msra.mxu0 0
    %6056 = vmatprep.subr.bf16.mxu0 0
    %6057 = vmatpush1.bf16.msra.mxu0 0
    %6058 = vmatprep.subr.bf16.mxu0 0
    %6059 = vmatpush1.bf16.msra.mxu0 0
    %6060 = vmatprep.subr.bf16.mxu0 0
    %6061 = vmatpush1.bf16.msra.mxu0 0
    %6062 = vmatprep.subr.bf16.mxu0 0
    %6063 = vmatpush1.bf16.msra.mxu0 0
    %6064 = vmatprep.subr.bf16.mxu0 0
    %6065 = vmatpush1.bf16.msra.mxu0 0
    %6066 = vmatprep.subr.bf16.mxu0 0
    %6067 = vmatpush1.bf16.msra.mxu0 0
    %6068 = vmatprep.subr.bf16.mxu0 0
    %6069 = vmatpush1.bf16.msra.mxu0 0
    %6070 = vmatprep.mubr.bf16.mxu0 0
    %6071 = vmatmul.mubr.bf16.gmra.mrb[0].mxu0 %v5790
    %v6072 = vpop.f32.mrb[0].mxu0
    %v6073 = vadd.f32 0.0, %v6072
    %v6074 = vpop.f32.mrb[0].mxu0
    %v6075 = vpop.f32.mrb[0].mxu0
    %v6076 = vpop.f32.mrb[0].mxu0
    %6077 = vdwg.mxu0
    %6078 = vmatprep.subr.bf16.mxu0 0
    %6079 = vmatpush1.bf16.msra.mxu0 %v1111
    %6080 = vmatprep.subr.bf16.mxu0 0
    %6081 = vmatpush1.bf16.msra.mxu0 %v1112
    %6082 = vmatprep.subr.bf16.mxu0 0
    %6083 = vmatpush1.bf16.msra.mxu0 0
    %6084 = vmatprep.subr.bf16.mxu0 0
    %6085 = vmatpush1.bf16.msra.mxu0 0
    %6086 = vmatprep.subr.bf16.mxu0 0
    %6087 = vmatpush1.bf16.msra.mxu0 0
    %6088 = vmatprep.subr.bf16.mxu0 0
    %6089 = vmatpush1.bf16.msra.mxu0 0
    %6090 = vmatprep.subr.bf16.mxu0 0
    %6091 = vmatpush1.bf16.msra.mxu0 0
    %6092 = vmatprep.subr.bf16.mxu0 0
    %6093 = vmatpush1.bf16.msra.mxu0 0
    %6094 = vmatprep.subr.bf16.mxu0 0
    %6095 = vmatpush1.bf16.msra.mxu0 0
    %6096 = vmatprep.subr.bf16.mxu0 0
    %6097 = vmatpush1.bf16.msra.mxu0 0
    %6098 = vmatprep.subr.bf16.mxu0 0
    %6099 = vmatpush1.bf16.msra.mxu0 0
    %6100 = vmatprep.subr.bf16.mxu0 0
    %6101 = vmatpush1.bf16.msra.mxu0 0
    %6102 = vmatprep.subr.bf16.mxu0 0
    %6103 = vmatpush1.bf16.msra.mxu0 0
    %6104 = vmatprep.subr.bf16.mxu0 0
    %6105 = vmatpush1.bf16.msra.mxu0 0
    %6106 = vmatprep.subr.bf16.mxu0 0
    %6107 = vmatpush1.bf16.msra.mxu0 0
    %6108 = vmatprep.subr.bf16.mxu0 0
    %6109 = vmatpush1.bf16.msra.mxu0 0
    %6110 = vmatprep.mubr.bf16.mxu0 0
    %6111 = vmatmul.mubr.bf16.gmra.mrb[0].mxu0 %v5833
    %v6112 = vpop.f32.mrb[0].mxu0
    %v6113 = vadd.f32 %v6073, %v6112
    %v6114 = vpop.f32.mrb[0].mxu0
    %v6115 = vpop.f32.mrb[0].mxu0
    %v6116 = vpop.f32.mrb[0].mxu0
    %6117 = vdwg.mxu0
    %v6118 = vadd.f32 %v6113, %v290
    %v6119 = vxor.u32 %v5875, 2147483648
    %v6120 = vmul.f32 %v6119, 1.442695
    %v6121 = vpow.pop %v6120
    %v6122 = vadd.f32 %v6121, 1.0
    %v6123 = vrcp.pop %v6122
    %v6124 = vmul.f32 1.0, %v6123
    %v6125 = vxor.u32 %v5956, 2147483648
    %v6126 = vmul.f32 %v6125, 1.442695
    %v6127 = vpow.pop %v6126
    %v6128 = vadd.f32 %v6127, 1.0
    %v6129 = vrcp.pop %v6128
    %v6130 = vmul.f32 1.0, %v6129
    %v6131 = vtanh.pop %v6037
    %v6132 = vxor.u32 %v6118, 2147483648
    %v6133 = vmul.f32 %v6132, 1.442695
    %v6134 = vpow.pop %v6133
    %v6135 = vadd.f32 %v6134, 1.0
    %v6136 = vrcp.pop %v6135
    %v6137 = vmul.f32 1.0, %v6136
    %v6138 = vmul.f32 %v6130, %v5431
    %v6139 = vmul.f32 %v6124, %v6131
    %v6140 = vadd.f32 %v6138, %v6139
    %v6141 = vtanh.pop %v6140
    %v6142 = vmul.f32 %v6137, %v6141
    %v6143 = vld [vmem:[%s9] sm:$0xff]
    %v6144 = vld [vmem:[%s9 + $0x8] sm:$0xff]
    %v6145 = vld [vmem:[%s9 + $0x10] sm:$0xff]
    %v6146 = vld [vmem:[%s9 + $0x18] sm:$0xff]
    %v6147 = vld [vmem:[%s10] sm:$0x1]
    %v6149 = vlaneseq
    %v6150 = vshrl.u32 %v6149, 7
    %v6151 = vsub.s32 0, %v6150
    %v6152 = vrot.slane %v6147, %v6151
    %v6155 = vsel %vm312, %v6142, 0
    %6157 = vmatprep.subr.mxu0 0.0
    %6158 = vmatpush1.msra.mxu0 %v6143
    %6159 = vmatprep.subr.mxu0 0.0
    %6160 = vmatpush1.msra.mxu0 %v6144
    %6161 = vmatprep.subr.mxu0 0.0
    %6162 = vmatpush1.msra.mxu0 %v6145
    %6163 = vmatprep.subr.mxu0 0.0
    %6164 = vmatpush1.msra.mxu0 %v6146
    %6165 = vmatprep.subr.mxu0 0.0
    %6166 = vmatpush1.msra.mxu0 0.0
    %6167 = vmatprep.subr.mxu0 0.0
    %6168 = vmatpush1.msra.mxu0 0.0
    %6169 = vmatprep.subr.mxu0 0.0
    %6170 = vmatpush1.msra.mxu0 0.0
    %6171 = vmatprep.subr.mxu0 0.0
    %6172 = vmatpush1.msra.mxu0 0.0
    %6173 = vmatprep.subr.mxu0 0.0
    %6174 = vmatpush1.msra.mxu0 0.0
    %6175 = vmatprep.subr.mxu0 0.0
    %6176 = vmatpush1.msra.mxu0 0.0
    %6177 = vmatprep.subr.mxu0 0.0
    %6178 = vmatpush1.msra.mxu0 0.0
    %6179 = vmatprep.subr.mxu0 0.0
    %6180 = vmatpush1.msra.mxu0 0.0
    %6181 = vmatprep.subr.mxu0 0.0
    %6182 = vmatpush1.msra.mxu0 0.0
    %6183 = vmatprep.subr.mxu0 0.0
    %6184 = vmatpush1.msra.mxu0 0.0
    %6185 = vmatprep.subr.mxu0 0.0
    %6186 = vmatpush1.msra.mxu0 0.0
    %6187 = vmatprep.subr.mxu0 0.0
    %6188 = vmatpush1.msra.mxu0 0.0
    %6189 = vmatprep.subr.mxu0 0.0
    %6190 = vmatpush1.msra.mxu0 0.0
    %6191 = vmatprep.subr.mxu0 0.0
    %6192 = vmatpush1.msra.mxu0 0.0
    %6193 = vmatprep.subr.mxu0 0.0
    %6194 = vmatpush1.msra.mxu0 0.0
    %6195 = vmatprep.subr.mxu0 0.0
    %6196 = vmatpush1.msra.mxu0 0.0
    %6197 = vmatprep.subr.mxu0 0.0
    %6198 = vmatpush1.msra.mxu0 0.0
    %6199 = vmatprep.subr.mxu0 0.0
    %6200 = vmatpush1.msra.mxu0 0.0
    %6201 = vmatprep.subr.mxu0 0.0
    %6202 = vmatpush1.msra.mxu0 0.0
    %6203 = vmatprep.subr.mxu0 0.0
    %6204 = vmatpush1.msra.mxu0 0.0
    %6205 = vmatprep.subr.mxu0 0.0
    %6206 = vmatpush1.msra.mxu0 0.0
    %6207 = vmatprep.subr.mxu0 0.0
    %6208 = vmatpush1.msra.mxu0 0.0
    %6209 = vmatprep.subr.mxu0 0.0
    %6210 = vmatpush1.msra.mxu0 0.0
    %6211 = vmatprep.subr.mxu0 0.0
    %6212 = vmatpush1.msra.mxu0 0.0
    %6213 = vmatprep.subr.mxu0 0.0
    %6214 = vmatpush1.msra.mxu0 0.0
    %6215 = vmatprep.subr.mxu0 0.0
    %6216 = vmatpush1.msra.mxu0 0.0
    %6217 = vmatprep.subr.mxu0 0.0
    %6218 = vmatpush1.msra.mxu0 0.0
    %6219 = vmatprep.subr.mxu0 0.0
    %6220 = vmatpush1.msra.mxu0 0.0
    %6221 = vmatprep.mubr.f32.mxu0 0.0
    %6222 = vmatmul.mubr.f32.gmra.mrb[0].mxu0 %v6155
    %v6223 = vpop.f32.mrb[0].mxu0
    %v6224 = vadd.f32 %v6152, %v6223
    %v6225 = vpop.f32.mrb[0].mxu0
    %6226 = vdwg.mxu0
    %6227 = vst [vmem:[#allocation17] sm:$0xff] %v6224
    // Predicated region
    $region82: #{tpu_custom_call.1} parent=1 // pred_check
      _
    $region83: #{tpu_custom_call.1} parent=1 // pred_check_branch
      %6229 = sbr.rel (0) target = $region85
    $region84: #{tpu_custom_call.1} parent=1 // pred_region
      %s6231 = ssub.s32 128, 128
      %6232 = vsyncadd [#allocation4], %s6231
      %s6234 = sshll.u32 [#allocation17], 4
      %s6235 = int_to_ptr.vmem [resolvable:$true] %s6234
      %6237 = dma.vmem_to_hbm [thread:$0]  %s6235, 128, %s11, [#allocation4]
    $region85: #{tpu_custom_call.1} parent=1 // pred_fallthru
      _
    // Predicated region
    $region86: #{tpu_custom_call.1} parent=1 // pred_check
      _
    $region87: #{tpu_custom_call.1} parent=1 // pred_check_branch
      %6239 = sbr.rel (0) target = $region89
    $region88: #{tpu_custom_call.1} parent=1 // pred_region
      %6240 = dma.done [#allocation4], 128
    $region89: #{tpu_custom_call.1} parent=1 // pred_fallthru
      _
    %6241 = vsyncpa [#allocation3], 1
    %6242 = vsyncpa [#allocation6], 1
    %6243 = vsyncpa [#allocation9], 1
    %6244 = vsyncpa [#allocation12], 1
    %6245 = vsyncpa [#allocation15], 1
    %6246 = vsyncpa [#allocation4], 1

</llo_original>
